<compile_context>
chip_gen: v7x
topology: tpu7x:2x2x1
jax: 0.10.0
libtpu: 0.0.40
codegen_flags: <defaults>
</compile_context>

<pallas_src>
import functools

import jax
import jax.numpy as jnp
from jax import lax
from jax.experimental import pallas as pl
from jax.experimental.pallas import tpu as pltpu


# --------------------------------------------------------------------------------------
# Helpers
# --------------------------------------------------------------------------------------
@functools.lru_cache(maxsize=None)
def _vmem_limit():
    """Scoped-VMEM cap: half of physical, clamped to [32, 96] MiB (v7x-aware)."""
    try:
        cap = int(getattr(pltpu.get_tpu_info(), "vmem_capacity_bytes", 128 * 1024 * 1024))
    except Exception:
        cap = 128 * 1024 * 1024
    return int(max(32 * 1024 * 1024, min(cap // 2, 96 * 1024 * 1024)))


def _pick_th(hout, wout, per_out_row_bytes, budget=3 * 1024 * 1024):
    """Largest row-tile th (divisor of hout, th*wout % 8 == 0 or full) within the budget."""
    cands = [t for t in range(1, hout + 1)
             if hout % t == 0 and ((t * wout) % 8 == 0 or t == hout)]
    fitting = [t for t in cands if t * per_out_row_bytes <= budget]
    return max(fitting) if fitting else min(cands)


def _bn_scale_shift(b, eps=1e-5):
    scale = b["gamma"] / jnp.sqrt(b["var"] + eps)
    shift = b["beta"] - b["mean"] * scale
    return scale.reshape(1, -1), shift.reshape(1, -1)


def _fold_conv_w(w_oihw, scale_row):
    """PyTorch (Cout,Cin,K,K) -> (K*K, Cin, Cout) per-tap weights, BN scale folded, bf16."""
    cout, cin, kh, kw = w_oihw.shape
    w = jnp.transpose(w_oihw, (2, 3, 1, 0)).reshape(kh * kw, cin, cout)
    return (w * scale_row).astype(jnp.bfloat16)


# --------------------------------------------------------------------------------------
# Pallas kernels
# --------------------------------------------------------------------------------------
def _conv_bn_kernel(*refs, s, th, wout, cin, cout, relu, with_stats):
    """3x3 conv (as 9 accumulating MXU dots over stride-1 phases) + BN shift (+ReLU)
    (+ per-tile avg/max pooling partials).  Input refs: main rows, `hal` 1-row halos,
    per-tap weights (9,Cin,Cout), BN shift (1,Cout).  Scratch: assembled x slab."""
    hal = 2 // s
    xm_ref = refs[0]
    halo_refs = refs[1:1 + hal]
    w_ref = refs[1 + hal]
    shift_ref = refs[2 + hal]
    out_ref = refs[3 + hal]
    stats_ref = refs[4 + hal] if with_stats else None
    xbuf = refs[-1]                               # VMEM scratch (P, th+hal, Wph, Cin)

    # Assemble the contiguous (rows+halo) slab once in VMEM.
    xbuf[:, :th] = xm_ref[0]
    for k, h_ref in enumerate(halo_refs):
        xbuf[:, th + k] = h_ref[0, :, 0]

    acc = jnp.zeros((th * wout, cout), jnp.float32)
    for dy in range(3):
        for dx in range(3):
            p = (dy % s) * s + (dx % s)           # phase index (0 when s == 1)
            oy, ox = dy // s, dx // s
            xs = xbuf[p, oy:oy + th, ox:ox + wout, :]          # (th, wout, cin) bf16
            acc = acc + jnp.dot(xs.reshape(th * wout, cin), w_ref[dy * 3 + dx],
                                preferred_element_type=jnp.float32)

    y = acc + shift_ref[...]
    if relu:
        y = jnp.maximum(y, 0.0)
    out_ref[0] = y.astype(out_ref.dtype)

    if with_stats:
        stats_ref[0, 0, 0:1, :] = jnp.sum(y, axis=0, keepdims=True)
        stats_ref[0, 0, 1:2, :] = jnp.max(y, axis=0, keepdims=True)


def _apply_proj_kernel(x_ref, attn_ref, res_ref, scw_ref, scsh_ref, o_ref):
    """attn * out2 + (1x1 conv + BN shortcut, folded) + ReLU."""
    res = jnp.dot(res_ref[0], scw_ref[...], preferred_element_type=jnp.float32)
    res = res + scsh_ref[...]
    y = x_ref[0].astype(jnp.float32) * attn_ref[0] + res
    o_ref[0] = jnp.maximum(y, 0.0).astype(o_ref.dtype)


def _apply_id_kernel(x_ref, attn_ref, res_ref, o_ref):
    """attn * out2 + identity shortcut + ReLU."""
    y = x_ref[0].astype(jnp.float32) * attn_ref[0] + res_ref[0].astype(jnp.float32)
    o_ref[0] = jnp.maximum(y, 0.0).astype(o_ref.dtype)


# --------------------------------------------------------------------------------------
# pallas_call builders
# --------------------------------------------------------------------------------------
def conv_bn(xph, w9, shift, *, s, hout, wout, relu, with_stats, out_dtype):
    """xph: (N, s*s, Hout+hal, Wout+hal, Cin) bf16 phases; returns (N, Hout*Wout, Cout)
    (+ (N, Tiles, 2, Cout) pooling partials when with_stats)."""
    n, P, hph, wph, cin = xph.shape
    cout = w9.shape[-1]
    hal = 2 // s
    per_row = P * wph * cin * xph.dtype.itemsize + wout * cout * jnp.dtype(out_dtype).itemsize
    th = _pick_th(hout, wout, per_row)
    tm = th * wout
    n_t = hout // th

    in_specs = [pl.BlockSpec((1, P, th, wph, cin), lambda i, j: (i, 0, j, 0, 0))]
    for k in range(hal):  # 1-row halo blocks (same array passed again)
        in_specs.append(
            pl.BlockSpec((1, P, 1, wph, cin),
                         lambda i, j, k=k: (i, 0, (j + 1) * th + k, 0, 0)))
    in_specs += [
        pl.BlockSpec((9, cin, cout), lambda i, j: (0, 0, 0)),
        pl.BlockSpec((1, cout), lambda i, j: (0, 0)),
    ]

    out_shape = [jax.ShapeDtypeStruct((n, hout * wout, cout), out_dtype)]
    out_specs = [pl.BlockSpec((1, tm, cout), lambda i, j: (i, j, 0))]
    if with_stats:
        out_shape.append(jax.ShapeDtypeStruct((n, n_t, 2, cout), jnp.float32))
        out_specs.append(pl.BlockSpec((1, 1, 2, cout), lambda i, j: (i, j, 0, 0)))

    kern = functools.partial(_conv_bn_kernel, s=s, th=th, wout=wout, cin=cin,
                             cout=cout, relu=relu, with_stats=with_stats)
    return pl.pallas_call(
        kern,
        out_shape=tuple(out_shape) if with_stats else out_shape[0],
        grid=(n, n_t),
        in_specs=in_specs,
        out_specs=tuple(out_specs) if with_stats else out_specs[0],
        scratch_shapes=[pltpu.VMEM((P, th + hal, wph, cin), xph.dtype)],
        compiler_params=pltpu.CompilerParams(
            dimension_semantics=("parallel", "parallel"),
            vmem_limit_bytes=_vmem_limit()),
    )(xph, *([xph] * hal), w9, shift)


def attn_apply(out2, attn, res_src, scw, scsh, *, hout, wout):
    """out2: (N,M,C) bf16, attn: (N,1,C) f32, res_src: (N,M,Cres) bf16.
    scw/scsh given -> projection shortcut is fused; None -> identity shortcut."""
    n, m, cout = out2.shape
    cin = res_src.shape[-1]
    use_sc = scw is not None
    per_row = wout * (out2.dtype.itemsize * cout + res_src.dtype.itemsize * cin + 4 * cout)
    th = _pick_th(hout, wout, per_row)
    tm = th * wout

    in_specs = [
        pl.BlockSpec((1, tm, cout), lambda i, j: (i, j, 0)),
        pl.BlockSpec((1, 1, cout), lambda i, j: (i, 0, 0)),
        pl.BlockSpec((1, tm, cin), lambda i, j: (i, j, 0)),
    ]
    args = [out2, attn, res_src]
    if use_sc:
        in_specs += [pl.BlockSpec((cin, cout), lambda i, j: (0, 0)),
                     pl.BlockSpec((1, cout), lambda i, j: (0, 0))]
        args += [scw, scsh]
        kern = _apply_proj_kernel
    else:
        kern = _apply_id_kernel

    return pl.pallas_call(
        kern,
        out_shape=jax.ShapeDtypeStruct((n, m, cout), jnp.float32),
        grid=(n, hout // th),
        in_specs=in_specs,
        out_specs=pl.BlockSpec((1, tm, cout), lambda i, j: (i, j, 0)),
        compiler_params=pltpu.CompilerParams(
            dimension_semantics=("parallel", "parallel"),
            vmem_limit_bytes=_vmem_limit()),
    )(*args)


# --------------------------------------------------------------------------------------
# Forward pass (wrapper)
# --------------------------------------------------------------------------------------
@functools.partial(jax.jit, static_argnames=("stride",))
def residual_block_forward(x_nchw, p, *, stride):
    assert stride in (1, 2), "Pallas path implements stride 1 and 2"
    x = jnp.transpose(x_nchw, (0, 2, 3, 1)).astype(jnp.float32)   # NCHW -> NHWC (boundary)
    n, h, w, cin = x.shape
    cout = p["conv1_w"].shape[0]
    hout = (h - 1) // stride + 1
    wout = (w - 1) // stride + 1

    sc1, sh1 = _bn_scale_shift(p["bn1"])
    sc2, sh2 = _bn_scale_shift(p["bn2"])

    # ---- conv1 + bn1 + relu ----------------------------------------------------------
    xb = x.astype(jnp.bfloat16)
    xp = jnp.pad(xb, ((0, 0), (1, stride), (1, stride), (0, 0)))   # pad=1 (+1 extra for s=2 phases)
    if stride == 1:
        xph = xp[:, None]                                          # (N,1,H+2,W+2,Cin), free reshape
    else:  # stride 2: space-to-depth phases -> stride-1 taps inside the kernel
        phs = [xp[:, a::2, b::2, :][:, :hout + 1, :wout + 1, :]
               for a in range(2) for b in range(2)]
        xph = jnp.stack(phs, axis=1)                               # (N,4,Hout+1,Wout+1,Cin)
    out1 = conv_bn(xph, _fold_conv_w(p["conv1_w"], sc1), sh1, s=stride,
                   hout=hout, wout=wout, relu=True, with_stats=False,
                   out_dtype=jnp.bfloat16)
    # TODO(synk): nn.Dropout2d is identity in eval mode; training-mode stochastic channel
    # dropout is not implemented.

    # ---- conv2 + bn2 + fused avg/max pooling partials ---------------------------------
    out1p = jnp.pad(out1.reshape(n, hout, wout, cout),
                    ((0, 0), (1, 1), (1, 1), (0, 0)))[:, None]     # (N,1,Hout+2,Wout+2,C)
    out2, stats = conv_bn(out1p, _fold_conv_w(p["conv2_w"], sc2), sh2, s=1,
                          hout=hout, wout=wout, relu=False, with_stats=True,
                          out_dtype=jnp.bfloat16)

    # ---- channel attention vector (tiny -> plain JAX, f32) -----------------------------
    m2 = hout * wout
    avg = jnp.sum(stats[:, :, 0, :], axis=1) / float(m2)           # (N, C)
    mx = jnp.max(stats[:, :, 1, :], axis=1)                        # (N, C)
    w_a1 = p["attn_w1"][:, :, 0, 0]                                # (Chid, C)
    w_a2 = p["attn_w2"][:, :, 0, 0]                                # (C, Chid)

    def fc(v):
        return jnp.maximum(v @ w_a1.T, 0.0) @ w_a2.T

    attn = jax.nn.sigmoid(fc(avg) + fc(mx))[:, None, :]            # (N, 1, C) f32

    # ---- attn*out2 + shortcut + relu ---------------------------------------------------
    use_sc = (stride != 1) or (cin != cout)
    if use_sc:
        scs, scsh = _bn_scale_shift(p["bn_sc"])
        scw = (p["sc_w"][:, :, 0, 0].T * scs).astype(jnp.bfloat16)           # (Cin, Cout)
        res_src = xb[:, ::stride, ::stride, :].reshape(n, m2, cin)
        out = attn_apply(out2, attn, res_src, scw, scsh, hout=hout, wout=wout)
    else:
        res_src = xb.reshape(n, m2, cin)
        out = attn_apply(out2, attn, res_src, None, None, hout=hout, wout=wout)

    return jnp.transpose(out.reshape(n, hout, wout, cout), (0, 3, 1, 2))     # back to NCHW


# --------------------------------------------------------------------------------------
# Deterministic parameter init (shapes from ResidualBlock.__init__, eval-mode BN stats)
# --------------------------------------------------------------------------------------
def init_params(key, cin, cout, reduction=16):
    ks = jax.random.split(key, 8)
    chid = max(cout // reduction, 1)
    p = {}
    p["conv1_w"] = jax.random.normal(ks[0], (cout, cin, 3, 3), jnp.float32) * 0.1
    p["conv2_w"] = jax.random.normal(ks[1], (cout, cout, 3, 3), jnp.float32) * 0.1
    p["sc_w"] = jax.random.normal(ks[2], (cout, cin, 1, 1), jnp.float32) * 0.1
    p["attn_w1"] = jax.random.normal(ks[3], (chid, cout, 1, 1), jnp.float32) * 0.1
    p["attn_w2"] = jax.random.normal(ks[4], (cout, chid, 1, 1), jnp.float32) * 0.1

    def bn(k):
        k1, k2, k3, k4 = jax.random.split(k, 4)
        return dict(
            gamma=jax.random.uniform(k1, (cout,), jnp.float32, 0.5, 1.5),
            beta=jax.random.normal(k2, (cout,), jnp.float32) * 0.1,
            mean=jax.random.normal(k3, (cout,), jnp.float32) * 0.1,
            var=jax.random.uniform(k4, (cout,), jnp.float32, 0.5, 1.5),
        )

    p["bn1"], p["bn2"], p["bn_sc"] = bn(ks[5]), bn(ks[6]), bn(ks[7])
    return p


# --------------------------------------------------------------------------------------
# Pure-JAX reference (f32, HIGHEST precision) for correctness check
# --------------------------------------------------------------------------------------
def reference_forward(x_nchw, p, stride):
    x = jnp.transpose(x_nchw, (0, 2, 3, 1))

    def conv(xx, w_oihw, s, pad):
        w = jnp.transpose(w_oihw, (2, 3, 1, 0))
        return lax.conv_general_dilated(
            xx, w, (s, s), [(pad, pad), (pad, pad)],
            dimension_numbers=("NHWC", "HWIO", "NHWC"),
            precision=lax.Precision.HIGHEST)

    def bn(xx, b):
        return (xx - b["mean"]) / jnp.sqrt(b["var"] + 1e-5) * b["gamma"] + b["beta"]

    cin = x.shape[-1]
    cout = p["conv1_w"].shape[0]
    if stride != 1 or cin != cout:
        res = bn(conv(x, p["sc_w"], stride, 0), p["bn_sc"])
    else:
        res = x
    out = jnp.maximum(bn(conv(x, p["conv1_w"], stride, 1), p["bn1"]), 0.0)
    out = bn(conv(out, p["conv2_w"], 1, 1), p["bn2"])

    w1 = p["attn_w1"][:, :, 0, 0]   # (Chid, C)
    w2 = p["attn_w2"][:, :, 0, 0]   # (C, Chid)
    avg = jnp.mean(out, axis=(1, 2))
    mx = jnp.max(out, axis=(1, 2))

    def fc(v):
        h = jnp.maximum(jnp.einsum("nc,hc->nh", v, w1, precision=lax.Precision.HIGHEST), 0.0)
        return jnp.einsum("nh,ch->nc", h, w2, precision=lax.Precision.HIGHEST)

    attn = jax.nn.sigmoid(fc(avg) + fc(mx))
    out = jnp.maximum(out * attn[:, None, None, :] + res, 0.0)
    return jnp.transpose(out, (0, 3, 1, 2))


if __name__ == "__main__":
    key = jax.random.PRNGKey(0)
    configs = [
        dict(n=2, cin=32, cout=32, h=16, w=16, stride=1),   # identity shortcut
        dict(n=2, cin=16, cout=32, h=16, w=16, stride=2),   # projection shortcut + strided conv
    ]
    for cfg in configs:
        key, kx, kp = jax.random.split(key, 3)
        x = jax.random.normal(kx, (cfg["n"], cfg["cin"], cfg["h"], cfg["w"]), jnp.float32)
        params = init_params(kp, cfg["cin"], cfg["cout"])

        out = residual_block_forward(x, params, stride=cfg["stride"])
        out = jax.block_until_ready(out)

        ref = reference_forward(x, params, cfg["stride"])
        hout = (cfg["h"] - 1) // cfg["stride"] + 1
        wout = (cfg["w"] - 1) // cfg["stride"] + 1
        assert out.shape == ref.shape == (cfg["n"], cfg["cout"], hout, wout), (out.shape, ref.shape)
        max_err = float(jnp.max(jnp.abs(out - ref)))
        # bf16 activations/weights with f32 accumulation -> loose absolute tolerance.
        if max_err > 2.5e-1:
            raise AssertionError(
                f"Pallas output mismatch vs reference (stride={cfg['stride']}): "
                f"max abs err = {max_err}")

    print("KERNEL_OK")
</pallas_src>

<mosaic_0001>
module attributes {stable_mosaic.version = 11 : i64} {
  func.func @_conv_bn_kernel(%arg0: i32, %arg1: i32, %arg2: memref<1x1x16x18x32xbf16, #tpu.memory_space<vmem>>, %arg3: memref<1x1x1x18x32xbf16, #tpu.memory_space<vmem>>, %arg4: memref<1x1x1x18x32xbf16, #tpu.memory_space<vmem>>, %arg5: memref<9x32x32xbf16, #tpu.memory_space<vmem>>, %arg6: memref<1x32xf32, #tpu.memory_space<vmem>>, %arg7: memref<1x256x32xbf16, #tpu.memory_space<vmem>>, %arg8: memref<1x18x18x32xbf16, #tpu.memory_space<vmem>>) attributes {dimension_semantics = [#tpu.dimension_semantics<parallel>, #tpu.dimension_semantics<parallel>], iteration_bounds = array<i64: 2, 1>, scalar_prefetch = 0 : i64, scratch_operands = 1 : i64, tpu.core_type = #tpu.core_type<tc>, window_params = [{transform_indices = @transform_0, window_bounds = array<i64: 1, 1, 16, 18, 32>}, {transform_indices = @transform_1, window_bounds = array<i64: 1, 1, 1, 18, 32>}, {transform_indices = @transform_2, window_bounds = array<i64: 1, 1, 1, 18, 32>}, {pipeline_mode = #tpu.pipeline_mode<synchronous>, transform_indices = @transform_3, window_bounds = array<i64: 9, 32, 32>}, {pipeline_mode = #tpu.pipeline_mode<synchronous>, transform_indices = @transform_4, window_bounds = array<i64: 1, 32>}, {transform_indices = @transform_5, window_bounds = array<i64: 1, 256, 32>}]} {
    %c0 = arith.constant 0 : index
    %c0_0 = arith.constant 0 : index
    %c0_1 = arith.constant 0 : index
    %c0_2 = arith.constant 0 : index
    %c0_3 = arith.constant 0 : index
    %0 = vector.load %arg2[%c0, %c0_0, %c0_1, %c0_2, %c0_3] : memref<1x1x16x18x32xbf16, #tpu.memory_space<vmem>>, vector<1x1x16x18x32xbf16>
    %1 = vector.shape_cast %0 : vector<1x1x16x18x32xbf16> to vector<1x16x18x32xbf16>
    %c0_4 = arith.constant 0 : index
    %c0_5 = arith.constant 0 : index
    %c0_6 = arith.constant 0 : index
    %c0_7 = arith.constant 0 : index
    %2 = vector.load %arg8[%c0_4, %c0_5, %c0_6, %c0_7] : memref<1x18x18x32xbf16, #tpu.memory_space<vmem>>, vector<1x16x18x32xbf16>
    tpu.vector_store %arg8[%c0_4, %c0_5, %c0_6, %c0_7], %1 {strides = array<i32>} : memref<1x18x18x32xbf16, #tpu.memory_space<vmem>>, vector<1x16x18x32xbf16>,
    %c0_8 = arith.constant 0 : index
    %c0_9 = arith.constant 0 : index
    %c0_10 = arith.constant 0 : index
    %c0_11 = arith.constant 0 : index
    %c0_12 = arith.constant 0 : index
    %3 = vector.load %arg3[%c0_8, %c0_9, %c0_10, %c0_11, %c0_12] : memref<1x1x1x18x32xbf16, #tpu.memory_space<vmem>>, vector<1x1x1x18x32xbf16>
    %4 = vector.shape_cast %3 : vector<1x1x1x18x32xbf16> to vector<1x18x32xbf16>
    %c0_13 = arith.constant 0 : index
    %c16 = arith.constant 16 : index
    %c0_14 = arith.constant 0 : index
    %c0_15 = arith.constant 0 : index
    %5 = vector.load %arg8[%c0_13, %c16, %c0_14, %c0_15] : memref<1x18x18x32xbf16, #tpu.memory_space<vmem>>, vector<1x1x18x32xbf16>
    %6 = vector.shape_cast %5 : vector<1x1x18x32xbf16> to vector<1x18x32xbf16>
    %7 = vector.shape_cast %4 : vector<1x18x32xbf16> to vector<1x1x18x32xbf16>
    tpu.vector_store %arg8[%c0_13, %c16, %c0_14, %c0_15], %7 {strides = array<i32>} : memref<1x18x18x32xbf16, #tpu.memory_space<vmem>>, vector<1x1x18x32xbf16>,
    %c0_16 = arith.constant 0 : index
    %c0_17 = arith.constant 0 : index
    %c0_18 = arith.constant 0 : index
    %c0_19 = arith.constant 0 : index
    %c0_20 = arith.constant 0 : index
    %8 = vector.load %arg4[%c0_16, %c0_17, %c0_18, %c0_19, %c0_20] : memref<1x1x1x18x32xbf16, #tpu.memory_space<vmem>>, vector<1x1x1x18x32xbf16>
    %9 = vector.shape_cast %8 : vector<1x1x1x18x32xbf16> to vector<1x18x32xbf16>
    %c0_21 = arith.constant 0 : index
    %c17 = arith.constant 17 : index
    %c0_22 = arith.constant 0 : index
    %c0_23 = arith.constant 0 : index
    %10 = vector.load %arg8[%c0_21, %c17, %c0_22, %c0_23] : memref<1x18x18x32xbf16, #tpu.memory_space<vmem>>, vector<1x1x18x32xbf16>
    %11 = vector.shape_cast %10 : vector<1x1x18x32xbf16> to vector<1x18x32xbf16>
    %12 = vector.shape_cast %9 : vector<1x18x32xbf16> to vector<1x1x18x32xbf16>
    tpu.vector_store %arg8[%c0_21, %c17, %c0_22, %c0_23], %12 {strides = array<i32>} : memref<1x18x18x32xbf16, #tpu.memory_space<vmem>>, vector<1x1x18x32xbf16>,
    %cst = arith.constant 0.000000e+00 : f32
    %13 = vector.broadcast %cst : f32 to vector<256x32xf32>
    %c0_24 = arith.constant 0 : index
    %c0_25 = arith.constant 0 : index
    %c0_26 = arith.constant 0 : index
    %c0_27 = arith.constant 0 : index
    %14 = vector.load %arg8[%c0_24, %c0_25, %c0_26, %c0_27] : memref<1x18x18x32xbf16, #tpu.memory_space<vmem>>, vector<1x16x16x32xbf16>
    %15 = vector.shape_cast %14 : vector<1x16x16x32xbf16> to vector<16x16x32xbf16>
    %16 = vector.shape_cast %15 : vector<16x16x32xbf16> to vector<256x32xbf16>
    %c0_28 = arith.constant 0 : index
    %c0_29 = arith.constant 0 : index
    %c0_30 = arith.constant 0 : index
    %17 = vector.load %arg5[%c0_28, %c0_29, %c0_30] : memref<9x32x32xbf16, #tpu.memory_space<vmem>>, vector<1x32x32xbf16>
    %18 = vector.shape_cast %17 : vector<1x32x32xbf16> to vector<32x32xbf16>
    %cst_31 = arith.constant dense<0.000000e+00> : vector<256x32xf32>
    %19 = tpu.matmul %16, %18, %cst_31 {dimension_numbers = #tpu.dot_dimension_numbers<[1], [0], [0], [1], [0, 0, 1, 1], [], []>} : vector<256x32xbf16>, vector<32x32xbf16>, vector<256x32xf32> -> vector<256x32xf32>
    %20 = arith.addf %13, %19 : vector<256x32xf32>
    %c0_32 = arith.constant 0 : index
    %c0_33 = arith.constant 0 : index
    %c1 = arith.constant 1 : index
    %c0_34 = arith.constant 0 : index
    %21 = vector.load %arg8[%c0_32, %c0_33, %c1, %c0_34] : memref<1x18x18x32xbf16, #tpu.memory_space<vmem>>, vector<1x16x16x32xbf16>
    %22 = vector.shape_cast %21 : vector<1x16x16x32xbf16> to vector<16x16x32xbf16>
    %23 = vector.shape_cast %22 : vector<16x16x32xbf16> to vector<256x32xbf16>
    %c1_35 = arith.constant 1 : index
    %c0_36 = arith.constant 0 : index
    %c0_37 = arith.constant 0 : index
    %24 = vector.load %arg5[%c1_35, %c0_36, %c0_37] : memref<9x32x32xbf16, #tpu.memory_space<vmem>>, vector<1x32x32xbf16>
    %25 = vector.shape_cast %24 : vector<1x32x32xbf16> to vector<32x32xbf16>
    %cst_38 = arith.constant dense<0.000000e+00> : vector<256x32xf32>
    %26 = tpu.matmul %23, %25, %cst_38 {dimension_numbers = #tpu.dot_dimension_numbers<[1], [0], [0], [1], [0, 0, 1, 1], [], []>} : vector<256x32xbf16>, vector<32x32xbf16>, vector<256x32xf32> -> vector<256x32xf32>
    %27 = arith.addf %20, %26 : vector<256x32xf32>
    %c0_39 = arith.constant 0 : index
    %c0_40 = arith.constant 0 : index
    %c2 = arith.constant 2 : index
    %c0_41 = arith.constant 0 : index
    %28 = vector.load %arg8[%c0_39, %c0_40, %c2, %c0_41] : memref<1x18x18x32xbf16, #tpu.memory_space<vmem>>, vector<1x16x16x32xbf16>
    %29 = vector.shape_cast %28 : vector<1x16x16x32xbf16> to vector<16x16x32xbf16>
    %30 = vector.shape_cast %29 : vector<16x16x32xbf16> to vector<256x32xbf16>
    %c2_42 = arith.constant 2 : index
    %c0_43 = arith.constant 0 : index
    %c0_44 = arith.constant 0 : index
    %31 = vector.load %arg5[%c2_42, %c0_43, %c0_44] : memref<9x32x32xbf16, #tpu.memory_space<vmem>>, vector<1x32x32xbf16>
    %32 = vector.shape_cast %31 : vector<1x32x32xbf16> to vector<32x32xbf16>
    %cst_45 = arith.constant dense<0.000000e+00> : vector<256x32xf32>
    %33 = tpu.matmul %30, %32, %cst_45 {dimension_numbers = #tpu.dot_dimension_numbers<[1], [0], [0], [1], [0, 0, 1, 1], [], []>} : vector<256x32xbf16>, vector<32x32xbf16>, vector<256x32xf32> -> vector<256x32xf32>
    %34 = arith.addf %27, %33 : vector<256x32xf32>
    %c0_46 = arith.constant 0 : index
    %c1_47 = arith.constant 1 : index
    %c0_48 = arith.constant 0 : index
    %c0_49 = arith.constant 0 : index
    %35 = vector.load %arg8[%c0_46, %c1_47, %c0_48, %c0_49] : memref<1x18x18x32xbf16, #tpu.memory_space<vmem>>, vector<1x16x16x32xbf16>
    %36 = vector.shape_cast %35 : vector<1x16x16x32xbf16> to vector<16x16x32xbf16>
    %37 = vector.shape_cast %36 : vector<16x16x32xbf16> to vector<256x32xbf16>
    %c3 = arith.constant 3 : index
    %c0_50 = arith.constant 0 : index
    %c0_51 = arith.constant 0 : index
    %38 = vector.load %arg5[%c3, %c0_50, %c0_51] : memref<9x32x32xbf16, #tpu.memory_space<vmem>>, vector<1x32x32xbf16>
    %39 = vector.shape_cast %38 : vector<1x32x32xbf16> to vector<32x32xbf16>
    %cst_52 = arith.constant dense<0.000000e+00> : vector<256x32xf32>
    %40 = tpu.matmul %37, %39, %cst_52 {dimension_numbers = #tpu.dot_dimension_numbers<[1], [0], [0], [1], [0, 0, 1, 1], [], []>} : vector<256x32xbf16>, vector<32x32xbf16>, vector<256x32xf32> -> vector<256x32xf32>
    %41 = arith.addf %34, %40 : vector<256x32xf32>
    %c0_53 = arith.constant 0 : index
    %c1_54 = arith.constant 1 : index
    %c1_55 = arith.constant 1 : index
    %c0_56 = arith.constant 0 : index
    %42 = vector.load %arg8[%c0_53, %c1_54, %c1_55, %c0_56] : memref<1x18x18x32xbf16, #tpu.memory_space<vmem>>, vector<1x16x16x32xbf16>
    %43 = vector.shape_cast %42 : vector<1x16x16x32xbf16> to vector<16x16x32xbf16>
    %44 = vector.shape_cast %43 : vector<16x16x32xbf16> to vector<256x32xbf16>
    %c4 = arith.constant 4 : index
    %c0_57 = arith.constant 0 : index
    %c0_58 = arith.constant 0 : index
    %45 = vector.load %arg5[%c4, %c0_57, %c0_58] : memref<9x32x32xbf16, #tpu.memory_space<vmem>>, vector<1x32x32xbf16>
    %46 = vector.shape_cast %45 : vector<1x32x32xbf16> to vector<32x32xbf16>
    %cst_59 = arith.constant dense<0.000000e+00> : vector<256x32xf32>
    %47 = tpu.matmul %44, %46, %cst_59 {dimension_numbers = #tpu.dot_dimension_numbers<[1], [0], [0], [1], [0, 0, 1, 1], [], []>} : vector<256x32xbf16>, vector<32x32xbf16>, vector<256x32xf32> -> vector<256x32xf32>
    %48 = arith.addf %41, %47 : vector<256x32xf32>
    %c0_60 = arith.constant 0 : index
    %c1_61 = arith.constant 1 : index
    %c2_62 = arith.constant 2 : index
    %c0_63 = arith.constant 0 : index
    %49 = vector.load %arg8[%c0_60, %c1_61, %c2_62, %c0_63] : memref<1x18x18x32xbf16, #tpu.memory_space<vmem>>, vector<1x16x16x32xbf16>
    %50 = vector.shape_cast %49 : vector<1x16x16x32xbf16> to vector<16x16x32xbf16>
    %51 = vector.shape_cast %50 : vector<16x16x32xbf16> to vector<256x32xbf16>
    %c5 = arith.constant 5 : index
    %c0_64 = arith.constant 0 : index
    %c0_65 = arith.constant 0 : index
    %52 = vector.load %arg5[%c5, %c0_64, %c0_65] : memref<9x32x32xbf16, #tpu.memory_space<vmem>>, vector<1x32x32xbf16>
    %53 = vector.shape_cast %52 : vector<1x32x32xbf16> to vector<32x32xbf16>
    %cst_66 = arith.constant dense<0.000000e+00> : vector<256x32xf32>
    %54 = tpu.matmul %51, %53, %cst_66 {dimension_numbers = #tpu.dot_dimension_numbers<[1], [0], [0], [1], [0, 0, 1, 1], [], []>} : vector<256x32xbf16>, vector<32x32xbf16>, vector<256x32xf32> -> vector<256x32xf32>
    %55 = arith.addf %48, %54 : vector<256x32xf32>
    %c0_67 = arith.constant 0 : index
    %c2_68 = arith.constant 2 : index
    %c0_69 = arith.constant 0 : index
    %c0_70 = arith.constant 0 : index
    %56 = vector.load %arg8[%c0_67, %c2_68, %c0_69, %c0_70] : memref<1x18x18x32xbf16, #tpu.memory_space<vmem>>, vector<1x16x16x32xbf16>
    %57 = vector.shape_cast %56 : vector<1x16x16x32xbf16> to vector<16x16x32xbf16>
    %58 = vector.shape_cast %57 : vector<16x16x32xbf16> to vector<256x32xbf16>
    %c6 = arith.constant 6 : index
    %c0_71 = arith.constant 0 : index
    %c0_72 = arith.constant 0 : index
    %59 = vector.load %arg5[%c6, %c0_71, %c0_72] : memref<9x32x32xbf16, #tpu.memory_space<vmem>>, vector<1x32x32xbf16>
    %60 = vector.shape_cast %59 : vector<1x32x32xbf16> to vector<32x32xbf16>
    %cst_73 = arith.constant dense<0.000000e+00> : vector<256x32xf32>
    %61 = tpu.matmul %58, %60, %cst_73 {dimension_numbers = #tpu.dot_dimension_numbers<[1], [0], [0], [1], [0, 0, 1, 1], [], []>} : vector<256x32xbf16>, vector<32x32xbf16>, vector<256x32xf32> -> vector<256x32xf32>
    %62 = arith.addf %55, %61 : vector<256x32xf32>
    %c0_74 = arith.constant 0 : index
    %c2_75 = arith.constant 2 : index
    %c1_76 = arith.constant 1 : index
    %c0_77 = arith.constant 0 : index
    %63 = vector.load %arg8[%c0_74, %c2_75, %c1_76, %c0_77] : memref<1x18x18x32xbf16, #tpu.memory_space<vmem>>, vector<1x16x16x32xbf16>
    %64 = vector.shape_cast %63 : vector<1x16x16x32xbf16> to vector<16x16x32xbf16>
    %65 = vector.shape_cast %64 : vector<16x16x32xbf16> to vector<256x32xbf16>
    %c7 = arith.constant 7 : index
    %c0_78 = arith.constant 0 : index
    %c0_79 = arith.constant 0 : index
    %66 = vector.load %arg5[%c7, %c0_78, %c0_79] : memref<9x32x32xbf16, #tpu.memory_space<vmem>>, vector<1x32x32xbf16>
    %67 = vector.shape_cast %66 : vector<1x32x32xbf16> to vector<32x32xbf16>
    %cst_80 = arith.constant dense<0.000000e+00> : vector<256x32xf32>
    %68 = tpu.matmul %65, %67, %cst_80 {dimension_numbers = #tpu.dot_dimension_numbers<[1], [0], [0], [1], [0, 0, 1, 1], [], []>} : vector<256x32xbf16>, vector<32x32xbf16>, vector<256x32xf32> -> vector<256x32xf32>
    %69 = arith.addf %62, %68 : vector<256x32xf32>
    %c0_81 = arith.constant 0 : index
    %c2_82 = arith.constant 2 : index
    %c2_83 = arith.constant 2 : index
    %c0_84 = arith.constant 0 : index
    %70 = vector.load %arg8[%c0_81, %c2_82, %c2_83, %c0_84] : memref<1x18x18x32xbf16, #tpu.memory_space<vmem>>, vector<1x16x16x32xbf16>
    %71 = vector.shape_cast %70 : vector<1x16x16x32xbf16> to vector<16x16x32xbf16>
    %72 = vector.shape_cast %71 : vector<16x16x32xbf16> to vector<256x32xbf16>
    %c8 = arith.constant 8 : index
    %c0_85 = arith.constant 0 : index
    %c0_86 = arith.constant 0 : index
    %73 = vector.load %arg5[%c8, %c0_85, %c0_86] : memref<9x32x32xbf16, #tpu.memory_space<vmem>>, vector<1x32x32xbf16>
    %74 = vector.shape_cast %73 : vector<1x32x32xbf16> to vector<32x32xbf16>
    %cst_87 = arith.constant dense<0.000000e+00> : vector<256x32xf32>
    %75 = tpu.matmul %72, %74, %cst_87 {dimension_numbers = #tpu.dot_dimension_numbers<[1], [0], [0], [1], [0, 0, 1, 1], [], []>} : vector<256x32xbf16>, vector<32x32xbf16>, vector<256x32xf32> -> vector<256x32xf32>
    %76 = arith.addf %69, %75 : vector<256x32xf32>
    %c0_88 = arith.constant 0 : index
    %c0_89 = arith.constant 0 : index
    %77 = vector.load %arg6[%c0_88, %c0_89] : memref<1x32xf32, #tpu.memory_space<vmem>>, vector<1x32xf32>
    %78 = vector.broadcast %77 : vector<1x32xf32> to vector<256x32xf32>
    %79 = arith.addf %76, %78 : vector<256x32xf32>
    %cst_90 = arith.constant 0.000000e+00 : f32
    %80 = vector.broadcast %cst_90 : f32 to vector<256x32xf32>
    %81 = arith.maximumf %79, %80 : vector<256x32xf32>
    %82 = arith.truncf %81 : vector<256x32xf32> to vector<256x32xbf16>
    %c0_91 = arith.constant 0 : index
    %c0_92 = arith.constant 0 : index
    %c0_93 = arith.constant 0 : index
    %83 = vector.load %arg7[%c0_91, %c0_92, %c0_93] : memref<1x256x32xbf16, #tpu.memory_space<vmem>>, vector<1x256x32xbf16>
    %84 = vector.shape_cast %83 : vector<1x256x32xbf16> to vector<256x32xbf16>
    %85 = vector.shape_cast %82 : vector<256x32xbf16> to vector<1x256x32xbf16>
    tpu.vector_store %arg7[%c0_91, %c0_92, %c0_93], %85 {strides = array<i32>} : memref<1x256x32xbf16, #tpu.memory_space<vmem>>, vector<1x256x32xbf16>,
    return
  }
  func.func @transform_0(%arg0: i32, %arg1: i32) -> (i32, i32, i32, i32, i32) {
    %c0_i32 = arith.constant 0 : i32
    %c0_i32_0 = arith.constant 0 : i32
    %c0_i32_1 = arith.constant 0 : i32
    %c0_i32_2 = arith.constant 0 : i32
    return %arg0, %c0_i32, %arg1, %c0_i32_0, %c0_i32_1 : i32, i32, i32, i32, i32
  }
  func.func @transform_1(%arg0: i32, %arg1: i32) -> (i32, i32, i32, i32, i32) {
    %c1_i32 = arith.constant 1 : i32
    %0 = arith.addi %arg1, %c1_i32 : i32
    %c16_i32 = arith.constant 16 : i32
    %1 = arith.muli %0, %c16_i32 : i32
    %c0_i32 = arith.constant 0 : i32
    %2 = arith.addi %1, %c0_i32 : i32
    %c0_i32_0 = arith.constant 0 : i32
    %c0_i32_1 = arith.constant 0 : i32
    %c0_i32_2 = arith.constant 0 : i32
    %c0_i32_3 = arith.constant 0 : i32
    return %arg0, %c0_i32_0, %2, %c0_i32_1, %c0_i32_2 : i32, i32, i32, i32, i32
  }
  func.func @transform_2(%arg0: i32, %arg1: i32) -> (i32, i32, i32, i32, i32) {
    %c1_i32 = arith.constant 1 : i32
    %0 = arith.addi %arg1, %c1_i32 : i32
    %c16_i32 = arith.constant 16 : i32
    %1 = arith.muli %0, %c16_i32 : i32
    %c1_i32_0 = arith.constant 1 : i32
    %2 = arith.addi %1, %c1_i32_0 : i32
    %c0_i32 = arith.constant 0 : i32
    %c0_i32_1 = arith.constant 0 : i32
    %c0_i32_2 = arith.constant 0 : i32
    %c0_i32_3 = arith.constant 0 : i32
    return %arg0, %c0_i32, %2, %c0_i32_1, %c0_i32_2 : i32, i32, i32, i32, i32
  }
  func.func @transform_3(%arg0: i32, %arg1: i32) -> (i32, i32, i32) {
    %c0_i32 = arith.constant 0 : i32
    %c0_i32_0 = arith.constant 0 : i32
    %c0_i32_1 = arith.constant 0 : i32
    %c0_i32_2 = arith.constant 0 : i32
    return %c0_i32, %c0_i32_0, %c0_i32_1 : i32, i32, i32
  }
  func.func @transform_4(%arg0: i32, %arg1: i32) -> (i32, i32) {
    %c0_i32 = arith.constant 0 : i32
    %c0_i32_0 = arith.constant 0 : i32
    %c0_i32_1 = arith.constant 0 : i32
    return %c0_i32, %c0_i32_0 : i32, i32
  }
  func.func @transform_5(%arg0: i32, %arg1: i32) -> (i32, i32, i32) {
    %c0_i32 = arith.constant 0 : i32
    %c0_i32_0 = arith.constant 0 : i32
    return %arg0, %arg1, %c0_i32 : i32, i32, i32
  }
}

module attributes {stable_mosaic.version = 11 : i64} {
  func.func @_conv_bn_kernel(%arg0: i32, %arg1: i32, %arg2: memref<1x1x16x18x32xbf16, #tpu.memory_space<vmem>>, %arg3: memref<1x1x1x18x32xbf16, #tpu.memory_space<vmem>>, %arg4: memref<1x1x1x18x32xbf16, #tpu.memory_space<vmem>>, %arg5: memref<9x32x32xbf16, #tpu.memory_space<vmem>>, %arg6: memref<1x32xf32, #tpu.memory_space<vmem>>, %arg7: memref<1x256x32xbf16, #tpu.memory_space<vmem>>, %arg8: memref<1x1x2x32xf32, #tpu.memory_space<vmem>>, %arg9: memref<1x18x18x32xbf16, #tpu.memory_space<vmem>>) attributes {dimension_semantics = [#tpu.dimension_semantics<parallel>, #tpu.dimension_semantics<parallel>], iteration_bounds = array<i64: 2, 1>, scalar_prefetch = 0 : i64, scratch_operands = 1 : i64, tpu.core_type = #tpu.core_type<tc>, window_params = [{transform_indices = @transform_0, window_bounds = array<i64: 1, 1, 16, 18, 32>}, {transform_indices = @transform_1, window_bounds = array<i64: 1, 1, 1, 18, 32>}, {transform_indices = @transform_2, window_bounds = array<i64: 1, 1, 1, 18, 32>}, {pipeline_mode = #tpu.pipeline_mode<synchronous>, transform_indices = @transform_3, window_bounds = array<i64: 9, 32, 32>}, {pipeline_mode = #tpu.pipeline_mode<synchronous>, transform_indices = @transform_4, window_bounds = array<i64: 1, 32>}, {transform_indices = @transform_5, window_bounds = array<i64: 1, 256, 32>}, {transform_indices = @transform_6, window_bounds = array<i64: 1, 1, 2, 32>}]} {
    %c0 = arith.constant 0 : index
    %c0_0 = arith.constant 0 : index
    %c0_1 = arith.constant 0 : index
    %c0_2 = arith.constant 0 : index
    %c0_3 = arith.constant 0 : index
    %0 = vector.load %arg2[%c0, %c0_0, %c0_1, %c0_2, %c0_3] : memref<1x1x16x18x32xbf16, #tpu.memory_space<vmem>>, vector<1x1x16x18x32xbf16>
    %1 = vector.shape_cast %0 : vector<1x1x16x18x32xbf16> to vector<1x16x18x32xbf16>
    %c0_4 = arith.constant 0 : index
    %c0_5 = arith.constant 0 : index
    %c0_6 = arith.constant 0 : index
    %c0_7 = arith.constant 0 : index
    %2 = vector.load %arg9[%c0_4, %c0_5, %c0_6, %c0_7] : memref<1x18x18x32xbf16, #tpu.memory_space<vmem>>, vector<1x16x18x32xbf16>
    tpu.vector_store %arg9[%c0_4, %c0_5, %c0_6, %c0_7], %1 {strides = array<i32>} : memref<1x18x18x32xbf16, #tpu.memory_space<vmem>>, vector<1x16x18x32xbf16>,
    %c0_8 = arith.constant 0 : index
    %c0_9 = arith.constant 0 : index
    %c0_10 = arith.constant 0 : index
    %c0_11 = arith.constant 0 : index
    %c0_12 = arith.constant 0 : index
    %3 = vector.load %arg3[%c0_8, %c0_9, %c0_10, %c0_11, %c0_12] : memref<1x1x1x18x32xbf16, #tpu.memory_space<vmem>>, vector<1x1x1x18x32xbf16>
    %4 = vector.shape_cast %3 : vector<1x1x1x18x32xbf16> to vector<1x18x32xbf16>
    %c0_13 = arith.constant 0 : index
    %c16 = arith.constant 16 : index
    %c0_14 = arith.constant 0 : index
    %c0_15 = arith.constant 0 : index
    %5 = vector.load %arg9[%c0_13, %c16, %c0_14, %c0_15] : memref<1x18x18x32xbf16, #tpu.memory_space<vmem>>, vector<1x1x18x32xbf16>
    %6 = vector.shape_cast %5 : vector<1x1x18x32xbf16> to vector<1x18x32xbf16>
    %7 = vector.shape_cast %4 : vector<1x18x32xbf16> to vector<1x1x18x32xbf16>
    tpu.vector_store %arg9[%c0_13, %c16, %c0_14, %c0_15], %7 {strides = array<i32>} : memref<1x18x18x32xbf16, #tpu.memory_space<vmem>>, vector<1x1x18x32xbf16>,
    %c0_16 = arith.constant 0 : index
    %c0_17 = arith.constant 0 : index
    %c0_18 = arith.constant 0 : index
    %c0_19 = arith.constant 0 : index
    %c0_20 = arith.constant 0 : index
    %8 = vector.load %arg4[%c0_16, %c0_17, %c0_18, %c0_19, %c0_20] : memref<1x1x1x18x32xbf16, #tpu.memory_space<vmem>>, vector<1x1x1x18x32xbf16>
    %9 = vector.shape_cast %8 : vector<1x1x1x18x32xbf16> to vector<1x18x32xbf16>
    %c0_21 = arith.constant 0 : index
    %c17 = arith.constant 17 : index
    %c0_22 = arith.constant 0 : index
    %c0_23 = arith.constant 0 : index
    %10 = vector.load %arg9[%c0_21, %c17, %c0_22, %c0_23] : memref<1x18x18x32xbf16, #tpu.memory_space<vmem>>, vector<1x1x18x32xbf16>
    %11 = vector.shape_cast %10 : vector<1x1x18x32xbf16> to vector<1x18x32xbf16>
    %12 = vector.shape_cast %9 : vector<1x18x32xbf16> to vector<1x1x18x32xbf16>
    tpu.vector_store %arg9[%c0_21, %c17, %c0_22, %c0_23], %12 {strides = array<i32>} : memref<1x18x18x32xbf16, #tpu.memory_space<vmem>>, vector<1x1x18x32xbf16>,
    %cst = arith.constant 0.000000e+00 : f32
    %13 = vector.broadcast %cst : f32 to vector<256x32xf32>
    %c0_24 = arith.constant 0 : index
    %c0_25 = arith.constant 0 : index
    %c0_26 = arith.constant 0 : index
    %c0_27 = arith.constant 0 : index
    %14 = vector.load %arg9[%c0_24, %c0_25, %c0_26, %c0_27] : memref<1x18x18x32xbf16, #tpu.memory_space<vmem>>, vector<1x16x16x32xbf16>
    %15 = vector.shape_cast %14 : vector<1x16x16x32xbf16> to vector<16x16x32xbf16>
    %16 = vector.shape_cast %15 : vector<16x16x32xbf16> to vector<256x32xbf16>
    %c0_28 = arith.constant 0 : index
    %c0_29 = arith.constant 0 : index
    %c0_30 = arith.constant 0 : index
    %17 = vector.load %arg5[%c0_28, %c0_29, %c0_30] : memref<9x32x32xbf16, #tpu.memory_space<vmem>>, vector<1x32x32xbf16>
    %18 = vector.shape_cast %17 : vector<1x32x32xbf16> to vector<32x32xbf16>
    %cst_31 = arith.constant dense<0.000000e+00> : vector<256x32xf32>
    %19 = tpu.matmul %16, %18, %cst_31 {dimension_numbers = #tpu.dot_dimension_numbers<[1], [0], [0], [1], [0, 0, 1, 1], [], []>} : vector<256x32xbf16>, vector<32x32xbf16>, vector<256x32xf32> -> vector<256x32xf32>
    %20 = arith.addf %13, %19 : vector<256x32xf32>
    %c0_32 = arith.constant 0 : index
    %c0_33 = arith.constant 0 : index
    %c1 = arith.constant 1 : index
    %c0_34 = arith.constant 0 : index
    %21 = vector.load %arg9[%c0_32, %c0_33, %c1, %c0_34] : memref<1x18x18x32xbf16, #tpu.memory_space<vmem>>, vector<1x16x16x32xbf16>
    %22 = vector.shape_cast %21 : vector<1x16x16x32xbf16> to vector<16x16x32xbf16>
    %23 = vector.shape_cast %22 : vector<16x16x32xbf16> to vector<256x32xbf16>
    %c1_35 = arith.constant 1 : index
    %c0_36 = arith.constant 0 : index
    %c0_37 = arith.constant 0 : index
    %24 = vector.load %arg5[%c1_35, %c0_36, %c0_37] : memref<9x32x32xbf16, #tpu.memory_space<vmem>>, vector<1x32x32xbf16>
    %25 = vector.shape_cast %24 : vector<1x32x32xbf16> to vector<32x32xbf16>
    %cst_38 = arith.constant dense<0.000000e+00> : vector<256x32xf32>
    %26 = tpu.matmul %23, %25, %cst_38 {dimension_numbers = #tpu.dot_dimension_numbers<[1], [0], [0], [1], [0, 0, 1, 1], [], []>} : vector<256x32xbf16>, vector<32x32xbf16>, vector<256x32xf32> -> vector<256x32xf32>
    %27 = arith.addf %20, %26 : vector<256x32xf32>
    %c0_39 = arith.constant 0 : index
    %c0_40 = arith.constant 0 : index
    %c2 = arith.constant 2 : index
    %c0_41 = arith.constant 0 : index
    %28 = vector.load %arg9[%c0_39, %c0_40, %c2, %c0_41] : memref<1x18x18x32xbf16, #tpu.memory_space<vmem>>, vector<1x16x16x32xbf16>
    %29 = vector.shape_cast %28 : vector<1x16x16x32xbf16> to vector<16x16x32xbf16>
    %30 = vector.shape_cast %29 : vector<16x16x32xbf16> to vector<256x32xbf16>
    %c2_42 = arith.constant 2 : index
    %c0_43 = arith.constant 0 : index
    %c0_44 = arith.constant 0 : index
    %31 = vector.load %arg5[%c2_42, %c0_43, %c0_44] : memref<9x32x32xbf16, #tpu.memory_space<vmem>>, vector<1x32x32xbf16>
    %32 = vector.shape_cast %31 : vector<1x32x32xbf16> to vector<32x32xbf16>
    %cst_45 = arith.constant dense<0.000000e+00> : vector<256x32xf32>
    %33 = tpu.matmul %30, %32, %cst_45 {dimension_numbers = #tpu.dot_dimension_numbers<[1], [0], [0], [1], [0, 0, 1, 1], [], []>} : vector<256x32xbf16>, vector<32x32xbf16>, vector<256x32xf32> -> vector<256x32xf32>
    %34 = arith.addf %27, %33 : vector<256x32xf32>
    %c0_46 = arith.constant 0 : index
    %c1_47 = arith.constant 1 : index
    %c0_48 = arith.constant 0 : index
    %c0_49 = arith.constant 0 : index
    %35 = vector.load %arg9[%c0_46, %c1_47, %c0_48, %c0_49] : memref<1x18x18x32xbf16, #tpu.memory_space<vmem>>, vector<1x16x16x32xbf16>
    %36 = vector.shape_cast %35 : vector<1x16x16x32xbf16> to vector<16x16x32xbf16>
    %37 = vector.shape_cast %36 : vector<16x16x32xbf16> to vector<256x32xbf16>
    %c3 = arith.constant 3 : index
    %c0_50 = arith.constant 0 : index
    %c0_51 = arith.constant 0 : index
    %38 = vector.load %arg5[%c3, %c0_50, %c0_51] : memref<9x32x32xbf16, #tpu.memory_space<vmem>>, vector<1x32x32xbf16>
    %39 = vector.shape_cast %38 : vector<1x32x32xbf16> to vector<32x32xbf16>
    %cst_52 = arith.constant dense<0.000000e+00> : vector<256x32xf32>
    %40 = tpu.matmul %37, %39, %cst_52 {dimension_numbers = #tpu.dot_dimension_numbers<[1], [0], [0], [1], [0, 0, 1, 1], [], []>} : vector<256x32xbf16>, vector<32x32xbf16>, vector<256x32xf32> -> vector<256x32xf32>
    %41 = arith.addf %34, %40 : vector<256x32xf32>
    %c0_53 = arith.constant 0 : index
    %c1_54 = arith.constant 1 : index
    %c1_55 = arith.constant 1 : index
    %c0_56 = arith.constant 0 : index
    %42 = vector.load %arg9[%c0_53, %c1_54, %c1_55, %c0_56] : memref<1x18x18x32xbf16, #tpu.memory_space<vmem>>, vector<1x16x16x32xbf16>
    %43 = vector.shape_cast %42 : vector<1x16x16x32xbf16> to vector<16x16x32xbf16>
    %44 = vector.shape_cast %43 : vector<16x16x32xbf16> to vector<256x32xbf16>
    %c4 = arith.constant 4 : index
    %c0_57 = arith.constant 0 : index
    %c0_58 = arith.constant 0 : index
    %45 = vector.load %arg5[%c4, %c0_57, %c0_58] : memref<9x32x32xbf16, #tpu.memory_space<vmem>>, vector<1x32x32xbf16>
    %46 = vector.shape_cast %45 : vector<1x32x32xbf16> to vector<32x32xbf16>
    %cst_59 = arith.constant dense<0.000000e+00> : vector<256x32xf32>
    %47 = tpu.matmul %44, %46, %cst_59 {dimension_numbers = #tpu.dot_dimension_numbers<[1], [0], [0], [1], [0, 0, 1, 1], [], []>} : vector<256x32xbf16>, vector<32x32xbf16>, vector<256x32xf32> -> vector<256x32xf32>
    %48 = arith.addf %41, %47 : vector<256x32xf32>
    %c0_60 = arith.constant 0 : index
    %c1_61 = arith.constant 1 : index
    %c2_62 = arith.constant 2 : index
    %c0_63 = arith.constant 0 : index
    %49 = vector.load %arg9[%c0_60, %c1_61, %c2_62, %c0_63] : memref<1x18x18x32xbf16, #tpu.memory_space<vmem>>, vector<1x16x16x32xbf16>
    %50 = vector.shape_cast %49 : vector<1x16x16x32xbf16> to vector<16x16x32xbf16>
    %51 = vector.shape_cast %50 : vector<16x16x32xbf16> to vector<256x32xbf16>
    %c5 = arith.constant 5 : index
    %c0_64 = arith.constant 0 : index
    %c0_65 = arith.constant 0 : index
    %52 = vector.load %arg5[%c5, %c0_64, %c0_65] : memref<9x32x32xbf16, #tpu.memory_space<vmem>>, vector<1x32x32xbf16>
    %53 = vector.shape_cast %52 : vector<1x32x32xbf16> to vector<32x32xbf16>
    %cst_66 = arith.constant dense<0.000000e+00> : vector<256x32xf32>
    %54 = tpu.matmul %51, %53, %cst_66 {dimension_numbers = #tpu.dot_dimension_numbers<[1], [0], [0], [1], [0, 0, 1, 1], [], []>} : vector<256x32xbf16>, vector<32x32xbf16>, vector<256x32xf32> -> vector<256x32xf32>
    %55 = arith.addf %48, %54 : vector<256x32xf32>
    %c0_67 = arith.constant 0 : index
    %c2_68 = arith.constant 2 : index
    %c0_69 = arith.constant 0 : index
    %c0_70 = arith.constant 0 : index
    %56 = vector.load %arg9[%c0_67, %c2_68, %c0_69, %c0_70] : memref<1x18x18x32xbf16, #tpu.memory_space<vmem>>, vector<1x16x16x32xbf16>
    %57 = vector.shape_cast %56 : vector<1x16x16x32xbf16> to vector<16x16x32xbf16>
    %58 = vector.shape_cast %57 : vector<16x16x32xbf16> to vector<256x32xbf16>
    %c6 = arith.constant 6 : index
    %c0_71 = arith.constant 0 : index
    %c0_72 = arith.constant 0 : index
    %59 = vector.load %arg5[%c6, %c0_71, %c0_72] : memref<9x32x32xbf16, #tpu.memory_space<vmem>>, vector<1x32x32xbf16>
    %60 = vector.shape_cast %59 : vector<1x32x32xbf16> to vector<32x32xbf16>
    %cst_73 = arith.constant dense<0.000000e+00> : vector<256x32xf32>
    %61 = tpu.matmul %58, %60, %cst_73 {dimension_numbers = #tpu.dot_dimension_numbers<[1], [0], [0], [1], [0, 0, 1, 1], [], []>} : vector<256x32xbf16>, vector<32x32xbf16>, vector<256x32xf32> -> vector<256x32xf32>
    %62 = arith.addf %55, %61 : vector<256x32xf32>
    %c0_74 = arith.constant 0 : index
    %c2_75 = arith.constant 2 : index
    %c1_76 = arith.constant 1 : index
    %c0_77 = arith.constant 0 : index
    %63 = vector.load %arg9[%c0_74, %c2_75, %c1_76, %c0_77] : memref<1x18x18x32xbf16, #tpu.memory_space<vmem>>, vector<1x16x16x32xbf16>
    %64 = vector.shape_cast %63 : vector<1x16x16x32xbf16> to vector<16x16x32xbf16>
    %65 = vector.shape_cast %64 : vector<16x16x32xbf16> to vector<256x32xbf16>
    %c7 = arith.constant 7 : index
    %c0_78 = arith.constant 0 : index
    %c0_79 = arith.constant 0 : index
    %66 = vector.load %arg5[%c7, %c0_78, %c0_79] : memref<9x32x32xbf16, #tpu.memory_space<vmem>>, vector<1x32x32xbf16>
    %67 = vector.shape_cast %66 : vector<1x32x32xbf16> to vector<32x32xbf16>
    %cst_80 = arith.constant dense<0.000000e+00> : vector<256x32xf32>
    %68 = tpu.matmul %65, %67, %cst_80 {dimension_numbers = #tpu.dot_dimension_numbers<[1], [0], [0], [1], [0, 0, 1, 1], [], []>} : vector<256x32xbf16>, vector<32x32xbf16>, vector<256x32xf32> -> vector<256x32xf32>
    %69 = arith.addf %62, %68 : vector<256x32xf32>
    %c0_81 = arith.constant 0 : index
    %c2_82 = arith.constant 2 : index
    %c2_83 = arith.constant 2 : index
    %c0_84 = arith.constant 0 : index
    %70 = vector.load %arg9[%c0_81, %c2_82, %c2_83, %c0_84] : memref<1x18x18x32xbf16, #tpu.memory_space<vmem>>, vector<1x16x16x32xbf16>
    %71 = vector.shape_cast %70 : vector<1x16x16x32xbf16> to vector<16x16x32xbf16>
    %72 = vector.shape_cast %71 : vector<16x16x32xbf16> to vector<256x32xbf16>
    %c8 = arith.constant 8 : index
    %c0_85 = arith.constant 0 : index
    %c0_86 = arith.constant 0 : index
    %73 = vector.load %arg5[%c8, %c0_85, %c0_86] : memref<9x32x32xbf16, #tpu.memory_space<vmem>>, vector<1x32x32xbf16>
    %74 = vector.shape_cast %73 : vector<1x32x32xbf16> to vector<32x32xbf16>
    %cst_87 = arith.constant dense<0.000000e+00> : vector<256x32xf32>
    %75 = tpu.matmul %72, %74, %cst_87 {dimension_numbers = #tpu.dot_dimension_numbers<[1], [0], [0], [1], [0, 0, 1, 1], [], []>} : vector<256x32xbf16>, vector<32x32xbf16>, vector<256x32xf32> -> vector<256x32xf32>
    %76 = arith.addf %69, %75 : vector<256x32xf32>
    %c0_88 = arith.constant 0 : index
    %c0_89 = arith.constant 0 : index
    %77 = vector.load %arg6[%c0_88, %c0_89] : memref<1x32xf32, #tpu.memory_space<vmem>>, vector<1x32xf32>
    %78 = vector.broadcast %77 : vector<1x32xf32> to vector<256x32xf32>
    %79 = arith.addf %76, %78 : vector<256x32xf32>
    %80 = arith.truncf %79 : vector<256x32xf32> to vector<256x32xbf16>
    %c0_90 = arith.constant 0 : index
    %c0_91 = arith.constant 0 : index
    %c0_92 = arith.constant 0 : index
    %81 = vector.load %arg7[%c0_90, %c0_91, %c0_92] : memref<1x256x32xbf16, #tpu.memory_space<vmem>>, vector<1x256x32xbf16>
    %82 = vector.shape_cast %81 : vector<1x256x32xbf16> to vector<256x32xbf16>
    %83 = vector.shape_cast %80 : vector<256x32xbf16> to vector<1x256x32xbf16>
    tpu.vector_store %arg7[%c0_90, %c0_91, %c0_92], %83 {strides = array<i32>} : memref<1x256x32xbf16, #tpu.memory_space<vmem>>, vector<1x256x32xbf16>,
    %cst_93 = arith.constant dense<0.000000e+00> : vector<32xf32>
    %84 = vector.multi_reduction <add>, %79, %cst_93 [0] : vector<256x32xf32> to vector<32xf32>
    %85 = vector.shape_cast %84 : vector<32xf32> to vector<1x32xf32>
    %c0_94 = arith.constant 0 : index
    %c0_95 = arith.constant 0 : index
    %c0_96 = arith.constant 0 : index
    %c0_97 = arith.constant 0 : index
    %86 = vector.load %arg8[%c0_94, %c0_95, %c0_96, %c0_97] : memref<1x1x2x32xf32, #tpu.memory_space<vmem>>, vector<1x1x1x32xf32>
    %87 = vector.shape_cast %86 : vector<1x1x1x32xf32> to vector<1x32xf32>
    %88 = vector.shape_cast %85 : vector<1x32xf32> to vector<1x1x1x32xf32>
    tpu.vector_store %arg8[%c0_94, %c0_95, %c0_96, %c0_97], %88 {strides = array<i32>} : memref<1x1x2x32xf32, #tpu.memory_space<vmem>>, vector<1x1x1x32xf32>,
    %cst_98 = arith.constant dense<0xFF800000> : vector<32xf32>
    %89 = vector.multi_reduction <maximumf>, %79, %cst_98 [0] : vector<256x32xf32> to vector<32xf32>
    %90 = vector.shape_cast %89 : vector<32xf32> to vector<1x32xf32>
    %c0_99 = arith.constant 0 : index
    %c0_100 = arith.constant 0 : index
    %c1_101 = arith.constant 1 : index
    %c0_102 = arith.constant 0 : index
    %91 = vector.load %arg8[%c0_99, %c0_100, %c1_101, %c0_102] : memref<1x1x2x32xf32, #tpu.memory_space<vmem>>, vector<1x1x1x32xf32>
    %92 = vector.shape_cast %91 : vector<1x1x1x32xf32> to vector<1x32xf32>
    %93 = vector.shape_cast %90 : vector<1x32xf32> to vector<1x1x1x32xf32>
    tpu.vector_store %arg8[%c0_99, %c0_100, %c1_101, %c0_102], %93 {strides = array<i32>} : memref<1x1x2x32xf32, #tpu.memory_space<vmem>>, vector<1x1x1x32xf32>,
    return
  }
  func.func @transform_0(%arg0: i32, %arg1: i32) -> (i32, i32, i32, i32, i32) {
    %c0_i32 = arith.constant 0 : i32
    %c0_i32_0 = arith.constant 0 : i32
    %c0_i32_1 = arith.constant 0 : i32
    %c0_i32_2 = arith.constant 0 : i32
    return %arg0, %c0_i32, %arg1, %c0_i32_0, %c0_i32_1 : i32, i32, i32, i32, i32
  }
  func.func @transform_1(%arg0: i32, %arg1: i32) -> (i32, i32, i32, i32, i32) {
    %c1_i32 = arith.constant 1 : i32
    %0 = arith.addi %arg1, %c1_i32 : i32
    %c16_i32 = arith.constant 16 : i32
    %1 = arith.muli %0, %c16_i32 : i32
    %c0_i32 = arith.constant 0 : i32
    %2 = arith.addi %1, %c0_i32 : i32
    %c0_i32_0 = arith.constant 0 : i32
    %c0_i32_1 = arith.constant 0 : i32
    %c0_i32_2 = arith.constant 0 : i32
    %c0_i32_3 = arith.constant 0 : i32
    return %arg0, %c0_i32_0, %2, %c0_i32_1, %c0_i32_2 : i32, i32, i32, i32, i32
  }
  func.func @transform_2(%arg0: i32, %arg1: i32) -> (i32, i32, i32, i32, i32) {
    %c1_i32 = arith.constant 1 : i32
    %0 = arith.addi %arg1, %c1_i32 : i32
    %c16_i32 = arith.constant 16 : i32
    %1 = arith.muli %0, %c16_i32 : i32
    %c1_i32_0 = arith.constant 1 : i32
    %2 = arith.addi %1, %c1_i32_0 : i32
    %c0_i32 = arith.constant 0 : i32
    %c0_i32_1 = arith.constant 0 : i32
    %c0_i32_2 = arith.constant 0 : i32
    %c0_i32_3 = arith.constant 0 : i32
    return %arg0, %c0_i32, %2, %c0_i32_1, %c0_i32_2 : i32, i32, i32, i32, i32
  }
  func.func @transform_3(%arg0: i32, %arg1: i32) -> (i32, i32, i32) {
    %c0_i32 = arith.constant 0 : i32
    %c0_i32_0 = arith.constant 0 : i32
    %c0_i32_1 = arith.constant 0 : i32
    %c0_i32_2 = arith.constant 0 : i32
    return %c0_i32, %c0_i32_0, %c0_i32_1 : i32, i32, i32
  }
  func.func @transform_4(%arg0: i32, %arg1: i32) -> (i32, i32) {
    %c0_i32 = arith.constant 0 : i32
    %c0_i32_0 = arith.constant 0 : i32
    %c0_i32_1 = arith.constant 0 : i32
    return %c0_i32, %c0_i32_0 : i32, i32
  }
  func.func @transform_5(%arg0: i32, %arg1: i32) -> (i32, i32, i32) {
    %c0_i32 = arith.constant 0 : i32
    %c0_i32_0 = arith.constant 0 : i32
    return %arg0, %arg1, %c0_i32 : i32, i32, i32
  }
  func.func @transform_6(%arg0: i32, %arg1: i32) -> (i32, i32, i32, i32) {
    %c0_i32 = arith.constant 0 : i32
    %c0_i32_0 = arith.constant 0 : i32
    %c0_i32_1 = arith.constant 0 : i32
    return %arg0, %arg1, %c0_i32, %c0_i32_0 : i32, i32, i32, i32
  }
}

module attributes {stable_mosaic.version = 11 : i64} {
  func.func @_apply_id_kernel(%arg0: i32, %arg1: i32, %arg2: memref<1x256x32xbf16, #tpu.memory_space<vmem>>, %arg3: memref<1x1x32xf32, #tpu.memory_space<vmem>>, %arg4: memref<1x256x32xbf16, #tpu.memory_space<vmem>>, %arg5: memref<1x256x32xf32, #tpu.memory_space<vmem>>) attributes {dimension_semantics = [#tpu.dimension_semantics<parallel>, #tpu.dimension_semantics<parallel>], iteration_bounds = array<i64: 2, 1>, scalar_prefetch = 0 : i64, scratch_operands = 0 : i64, tpu.core_type = #tpu.core_type<tc>, window_params = [{transform_indices = @transform_0, window_bounds = array<i64: 1, 256, 32>}, {transform_indices = @transform_1, window_bounds = array<i64: 1, 1, 32>}, {transform_indices = @transform_2, window_bounds = array<i64: 1, 256, 32>}, {transform_indices = @transform_3, window_bounds = array<i64: 1, 256, 32>}]} {
    %c0 = arith.constant 0 : index
    %c0_0 = arith.constant 0 : index
    %c0_1 = arith.constant 0 : index
    %0 = vector.load %arg2[%c0, %c0_0, %c0_1] : memref<1x256x32xbf16, #tpu.memory_space<vmem>>, vector<1x256x32xbf16>
    %1 = vector.shape_cast %0 : vector<1x256x32xbf16> to vector<256x32xbf16>
    %2 = arith.extf %1 : vector<256x32xbf16> to vector<256x32xf32>
    %c0_2 = arith.constant 0 : index
    %c0_3 = arith.constant 0 : index
    %c0_4 = arith.constant 0 : index
    %3 = vector.load %arg3[%c0_2, %c0_3, %c0_4] : memref<1x1x32xf32, #tpu.memory_space<vmem>>, vector<1x1x32xf32>
    %4 = vector.shape_cast %3 : vector<1x1x32xf32> to vector<1x32xf32>
    %5 = vector.broadcast %4 : vector<1x32xf32> to vector<256x32xf32>
    %6 = arith.mulf %2, %5 : vector<256x32xf32>
    %c0_5 = arith.constant 0 : index
    %c0_6 = arith.constant 0 : index
    %c0_7 = arith.constant 0 : index
    %7 = vector.load %arg4[%c0_5, %c0_6, %c0_7] : memref<1x256x32xbf16, #tpu.memory_space<vmem>>, vector<1x256x32xbf16>
    %8 = vector.shape_cast %7 : vector<1x256x32xbf16> to vector<256x32xbf16>
    %9 = arith.extf %8 : vector<256x32xbf16> to vector<256x32xf32>
    %10 = arith.addf %6, %9 : vector<256x32xf32>
    %cst = arith.constant 0.000000e+00 : f32
    %11 = vector.broadcast %cst : f32 to vector<256x32xf32>
    %12 = arith.maximumf %10, %11 : vector<256x32xf32>
    %c0_8 = arith.constant 0 : index
    %c0_9 = arith.constant 0 : index
    %c0_10 = arith.constant 0 : index
    %13 = vector.load %arg5[%c0_8, %c0_9, %c0_10] : memref<1x256x32xf32, #tpu.memory_space<vmem>>, vector<1x256x32xf32>
    %14 = vector.shape_cast %13 : vector<1x256x32xf32> to vector<256x32xf32>
    %15 = vector.shape_cast %12 : vector<256x32xf32> to vector<1x256x32xf32>
    tpu.vector_store %arg5[%c0_8, %c0_9, %c0_10], %15 {strides = array<i32>} : memref<1x256x32xf32, #tpu.memory_space<vmem>>, vector<1x256x32xf32>,
    return
  }
  func.func @transform_0(%arg0: i32, %arg1: i32) -> (i32, i32, i32) {
    %c0_i32 = arith.constant 0 : i32
    %c0_i32_0 = arith.constant 0 : i32
    return %arg0, %arg1, %c0_i32 : i32, i32, i32
  }
  func.func @transform_1(%arg0: i32, %arg1: i32) -> (i32, i32, i32) {
    %c0_i32 = arith.constant 0 : i32
    %c0_i32_0 = arith.constant 0 : i32
    %c0_i32_1 = arith.constant 0 : i32
    return %arg0, %c0_i32, %c0_i32_0 : i32, i32, i32
  }
  func.func @transform_2(%arg0: i32, %arg1: i32) -> (i32, i32, i32) {
    %c0_i32 = arith.constant 0 : i32
    %c0_i32_0 = arith.constant 0 : i32
    return %arg0, %arg1, %c0_i32 : i32, i32, i32
  }
  func.func @transform_3(%arg0: i32, %arg1: i32) -> (i32, i32, i32) {
    %c0_i32 = arith.constant 0 : i32
    %c0_i32_0 = arith.constant 0 : i32
    return %arg0, %arg1, %c0_i32 : i32, i32, i32
  }
}

</mosaic_0001>

<llo_original>
// kernel: residual_block_forward.5
$region0: #{residual_block_forward.5}
  #allocation0 [shape = 'u32[]', space=smem, size = 0x4, offset = 0x4, fixed_abs, tag = 'smem constant byte address 0x4 - core index']
  #allocation1 [shape = 'u32[144,128]{1,0:T(1,128)}', space=vmem, size = 0x12000, scoped, tag = 'internal scratch']
  %s0 = inlined_call_operand.hbm [shape: bf16[2,256,32], index: 0, kind: input, shape index: {}]
  %s1 = inlined_call_operand.hbm [shape: f32[2,1,32], index: 1, kind: input, shape index: {}]
  %s2 = inlined_call_operand.hbm [shape: bf16[2,256,32], index: 2, kind: input, shape index: {}]
  %s3 = inlined_call_operand.hbm [shape: f32[2,256,32], index: 3, kind: output, shape index: {}]
  %s4 = sld [smem:[#allocation0]]
  $region57: #{residual_block_forward.5} parent=0
    _
  %s6 = ssub.s32 1, %s4
  %s7 = scalar_select 0, %s6, %s4
  $region1: #{residual_block_forward.5} parent=0
    #allocation2 [shape = 'u8[131072]{0}', space=vmem, size = 0x20000, scoped, tag = 'input window, operand 0']
    #allocation3 [shape = 's32[2]{0}', space=sflag, size = 0x8, scoped, tag = 'scoped memory for residual_block_forward.5']
    #allocation4 [shape = 's32[2]{0}', space=sflag, size = 0x8, scoped, tag = 'scoped memory for residual_block_forward.5']
    #allocation5 [shape = 'u8[1024]{0}', space=vmem, size = 0x400, scoped, tag = 'input window, operand 1']
    #allocation6 [shape = 's32[2]{0}', space=sflag, size = 0x8, scoped, tag = 'scoped memory for residual_block_forward.5']
    #allocation7 [shape = 'u8[131072]{0}', space=vmem, size = 0x20000, scoped, tag = 'input window, operand 2']
    #allocation8 [shape = 'u8[262144]{0}', space=vmem, size = 0x40000, scoped, tag = 'output window, operand 0']
    %8 = vsyncpa [#allocation3], 0
    %s9 = scalar_lea.sflag [#allocation3], 1
    %10 = vsyncpa %s9, 0
    %11 = vsyncpa [#allocation6], 0
    %s12 = scalar_lea.sflag [#allocation6], 1
    %13 = vsyncpa %s12, 0
    %14 = vsyncpa [#allocation4], 0
    %s15 = scalar_lea.sflag [#allocation4], 1
    %16 = vsyncpa %s15, 0
    loop: start=0, step=1, limit=4
    $region2: #{residual_block_forward.5} parent=1 // loop_pre_header
      _
    $region3: #{residual_block_forward.5} parent=1 // loop_header
      %s18 = sphi 0, %s22
      %p19 = scmp.ge.s32.totalorder %s18, 4
      %s25 = sphi 0, %s37
      %s26 = sphi 0, %s33
      %s27 = sphi 0, %s25
      %s28 = sphi 0, %s26
      %s29 = sphi 0, %s27
      %s30 = sphi 0, %s28
      %s42 = sphi 0, %s44
      %s45 = sphi 0, %s42
      %s46 = sphi 0, %s45
      %s62 = sphi 0, %s46
      %s68 = sphi 0, %s70
      %s71 = sphi 0, %s68
      %s72 = sphi 0, %s71
      %s88 = sphi 0, %s72
      %s96 = sphi 0, %s98
      %s99 = sphi 0, %s96
      %s100 = sphi 0, %s99
      %s116 = sphi 0, %s100
      %s124 = sphi 0, %s126
      %s127 = sphi 0, %s124
      %s128 = sphi 0, %s127
      %s144 = sphi 0, %s128
    $region4: #{residual_block_forward.5} parent=1 // loop_header_branch
      %21 = sbr.rel (%p19) target = $region8
    $region5: #{residual_block_forward.5} parent=1 // loop_body
      %s23 = ssub.s32 %s18, 1
      %s24 = ssub.s32 %s18, 2
      %s31 = sadd.s32 1, %s26
      %p32 = scmp.ge.s32.totalorder %s31, 1
      %s33 = scalar_select %p32, 0, %s31
      %s34 = sadd.s32 1, %s25
      %s35 = scalar_select %p32, %s34, %s25
      %p36 = scmp.ge.s32.totalorder %s35, 2
      %s37 = scalar_select %p36, 0, %s35
      %s38 = ssub.s32 %s25, %s37
      %s39 = ssub.s32 %s26, %s33
      %s40 = sor.u32 %s38, %s39
      %p41 = scmp.eq.s32.totalorder %s40, 0
      %s43 = sadd.s32 %s42, 1
      %s44 = scalar_select %p41, %s42, %s43
      %p47 = pneg %p41
      %p48 = scmp.eq.s32.totalorder %s18, 1
      %p49 = por %p47, %p48
      %p50 = scmp.ne.s32.totalorder %s42, %s45
      %p51 = scmp.eq.s32.totalorder %s18, 0
      %p52 = por %p50, %p51
      %p53 = scmp.ne.s32.totalorder %s42, %s45
      %p54 = scmp.eq.s32.totalorder %s23, 1
      %p55 = por %p53, %p54
      %p56 = scmp.ne.s32.totalorder %s45, %s46
      %p57 = scmp.eq.s32.totalorder %s23, 0
      %p58 = por %p56, %p57
      %p59 = scmp.ne.s32.totalorder %s45, %s46
      %p60 = scmp.eq.s32.totalorder %s24, 1
      %p61 = por %p59, %p60
      %p63 = scmp.ne.s32.totalorder %s46, %s62
      %p64 = scmp.eq.s32.totalorder %s24, 0
      %p65 = por %p63, %p64
      %s66 = ssub.s32 %s25, %s37
      %p67 = scmp.eq.s32.totalorder %s66, 0
      %s69 = sadd.s32 %s68, 1
      %s70 = scalar_select %p67, %s68, %s69
      %p73 = pneg %p67
      %p74 = scmp.eq.s32.totalorder %s18, 1
      %p75 = por %p73, %p74
      %p76 = scmp.ne.s32.totalorder %s68, %s71
      %p77 = scmp.eq.s32.totalorder %s18, 0
      %p78 = por %p76, %p77
      %p79 = scmp.ne.s32.totalorder %s68, %s71
      %p80 = scmp.eq.s32.totalorder %s23, 1
      %p81 = por %p79, %p80
      %p82 = scmp.ne.s32.totalorder %s71, %s72
      %p83 = scmp.eq.s32.totalorder %s23, 0
      %p84 = por %p82, %p83
      %p85 = scmp.ne.s32.totalorder %s71, %s72
      %p86 = scmp.eq.s32.totalorder %s24, 1
      %p87 = por %p85, %p86
      %p89 = scmp.ne.s32.totalorder %s72, %s88
      %p90 = scmp.eq.s32.totalorder %s24, 0
      %p91 = por %p89, %p90
      %s92 = ssub.s32 %s25, %s37
      %s93 = ssub.s32 %s26, %s33
      %s94 = sor.u32 %s92, %s93
      %p95 = scmp.eq.s32.totalorder %s94, 0
      %s97 = sadd.s32 %s96, 1
      %s98 = scalar_select %p95, %s96, %s97
      %p101 = pneg %p95
      %p102 = scmp.eq.s32.totalorder %s18, 1
      %p103 = por %p101, %p102
      %p104 = scmp.ne.s32.totalorder %s96, %s99
      %p105 = scmp.eq.s32.totalorder %s18, 0
      %p106 = por %p104, %p105
      %p107 = scmp.ne.s32.totalorder %s96, %s99
      %p108 = scmp.eq.s32.totalorder %s23, 1
      %p109 = por %p107, %p108
      %p110 = scmp.ne.s32.totalorder %s99, %s100
      %p111 = scmp.eq.s32.totalorder %s23, 0
      %p112 = por %p110, %p111
      %p113 = scmp.ne.s32.totalorder %s99, %s100
      %p114 = scmp.eq.s32.totalorder %s24, 1
      %p115 = por %p113, %p114
      %p117 = scmp.ne.s32.totalorder %s100, %s116
      %p118 = scmp.eq.s32.totalorder %s24, 0
      %p119 = por %p117, %p118
      %s120 = ssub.s32 %s25, %s37
      %s121 = ssub.s32 %s26, %s33
      %s122 = sor.u32 %s120, %s121
      %p123 = scmp.eq.s32.totalorder %s122, 0
      %s125 = sadd.s32 %s124, 1
      %s126 = scalar_select %p123, %s124, %s125
      %p129 = pneg %p123
      %p130 = scmp.eq.s32.totalorder %s18, 1
      %p131 = por %p129, %p130
      %p132 = scmp.ne.s32.totalorder %s124, %s127
      %p133 = scmp.eq.s32.totalorder %s18, 0
      %p134 = por %p132, %p133
      %p135 = scmp.ne.s32.totalorder %s124, %s127
      %p136 = scmp.eq.s32.totalorder %s23, 1
      %p137 = por %p135, %p136
      %p138 = scmp.ne.s32.totalorder %s127, %s128
      %p139 = scmp.eq.s32.totalorder %s23, 0
      %p140 = por %p138, %p139
      %p141 = scmp.ne.s32.totalorder %s127, %s128
      %p142 = scmp.eq.s32.totalorder %s24, 1
      %p143 = por %p141, %p142
      %p145 = scmp.ne.s32.totalorder %s128, %s144
      %p146 = scmp.eq.s32.totalorder %s24, 0
      %p147 = por %p145, %p146
      %p148 = scmp.le.s32.totalorder 1, %s18
      %p149 = scmp.lt.s32.totalorder %s18, 3
      %p150 = pnand %p148, %p149
      %p151 = pneg %p150
      // Predicated region
      $region9: #{residual_block_forward.5} parent=5 // pred_check
        _
      $region10: #{residual_block_forward.5} parent=5 // pred_check_branch
        %153 = sbr.rel (%p150) target = $region12
      $region11: #{residual_block_forward.5} parent=5 // pred_region
        %s154 = ssub.s32 %s18, 1
      $region12: #{residual_block_forward.5} parent=5 // pred_fallthru
        _
      %p155 = scmp.lt.s32.totalorder %s18, 2
      // Predicated region
      $region13: #{residual_block_forward.5} parent=5 // pred_check
        %p156 = pneg %p155
      $region14: #{residual_block_forward.5} parent=5 // pred_check_branch
        %158 = sbr.rel (%p156) target = $region16
      $region15: #{residual_block_forward.5} parent=5 // pred_region
        // Predicated region
        $region17: #{residual_block_forward.5} parent=15 // pred_check
          %p159 = pneg %p52
        $region18: #{residual_block_forward.5} parent=15 // pred_check_branch
          %161 = sbr.rel (%p159) target = $region20
        $region19: #{residual_block_forward.5} parent=15 // pred_region
          %s162 = sand.u32 %s42, 1
          %s163 = scalar_lea.sflag [#allocation3], %s162
          %s164 = sand.u32 %s42, 1
          %s165 = smul.addr %s164, 128
          %s166 = scalar_lea.vmem [#allocation2], %s165
          %s167 = smul.u32 32, %s26
          %s169 = ssub.s32 2048, 2048
          %170 = vsyncadd %s163, %s169
          %s171 = smul.addr %s25, 32
          %s172 = sadd.s32 %s167, %s171
          %s173 = smul.addr %s172, 64
          %s174 = scalar_lea.hbm %s0, %s173
          %s175 = sshll.u32 %s166, 4
          %s176 = int_to_ptr.vmem [resolvable:$true] %s175
          %181 = dma.hbm_to_vmem [thread:$0]  %s174, 2048, %s176, %s163, 64, 64, 4
        $region20: #{residual_block_forward.5} parent=15 // pred_fallthru
          _
        // Predicated region
        $region21: #{residual_block_forward.5} parent=15 // pred_check
          %p182 = pneg %p78
        $region22: #{residual_block_forward.5} parent=15 // pred_check_branch
          %184 = sbr.rel (%p182) target = $region24
        $region23: #{residual_block_forward.5} parent=15 // pred_region
          %s185 = sand.u32 %s18, 1
          %s186 = scalar_lea.sflag [#allocation6], %s185
          %s187 = sand.u32 %s68, 1
          %s188 = scalar_lea.vmem [#allocation5], %s187
          %s190 = ssub.s32 16, 16
          %191 = vsyncadd %s186, %s190
          %s192 = smul.addr %s25, 16
          %s193 = scalar_lea.hbm %s1, %s192
          %s195 = sshll.u32 %s188, 4
          %s196 = int_to_ptr.vmem [resolvable:$true] %s195
          %198 = dma.hbm_to_vmem [thread:$0]  %s193, 16, %s196, %s186
        $region24: #{residual_block_forward.5} parent=15 // pred_fallthru
          _
        // Predicated region
        $region25: #{residual_block_forward.5} parent=15 // pred_check
          %p199 = pneg %p106
        $region26: #{residual_block_forward.5} parent=15 // pred_check_branch
          %201 = sbr.rel (%p199) target = $region28
        $region27: #{residual_block_forward.5} parent=15 // pred_region
          %s202 = sand.u32 %s18, 1
          %s203 = scalar_lea.sflag [#allocation6], %s202
          %s204 = sand.u32 %s96, 1
          %s205 = smul.addr %s204, 128
          %s206 = scalar_lea.vmem [#allocation7], %s205
          %s207 = smul.u32 32, %s26
          %s209 = ssub.s32 2048, 2048
          %210 = vsyncadd %s203, %s209
          %s211 = smul.addr %s25, 32
          %s212 = sadd.s32 %s207, %s211
          %s213 = smul.addr %s212, 64
          %s214 = scalar_lea.hbm %s2, %s213
          %s215 = sshll.u32 %s206, 4
          %s216 = int_to_ptr.vmem [resolvable:$true] %s215
          %221 = dma.hbm_to_vmem [thread:$0]  %s214, 2048, %s216, %s203, 64, 64, 4
        $region28: #{residual_block_forward.5} parent=15 // pred_fallthru
          _
      $region16: #{residual_block_forward.5} parent=5 // pred_fallthru
        _
      %p222 = scmp.le.s32.totalorder 1, %s18
      %p223 = scmp.lt.s32.totalorder %s18, 3
      %p224 = pnand %p222, %p223
      %p225 = pneg %p224
      // Predicated region
      $region29: #{residual_block_forward.5} parent=5 // pred_check
        _
      $region30: #{residual_block_forward.5} parent=5 // pred_check_branch
        %227 = sbr.rel (%p224) target = $region32
      $region31: #{residual_block_forward.5} parent=5 // pred_region
        %s228 = ssub.s32 %s18, 1
        %s229 = sand.u32 %s45, 1
        %s230 = scalar_lea.sflag [#allocation3], %s229
        %s231 = sand.u32 %s45, 1
        %s232 = smul.addr %s231, 128
        %s233 = scalar_lea.vmem [#allocation2], %s232
        // Predicated region
        $region33: #{residual_block_forward.5} parent=31 // pred_check
          %p234 = pneg %p58
        $region34: #{residual_block_forward.5} parent=31 // pred_check_branch
          %236 = sbr.rel (%p234) target = $region36
        $region35: #{residual_block_forward.5} parent=31 // pred_region
          %237 = dma.done %s230, 2048
        $region36: #{residual_block_forward.5} parent=31 // pred_fallthru
          _
        %s238 = sand.u32 %s23, 1
        %s239 = scalar_lea.sflag [#allocation6], %s238
        %s240 = sand.u32 %s71, 1
        %s241 = scalar_lea.vmem [#allocation5], %s240
        // Predicated region
        $region37: #{residual_block_forward.5} parent=31 // pred_check
          %p242 = pneg %p84
        $region38: #{residual_block_forward.5} parent=31 // pred_check_branch
          %244 = sbr.rel (%p242) target = $region40
        $region39: #{residual_block_forward.5} parent=31 // pred_region
          %245 = dma.done %s239, 16
        $region40: #{residual_block_forward.5} parent=31 // pred_fallthru
          _
        %s246 = sand.u32 %s23, 1
        %s247 = scalar_lea.sflag [#allocation6], %s246
        %s248 = sand.u32 %s99, 1
        %s249 = smul.addr %s248, 128
        %s250 = scalar_lea.vmem [#allocation7], %s249
        // Predicated region
        $region41: #{residual_block_forward.5} parent=31 // pred_check
          %p251 = pneg %p112
        $region42: #{residual_block_forward.5} parent=31 // pred_check_branch
          %253 = sbr.rel (%p251) target = $region44
        $region43: #{residual_block_forward.5} parent=31 // pred_region
          %254 = dma.done %s247, 2048
        $region44: #{residual_block_forward.5} parent=31 // pred_fallthru
          _
        %s255 = sand.u32 %s45, 1
        %s256 = scalar_lea.sflag [#allocation3], %s255
        %s257 = sand.u32 %s45, 1
        %s258 = smul.addr %s257, 128
        %s259 = scalar_lea.vmem [#allocation2], %s258
        %p260 = pneg %p58
        %p261 = pneg %p55
        %s262 = sand.u32 %s23, 1
        %s263 = scalar_lea.sflag [#allocation6], %s262
        %s264 = sand.u32 %s71, 1
        %s265 = scalar_lea.vmem [#allocation5], %s264
        %p266 = pneg %p84
        %p267 = pneg %p81
        %s268 = sand.u32 %s23, 1
        %s269 = scalar_lea.sflag [#allocation6], %s268
        %s270 = sand.u32 %s99, 1
        %s271 = smul.addr %s270, 128
        %s272 = scalar_lea.vmem [#allocation7], %s271
        %p273 = pneg %p112
        %p274 = pneg %p109
        %p275 = pneg %p140
        %p276 = pneg %p137
        %s277 = sand.u32 %s127, 1
        %s278 = scalar_lea.sflag [#allocation4], %s277
        %s279 = sand.u32 %s127, 1
        %s280 = smul.addr %s279, 256
        %s281 = scalar_lea.vmem [#allocation8], %s280
        %s282 = smul.u32 32, %s28
        %s283 = smul.u32 32, %s28
        %s284 = smul.u32 32, %s28
        %v285 = vld [vmem:[%s233] sm:$0xf]
        %v286 = vld [vmem:[%s233 + $0x4] sm:$0xf]
        %v287 = vld [vmem:[%s233 + $0x8] sm:$0xf]
        %v288 = vld [vmem:[%s233 + $0xc] sm:$0xf]
        %v289 = vld [vmem:[%s233 + $0x10] sm:$0xf]
        %v290 = vld [vmem:[%s233 + $0x14] sm:$0xf]
        %v291 = vld [vmem:[%s233 + $0x18] sm:$0xf]
        %v292 = vld [vmem:[%s233 + $0x1c] sm:$0xf]
        %v293 = vld [vmem:[%s233 + $0x20] sm:$0xf]
        %v294 = vld [vmem:[%s233 + $0x24] sm:$0xf]
        %v295 = vld [vmem:[%s233 + $0x28] sm:$0xf]
        %v296 = vld [vmem:[%s233 + $0x2c] sm:$0xf]
        %v297 = vld [vmem:[%s233 + $0x30] sm:$0xf]
        %v298 = vld [vmem:[%s233 + $0x34] sm:$0xf]
        %v299 = vld [vmem:[%s233 + $0x38] sm:$0xf]
        %v300 = vld [vmem:[%s233 + $0x3c] sm:$0xf]
        %v301 = vld [vmem:[%s233 + $0x40] sm:$0xf]
        %v302 = vld [vmem:[%s233 + $0x44] sm:$0xf]
        %v303 = vld [vmem:[%s233 + $0x48] sm:$0xf]
        %v304 = vld [vmem:[%s233 + $0x4c] sm:$0xf]
        %v305 = vld [vmem:[%s233 + $0x50] sm:$0xf]
        %v306 = vld [vmem:[%s233 + $0x54] sm:$0xf]
        %v307 = vld [vmem:[%s233 + $0x58] sm:$0xf]
        %v308 = vld [vmem:[%s233 + $0x5c] sm:$0xf]
        %v309 = vld [vmem:[%s233 + $0x60] sm:$0xf]
        %v310 = vld [vmem:[%s233 + $0x64] sm:$0xf]
        %v311 = vld [vmem:[%s233 + $0x68] sm:$0xf]
        %v312 = vld [vmem:[%s233 + $0x6c] sm:$0xf]
        %v313 = vld [vmem:[%s233 + $0x70] sm:$0xf]
        %v314 = vld [vmem:[%s233 + $0x74] sm:$0xf]
        %v315 = vld [vmem:[%s233 + $0x78] sm:$0xf]
        %v316 = vld [vmem:[%s233 + $0x7c] sm:$0xf]
        %v317 = vunpack.c.l.bf16 %v285
        %v318 = vunpack.c.l.bf16 %v286
        %v319 = vunpack.c.l.bf16 %v287
        %v320 = vunpack.c.l.bf16 %v288
        %v321 = vunpack.c.l.bf16 %v289
        %v322 = vunpack.c.l.bf16 %v290
        %v323 = vunpack.c.l.bf16 %v291
        %v324 = vunpack.c.l.bf16 %v292
        %v325 = vunpack.c.l.bf16 %v293
        %v326 = vunpack.c.l.bf16 %v294
        %v327 = vunpack.c.l.bf16 %v295
        %v328 = vunpack.c.l.bf16 %v296
        %v329 = vunpack.c.l.bf16 %v297
        %v330 = vunpack.c.l.bf16 %v298
        %v331 = vunpack.c.l.bf16 %v299
        %v332 = vunpack.c.l.bf16 %v300
        %v333 = vunpack.c.l.bf16 %v301
        %v334 = vunpack.c.l.bf16 %v302
        %v335 = vunpack.c.l.bf16 %v303
        %v336 = vunpack.c.l.bf16 %v304
        %v337 = vunpack.c.l.bf16 %v305
        %v338 = vunpack.c.l.bf16 %v306
        %v339 = vunpack.c.l.bf16 %v307
        %v340 = vunpack.c.l.bf16 %v308
        %v341 = vunpack.c.l.bf16 %v309
        %v342 = vunpack.c.l.bf16 %v310
        %v343 = vunpack.c.l.bf16 %v311
        %v344 = vunpack.c.l.bf16 %v312
        %v345 = vunpack.c.l.bf16 %v313
        %v346 = vunpack.c.l.bf16 %v314
        %v347 = vunpack.c.l.bf16 %v315
        %v348 = vunpack.c.l.bf16 %v316
        %v349 = vld [vmem:[%s241] sm:$0x1]
        %v351 = vlaneseq
        %v352 = vshrl.u32 %v351, 7
        %v353 = vsub.s32 0, %v352
        %v354 = vrot.slane %v349, %v353
        %v356 = vmul.f32 %v317, %v354
        %v357 = vmul.f32 %v318, %v354
        %v358 = vmul.f32 %v319, %v354
        %v359 = vmul.f32 %v320, %v354
        %v360 = vmul.f32 %v321, %v354
        %v361 = vmul.f32 %v322, %v354
        %v362 = vmul.f32 %v323, %v354
        %v363 = vmul.f32 %v324, %v354
        %v364 = vmul.f32 %v325, %v354
        %v365 = vmul.f32 %v326, %v354
        %v366 = vmul.f32 %v327, %v354
        %v367 = vmul.f32 %v328, %v354
        %v368 = vmul.f32 %v329, %v354
        %v369 = vmul.f32 %v330, %v354
        %v370 = vmul.f32 %v331, %v354
        %v371 = vmul.f32 %v332, %v354
        %v372 = vmul.f32 %v333, %v354
        %v373 = vmul.f32 %v334, %v354
        %v374 = vmul.f32 %v335, %v354
        %v375 = vmul.f32 %v336, %v354
        %v376 = vmul.f32 %v337, %v354
        %v377 = vmul.f32 %v338, %v354
        %v378 = vmul.f32 %v339, %v354
        %v379 = vmul.f32 %v340, %v354
        %v380 = vmul.f32 %v341, %v354
        %v381 = vmul.f32 %v342, %v354
        %v382 = vmul.f32 %v343, %v354
        %v383 = vmul.f32 %v344, %v354
        %v384 = vmul.f32 %v345, %v354
        %v385 = vmul.f32 %v346, %v354
        %v386 = vmul.f32 %v347, %v354
        %v387 = vmul.f32 %v348, %v354
        %v388 = vld [vmem:[%s250] sm:$0xf]
        %v389 = vld [vmem:[%s250 + $0x4] sm:$0xf]
        %v390 = vld [vmem:[%s250 + $0x8] sm:$0xf]
        %v391 = vld [vmem:[%s250 + $0xc] sm:$0xf]
        %v392 = vld [vmem:[%s250 + $0x10] sm:$0xf]
        %v393 = vld [vmem:[%s250 + $0x14] sm:$0xf]
        %v394 = vld [vmem:[%s250 + $0x18] sm:$0xf]
        %v395 = vld [vmem:[%s250 + $0x1c] sm:$0xf]
        %v396 = vld [vmem:[%s250 + $0x20] sm:$0xf]
        %v397 = vld [vmem:[%s250 + $0x24] sm:$0xf]
        %v398 = vld [vmem:[%s250 + $0x28] sm:$0xf]
        %v399 = vld [vmem:[%s250 + $0x2c] sm:$0xf]
        %v400 = vld [vmem:[%s250 + $0x30] sm:$0xf]
        %v401 = vld [vmem:[%s250 + $0x34] sm:$0xf]
        %v402 = vld [vmem:[%s250 + $0x38] sm:$0xf]
        %v403 = vld [vmem:[%s250 + $0x3c] sm:$0xf]
        %v404 = vld [vmem:[%s250 + $0x40] sm:$0xf]
        %v405 = vld [vmem:[%s250 + $0x44] sm:$0xf]
        %v406 = vld [vmem:[%s250 + $0x48] sm:$0xf]
        %v407 = vld [vmem:[%s250 + $0x4c] sm:$0xf]
        %v408 = vld [vmem:[%s250 + $0x50] sm:$0xf]
        %v409 = vld [vmem:[%s250 + $0x54] sm:$0xf]
        %v410 = vld [vmem:[%s250 + $0x58] sm:$0xf]
        %v411 = vld [vmem:[%s250 + $0x5c] sm:$0xf]
        %v412 = vld [vmem:[%s250 + $0x60] sm:$0xf]
        %v413 = vld [vmem:[%s250 + $0x64] sm:$0xf]
        %v414 = vld [vmem:[%s250 + $0x68] sm:$0xf]
        %v415 = vld [vmem:[%s250 + $0x6c] sm:$0xf]
        %v416 = vld [vmem:[%s250 + $0x70] sm:$0xf]
        %v417 = vld [vmem:[%s250 + $0x74] sm:$0xf]
        %v418 = vld [vmem:[%s250 + $0x78] sm:$0xf]
        %v419 = vld [vmem:[%s250 + $0x7c] sm:$0xf]
        %v420 = vunpack.c.l.bf16 %v388
        %v421 = vunpack.c.l.bf16 %v389
        %v422 = vunpack.c.l.bf16 %v390
        %v423 = vunpack.c.l.bf16 %v391
        %v424 = vunpack.c.l.bf16 %v392
        %v425 = vunpack.c.l.bf16 %v393
        %v426 = vunpack.c.l.bf16 %v394
        %v427 = vunpack.c.l.bf16 %v395
        %v428 = vunpack.c.l.bf16 %v396
        %v429 = vunpack.c.l.bf16 %v397
        %v430 = vunpack.c.l.bf16 %v398
        %v431 = vunpack.c.l.bf16 %v399
        %v432 = vunpack.c.l.bf16 %v400
        %v433 = vunpack.c.l.bf16 %v401
        %v434 = vunpack.c.l.bf16 %v402
        %v435 = vunpack.c.l.bf16 %v403
        %v436 = vunpack.c.l.bf16 %v404
        %v437 = vunpack.c.l.bf16 %v405
        %v438 = vunpack.c.l.bf16 %v406
        %v439 = vunpack.c.l.bf16 %v407
        %v440 = vunpack.c.l.bf16 %v408
        %v441 = vunpack.c.l.bf16 %v409
        %v442 = vunpack.c.l.bf16 %v410
        %v443 = vunpack.c.l.bf16 %v411
        %v444 = vunpack.c.l.bf16 %v412
        %v445 = vunpack.c.l.bf16 %v413
        %v446 = vunpack.c.l.bf16 %v414
        %v447 = vunpack.c.l.bf16 %v415
        %v448 = vunpack.c.l.bf16 %v416
        %v449 = vunpack.c.l.bf16 %v417
        %v450 = vunpack.c.l.bf16 %v418
        %v451 = vunpack.c.l.bf16 %v419
        %v452 = vadd.f32 %v356, %v420
        %v453 = vadd.f32 %v357, %v421
        %v454 = vadd.f32 %v358, %v422
        %v455 = vadd.f32 %v359, %v423
        %v456 = vadd.f32 %v360, %v424
        %v457 = vadd.f32 %v361, %v425
        %v458 = vadd.f32 %v362, %v426
        %v459 = vadd.f32 %v363, %v427
        %v460 = vadd.f32 %v364, %v428
        %v461 = vadd.f32 %v365, %v429
        %v462 = vadd.f32 %v366, %v430
        %v463 = vadd.f32 %v367, %v431
        %v464 = vadd.f32 %v368, %v432
        %v465 = vadd.f32 %v369, %v433
        %v466 = vadd.f32 %v370, %v434
        %v467 = vadd.f32 %v371, %v435
        %v468 = vadd.f32 %v372, %v436
        %v469 = vadd.f32 %v373, %v437
        %v470 = vadd.f32 %v374, %v438
        %v471 = vadd.f32 %v375, %v439
        %v472 = vadd.f32 %v376, %v440
        %v473 = vadd.f32 %v377, %v441
        %v474 = vadd.f32 %v378, %v442
        %v475 = vadd.f32 %v379, %v443
        %v476 = vadd.f32 %v380, %v444
        %v477 = vadd.f32 %v381, %v445
        %v478 = vadd.f32 %v382, %v446
        %v479 = vadd.f32 %v383, %v447
        %v480 = vadd.f32 %v384, %v448
        %v481 = vadd.f32 %v385, %v449
        %v482 = vadd.f32 %v386, %v450
        %v483 = vadd.f32 %v387, %v451
        %v484 = vmax.f32 %v452, 0.0
        %v485 = vmax.f32 %v453, 0.0
        %v486 = vmax.f32 %v454, 0.0
        %v487 = vmax.f32 %v455, 0.0
        %v488 = vmax.f32 %v456, 0.0
        %v489 = vmax.f32 %v457, 0.0
        %v490 = vmax.f32 %v458, 0.0
        %v491 = vmax.f32 %v459, 0.0
        %v492 = vmax.f32 %v460, 0.0
        %v493 = vmax.f32 %v461, 0.0
        %v494 = vmax.f32 %v462, 0.0
        %v495 = vmax.f32 %v463, 0.0
        %v496 = vmax.f32 %v464, 0.0
        %v497 = vmax.f32 %v465, 0.0
        %v498 = vmax.f32 %v466, 0.0
        %v499 = vmax.f32 %v467, 0.0
        %v500 = vmax.f32 %v468, 0.0
        %v501 = vmax.f32 %v469, 0.0
        %v502 = vmax.f32 %v470, 0.0
        %v503 = vmax.f32 %v471, 0.0
        %v504 = vmax.f32 %v472, 0.0
        %v505 = vmax.f32 %v473, 0.0
        %v506 = vmax.f32 %v474, 0.0
        %v507 = vmax.f32 %v475, 0.0
        %v508 = vmax.f32 %v476, 0.0
        %v509 = vmax.f32 %v477, 0.0
        %v510 = vmax.f32 %v478, 0.0
        %v511 = vmax.f32 %v479, 0.0
        %v512 = vmax.f32 %v480, 0.0
        %v513 = vmax.f32 %v481, 0.0
        %v514 = vmax.f32 %v482, 0.0
        %v515 = vmax.f32 %v483, 0.0
        %vm516 = vcmask 261120
        %517 = vst.msk [vmem:[%s281] sm:$0xff] %vm516, %v484
        %518 = vst.msk [vmem:[%s281 + $0x8] sm:$0xff] %vm516, %v485
        %519 = vst.msk [vmem:[%s281 + $0x10] sm:$0xff] %vm516, %v486
        %520 = vst.msk [vmem:[%s281 + $0x18] sm:$0xff] %vm516, %v487
        %521 = vst.msk [vmem:[%s281 + $0x20] sm:$0xff] %vm516, %v488
        %522 = vst.msk [vmem:[%s281 + $0x28] sm:$0xff] %vm516, %v489
        %523 = vst.msk [vmem:[%s281 + $0x30] sm:$0xff] %vm516, %v490
        %524 = vst.msk [vmem:[%s281 + $0x38] sm:$0xff] %vm516, %v491
        %525 = vst.msk [vmem:[%s281 + $0x40] sm:$0xff] %vm516, %v492
        %526 = vst.msk [vmem:[%s281 + $0x48] sm:$0xff] %vm516, %v493
        %527 = vst.msk [vmem:[%s281 + $0x50] sm:$0xff] %vm516, %v494
        %528 = vst.msk [vmem:[%s281 + $0x58] sm:$0xff] %vm516, %v495
        %529 = vst.msk [vmem:[%s281 + $0x60] sm:$0xff] %vm516, %v496
        %530 = vst.msk [vmem:[%s281 + $0x68] sm:$0xff] %vm516, %v497
        %531 = vst.msk [vmem:[%s281 + $0x70] sm:$0xff] %vm516, %v498
        %532 = vst.msk [vmem:[%s281 + $0x78] sm:$0xff] %vm516, %v499
        %533 = vst.msk [vmem:[%s281 + $0x80] sm:$0xff] %vm516, %v500
        %534 = vst.msk [vmem:[%s281 + $0x88] sm:$0xff] %vm516, %v501
        %535 = vst.msk [vmem:[%s281 + $0x90] sm:$0xff] %vm516, %v502
        %536 = vst.msk [vmem:[%s281 + $0x98] sm:$0xff] %vm516, %v503
        %537 = vst.msk [vmem:[%s281 + $0xa0] sm:$0xff] %vm516, %v504
        %538 = vst.msk [vmem:[%s281 + $0xa8] sm:$0xff] %vm516, %v505
        %539 = vst.msk [vmem:[%s281 + $0xb0] sm:$0xff] %vm516, %v506
        %540 = vst.msk [vmem:[%s281 + $0xb8] sm:$0xff] %vm516, %v507
        %541 = vst.msk [vmem:[%s281 + $0xc0] sm:$0xff] %vm516, %v508
        %542 = vst.msk [vmem:[%s281 + $0xc8] sm:$0xff] %vm516, %v509
        %543 = vst.msk [vmem:[%s281 + $0xd0] sm:$0xff] %vm516, %v510
        %544 = vst.msk [vmem:[%s281 + $0xd8] sm:$0xff] %vm516, %v511
        %545 = vst.msk [vmem:[%s281 + $0xe0] sm:$0xff] %vm516, %v512
        %546 = vst.msk [vmem:[%s281 + $0xe8] sm:$0xff] %vm516, %v513
        %547 = vst.msk [vmem:[%s281 + $0xf0] sm:$0xff] %vm516, %v514
        %548 = vst.msk [vmem:[%s281 + $0xf8] sm:$0xff] %vm516, %v515
        %s549 = sand.u32 %s127, 1
        %s550 = scalar_lea.sflag [#allocation4], %s549
        %s551 = sand.u32 %s127, 1
        %s552 = smul.addr %s551, 256
        %s553 = scalar_lea.vmem [#allocation8], %s552
        // Predicated region
        $region45: #{residual_block_forward.5} parent=31 // pred_check
          %p554 = pneg %p137
        $region46: #{residual_block_forward.5} parent=31 // pred_check_branch
          %556 = sbr.rel (%p554) target = $region48
        $region47: #{residual_block_forward.5} parent=31 // pred_region
          %s557 = smul.u32 32, %s28
          %s559 = ssub.s32 4096, 4096
          %560 = vsyncadd %s550, %s559
          %s561 = smul.addr %s27, 32
          %s562 = sadd.s32 %s557, %s561
          %s563 = smul.addr %s562, 128
          %s564 = scalar_lea.hbm %s3, %s563
          %s565 = sshll.u32 %s553, 4
          %s566 = int_to_ptr.vmem [resolvable:$true] %s565
          %571 = dma.vmem_to_hbm [thread:$0]  %s566, 4096, %s564, %s550, 128, 128, 8
        $region48: #{residual_block_forward.5} parent=31 // pred_fallthru
          _
      $region32: #{residual_block_forward.5} parent=5 // pred_fallthru
        _
      %p572 = scmp.le.s32.totalorder 2, %s18
      // Predicated region
      $region49: #{residual_block_forward.5} parent=5 // pred_check
        %p573 = pneg %p572
      $region50: #{residual_block_forward.5} parent=5 // pred_check_branch
        %575 = sbr.rel (%p573) target = $region52
      $region51: #{residual_block_forward.5} parent=5 // pred_region
        %s576 = ssub.s32 %s18, 2
        // Predicated region
        $region53: #{residual_block_forward.5} parent=51 // pred_check
          %p577 = pneg %p143
        $region54: #{residual_block_forward.5} parent=51 // pred_check_branch
          %579 = sbr.rel (%p577) target = $region56
        $region55: #{residual_block_forward.5} parent=51 // pred_region
          %s580 = sand.u32 %s128, 1
          %s581 = scalar_lea.sflag [#allocation4], %s580
          %s582 = sand.u32 %s128, 1
          %s583 = smul.addr %s582, 256
          %s584 = scalar_lea.vmem [#allocation8], %s583
          %585 = dma.done %s581, 4096
        $region56: #{residual_block_forward.5} parent=51 // pred_fallthru
          _
      $region52: #{residual_block_forward.5} parent=5 // pred_fallthru
        _
    $region6: #{residual_block_forward.5} parent=1 // loop_footer
      %s22 = sadd.s32 1, %s18
    $region7: #{residual_block_forward.5} parent=1 // loop_footer_branch
      %17 = sbr.rel target = $region3
    $region8: #{residual_block_forward.5} parent=1 // loop_exit
      _
    %586 = vsyncpa [#allocation3], 1
    %s587 = scalar_lea.sflag [#allocation3], 1
    %588 = vsyncpa %s587, 1
    %589 = vsyncpa [#allocation6], 1
    %s590 = scalar_lea.sflag [#allocation6], 1
    %591 = vsyncpa %s590, 1
    %592 = vsyncpa [#allocation4], 1
    %s593 = scalar_lea.sflag [#allocation4], 1
    %594 = vsyncpa %s593, 1

// kernel: residual_block_forward.3
$region0: #{residual_block_forward.3}
  #allocation0 [shape = 'u32[]', space=smem, size = 0x4, offset = 0x4, fixed_abs, tag = 'smem constant byte address 0x4 - core index']
  #allocation1 [shape = 'u32[144,128]{1,0:T(1,128)}', space=vmem, size = 0x12000, scoped, tag = 'internal scratch']
  #allocation2 [shape = 'bf16[1,18,18,32]{3,2,1,0:T(8,128)(2,1)}', space=vmem, size = 0x1b000, scoped, tag = 'scratch operand']
  %s0 = inlined_call_operand.hbm [shape: bf16[2,1,18,18,32], index: 0, kind: input, shape index: {}, may-alias: {0,1,2}]
  %s1 = inlined_call_operand.hbm [shape: bf16[2,1,18,18,32], index: 1, kind: input, shape index: {}, may-alias: {0,1,2}]
  %s2 = inlined_call_operand.hbm [shape: bf16[2,1,18,18,32], index: 2, kind: input, shape index: {}, may-alias: {0,1,2}]
  %s3 = inlined_call_operand.hbm [shape: bf16[9,32,32], index: 3, kind: input, shape index: {}]
  %s4 = inlined_call_operand.hbm [shape: f32[1,32], index: 4, kind: input, shape index: {}]
  %s5 = inlined_call_operand.hbm [shape: bf16[2,256,32], index: 5, kind: output, shape index: {}]
  %s6 = sld [smem:[#allocation0]]
  $region73: #{residual_block_forward.3} parent=0
    _
  %s8 = ssub.s32 1, %s6
  %s9 = scalar_select 0, %s8, %s6
  $region1: #{residual_block_forward.3} parent=0
    #allocation3 [shape = 'u8[196608]{0}', space=vmem, size = 0x30000, scoped, tag = 'input window, operand 0']
    #allocation4 [shape = 's32[2]{0}', space=sflag, size = 0x8, scoped, tag = 'scoped memory for residual_block_forward.3']
    #allocation5 [shape = 's32[2]{0}', space=sflag, size = 0x8, scoped, tag = 'scoped memory for residual_block_forward.3']
    #allocation6 [shape = 'u8[12288]{0}', space=vmem, size = 0x3000, scoped, tag = 'input window, operand 1']
    #allocation7 [shape = 's32[2]{0}', space=sflag, size = 0x8, scoped, tag = 'scoped memory for residual_block_forward.3']
    #allocation8 [shape = 'u8[12288]{0}', space=vmem, size = 0x3000, scoped, tag = 'input window, operand 2']
    #allocation9 [shape = 'u8[73728]{0}', space=vmem, size = 0x12000, scoped, tag = 'input window, operand 3, single buffered']
    #allocation10 [shape = 's32[1]{0}', space=sflag, size = 0x4, scoped, tag = 'scoped memory for residual_block_forward.3']
    #allocation11 [shape = 'u8[512]{0}', space=vmem, size = 0x400, scoped, tag = 'input window, operand 4, single buffered']
    #allocation12 [shape = 'u8[131072]{0}', space=vmem, size = 0x20000, scoped, tag = 'output window, operand 0']
    %10 = vsyncpa [#allocation4], 0
    %s11 = scalar_lea.sflag [#allocation4], 1
    %12 = vsyncpa %s11, 0
    %13 = vsyncpa [#allocation7], 0
    %s14 = scalar_lea.sflag [#allocation7], 1
    %15 = vsyncpa %s14, 0
    %16 = vsyncpa [#allocation10], 0
    %17 = vsyncpa [#allocation5], 0
    %s18 = scalar_lea.sflag [#allocation5], 1
    %19 = vsyncpa %s18, 0
    loop: start=0, step=1, limit=4
    $region2: #{residual_block_forward.3} parent=1 // loop_pre_header
      _
    $region3: #{residual_block_forward.3} parent=1 // loop_header
      %s21 = sphi 0, %s25
      %p22 = scmp.ge.s32.totalorder %s21, 4
      %s28 = sphi 0, %s40
      %s29 = sphi 0, %s36
      %s30 = sphi 0, %s28
      %s31 = sphi 0, %s29
      %s32 = sphi 0, %s30
      %s33 = sphi 0, %s31
      %s45 = sphi 0, %s47
      %s48 = sphi 0, %s45
      %s49 = sphi 0, %s48
      %s65 = sphi 0, %s49
      %s77 = sphi 0, %s79
      %s80 = sphi 0, %s77
      %s81 = sphi 0, %s80
      %s97 = sphi 0, %s81
      %s111 = sphi 0, %s113
      %s114 = sphi 0, %s111
      %s115 = sphi 0, %s114
      %s131 = sphi 0, %s115
      %s135 = sphi 0, %s135
      %s137 = sphi 0, %s135
      %s138 = sphi 0, %s137
      %s152 = sphi 0, %s138
      %s156 = sphi 0, %s156
      %s158 = sphi 0, %s156
      %s159 = sphi 0, %s158
      %s173 = sphi 0, %s159
      %s181 = sphi 0, %s183
      %s184 = sphi 0, %s181
      %s185 = sphi 0, %s184
      %s201 = sphi 0, %s185
    $region4: #{residual_block_forward.3} parent=1 // loop_header_branch
      %24 = sbr.rel (%p22) target = $region8
    $region5: #{residual_block_forward.3} parent=1 // loop_body
      %s26 = ssub.s32 %s21, 1
      %s27 = ssub.s32 %s21, 2
      %s34 = sadd.s32 1, %s29
      %p35 = scmp.ge.s32.totalorder %s34, 1
      %s36 = scalar_select %p35, 0, %s34
      %s37 = sadd.s32 1, %s28
      %s38 = scalar_select %p35, %s37, %s28
      %p39 = scmp.ge.s32.totalorder %s38, 2
      %s40 = scalar_select %p39, 0, %s38
      %s41 = ssub.s32 %s28, %s40
      %s42 = ssub.s32 %s29, %s36
      %s43 = sor.u32 %s41, %s42
      %p44 = scmp.eq.s32.totalorder %s43, 0
      %s46 = sadd.s32 %s45, 1
      %s47 = scalar_select %p44, %s45, %s46
      %p50 = pneg %p44
      %p51 = scmp.eq.s32.totalorder %s21, 1
      %p52 = por %p50, %p51
      %p53 = scmp.ne.s32.totalorder %s45, %s48
      %p54 = scmp.eq.s32.totalorder %s21, 0
      %p55 = por %p53, %p54
      %p56 = scmp.ne.s32.totalorder %s45, %s48
      %p57 = scmp.eq.s32.totalorder %s26, 1
      %p58 = por %p56, %p57
      %p59 = scmp.ne.s32.totalorder %s48, %s49
      %p60 = scmp.eq.s32.totalorder %s26, 0
      %p61 = por %p59, %p60
      %p62 = scmp.ne.s32.totalorder %s48, %s49
      %p63 = scmp.eq.s32.totalorder %s27, 1
      %p64 = por %p62, %p63
      %p66 = scmp.ne.s32.totalorder %s49, %s65
      %p67 = scmp.eq.s32.totalorder %s27, 0
      %p68 = por %p66, %p67
      %s69 = sadd.s32 %s29, 1
      %s70 = smul.u32 %s69, 16
      %s71 = sadd.s32 %s36, 1
      %s72 = smul.u32 %s71, 16
      %s73 = ssub.s32 %s28, %s40
      %s74 = ssub.s32 %s70, %s72
      %s75 = sor.u32 %s73, %s74
      %p76 = scmp.eq.s32.totalorder %s75, 0
      %s78 = sadd.s32 %s77, 1
      %s79 = scalar_select %p76, %s77, %s78
      %p82 = pneg %p76
      %p83 = scmp.eq.s32.totalorder %s21, 1
      %p84 = por %p82, %p83
      %p85 = scmp.ne.s32.totalorder %s77, %s80
      %p86 = scmp.eq.s32.totalorder %s21, 0
      %p87 = por %p85, %p86
      %p88 = scmp.ne.s32.totalorder %s77, %s80
      %p89 = scmp.eq.s32.totalorder %s26, 1
      %p90 = por %p88, %p89
      %p91 = scmp.ne.s32.totalorder %s80, %s81
      %p92 = scmp.eq.s32.totalorder %s26, 0
      %p93 = por %p91, %p92
      %p94 = scmp.ne.s32.totalorder %s80, %s81
      %p95 = scmp.eq.s32.totalorder %s27, 1
      %p96 = por %p94, %p95
      %p98 = scmp.ne.s32.totalorder %s81, %s97
      %p99 = scmp.eq.s32.totalorder %s27, 0
      %p100 = por %p98, %p99
      %s101 = sadd.s32 %s29, 1
      %s102 = smul.u32 %s101, 16
      %s103 = sadd.s32 %s102, 1
      %s104 = sadd.s32 %s36, 1
      %s105 = smul.u32 %s104, 16
      %s106 = sadd.s32 %s105, 1
      %s107 = ssub.s32 %s28, %s40
      %s108 = ssub.s32 %s103, %s106
      %s109 = sor.u32 %s107, %s108
      %p110 = scmp.eq.s32.totalorder %s109, 0
      %s112 = sadd.s32 %s111, 1
      %s113 = scalar_select %p110, %s111, %s112
      %p116 = pneg %p110
      %p117 = scmp.eq.s32.totalorder %s21, 1
      %p118 = por %p116, %p117
      %p119 = scmp.ne.s32.totalorder %s111, %s114
      %p120 = scmp.eq.s32.totalorder %s21, 0
      %p121 = por %p119, %p120
      %p122 = scmp.ne.s32.totalorder %s111, %s114
      %p123 = scmp.eq.s32.totalorder %s26, 1
      %p124 = por %p122, %p123
      %p125 = scmp.ne.s32.totalorder %s114, %s115
      %p126 = scmp.eq.s32.totalorder %s26, 0
      %p127 = por %p125, %p126
      %p128 = scmp.ne.s32.totalorder %s114, %s115
      %p129 = scmp.eq.s32.totalorder %s27, 1
      %p130 = por %p128, %p129
      %p132 = scmp.ne.s32.totalorder %s115, %s131
      %p133 = scmp.eq.s32.totalorder %s27, 0
      %p134 = por %p132, %p133
      %s136 = sadd.s32 %s135, 1
      %p139 = scmp.eq.s32.totalorder %s21, 1
      %p140 = scmp.ne.s32.totalorder %s135, %s137
      %p141 = scmp.eq.s32.totalorder %s21, 0
      %p142 = por %p140, %p141
      %p143 = scmp.ne.s32.totalorder %s135, %s137
      %p144 = scmp.eq.s32.totalorder %s26, 1
      %p145 = por %p143, %p144
      %p146 = scmp.ne.s32.totalorder %s137, %s138
      %p147 = scmp.eq.s32.totalorder %s26, 0
      %p148 = por %p146, %p147
      %p149 = scmp.ne.s32.totalorder %s137, %s138
      %p150 = scmp.eq.s32.totalorder %s27, 1
      %p151 = por %p149, %p150
      %p153 = scmp.ne.s32.totalorder %s138, %s152
      %p154 = scmp.eq.s32.totalorder %s27, 0
      %p155 = por %p153, %p154
      %s157 = sadd.s32 %s156, 1
      %p160 = scmp.eq.s32.totalorder %s21, 1
      %p161 = scmp.ne.s32.totalorder %s156, %s158
      %p162 = scmp.eq.s32.totalorder %s21, 0
      %p163 = por %p161, %p162
      %p164 = scmp.ne.s32.totalorder %s156, %s158
      %p165 = scmp.eq.s32.totalorder %s26, 1
      %p166 = por %p164, %p165
      %p167 = scmp.ne.s32.totalorder %s158, %s159
      %p168 = scmp.eq.s32.totalorder %s26, 0
      %p169 = por %p167, %p168
      %p170 = scmp.ne.s32.totalorder %s158, %s159
      %p171 = scmp.eq.s32.totalorder %s27, 1
      %p172 = por %p170, %p171
      %p174 = scmp.ne.s32.totalorder %s159, %s173
      %p175 = scmp.eq.s32.totalorder %s27, 0
      %p176 = por %p174, %p175
      %s177 = ssub.s32 %s28, %s40
      %s178 = ssub.s32 %s29, %s36
      %s179 = sor.u32 %s177, %s178
      %p180 = scmp.eq.s32.totalorder %s179, 0
      %s182 = sadd.s32 %s181, 1
      %s183 = scalar_select %p180, %s181, %s182
      %p186 = pneg %p180
      %p187 = scmp.eq.s32.totalorder %s21, 1
      %p188 = por %p186, %p187
      %p189 = scmp.ne.s32.totalorder %s181, %s184
      %p190 = scmp.eq.s32.totalorder %s21, 0
      %p191 = por %p189, %p190
      %p192 = scmp.ne.s32.totalorder %s181, %s184
      %p193 = scmp.eq.s32.totalorder %s26, 1
      %p194 = por %p192, %p193
      %p195 = scmp.ne.s32.totalorder %s184, %s185
      %p196 = scmp.eq.s32.totalorder %s26, 0
      %p197 = por %p195, %p196
      %p198 = scmp.ne.s32.totalorder %s184, %s185
      %p199 = scmp.eq.s32.totalorder %s27, 1
      %p200 = por %p198, %p199
      %p202 = scmp.ne.s32.totalorder %s185, %s201
      %p203 = scmp.eq.s32.totalorder %s27, 0
      %p204 = por %p202, %p203
      %p205 = scmp.le.s32.totalorder 1, %s21
      %p206 = scmp.lt.s32.totalorder %s21, 3
      %p207 = pnand %p205, %p206
      %p208 = pneg %p207
      // Predicated region
      $region9: #{residual_block_forward.3} parent=5 // pred_check
        _
      $region10: #{residual_block_forward.3} parent=5 // pred_check_branch
        %210 = sbr.rel (%p207) target = $region12
      $region11: #{residual_block_forward.3} parent=5 // pred_region
        %s211 = ssub.s32 %s21, 1
        // Predicated region
        $region13: #{residual_block_forward.3} parent=11 // pred_check
          %p212 = pneg %p148
        $region14: #{residual_block_forward.3} parent=11 // pred_check_branch
          %214 = sbr.rel (%p212) target = $region16
        $region15: #{residual_block_forward.3} parent=11 // pred_region
          %s216 = ssub.s32 2304, 2304
          %217 = vsyncadd [#allocation10], %s216
          %s218 = sshll.u32 [#allocation9], 4
          %s219 = int_to_ptr.vmem [resolvable:$true] %s218
          %224 = dma.hbm_to_vmem [thread:$0]  %s3, 2304, %s219, [#allocation10], 64, 64, 4
        $region16: #{residual_block_forward.3} parent=11 // pred_fallthru
          _
        // Predicated region
        $region17: #{residual_block_forward.3} parent=11 // pred_check
          %p225 = pneg %p169
        $region18: #{residual_block_forward.3} parent=11 // pred_check_branch
          %227 = sbr.rel (%p225) target = $region20
        $region19: #{residual_block_forward.3} parent=11 // pred_region
          %s229 = ssub.s32 16, 16
          %230 = vsyncadd [#allocation10], %s229
          %s232 = sshll.u32 [#allocation11], 4
          %s233 = int_to_ptr.vmem [resolvable:$true] %s232
          %235 = dma.hbm_to_vmem [thread:$0]  %s4, 16, %s233, [#allocation10]
        $region20: #{residual_block_forward.3} parent=11 // pred_fallthru
          _
      $region12: #{residual_block_forward.3} parent=5 // pred_fallthru
        _
      %p236 = scmp.lt.s32.totalorder %s21, 2
      // Predicated region
      $region21: #{residual_block_forward.3} parent=5 // pred_check
        %p237 = pneg %p236
      $region22: #{residual_block_forward.3} parent=5 // pred_check_branch
        %239 = sbr.rel (%p237) target = $region24
      $region23: #{residual_block_forward.3} parent=5 // pred_region
        // Predicated region
        $region25: #{residual_block_forward.3} parent=23 // pred_check
          %p240 = pneg %p55
        $region26: #{residual_block_forward.3} parent=23 // pred_check_branch
          %242 = sbr.rel (%p240) target = $region28
        $region27: #{residual_block_forward.3} parent=23 // pred_region
          %s243 = sand.u32 %s45, 1
          %s244 = scalar_lea.sflag [#allocation4], %s243
          %s245 = sand.u32 %s45, 1
          %s246 = smul.addr %s245, 192
          %s247 = scalar_lea.vmem [#allocation3], %s246
          %s248 = smul.u32 16, %s29
          %s249 = ssub.s32 18, %s248
          %p250 = scmp.lt.s32.totalorder %s249, 16
          %s251 = scalar_select %p250, %s249, 16
          %s252 = smul.u32 64, %s251
          %s253 = smul.u32 %s252, 3
          %s255 = ssub.s32 3072, %s253
          %256 = vsyncadd %s244, %s255
          %p257 = scmp.ne.s32.totalorder 0, %s253
          %s258 = smul.addr %s248, 3
          %s259 = smul.addr %s28, 54
          %s260 = sadd.s32 %s258, %s259
          %s261 = smul.addr %s260, 64
          %s262 = scalar_lea.hbm %s0, %s261
          %s263 = smul.u32 %s251, 3
          %s264 = smul.u32 4, %s263
          %s265 = sshll.u32 %s247, 4
          %s266 = int_to_ptr.vmem [resolvable:$true] %s265
          %s267 = sshll.u32 %s264, 4
          %271 = dma.hbm_to_vmem [thread:$0]  (%p257), %s262, %s267, %s266, %s244, 64, 64, 4
        $region28: #{residual_block_forward.3} parent=23 // pred_fallthru
          _
        // Predicated region
        $region29: #{residual_block_forward.3} parent=23 // pred_check
          %p272 = pneg %p87
        $region30: #{residual_block_forward.3} parent=23 // pred_check_branch
          %274 = sbr.rel (%p272) target = $region32
        $region31: #{residual_block_forward.3} parent=23 // pred_region
          %s275 = sand.u32 %s21, 1
          %s276 = scalar_lea.sflag [#allocation7], %s275
          %s277 = sand.u32 %s77, 1
          %s278 = smul.addr %s277, 12
          %s279 = scalar_lea.vmem [#allocation6], %s278
          %s280 = sadd.s32 %s29, 1
          %s281 = smul.u32 %s280, 16
          %s283 = ssub.s32 192, 192
          %284 = vsyncadd %s276, %s283
          %s285 = smul.addr %s281, 3
          %s286 = smul.addr %s28, 54
          %s287 = sadd.s32 %s285, %s286
          %s288 = smul.addr %s287, 64
          %s289 = scalar_lea.hbm %s1, %s288
          %s290 = sshll.u32 %s279, 4
          %s291 = int_to_ptr.vmem [resolvable:$true] %s290
          %296 = dma.hbm_to_vmem [thread:$0]  %s289, 192, %s291, %s276, 64, 64, 4
        $region32: #{residual_block_forward.3} parent=23 // pred_fallthru
          _
        // Predicated region
        $region33: #{residual_block_forward.3} parent=23 // pred_check
          %p297 = pneg %p121
        $region34: #{residual_block_forward.3} parent=23 // pred_check_branch
          %299 = sbr.rel (%p297) target = $region36
        $region35: #{residual_block_forward.3} parent=23 // pred_region
          %s300 = sand.u32 %s21, 1
          %s301 = scalar_lea.sflag [#allocation7], %s300
          %s302 = sand.u32 %s111, 1
          %s303 = smul.addr %s302, 12
          %s304 = scalar_lea.vmem [#allocation8], %s303
          %s305 = sadd.s32 %s29, 1
          %s306 = smul.u32 %s305, 16
          %s307 = sadd.s32 %s306, 1
          %s309 = ssub.s32 192, 192
          %310 = vsyncadd %s301, %s309
          %s311 = smul.addr %s307, 3
          %s312 = smul.addr %s28, 54
          %s313 = sadd.s32 %s311, %s312
          %s314 = smul.addr %s313, 64
          %s315 = scalar_lea.hbm %s2, %s314
          %s316 = sshll.u32 %s304, 4
          %s317 = int_to_ptr.vmem [resolvable:$true] %s316
          %322 = dma.hbm_to_vmem [thread:$0]  %s315, 192, %s317, %s301, 64, 64, 4
        $region36: #{residual_block_forward.3} parent=23 // pred_fallthru
          _
      $region24: #{residual_block_forward.3} parent=5 // pred_fallthru
        _
      %p323 = scmp.le.s32.totalorder 1, %s21
      %p324 = scmp.lt.s32.totalorder %s21, 3
      %p325 = pnand %p323, %p324
      %p326 = pneg %p325
      // Predicated region
      $region37: #{residual_block_forward.3} parent=5 // pred_check
        _
      $region38: #{residual_block_forward.3} parent=5 // pred_check_branch
        %328 = sbr.rel (%p325) target = $region40
      $region39: #{residual_block_forward.3} parent=5 // pred_region
        %s329 = ssub.s32 %s21, 1
        %s330 = sand.u32 %s48, 1
        %s331 = scalar_lea.sflag [#allocation4], %s330
        %s332 = sand.u32 %s48, 1
        %s333 = smul.addr %s332, 192
        %s334 = scalar_lea.vmem [#allocation3], %s333
        // Predicated region
        $region41: #{residual_block_forward.3} parent=39 // pred_check
          %p335 = pneg %p61
        $region42: #{residual_block_forward.3} parent=39 // pred_check_branch
          %337 = sbr.rel (%p335) target = $region44
        $region43: #{residual_block_forward.3} parent=39 // pred_region
          %338 = dma.done %s331, 3072
        $region44: #{residual_block_forward.3} parent=39 // pred_fallthru
          _
        %s339 = sand.u32 %s26, 1
        %s340 = scalar_lea.sflag [#allocation7], %s339
        %s341 = sand.u32 %s80, 1
        %s342 = smul.addr %s341, 12
        %s343 = scalar_lea.vmem [#allocation6], %s342
        // Predicated region
        $region45: #{residual_block_forward.3} parent=39 // pred_check
          %p344 = pneg %p93
        $region46: #{residual_block_forward.3} parent=39 // pred_check_branch
          %346 = sbr.rel (%p344) target = $region48
        $region47: #{residual_block_forward.3} parent=39 // pred_region
          %347 = dma.done %s340, 192
        $region48: #{residual_block_forward.3} parent=39 // pred_fallthru
          _
        %s348 = sand.u32 %s26, 1
        %s349 = scalar_lea.sflag [#allocation7], %s348
        %s350 = sand.u32 %s114, 1
        %s351 = smul.addr %s350, 12
        %s352 = scalar_lea.vmem [#allocation8], %s351
        // Predicated region
        $region49: #{residual_block_forward.3} parent=39 // pred_check
          %p353 = pneg %p127
        $region50: #{residual_block_forward.3} parent=39 // pred_check_branch
          %355 = sbr.rel (%p353) target = $region52
        $region51: #{residual_block_forward.3} parent=39 // pred_region
          %356 = dma.done %s349, 192
        $region52: #{residual_block_forward.3} parent=39 // pred_fallthru
          _
        // Predicated region
        $region53: #{residual_block_forward.3} parent=39 // pred_check
          %p357 = pneg %p148
        $region54: #{residual_block_forward.3} parent=39 // pred_check_branch
          %359 = sbr.rel (%p357) target = $region56
        $region55: #{residual_block_forward.3} parent=39 // pred_region
          %360 = dma.done [#allocation10], 2304
        $region56: #{residual_block_forward.3} parent=39 // pred_fallthru
          _
        // Predicated region
        $region57: #{residual_block_forward.3} parent=39 // pred_check
          %p361 = pneg %p169
        $region58: #{residual_block_forward.3} parent=39 // pred_check_branch
          %363 = sbr.rel (%p361) target = $region60
        $region59: #{residual_block_forward.3} parent=39 // pred_region
          %364 = dma.done [#allocation10], 16
        $region60: #{residual_block_forward.3} parent=39 // pred_fallthru
          _
        %s365 = sand.u32 %s48, 1
        %s366 = scalar_lea.sflag [#allocation4], %s365
        %s367 = sand.u32 %s48, 1
        %s368 = smul.addr %s367, 192
        %s369 = scalar_lea.vmem [#allocation3], %s368
        %p370 = pneg %p61
        %p371 = pneg %p58
        %s372 = sand.u32 %s26, 1
        %s373 = scalar_lea.sflag [#allocation7], %s372
        %s374 = sand.u32 %s80, 1
        %s375 = smul.addr %s374, 12
        %s376 = scalar_lea.vmem [#allocation6], %s375
        %p377 = pneg %p93
        %p378 = pneg %p90
        %s379 = sand.u32 %s26, 1
        %s380 = scalar_lea.sflag [#allocation7], %s379
        %s381 = sand.u32 %s114, 1
        %s382 = smul.addr %s381, 12
        %s383 = scalar_lea.vmem [#allocation8], %s382
        %p384 = pneg %p127
        %p385 = pneg %p124
        %p386 = pneg %p148
        %p387 = pneg %p145
        %p388 = pneg %p169
        %p389 = pneg %p166
        %p390 = pneg %p197
        %p391 = pneg %p194
        %s392 = sand.u32 %s184, 1
        %s393 = scalar_lea.sflag [#allocation5], %s392
        %s394 = sand.u32 %s184, 1
        %s395 = smul.addr %s394, 128
        %s396 = scalar_lea.vmem [#allocation12], %s395
        %s397 = smul.u32 16, %s31
        %s398 = ssub.s32 18, %s397
        %p399 = scmp.lt.s32.totalorder %s398, 16
        %s400 = scalar_select %p399, %s398, 16
        %s401 = smul.u32 64, %s400
        %s402 = smul.u32 %s401, 3
        %s403 = sadd.s32 %s31, 1
        %s404 = smul.u32 %s403, 16
        %s405 = sadd.s32 %s31, 1
        %s406 = smul.u32 %s405, 16
        %s407 = sadd.s32 %s406, 1
        %s408 = smul.u32 32, %s31
        %v410 = vld [vmem:[%s334] sm:$0xf]
        %v411 = vld [vmem:[%s334 + $0x4] sm:$0xf]
        %v412 = vld [vmem:[%s334 + $0x8] sm:$0x1]
        %v413 = vld [vmem:[%s334 + $0xc] sm:$0xf]
        %v414 = vld [vmem:[%s334 + $0x10] sm:$0xf]
        %v415 = vld [vmem:[%s334 + $0x14] sm:$0x1]
        %v416 = vld [vmem:[%s334 + $0x18] sm:$0xf]
        %v417 = vld [vmem:[%s334 + $0x1c] sm:$0xf]
        %v418 = vld [vmem:[%s334 + $0x20] sm:$0x1]
        %v419 = vld [vmem:[%s334 + $0x24] sm:$0xf]
        %v420 = vld [vmem:[%s334 + $0x28] sm:$0xf]
        %v421 = vld [vmem:[%s334 + $0x2c] sm:$0x1]
        %v422 = vld [vmem:[%s334 + $0x30] sm:$0xf]
        %v423 = vld [vmem:[%s334 + $0x34] sm:$0xf]
        %v424 = vld [vmem:[%s334 + $0x38] sm:$0x1]
        %v425 = vld [vmem:[%s334 + $0x3c] sm:$0xf]
        %v426 = vld [vmem:[%s334 + $0x40] sm:$0xf]
        %v427 = vld [vmem:[%s334 + $0x44] sm:$0x1]
        %v428 = vld [vmem:[%s334 + $0x48] sm:$0xf]
        %v429 = vld [vmem:[%s334 + $0x4c] sm:$0xf]
        %v430 = vld [vmem:[%s334 + $0x50] sm:$0x1]
        %v431 = vld [vmem:[%s334 + $0x54] sm:$0xf]
        %v432 = vld [vmem:[%s334 + $0x58] sm:$0xf]
        %v433 = vld [vmem:[%s334 + $0x5c] sm:$0x1]
        %v434 = vld [vmem:[%s334 + $0x60] sm:$0xf]
        %v435 = vld [vmem:[%s334 + $0x64] sm:$0xf]
        %v436 = vld [vmem:[%s334 + $0x68] sm:$0x1]
        %v437 = vld [vmem:[%s334 + $0x6c] sm:$0xf]
        %v438 = vld [vmem:[%s334 + $0x70] sm:$0xf]
        %v439 = vld [vmem:[%s334 + $0x74] sm:$0x1]
        %v440 = vld [vmem:[%s334 + $0x78] sm:$0xf]
        %v441 = vld [vmem:[%s334 + $0x7c] sm:$0xf]
        %v442 = vld [vmem:[%s334 + $0x80] sm:$0x1]
        %v443 = vld [vmem:[%s334 + $0x84] sm:$0xf]
        %v444 = vld [vmem:[%s334 + $0x88] sm:$0xf]
        %v445 = vld [vmem:[%s334 + $0x8c] sm:$0x1]
        %v446 = vld [vmem:[%s334 + $0x90] sm:$0xf]
        %v447 = vld [vmem:[%s334 + $0x94] sm:$0xf]
        %v448 = vld [vmem:[%s334 + $0x98] sm:$0x1]
        %v449 = vld [vmem:[%s334 + $0x9c] sm:$0xf]
        %v450 = vld [vmem:[%s334 + $0xa0] sm:$0xf]
        %v451 = vld [vmem:[%s334 + $0xa4] sm:$0x1]
        %v452 = vld [vmem:[%s334 + $0xa8] sm:$0xf]
        %v453 = vld [vmem:[%s334 + $0xac] sm:$0xf]
        %v454 = vld [vmem:[%s334 + $0xb0] sm:$0x1]
        %v455 = vld [vmem:[%s334 + $0xb4] sm:$0xf]
        %v456 = vld [vmem:[%s334 + $0xb8] sm:$0xf]
        %v457 = vld [vmem:[%s334 + $0xbc] sm:$0x1]
        %vm458 = vcmask 257024
        %459 = vst.msk [vmem:[#allocation2] sm:$0xf] %vm458, %v410
        %460 = vst.msk [vmem:[#allocation2 + $0x4] sm:$0xf] %vm458, %v411
        %vm461 = vcmask 253952
        %462 = vst.msk [vmem:[#allocation2 + $0x8] sm:$0x1] %vm461, %v412
        %463 = vst.msk [vmem:[#allocation2 + $0xc] sm:$0xf] %vm458, %v413
        %464 = vst.msk [vmem:[#allocation2 + $0x10] sm:$0xf] %vm458, %v414
        %465 = vst.msk [vmem:[#allocation2 + $0x14] sm:$0x1] %vm461, %v415
        %466 = vst.msk [vmem:[#allocation2 + $0x18] sm:$0xf] %vm458, %v416
        %467 = vst.msk [vmem:[#allocation2 + $0x1c] sm:$0xf] %vm458, %v417
        %468 = vst.msk [vmem:[#allocation2 + $0x20] sm:$0x1] %vm461, %v418
        %469 = vst.msk [vmem:[#allocation2 + $0x24] sm:$0xf] %vm458, %v419
        %470 = vst.msk [vmem:[#allocation2 + $0x28] sm:$0xf] %vm458, %v420
        %471 = vst.msk [vmem:[#allocation2 + $0x2c] sm:$0x1] %vm461, %v421
        %472 = vst.msk [vmem:[#allocation2 + $0x30] sm:$0xf] %vm458, %v422
        %473 = vst.msk [vmem:[#allocation2 + $0x34] sm:$0xf] %vm458, %v423
        %474 = vst.msk [vmem:[#allocation2 + $0x38] sm:$0x1] %vm461, %v424
        %475 = vst.msk [vmem:[#allocation2 + $0x3c] sm:$0xf] %vm458, %v425
        %476 = vst.msk [vmem:[#allocation2 + $0x40] sm:$0xf] %vm458, %v426
        %477 = vst.msk [vmem:[#allocation2 + $0x44] sm:$0x1] %vm461, %v427
        %478 = vst.msk [vmem:[#allocation2 + $0x48] sm:$0xf] %vm458, %v428
        %479 = vst.msk [vmem:[#allocation2 + $0x4c] sm:$0xf] %vm458, %v429
        %480 = vst.msk [vmem:[#allocation2 + $0x50] sm:$0x1] %vm461, %v430
        %481 = vst.msk [vmem:[#allocation2 + $0x54] sm:$0xf] %vm458, %v431
        %482 = vst.msk [vmem:[#allocation2 + $0x58] sm:$0xf] %vm458, %v432
        %483 = vst.msk [vmem:[#allocation2 + $0x5c] sm:$0x1] %vm461, %v433
        %484 = vst.msk [vmem:[#allocation2 + $0x60] sm:$0xf] %vm458, %v434
        %485 = vst.msk [vmem:[#allocation2 + $0x64] sm:$0xf] %vm458, %v435
        %486 = vst.msk [vmem:[#allocation2 + $0x68] sm:$0x1] %vm461, %v436
        %487 = vst.msk [vmem:[#allocation2 + $0x6c] sm:$0xf] %vm458, %v437
        %488 = vst.msk [vmem:[#allocation2 + $0x70] sm:$0xf] %vm458, %v438
        %489 = vst.msk [vmem:[#allocation2 + $0x74] sm:$0x1] %vm461, %v439
        %490 = vst.msk [vmem:[#allocation2 + $0x78] sm:$0xf] %vm458, %v440
        %491 = vst.msk [vmem:[#allocation2 + $0x7c] sm:$0xf] %vm458, %v441
        %492 = vst.msk [vmem:[#allocation2 + $0x80] sm:$0x1] %vm461, %v442
        %493 = vst.msk [vmem:[#allocation2 + $0x84] sm:$0xf] %vm458, %v443
        %494 = vst.msk [vmem:[#allocation2 + $0x88] sm:$0xf] %vm458, %v444
        %495 = vst.msk [vmem:[#allocation2 + $0x8c] sm:$0x1] %vm461, %v445
        %496 = vst.msk [vmem:[#allocation2 + $0x90] sm:$0xf] %vm458, %v446
        %497 = vst.msk [vmem:[#allocation2 + $0x94] sm:$0xf] %vm458, %v447
        %498 = vst.msk [vmem:[#allocation2 + $0x98] sm:$0x1] %vm461, %v448
        %499 = vst.msk [vmem:[#allocation2 + $0x9c] sm:$0xf] %vm458, %v449
        %500 = vst.msk [vmem:[#allocation2 + $0xa0] sm:$0xf] %vm458, %v450
        %501 = vst.msk [vmem:[#allocation2 + $0xa4] sm:$0x1] %vm461, %v451
        %502 = vst.msk [vmem:[#allocation2 + $0xa8] sm:$0xf] %vm458, %v452
        %503 = vst.msk [vmem:[#allocation2 + $0xac] sm:$0xf] %vm458, %v453
        %504 = vst.msk [vmem:[#allocation2 + $0xb0] sm:$0x1] %vm461, %v454
        %505 = vst.msk [vmem:[#allocation2 + $0xb4] sm:$0xf] %vm458, %v455
        %506 = vst.msk [vmem:[#allocation2 + $0xb8] sm:$0xf] %vm458, %v456
        %507 = vst.msk [vmem:[#allocation2 + $0xbc] sm:$0x1] %vm461, %v457
        %v508 = vld [vmem:[%s343] sm:$0xf]
        %v509 = vld [vmem:[%s343 + $0x4] sm:$0xf]
        %v510 = vld [vmem:[%s343 + $0x8] sm:$0x1]
        %s511 = scalar_lea.vmem [#allocation2], 192
        %512 = vst.msk [vmem:[%s511] sm:$0xf] %vm458, %v508
        %513 = vst.msk [vmem:[%s511 + $0x4] sm:$0xf] %vm458, %v509
        %514 = vst.msk [vmem:[%s511 + $0x8] sm:$0x1] %vm461, %v510
        %v515 = vld [vmem:[%s352] sm:$0xf]
        %v516 = vld [vmem:[%s352 + $0x4] sm:$0xf]
        %v517 = vld [vmem:[%s352 + $0x8] sm:$0x1]
        %s518 = scalar_lea.vmem [#allocation2], 204
        %519 = vst.msk [vmem:[%s518] sm:$0xf] %vm458, %v515
        %520 = vst.msk [vmem:[%s518 + $0x4] sm:$0xf] %vm458, %v516
        %521 = vst.msk [vmem:[%s518 + $0x8] sm:$0x1] %vm461, %v517
        %v522 = vld [vmem:[#allocation2] sm:$0xf]
        %v523 = vld [vmem:[#allocation2 + $0x4] sm:$0xf]
        %v524 = vld [vmem:[#allocation2 + $0xc] sm:$0xf]
        %v525 = vld [vmem:[#allocation2 + $0x10] sm:$0xf]
        %v526 = vld [vmem:[#allocation2 + $0x18] sm:$0xf]
        %v527 = vld [vmem:[#allocation2 + $0x1c] sm:$0xf]
        %v528 = vld [vmem:[#allocation2 + $0x24] sm:$0xf]
        %v529 = vld [vmem:[#allocation2 + $0x28] sm:$0xf]
        %v530 = vld [vmem:[#allocation2 + $0x30] sm:$0xf]
        %v531 = vld [vmem:[#allocation2 + $0x34] sm:$0xf]
        %v532 = vld [vmem:[#allocation2 + $0x3c] sm:$0xf]
        %v533 = vld [vmem:[#allocation2 + $0x40] sm:$0xf]
        %v534 = vld [vmem:[#allocation2 + $0x48] sm:$0xf]
        %v535 = vld [vmem:[#allocation2 + $0x4c] sm:$0xf]
        %v536 = vld [vmem:[#allocation2 + $0x54] sm:$0xf]
        %v537 = vld [vmem:[#allocation2 + $0x58] sm:$0xf]
        %v538 = vld [vmem:[#allocation2 + $0x60] sm:$0xf]
        %v539 = vld [vmem:[#allocation2 + $0x64] sm:$0xf]
        %v540 = vld [vmem:[#allocation2 + $0x6c] sm:$0xf]
        %v541 = vld [vmem:[#allocation2 + $0x70] sm:$0xf]
        %v542 = vld [vmem:[#allocation2 + $0x78] sm:$0xf]
        %v543 = vld [vmem:[#allocation2 + $0x7c] sm:$0xf]
        %v544 = vld [vmem:[#allocation2 + $0x84] sm:$0xf]
        %v545 = vld [vmem:[#allocation2 + $0x88] sm:$0xf]
        %v546 = vld [vmem:[#allocation2 + $0x90] sm:$0xf]
        %v547 = vld [vmem:[#allocation2 + $0x94] sm:$0xf]
        %v548 = vld [vmem:[#allocation2 + $0x9c] sm:$0xf]
        %v549 = vld [vmem:[#allocation2 + $0xa0] sm:$0xf]
        %v550 = vld [vmem:[#allocation2 + $0xa8] sm:$0xf]
        %v551 = vld [vmem:[#allocation2 + $0xac] sm:$0xf]
        %v552 = vld [vmem:[#allocation2 + $0xb4] sm:$0xf]
        %v553 = vld [vmem:[#allocation2 + $0xb8] sm:$0xf]
        %v554 = vld [vmem:[#allocation9] sm:$0xf]
        %v555 = vld [vmem:[#allocation9 + $0x4] sm:$0xf]
        %v556 = vld [vmem:[#allocation9 + $0x8] sm:$0xf]
        %v557 = vld [vmem:[#allocation9 + $0xc] sm:$0xf]
        %v558 = vld [vmem:[#allocation2 + $0x8] sm:$0x1]
        %v559 = vld [vmem:[#allocation2 + $0x14] sm:$0x1]
        %v560 = vld [vmem:[#allocation2 + $0x20] sm:$0x1]
        %v561 = vld [vmem:[#allocation2 + $0x2c] sm:$0x1]
        %v562 = vld [vmem:[#allocation2 + $0x38] sm:$0x1]
        %v563 = vld [vmem:[#allocation2 + $0x44] sm:$0x1]
        %v564 = vld [vmem:[#allocation2 + $0x50] sm:$0x1]
        %v565 = vld [vmem:[#allocation2 + $0x5c] sm:$0x1]
        %v566 = vld [vmem:[#allocation2 + $0x68] sm:$0x1]
        %v567 = vld [vmem:[#allocation2 + $0x74] sm:$0x1]
        %v568 = vld [vmem:[#allocation2 + $0x80] sm:$0x1]
        %v569 = vld [vmem:[#allocation2 + $0x8c] sm:$0x1]
        %v570 = vld [vmem:[#allocation2 + $0x98] sm:$0x1]
        %v571 = vld [vmem:[#allocation2 + $0xa4] sm:$0x1]
        %v572 = vld [vmem:[#allocation2 + $0xb0] sm:$0x1]
        %v573 = vld [vmem:[#allocation2 + $0xbc] sm:$0x1]
        %vm574 = vsmask.f32 3328
        %vm575 = vsmask.f32 7440
        %vm576 = vmor %vm574, %vm575
        %v578 = vshrl.u32 %v522, 16
        %v580 = vrot.slane %v578, 4
        %v581 = vshll.u32 %v522, 16
        %v583 = vrot.slane %v581, 5
        %v584 = vor.u32 %v580, %v583
        %v585 = vrot.slane %v584, 4
        %v587 = vshll.u32 %v523, 16
        %v589 = vrot.slane %v587, 5
        %v590 = vsel %vm576, %v585, %v589
        %v591 = vshrl.u32 %v523, 16
        %v593 = vrot.slane %v591, 4
        %v594 = vor.u32 %v593, %v589
        %v595 = vrot.slane %v594, 4
        %v597 = vshll.u32 %v558, 16
        %v599 = vrot.slane %v597, 5
        %v600 = vsel %vm576, %v595, %v599
        %v602 = vshrl.u32 %v524, 16
        %v604 = vrot.slane %v602, 4
        %v605 = vshll.u32 %v524, 16
        %v607 = vrot.slane %v605, 5
        %v608 = vor.u32 %v604, %v607
        %v609 = vrot.slane %v608, 4
        %v611 = vshll.u32 %v525, 16
        %v613 = vrot.slane %v611, 5
        %v614 = vsel %vm576, %v609, %v613
        %v615 = vshrl.u32 %v525, 16
        %v617 = vrot.slane %v615, 4
        %v618 = vor.u32 %v617, %v613
        %v619 = vrot.slane %v618, 4
        %v621 = vshll.u32 %v559, 16
        %v623 = vrot.slane %v621, 5
        %v624 = vsel %vm576, %v619, %v623
        %v626 = vshrl.u32 %v526, 16
        %v628 = vrot.slane %v626, 4
        %v629 = vshll.u32 %v526, 16
        %v631 = vrot.slane %v629, 5
        %v632 = vor.u32 %v628, %v631
        %v633 = vrot.slane %v632, 4
        %v635 = vshll.u32 %v527, 16
        %v637 = vrot.slane %v635, 5
        %v638 = vsel %vm576, %v633, %v637
        %v639 = vshrl.u32 %v527, 16
        %v641 = vrot.slane %v639, 4
        %v642 = vor.u32 %v641, %v637
        %v643 = vrot.slane %v642, 4
        %v645 = vshll.u32 %v560, 16
        %v647 = vrot.slane %v645, 5
        %v648 = vsel %vm576, %v643, %v647
        %v650 = vshrl.u32 %v528, 16
        %v652 = vrot.slane %v650, 4
        %v653 = vshll.u32 %v528, 16
        %v655 = vrot.slane %v653, 5
        %v656 = vor.u32 %v652, %v655
        %v657 = vrot.slane %v656, 4
        %v659 = vshll.u32 %v529, 16
        %v661 = vrot.slane %v659, 5
        %v662 = vsel %vm576, %v657, %v661
        %v663 = vshrl.u32 %v529, 16
        %v665 = vrot.slane %v663, 4
        %v666 = vor.u32 %v665, %v661
        %v667 = vrot.slane %v666, 4
        %v669 = vshll.u32 %v561, 16
        %v671 = vrot.slane %v669, 5
        %v672 = vsel %vm576, %v667, %v671
        %v674 = vshrl.u32 %v530, 16
        %v676 = vrot.slane %v674, 4
        %v677 = vshll.u32 %v530, 16
        %v679 = vrot.slane %v677, 5
        %v680 = vor.u32 %v676, %v679
        %v681 = vrot.slane %v680, 4
        %v683 = vshll.u32 %v531, 16
        %v685 = vrot.slane %v683, 5
        %v686 = vsel %vm576, %v681, %v685
        %v687 = vshrl.u32 %v531, 16
        %v689 = vrot.slane %v687, 4
        %v690 = vor.u32 %v689, %v685
        %v691 = vrot.slane %v690, 4
        %v693 = vshll.u32 %v562, 16
        %v695 = vrot.slane %v693, 5
        %v696 = vsel %vm576, %v691, %v695
        %v698 = vshrl.u32 %v532, 16
        %v700 = vrot.slane %v698, 4
        %v701 = vshll.u32 %v532, 16
        %v703 = vrot.slane %v701, 5
        %v704 = vor.u32 %v700, %v703
        %v705 = vrot.slane %v704, 4
        %v707 = vshll.u32 %v533, 16
        %v709 = vrot.slane %v707, 5
        %v710 = vsel %vm576, %v705, %v709
        %v711 = vshrl.u32 %v533, 16
        %v713 = vrot.slane %v711, 4
        %v714 = vor.u32 %v713, %v709
        %v715 = vrot.slane %v714, 4
        %v717 = vshll.u32 %v563, 16
        %v719 = vrot.slane %v717, 5
        %v720 = vsel %vm576, %v715, %v719
        %v722 = vshrl.u32 %v534, 16
        %v724 = vrot.slane %v722, 4
        %v725 = vshll.u32 %v534, 16
        %v727 = vrot.slane %v725, 5
        %v728 = vor.u32 %v724, %v727
        %v729 = vrot.slane %v728, 4
        %v731 = vshll.u32 %v535, 16
        %v733 = vrot.slane %v731, 5
        %v734 = vsel %vm576, %v729, %v733
        %v735 = vshrl.u32 %v535, 16
        %v737 = vrot.slane %v735, 4
        %v738 = vor.u32 %v737, %v733
        %v739 = vrot.slane %v738, 4
        %v741 = vshll.u32 %v564, 16
        %v743 = vrot.slane %v741, 5
        %v744 = vsel %vm576, %v739, %v743
        %v746 = vshrl.u32 %v536, 16
        %v748 = vrot.slane %v746, 4
        %v749 = vshll.u32 %v536, 16
        %v751 = vrot.slane %v749, 5
        %v752 = vor.u32 %v748, %v751
        %v753 = vrot.slane %v752, 4
        %v755 = vshll.u32 %v537, 16
        %v757 = vrot.slane %v755, 5
        %v758 = vsel %vm576, %v753, %v757
        %v759 = vshrl.u32 %v537, 16
        %v761 = vrot.slane %v759, 4
        %v762 = vor.u32 %v761, %v757
        %v763 = vrot.slane %v762, 4
        %v765 = vshll.u32 %v565, 16
        %v767 = vrot.slane %v765, 5
        %v768 = vsel %vm576, %v763, %v767
        %v770 = vshrl.u32 %v538, 16
        %v772 = vrot.slane %v770, 4
        %v773 = vshll.u32 %v538, 16
        %v775 = vrot.slane %v773, 5
        %v776 = vor.u32 %v772, %v775
        %v777 = vrot.slane %v776, 4
        %v779 = vshll.u32 %v539, 16
        %v781 = vrot.slane %v779, 5
        %v782 = vsel %vm576, %v777, %v781
        %v783 = vshrl.u32 %v539, 16
        %v785 = vrot.slane %v783, 4
        %v786 = vor.u32 %v785, %v781
        %v787 = vrot.slane %v786, 4
        %v789 = vshll.u32 %v566, 16
        %v791 = vrot.slane %v789, 5
        %v792 = vsel %vm576, %v787, %v791
        %v794 = vshrl.u32 %v540, 16
        %v796 = vrot.slane %v794, 4
        %v797 = vshll.u32 %v540, 16
        %v799 = vrot.slane %v797, 5
        %v800 = vor.u32 %v796, %v799
        %v801 = vrot.slane %v800, 4
        %v803 = vshll.u32 %v541, 16
        %v805 = vrot.slane %v803, 5
        %v806 = vsel %vm576, %v801, %v805
        %v807 = vshrl.u32 %v541, 16
        %v809 = vrot.slane %v807, 4
        %v810 = vor.u32 %v809, %v805
        %v811 = vrot.slane %v810, 4
        %v813 = vshll.u32 %v567, 16
        %v815 = vrot.slane %v813, 5
        %v816 = vsel %vm576, %v811, %v815
        %v818 = vshrl.u32 %v542, 16
        %v820 = vrot.slane %v818, 4
        %v821 = vshll.u32 %v542, 16
        %v823 = vrot.slane %v821, 5
        %v824 = vor.u32 %v820, %v823
        %v825 = vrot.slane %v824, 4
        %v827 = vshll.u32 %v543, 16
        %v829 = vrot.slane %v827, 5
        %v830 = vsel %vm576, %v825, %v829
        %v831 = vshrl.u32 %v543, 16
        %v833 = vrot.slane %v831, 4
        %v834 = vor.u32 %v833, %v829
        %v835 = vrot.slane %v834, 4
        %v837 = vshll.u32 %v568, 16
        %v839 = vrot.slane %v837, 5
        %v840 = vsel %vm576, %v835, %v839
        %v842 = vshrl.u32 %v544, 16
        %v844 = vrot.slane %v842, 4
        %v845 = vshll.u32 %v544, 16
        %v847 = vrot.slane %v845, 5
        %v848 = vor.u32 %v844, %v847
        %v849 = vrot.slane %v848, 4
        %v851 = vshll.u32 %v545, 16
        %v853 = vrot.slane %v851, 5
        %v854 = vsel %vm576, %v849, %v853
        %v855 = vshrl.u32 %v545, 16
        %v857 = vrot.slane %v855, 4
        %v858 = vor.u32 %v857, %v853
        %v859 = vrot.slane %v858, 4
        %v861 = vshll.u32 %v569, 16
        %v863 = vrot.slane %v861, 5
        %v864 = vsel %vm576, %v859, %v863
        %v866 = vshrl.u32 %v546, 16
        %v868 = vrot.slane %v866, 4
        %v869 = vshll.u32 %v546, 16
        %v871 = vrot.slane %v869, 5
        %v872 = vor.u32 %v868, %v871
        %v873 = vrot.slane %v872, 4
        %v875 = vshll.u32 %v547, 16
        %v877 = vrot.slane %v875, 5
        %v878 = vsel %vm576, %v873, %v877
        %v879 = vshrl.u32 %v547, 16
        %v881 = vrot.slane %v879, 4
        %v882 = vor.u32 %v881, %v877
        %v883 = vrot.slane %v882, 4
        %v885 = vshll.u32 %v570, 16
        %v887 = vrot.slane %v885, 5
        %v888 = vsel %vm576, %v883, %v887
        %v890 = vshrl.u32 %v548, 16
        %v892 = vrot.slane %v890, 4
        %v893 = vshll.u32 %v548, 16
        %v895 = vrot.slane %v893, 5
        %v896 = vor.u32 %v892, %v895
        %v897 = vrot.slane %v896, 4
        %v899 = vshll.u32 %v549, 16
        %v901 = vrot.slane %v899, 5
        %v902 = vsel %vm576, %v897, %v901
        %v903 = vshrl.u32 %v549, 16
        %v905 = vrot.slane %v903, 4
        %v906 = vor.u32 %v905, %v901
        %v907 = vrot.slane %v906, 4
        %v909 = vshll.u32 %v571, 16
        %v911 = vrot.slane %v909, 5
        %v912 = vsel %vm576, %v907, %v911
        %v914 = vshrl.u32 %v550, 16
        %v916 = vrot.slane %v914, 4
        %v917 = vshll.u32 %v550, 16
        %v919 = vrot.slane %v917, 5
        %v920 = vor.u32 %v916, %v919
        %v921 = vrot.slane %v920, 4
        %v923 = vshll.u32 %v551, 16
        %v925 = vrot.slane %v923, 5
        %v926 = vsel %vm576, %v921, %v925
        %v927 = vshrl.u32 %v551, 16
        %v929 = vrot.slane %v927, 4
        %v930 = vor.u32 %v929, %v925
        %v931 = vrot.slane %v930, 4
        %v933 = vshll.u32 %v572, 16
        %v935 = vrot.slane %v933, 5
        %v936 = vsel %vm576, %v931, %v935
        %v938 = vshrl.u32 %v552, 16
        %v940 = vrot.slane %v938, 4
        %v941 = vshll.u32 %v552, 16
        %v943 = vrot.slane %v941, 5
        %v944 = vor.u32 %v940, %v943
        %v945 = vrot.slane %v944, 4
        %v947 = vshll.u32 %v553, 16
        %v949 = vrot.slane %v947, 5
        %v950 = vsel %vm576, %v945, %v949
        %v951 = vshrl.u32 %v553, 16
        %v953 = vrot.slane %v951, 4
        %v954 = vor.u32 %v953, %v949
        %v955 = vrot.slane %v954, 4
        %v957 = vshll.u32 %v573, 16
        %v959 = vrot.slane %v957, 5
        %v960 = vsel %vm576, %v955, %v959
        %s961 = scalar_lea.vmem [#allocation9], 16
        %v962 = vld [vmem:[%s961] sm:$0xf]
        %v963 = vld [vmem:[%s961 + $0x4] sm:$0xf]
        %v964 = vld [vmem:[%s961 + $0x8] sm:$0xf]
        %v965 = vld [vmem:[%s961 + $0xc] sm:$0xf]
        %v966 = vunpack.c.l.b16 %v590
        %v967 = vunpack.c.l.b16 %v600
        %v968 = vunpack.c.l.b16 %v614
        %v969 = vunpack.c.l.b16 %v624
        %v970 = vunpack.c.l.b16 %v638
        %v971 = vunpack.c.l.b16 %v648
        %v972 = vunpack.c.l.b16 %v662
        %v973 = vunpack.c.l.b16 %v672
        %v974 = vunpack.c.l.b16 %v686
        %v975 = vunpack.c.l.b16 %v696
        %v976 = vunpack.c.l.b16 %v710
        %v977 = vunpack.c.l.b16 %v720
        %v978 = vunpack.c.l.b16 %v734
        %v979 = vunpack.c.l.b16 %v744
        %v980 = vunpack.c.l.b16 %v758
        %v981 = vunpack.c.l.b16 %v768
        %v982 = vunpack.c.l.b16 %v782
        %v983 = vunpack.c.l.b16 %v792
        %v984 = vunpack.c.l.b16 %v806
        %v985 = vunpack.c.l.b16 %v816
        %v986 = vunpack.c.l.b16 %v830
        %v987 = vunpack.c.l.b16 %v840
        %v988 = vunpack.c.l.b16 %v854
        %v989 = vunpack.c.l.b16 %v864
        %v990 = vunpack.c.l.b16 %v878
        %v991 = vunpack.c.l.b16 %v888
        %v992 = vunpack.c.l.b16 %v902
        %v993 = vunpack.c.l.b16 %v912
        %v994 = vunpack.c.l.b16 %v926
        %v995 = vunpack.c.l.b16 %v936
        %v996 = vunpack.c.l.b16 %v950
        %v997 = vunpack.c.l.b16 %v960
        %v998 = vpack.c.b16 %v967, %v966
        %v999 = vpack.c.b16 %v969, %v968
        %v1000 = vpack.c.b16 %v971, %v970
        %v1001 = vpack.c.b16 %v973, %v972
        %v1002 = vpack.c.b16 %v975, %v974
        %v1003 = vpack.c.b16 %v977, %v976
        %v1004 = vpack.c.b16 %v979, %v978
        %v1005 = vpack.c.b16 %v981, %v980
        %v1006 = vpack.c.b16 %v983, %v982
        %v1007 = vpack.c.b16 %v985, %v984
        %v1008 = vpack.c.b16 %v987, %v986
        %v1009 = vpack.c.b16 %v989, %v988
        %v1010 = vpack.c.b16 %v991, %v990
        %v1011 = vpack.c.b16 %v993, %v992
        %v1012 = vpack.c.b16 %v995, %v994
        %v1013 = vpack.c.b16 %v997, %v996
        %v1018 = vunpack.c.l.b16 %v962
        %v1019 = vunpack.c.l.b16 %v963
        %v1020 = vunpack.c.l.b16 %v964
        %v1021 = vunpack.c.l.b16 %v965
        %v1022 = vpack.c.b16 %v1019, %v1018
        %v1023 = vpack.c.b16 %v1021, %v1020
        %vm1026 = vcmask 261120
        %v1028 = vsel %vm1026, %v998, 0
        %v1031 = vsel %vm1026, %v999, 0
        %v1034 = vsel %vm1026, %v1000, 0
        %v1037 = vsel %vm1026, %v1001, 0
        %v1040 = vsel %vm1026, %v1002, 0
        %v1043 = vsel %vm1026, %v1003, 0
        %v1046 = vsel %vm1026, %v1004, 0
        %v1049 = vsel %vm1026, %v1005, 0
        %v1052 = vsel %vm1026, %v1006, 0
        %v1055 = vsel %vm1026, %v1007, 0
        %v1058 = vsel %vm1026, %v1008, 0
        %v1061 = vsel %vm1026, %v1009, 0
        %v1064 = vsel %vm1026, %v1010, 0
        %v1067 = vsel %vm1026, %v1011, 0
        %v1070 = vsel %vm1026, %v1012, 0
        %v1073 = vsel %vm1026, %v1013, 0
        %1075 = vmatprep.subr.bf16.mxu0 0
        %1076 = vmatpush1.bf16.msra.mxu0 %v1022
        %1077 = vmatprep.subr.bf16.mxu0 0
        %1078 = vmatpush1.bf16.msra.mxu0 %v1023
        %1079 = vmatprep.subr.bf16.mxu0 0
        %1080 = vmatpush1.bf16.msra.mxu0 0
        %1081 = vmatprep.subr.bf16.mxu0 0
        %1082 = vmatpush1.bf16.msra.mxu0 0
        %1083 = vmatprep.subr.bf16.mxu0 0
        %1084 = vmatpush1.bf16.msra.mxu0 0
        %1085 = vmatprep.subr.bf16.mxu0 0
        %1086 = vmatpush1.bf16.msra.mxu0 0
        %1087 = vmatprep.subr.bf16.mxu0 0
        %1088 = vmatpush1.bf16.msra.mxu0 0
        %1089 = vmatprep.subr.bf16.mxu0 0
        %1090 = vmatpush1.bf16.msra.mxu0 0
        %1091 = vmatprep.subr.bf16.mxu0 0
        %1092 = vmatpush1.bf16.msra.mxu0 0
        %1093 = vmatprep.subr.bf16.mxu0 0
        %1094 = vmatpush1.bf16.msra.mxu0 0
        %1095 = vmatprep.subr.bf16.mxu0 0
        %1096 = vmatpush1.bf16.msra.mxu0 0
        %1097 = vmatprep.subr.bf16.mxu0 0
        %1098 = vmatpush1.bf16.msra.mxu0 0
        %1099 = vmatprep.subr.bf16.mxu0 0
        %1100 = vmatpush1.bf16.msra.mxu0 0
        %1101 = vmatprep.subr.bf16.mxu0 0
        %1102 = vmatpush1.bf16.msra.mxu0 0
        %1103 = vmatprep.subr.bf16.mxu0 0
        %1104 = vmatpush1.bf16.msra.mxu0 0
        %1105 = vmatprep.subr.bf16.mxu0 0
        %1106 = vmatpush1.bf16.msra.mxu0 0
        %1107 = vmatprep.mubr.bf16.mxu0 0
        %1108 = vmatmul.mubr.bf16.gmra.mrb[0].mxu0 %v1028
        %v1109 = vpop.f32.mrb[0].mxu0
        %v1110 = vadd.f32 0.0, %v1109
        %v1111 = vpop.f32.mrb[0].mxu0
        %v1112 = vpop.f32.mrb[0].mxu0
        %v1113 = vadd.f32 0.0, %v1112
        %v1114 = vpop.f32.mrb[0].mxu0
        %1115 = vmatprep.mubr.bf16.mxu0 0
        %1116 = vmatmul.mubr.bf16.gmra.mrb[0].mxu0 %v1031
        %v1117 = vpop.f32.mrb[0].mxu0
        %v1118 = vadd.f32 0.0, %v1117
        %v1119 = vpop.f32.mrb[0].mxu0
        %v1120 = vpop.f32.mrb[0].mxu0
        %v1121 = vadd.f32 0.0, %v1120
        %v1122 = vpop.f32.mrb[0].mxu0
        %1123 = vmatprep.mubr.bf16.mxu0 0
        %1124 = vmatmul.mubr.bf16.gmra.mrb[0].mxu0 %v1034
        %v1125 = vpop.f32.mrb[0].mxu0
        %v1126 = vadd.f32 0.0, %v1125
        %v1127 = vpop.f32.mrb[0].mxu0
        %v1128 = vpop.f32.mrb[0].mxu0
        %v1129 = vadd.f32 0.0, %v1128
        %v1130 = vpop.f32.mrb[0].mxu0
        %1131 = vmatprep.mubr.bf16.mxu0 0
        %1132 = vmatmul.mubr.bf16.gmra.mrb[0].mxu0 %v1037
        %v1133 = vpop.f32.mrb[0].mxu0
        %v1134 = vadd.f32 0.0, %v1133
        %v1135 = vpop.f32.mrb[0].mxu0
        %v1136 = vpop.f32.mrb[0].mxu0
        %v1137 = vadd.f32 0.0, %v1136
        %v1138 = vpop.f32.mrb[0].mxu0
        %1139 = vmatprep.mubr.bf16.mxu0 0
        %1140 = vmatmul.mubr.bf16.gmra.mrb[0].mxu0 %v1040
        %v1141 = vpop.f32.mrb[0].mxu0
        %v1142 = vadd.f32 0.0, %v1141
        %v1143 = vpop.f32.mrb[0].mxu0
        %v1144 = vpop.f32.mrb[0].mxu0
        %v1145 = vadd.f32 0.0, %v1144
        %v1146 = vpop.f32.mrb[0].mxu0
        %1147 = vmatprep.mubr.bf16.mxu0 0
        %1148 = vmatmul.mubr.bf16.gmra.mrb[0].mxu0 %v1043
        %v1149 = vpop.f32.mrb[0].mxu0
        %v1150 = vadd.f32 0.0, %v1149
        %v1151 = vpop.f32.mrb[0].mxu0
        %v1152 = vpop.f32.mrb[0].mxu0
        %v1153 = vadd.f32 0.0, %v1152
        %v1154 = vpop.f32.mrb[0].mxu0
        %1155 = vmatprep.mubr.bf16.mxu0 0
        %1156 = vmatmul.mubr.bf16.gmra.mrb[0].mxu0 %v1046
        %v1157 = vpop.f32.mrb[0].mxu0
        %v1158 = vadd.f32 0.0, %v1157
        %v1159 = vpop.f32.mrb[0].mxu0
        %v1160 = vpop.f32.mrb[0].mxu0
        %v1161 = vadd.f32 0.0, %v1160
        %v1162 = vpop.f32.mrb[0].mxu0
        %1163 = vmatprep.mubr.bf16.mxu0 0
        %1164 = vmatmul.mubr.bf16.gmra.mrb[0].mxu0 %v1049
        %v1165 = vpop.f32.mrb[0].mxu0
        %v1166 = vadd.f32 0.0, %v1165
        %v1167 = vpop.f32.mrb[0].mxu0
        %v1168 = vpop.f32.mrb[0].mxu0
        %v1169 = vadd.f32 0.0, %v1168
        %v1170 = vpop.f32.mrb[0].mxu0
        %1171 = vmatprep.mubr.bf16.mxu0 0
        %1172 = vmatmul.mubr.bf16.gmra.mrb[0].mxu0 %v1052
        %v1173 = vpop.f32.mrb[0].mxu0
        %v1174 = vadd.f32 0.0, %v1173
        %v1175 = vpop.f32.mrb[0].mxu0
        %v1176 = vpop.f32.mrb[0].mxu0
        %v1177 = vadd.f32 0.0, %v1176
        %v1178 = vpop.f32.mrb[0].mxu0
        %1179 = vmatprep.mubr.bf16.mxu0 0
        %1180 = vmatmul.mubr.bf16.gmra.mrb[0].mxu0 %v1055
        %v1181 = vpop.f32.mrb[0].mxu0
        %v1182 = vadd.f32 0.0, %v1181
        %v1183 = vpop.f32.mrb[0].mxu0
        %v1184 = vpop.f32.mrb[0].mxu0
        %v1185 = vadd.f32 0.0, %v1184
        %v1186 = vpop.f32.mrb[0].mxu0
        %1187 = vmatprep.mubr.bf16.mxu0 0
        %1188 = vmatmul.mubr.bf16.gmra.mrb[0].mxu0 %v1058
        %v1189 = vpop.f32.mrb[0].mxu0
        %v1190 = vadd.f32 0.0, %v1189
        %v1191 = vpop.f32.mrb[0].mxu0
        %v1192 = vpop.f32.mrb[0].mxu0
        %v1193 = vadd.f32 0.0, %v1192
        %v1194 = vpop.f32.mrb[0].mxu0
        %1195 = vmatprep.mubr.bf16.mxu0 0
        %1196 = vmatmul.mubr.bf16.gmra.mrb[0].mxu0 %v1061
        %v1197 = vpop.f32.mrb[0].mxu0
        %v1198 = vadd.f32 0.0, %v1197
        %v1199 = vpop.f32.mrb[0].mxu0
        %v1200 = vpop.f32.mrb[0].mxu0
        %v1201 = vadd.f32 0.0, %v1200
        %v1202 = vpop.f32.mrb[0].mxu0
        %1203 = vmatprep.mubr.bf16.mxu0 0
        %1204 = vmatmul.mubr.bf16.gmra.mrb[0].mxu0 %v1064
        %v1205 = vpop.f32.mrb[0].mxu0
        %v1206 = vadd.f32 0.0, %v1205
        %v1207 = vpop.f32.mrb[0].mxu0
        %v1208 = vpop.f32.mrb[0].mxu0
        %v1209 = vadd.f32 0.0, %v1208
        %v1210 = vpop.f32.mrb[0].mxu0
        %1211 = vmatprep.mubr.bf16.mxu0 0
        %1212 = vmatmul.mubr.bf16.gmra.mrb[0].mxu0 %v1067
        %v1213 = vpop.f32.mrb[0].mxu0
        %v1214 = vadd.f32 0.0, %v1213
        %v1215 = vpop.f32.mrb[0].mxu0
        %v1216 = vpop.f32.mrb[0].mxu0
        %v1217 = vadd.f32 0.0, %v1216
        %v1218 = vpop.f32.mrb[0].mxu0
        %1219 = vmatprep.mubr.bf16.mxu0 0
        %1220 = vmatmul.mubr.bf16.gmra.mrb[0].mxu0 %v1070
        %v1221 = vpop.f32.mrb[0].mxu0
        %v1222 = vadd.f32 0.0, %v1221
        %v1223 = vpop.f32.mrb[0].mxu0
        %v1224 = vpop.f32.mrb[0].mxu0
        %v1225 = vadd.f32 0.0, %v1224
        %v1226 = vpop.f32.mrb[0].mxu0
        %1227 = vmatprep.mubr.bf16.mxu0 0
        %1228 = vmatmul.mubr.bf16.gmra.mrb[0].mxu0 %v1073
        %v1229 = vpop.f32.mrb[0].mxu0
        %v1230 = vadd.f32 0.0, %v1229
        %v1231 = vpop.f32.mrb[0].mxu0
        %v1232 = vpop.f32.mrb[0].mxu0
        %v1233 = vadd.f32 0.0, %v1232
        %v1234 = vpop.f32.mrb[0].mxu0
        %1235 = vdwg.mxu0
        %v1268 = vunpack.c.l.b16 %v522
        %v1269 = vunpack.c.l.b16 %v523
        %v1270 = vunpack.c.l.b16 %v524
        %v1271 = vunpack.c.l.b16 %v525
        %v1272 = vunpack.c.l.b16 %v526
        %v1273 = vunpack.c.l.b16 %v527
        %v1274 = vunpack.c.l.b16 %v528
        %v1275 = vunpack.c.l.b16 %v529
        %v1276 = vunpack.c.l.b16 %v530
        %v1277 = vunpack.c.l.b16 %v531
        %v1278 = vunpack.c.l.b16 %v532
        %v1279 = vunpack.c.l.b16 %v533
        %v1280 = vunpack.c.l.b16 %v534
        %v1281 = vunpack.c.l.b16 %v535
        %v1282 = vunpack.c.l.b16 %v536
        %v1283 = vunpack.c.l.b16 %v537
        %v1284 = vunpack.c.l.b16 %v538
        %v1285 = vunpack.c.l.b16 %v539
        %v1286 = vunpack.c.l.b16 %v540
        %v1287 = vunpack.c.l.b16 %v541
        %v1288 = vunpack.c.l.b16 %v542
        %v1289 = vunpack.c.l.b16 %v543
        %v1290 = vunpack.c.l.b16 %v544
        %v1291 = vunpack.c.l.b16 %v545
        %v1292 = vunpack.c.l.b16 %v546
        %v1293 = vunpack.c.l.b16 %v547
        %v1294 = vunpack.c.l.b16 %v548
        %v1295 = vunpack.c.l.b16 %v549
        %v1296 = vunpack.c.l.b16 %v550
        %v1297 = vunpack.c.l.b16 %v551
        %v1298 = vunpack.c.l.b16 %v552
        %v1299 = vunpack.c.l.b16 %v553
        %v1300 = vpack.c.b16 %v1269, %v1268
        %v1301 = vpack.c.b16 %v1271, %v1270
        %v1302 = vpack.c.b16 %v1273, %v1272
        %v1303 = vpack.c.b16 %v1275, %v1274
        %v1304 = vpack.c.b16 %v1277, %v1276
        %v1305 = vpack.c.b16 %v1279, %v1278
        %v1306 = vpack.c.b16 %v1281, %v1280
        %v1307 = vpack.c.b16 %v1283, %v1282
        %v1308 = vpack.c.b16 %v1285, %v1284
        %v1309 = vpack.c.b16 %v1287, %v1286
        %v1310 = vpack.c.b16 %v1289, %v1288
        %v1311 = vpack.c.b16 %v1291, %v1290
        %v1312 = vpack.c.b16 %v1293, %v1292
        %v1313 = vpack.c.b16 %v1295, %v1294
        %v1314 = vpack.c.b16 %v1297, %v1296
        %v1315 = vpack.c.b16 %v1299, %v1298
        %v1320 = vunpack.c.l.b16 %v554
        %v1321 = vunpack.c.l.b16 %v555
        %v1322 = vunpack.c.l.b16 %v556
        %v1323 = vunpack.c.l.b16 %v557
        %v1324 = vpack.c.b16 %v1321, %v1320
        %v1325 = vpack.c.b16 %v1323, %v1322
        %v1329 = vsel %vm1026, %v1300, 0
        %v1332 = vsel %vm1026, %v1301, 0
        %v1335 = vsel %vm1026, %v1302, 0
        %v1338 = vsel %vm1026, %v1303, 0
        %v1341 = vsel %vm1026, %v1304, 0
        %v1344 = vsel %vm1026, %v1305, 0
        %v1347 = vsel %vm1026, %v1306, 0
        %v1350 = vsel %vm1026, %v1307, 0
        %v1353 = vsel %vm1026, %v1308, 0
        %v1356 = vsel %vm1026, %v1309, 0
        %v1359 = vsel %vm1026, %v1310, 0
        %v1362 = vsel %vm1026, %v1311, 0
        %v1365 = vsel %vm1026, %v1312, 0
        %v1368 = vsel %vm1026, %v1313, 0
        %v1371 = vsel %vm1026, %v1314, 0
        %v1374 = vsel %vm1026, %v1315, 0
        %1376 = vmatprep.subr.bf16.mxu0 0
        %1377 = vmatpush1.bf16.msra.mxu0 %v1324
        %1378 = vmatprep.subr.bf16.mxu0 0
        %1379 = vmatpush1.bf16.msra.mxu0 %v1325
        %1380 = vmatprep.subr.bf16.mxu0 0
        %1381 = vmatpush1.bf16.msra.mxu0 0
        %1382 = vmatprep.subr.bf16.mxu0 0
        %1383 = vmatpush1.bf16.msra.mxu0 0
        %1384 = vmatprep.subr.bf16.mxu0 0
        %1385 = vmatpush1.bf16.msra.mxu0 0
        %1386 = vmatprep.subr.bf16.mxu0 0
        %1387 = vmatpush1.bf16.msra.mxu0 0
        %1388 = vmatprep.subr.bf16.mxu0 0
        %1389 = vmatpush1.bf16.msra.mxu0 0
        %1390 = vmatprep.subr.bf16.mxu0 0
        %1391 = vmatpush1.bf16.msra.mxu0 0
        %1392 = vmatprep.subr.bf16.mxu0 0
        %1393 = vmatpush1.bf16.msra.mxu0 0
        %1394 = vmatprep.subr.bf16.mxu0 0
        %1395 = vmatpush1.bf16.msra.mxu0 0
        %1396 = vmatprep.subr.bf16.mxu0 0
        %1397 = vmatpush1.bf16.msra.mxu0 0
        %1398 = vmatprep.subr.bf16.mxu0 0
        %1399 = vmatpush1.bf16.msra.mxu0 0
        %1400 = vmatprep.subr.bf16.mxu0 0
        %1401 = vmatpush1.bf16.msra.mxu0 0
        %1402 = vmatprep.subr.bf16.mxu0 0
        %1403 = vmatpush1.bf16.msra.mxu0 0
        %1404 = vmatprep.subr.bf16.mxu0 0
        %1405 = vmatpush1.bf16.msra.mxu0 0
        %1406 = vmatprep.subr.bf16.mxu0 0
        %1407 = vmatpush1.bf16.msra.mxu0 0
        %1408 = vmatprep.mubr.bf16.mxu0 0
        %1409 = vmatmul.mubr.bf16.gmra.mrb[0].mxu0 %v1329
        %v1410 = vpop.f32.mrb[0].mxu0
        %v1411 = vadd.f32 %v1110, %v1410
        %v1412 = vpop.f32.mrb[0].mxu0
        %v1413 = vpop.f32.mrb[0].mxu0
        %v1414 = vadd.f32 %v1113, %v1413
        %v1415 = vpop.f32.mrb[0].mxu0
        %1416 = vmatprep.mubr.bf16.mxu0 0
        %1417 = vmatmul.mubr.bf16.gmra.mrb[0].mxu0 %v1332
        %v1418 = vpop.f32.mrb[0].mxu0
        %v1419 = vadd.f32 %v1118, %v1418
        %v1420 = vpop.f32.mrb[0].mxu0
        %v1421 = vpop.f32.mrb[0].mxu0
        %v1422 = vadd.f32 %v1121, %v1421
        %v1423 = vpop.f32.mrb[0].mxu0
        %1424 = vmatprep.mubr.bf16.mxu0 0
        %1425 = vmatmul.mubr.bf16.gmra.mrb[0].mxu0 %v1335
        %v1426 = vpop.f32.mrb[0].mxu0
        %v1427 = vadd.f32 %v1126, %v1426
        %v1428 = vpop.f32.mrb[0].mxu0
        %v1429 = vpop.f32.mrb[0].mxu0
        %v1430 = vadd.f32 %v1129, %v1429
        %v1431 = vpop.f32.mrb[0].mxu0
        %1432 = vmatprep.mubr.bf16.mxu0 0
        %1433 = vmatmul.mubr.bf16.gmra.mrb[0].mxu0 %v1338
        %v1434 = vpop.f32.mrb[0].mxu0
        %v1435 = vadd.f32 %v1134, %v1434
        %v1436 = vpop.f32.mrb[0].mxu0
        %v1437 = vpop.f32.mrb[0].mxu0
        %v1438 = vadd.f32 %v1137, %v1437
        %v1439 = vpop.f32.mrb[0].mxu0
        %1440 = vmatprep.mubr.bf16.mxu0 0
        %1441 = vmatmul.mubr.bf16.gmra.mrb[0].mxu0 %v1341
        %v1442 = vpop.f32.mrb[0].mxu0
        %v1443 = vadd.f32 %v1142, %v1442
        %v1444 = vpop.f32.mrb[0].mxu0
        %v1445 = vpop.f32.mrb[0].mxu0
        %v1446 = vadd.f32 %v1145, %v1445
        %v1447 = vpop.f32.mrb[0].mxu0
        %1448 = vmatprep.mubr.bf16.mxu0 0
        %1449 = vmatmul.mubr.bf16.gmra.mrb[0].mxu0 %v1344
        %v1450 = vpop.f32.mrb[0].mxu0
        %v1451 = vadd.f32 %v1150, %v1450
        %v1452 = vpop.f32.mrb[0].mxu0
        %v1453 = vpop.f32.mrb[0].mxu0
        %v1454 = vadd.f32 %v1153, %v1453
        %v1455 = vpop.f32.mrb[0].mxu0
        %1456 = vmatprep.mubr.bf16.mxu0 0
        %1457 = vmatmul.mubr.bf16.gmra.mrb[0].mxu0 %v1347
        %v1458 = vpop.f32.mrb[0].mxu0
        %v1459 = vadd.f32 %v1158, %v1458
        %v1460 = vpop.f32.mrb[0].mxu0
        %v1461 = vpop.f32.mrb[0].mxu0
        %v1462 = vadd.f32 %v1161, %v1461
        %v1463 = vpop.f32.mrb[0].mxu0
        %1464 = vmatprep.mubr.bf16.mxu0 0
        %1465 = vmatmul.mubr.bf16.gmra.mrb[0].mxu0 %v1350
        %v1466 = vpop.f32.mrb[0].mxu0
        %v1467 = vadd.f32 %v1166, %v1466
        %v1468 = vpop.f32.mrb[0].mxu0
        %v1469 = vpop.f32.mrb[0].mxu0
        %v1470 = vadd.f32 %v1169, %v1469
        %v1471 = vpop.f32.mrb[0].mxu0
        %1472 = vmatprep.mubr.bf16.mxu0 0
        %1473 = vmatmul.mubr.bf16.gmra.mrb[0].mxu0 %v1353
        %v1474 = vpop.f32.mrb[0].mxu0
        %v1475 = vadd.f32 %v1174, %v1474
        %v1476 = vpop.f32.mrb[0].mxu0
        %v1477 = vpop.f32.mrb[0].mxu0
        %v1478 = vadd.f32 %v1177, %v1477
        %v1479 = vpop.f32.mrb[0].mxu0
        %1480 = vmatprep.mubr.bf16.mxu0 0
        %1481 = vmatmul.mubr.bf16.gmra.mrb[0].mxu0 %v1356
        %v1482 = vpop.f32.mrb[0].mxu0
        %v1483 = vadd.f32 %v1182, %v1482
        %v1484 = vpop.f32.mrb[0].mxu0
        %v1485 = vpop.f32.mrb[0].mxu0
        %v1486 = vadd.f32 %v1185, %v1485
        %v1487 = vpop.f32.mrb[0].mxu0
        %1488 = vmatprep.mubr.bf16.mxu0 0
        %1489 = vmatmul.mubr.bf16.gmra.mrb[0].mxu0 %v1359
        %v1490 = vpop.f32.mrb[0].mxu0
        %v1491 = vadd.f32 %v1190, %v1490
        %v1492 = vpop.f32.mrb[0].mxu0
        %v1493 = vpop.f32.mrb[0].mxu0
        %v1494 = vadd.f32 %v1193, %v1493
        %v1495 = vpop.f32.mrb[0].mxu0
        %1496 = vmatprep.mubr.bf16.mxu0 0
        %1497 = vmatmul.mubr.bf16.gmra.mrb[0].mxu0 %v1362
        %v1498 = vpop.f32.mrb[0].mxu0
        %v1499 = vadd.f32 %v1198, %v1498
        %v1500 = vpop.f32.mrb[0].mxu0
        %v1501 = vpop.f32.mrb[0].mxu0
        %v1502 = vadd.f32 %v1201, %v1501
        %v1503 = vpop.f32.mrb[0].mxu0
        %1504 = vmatprep.mubr.bf16.mxu0 0
        %1505 = vmatmul.mubr.bf16.gmra.mrb[0].mxu0 %v1365
        %v1506 = vpop.f32.mrb[0].mxu0
        %v1507 = vadd.f32 %v1206, %v1506
        %v1508 = vpop.f32.mrb[0].mxu0
        %v1509 = vpop.f32.mrb[0].mxu0
        %v1510 = vadd.f32 %v1209, %v1509
        %v1511 = vpop.f32.mrb[0].mxu0
        %1512 = vmatprep.mubr.bf16.mxu0 0
        %1513 = vmatmul.mubr.bf16.gmra.mrb[0].mxu0 %v1368
        %v1514 = vpop.f32.mrb[0].mxu0
        %v1515 = vadd.f32 %v1214, %v1514
        %v1516 = vpop.f32.mrb[0].mxu0
        %v1517 = vpop.f32.mrb[0].mxu0
        %v1518 = vadd.f32 %v1217, %v1517
        %v1519 = vpop.f32.mrb[0].mxu0
        %1520 = vmatprep.mubr.bf16.mxu0 0
        %1521 = vmatmul.mubr.bf16.gmra.mrb[0].mxu0 %v1371
        %v1522 = vpop.f32.mrb[0].mxu0
        %v1523 = vadd.f32 %v1222, %v1522
        %v1524 = vpop.f32.mrb[0].mxu0
        %v1525 = vpop.f32.mrb[0].mxu0
        %v1526 = vadd.f32 %v1225, %v1525
        %v1527 = vpop.f32.mrb[0].mxu0
        %1528 = vmatprep.mubr.bf16.mxu0 0
        %1529 = vmatmul.mubr.bf16.gmra.mrb[0].mxu0 %v1374
        %v1530 = vpop.f32.mrb[0].mxu0
        %v1531 = vadd.f32 %v1230, %v1530
        %v1532 = vpop.f32.mrb[0].mxu0
        %v1533 = vpop.f32.mrb[0].mxu0
        %v1534 = vadd.f32 %v1233, %v1533
        %v1535 = vpop.f32.mrb[0].mxu0
        %1536 = vdwg.mxu0
        %v1537 = vld [vmem:[#allocation2] sm:$0xe]
        %v1538 = vld [vmem:[#allocation2 + $0xc] sm:$0xe]
        %v1539 = vld [vmem:[#allocation2 + $0x18] sm:$0xe]
        %v1540 = vld [vmem:[#allocation2 + $0x24] sm:$0xe]
        %v1541 = vld [vmem:[#allocation2 + $0x30] sm:$0xe]
        %v1542 = vld [vmem:[#allocation2 + $0x3c] sm:$0xe]
        %v1543 = vld [vmem:[#allocation2 + $0x48] sm:$0xe]
        %v1544 = vld [vmem:[#allocation2 + $0x54] sm:$0xe]
        %v1545 = vld [vmem:[#allocation2 + $0x60] sm:$0xe]
        %v1546 = vld [vmem:[#allocation2 + $0x6c] sm:$0xe]
        %v1547 = vld [vmem:[#allocation2 + $0x78] sm:$0xe]
        %v1548 = vld [vmem:[#allocation2 + $0x84] sm:$0xe]
        %v1549 = vld [vmem:[#allocation2 + $0x90] sm:$0xe]
        %v1550 = vld [vmem:[#allocation2 + $0x9c] sm:$0xe]
        %v1551 = vld [vmem:[#allocation2 + $0xa8] sm:$0xe]
        %v1552 = vld [vmem:[#allocation2 + $0xb4] sm:$0xe]
        %vm1585 = vcmask 1042432
        %vm1586 = vcmask 1046532
        %vm1587 = vmor %vm1585, %vm1586
        %v1588 = vrot.slane %v1537, 5
        %v1589 = vrot.slane %v1588, 4
        %v1590 = vrot.slane %v523, 5
        %v1591 = vsel %vm1587, %v1589, %v1590
        %v1592 = vrot.slane %v1590, 4
        %v1593 = vrot.slane %v558, 5
        %v1594 = vsel %vm1587, %v1592, %v1593
        %v1595 = vrot.slane %v1538, 5
        %v1596 = vrot.slane %v1595, 4
        %v1597 = vrot.slane %v525, 5
        %v1598 = vsel %vm1587, %v1596, %v1597
        %v1599 = vrot.slane %v1597, 4
        %v1600 = vrot.slane %v559, 5
        %v1601 = vsel %vm1587, %v1599, %v1600
        %v1602 = vrot.slane %v1539, 5
        %v1603 = vrot.slane %v1602, 4
        %v1604 = vrot.slane %v527, 5
        %v1605 = vsel %vm1587, %v1603, %v1604
        %v1606 = vrot.slane %v1604, 4
        %v1607 = vrot.slane %v560, 5
        %v1608 = vsel %vm1587, %v1606, %v1607
        %v1609 = vrot.slane %v1540, 5
        %v1610 = vrot.slane %v1609, 4
        %v1611 = vrot.slane %v529, 5
        %v1612 = vsel %vm1587, %v1610, %v1611
        %v1613 = vrot.slane %v1611, 4
        %v1614 = vrot.slane %v561, 5
        %v1615 = vsel %vm1587, %v1613, %v1614
        %v1616 = vrot.slane %v1541, 5
        %v1617 = vrot.slane %v1616, 4
        %v1618 = vrot.slane %v531, 5
        %v1619 = vsel %vm1587, %v1617, %v1618
        %v1620 = vrot.slane %v1618, 4
        %v1621 = vrot.slane %v562, 5
        %v1622 = vsel %vm1587, %v1620, %v1621
        %v1623 = vrot.slane %v1542, 5
        %v1624 = vrot.slane %v1623, 4
        %v1625 = vrot.slane %v533, 5
        %v1626 = vsel %vm1587, %v1624, %v1625
        %v1627 = vrot.slane %v1625, 4
        %v1628 = vrot.slane %v563, 5
        %v1629 = vsel %vm1587, %v1627, %v1628
        %v1630 = vrot.slane %v1543, 5
        %v1631 = vrot.slane %v1630, 4
        %v1632 = vrot.slane %v535, 5
        %v1633 = vsel %vm1587, %v1631, %v1632
        %v1634 = vrot.slane %v1632, 4
        %v1635 = vrot.slane %v564, 5
        %v1636 = vsel %vm1587, %v1634, %v1635
        %v1637 = vrot.slane %v1544, 5
        %v1638 = vrot.slane %v1637, 4
        %v1639 = vrot.slane %v537, 5
        %v1640 = vsel %vm1587, %v1638, %v1639
        %v1641 = vrot.slane %v1639, 4
        %v1642 = vrot.slane %v565, 5
        %v1643 = vsel %vm1587, %v1641, %v1642
        %v1644 = vrot.slane %v1545, 5
        %v1645 = vrot.slane %v1644, 4
        %v1646 = vrot.slane %v539, 5
        %v1647 = vsel %vm1587, %v1645, %v1646
        %v1648 = vrot.slane %v1646, 4
        %v1649 = vrot.slane %v566, 5
        %v1650 = vsel %vm1587, %v1648, %v1649
        %v1651 = vrot.slane %v1546, 5
        %v1652 = vrot.slane %v1651, 4
        %v1653 = vrot.slane %v541, 5
        %v1654 = vsel %vm1587, %v1652, %v1653
        %v1655 = vrot.slane %v1653, 4
        %v1656 = vrot.slane %v567, 5
        %v1657 = vsel %vm1587, %v1655, %v1656
        %v1658 = vrot.slane %v1547, 5
        %v1659 = vrot.slane %v1658, 4
        %v1660 = vrot.slane %v543, 5
        %v1661 = vsel %vm1587, %v1659, %v1660
        %v1662 = vrot.slane %v1660, 4
        %v1663 = vrot.slane %v568, 5
        %v1664 = vsel %vm1587, %v1662, %v1663
        %v1665 = vrot.slane %v1548, 5
        %v1666 = vrot.slane %v1665, 4
        %v1667 = vrot.slane %v545, 5
        %v1668 = vsel %vm1587, %v1666, %v1667
        %v1669 = vrot.slane %v1667, 4
        %v1670 = vrot.slane %v569, 5
        %v1671 = vsel %vm1587, %v1669, %v1670
        %v1672 = vrot.slane %v1549, 5
        %v1673 = vrot.slane %v1672, 4
        %v1674 = vrot.slane %v547, 5
        %v1675 = vsel %vm1587, %v1673, %v1674
        %v1676 = vrot.slane %v1674, 4
        %v1677 = vrot.slane %v570, 5
        %v1678 = vsel %vm1587, %v1676, %v1677
        %v1679 = vrot.slane %v1550, 5
        %v1680 = vrot.slane %v1679, 4
        %v1681 = vrot.slane %v549, 5
        %v1682 = vsel %vm1587, %v1680, %v1681
        %v1683 = vrot.slane %v1681, 4
        %v1684 = vrot.slane %v571, 5
        %v1685 = vsel %vm1587, %v1683, %v1684
        %v1686 = vrot.slane %v1551, 5
        %v1687 = vrot.slane %v1686, 4
        %v1688 = vrot.slane %v551, 5
        %v1689 = vsel %vm1587, %v1687, %v1688
        %v1690 = vrot.slane %v1688, 4
        %v1691 = vrot.slane %v572, 5
        %v1692 = vsel %vm1587, %v1690, %v1691
        %v1693 = vrot.slane %v1552, 5
        %v1694 = vrot.slane %v1693, 4
        %v1695 = vrot.slane %v553, 5
        %v1696 = vsel %vm1587, %v1694, %v1695
        %v1697 = vrot.slane %v1695, 4
        %v1698 = vrot.slane %v573, 5
        %v1699 = vsel %vm1587, %v1697, %v1698
        %s1700 = scalar_lea.vmem [#allocation9], 32
        %v1701 = vld [vmem:[%s1700] sm:$0xf]
        %v1702 = vld [vmem:[%s1700 + $0x4] sm:$0xf]
        %v1703 = vld [vmem:[%s1700 + $0x8] sm:$0xf]
        %v1704 = vld [vmem:[%s1700 + $0xc] sm:$0xf]
        %v1705 = vunpack.c.l.b16 %v1591
        %v1706 = vunpack.c.l.b16 %v1594
        %v1707 = vunpack.c.l.b16 %v1598
        %v1708 = vunpack.c.l.b16 %v1601
        %v1709 = vunpack.c.l.b16 %v1605
        %v1710 = vunpack.c.l.b16 %v1608
        %v1711 = vunpack.c.l.b16 %v1612
        %v1712 = vunpack.c.l.b16 %v1615
        %v1713 = vunpack.c.l.b16 %v1619
        %v1714 = vunpack.c.l.b16 %v1622
        %v1715 = vunpack.c.l.b16 %v1626
        %v1716 = vunpack.c.l.b16 %v1629
        %v1717 = vunpack.c.l.b16 %v1633
        %v1718 = vunpack.c.l.b16 %v1636
        %v1719 = vunpack.c.l.b16 %v1640
        %v1720 = vunpack.c.l.b16 %v1643
        %v1721 = vunpack.c.l.b16 %v1647
        %v1722 = vunpack.c.l.b16 %v1650
        %v1723 = vunpack.c.l.b16 %v1654
        %v1724 = vunpack.c.l.b16 %v1657
        %v1725 = vunpack.c.l.b16 %v1661
        %v1726 = vunpack.c.l.b16 %v1664
        %v1727 = vunpack.c.l.b16 %v1668
        %v1728 = vunpack.c.l.b16 %v1671
        %v1729 = vunpack.c.l.b16 %v1675
        %v1730 = vunpack.c.l.b16 %v1678
        %v1731 = vunpack.c.l.b16 %v1682
        %v1732 = vunpack.c.l.b16 %v1685
        %v1733 = vunpack.c.l.b16 %v1689
        %v1734 = vunpack.c.l.b16 %v1692
        %v1735 = vunpack.c.l.b16 %v1696
        %v1736 = vunpack.c.l.b16 %v1699
        %v1737 = vpack.c.b16 %v1706, %v1705
        %v1738 = vpack.c.b16 %v1708, %v1707
        %v1739 = vpack.c.b16 %v1710, %v1709
        %v1740 = vpack.c.b16 %v1712, %v1711
        %v1741 = vpack.c.b16 %v1714, %v1713
        %v1742 = vpack.c.b16 %v1716, %v1715
        %v1743 = vpack.c.b16 %v1718, %v1717
        %v1744 = vpack.c.b16 %v1720, %v1719
        %v1745 = vpack.c.b16 %v1722, %v1721
        %v1746 = vpack.c.b16 %v1724, %v1723
        %v1747 = vpack.c.b16 %v1726, %v1725
        %v1748 = vpack.c.b16 %v1728, %v1727
        %v1749 = vpack.c.b16 %v1730, %v1729
        %v1750 = vpack.c.b16 %v1732, %v1731
        %v1751 = vpack.c.b16 %v1734, %v1733
        %v1752 = vpack.c.b16 %v1736, %v1735
        %v1757 = vunpack.c.l.b16 %v1701
        %v1758 = vunpack.c.l.b16 %v1702
        %v1759 = vunpack.c.l.b16 %v1703
        %v1760 = vunpack.c.l.b16 %v1704
        %v1761 = vpack.c.b16 %v1758, %v1757
        %v1762 = vpack.c.b16 %v1760, %v1759
        %v1766 = vsel %vm1026, %v1737, 0
        %v1769 = vsel %vm1026, %v1738, 0
        %v1772 = vsel %vm1026, %v1739, 0
        %v1775 = vsel %vm1026, %v1740, 0
        %v1778 = vsel %vm1026, %v1741, 0
        %v1781 = vsel %vm1026, %v1742, 0
        %v1784 = vsel %vm1026, %v1743, 0
        %v1787 = vsel %vm1026, %v1744, 0
        %v1790 = vsel %vm1026, %v1745, 0
        %v1793 = vsel %vm1026, %v1746, 0
        %v1796 = vsel %vm1026, %v1747, 0
        %v1799 = vsel %vm1026, %v1748, 0
        %v1802 = vsel %vm1026, %v1749, 0
        %v1805 = vsel %vm1026, %v1750, 0
        %v1808 = vsel %vm1026, %v1751, 0
        %v1811 = vsel %vm1026, %v1752, 0
        %1813 = vmatprep.subr.bf16.mxu0 0
        %1814 = vmatpush1.bf16.msra.mxu0 %v1761
        %1815 = vmatprep.subr.bf16.mxu0 0
        %1816 = vmatpush1.bf16.msra.mxu0 %v1762
        %1817 = vmatprep.subr.bf16.mxu0 0
        %1818 = vmatpush1.bf16.msra.mxu0 0
        %1819 = vmatprep.subr.bf16.mxu0 0
        %1820 = vmatpush1.bf16.msra.mxu0 0
        %1821 = vmatprep.subr.bf16.mxu0 0
        %1822 = vmatpush1.bf16.msra.mxu0 0
        %1823 = vmatprep.subr.bf16.mxu0 0
        %1824 = vmatpush1.bf16.msra.mxu0 0
        %1825 = vmatprep.subr.bf16.mxu0 0
        %1826 = vmatpush1.bf16.msra.mxu0 0
        %1827 = vmatprep.subr.bf16.mxu0 0
        %1828 = vmatpush1.bf16.msra.mxu0 0
        %1829 = vmatprep.subr.bf16.mxu0 0
        %1830 = vmatpush1.bf16.msra.mxu0 0
        %1831 = vmatprep.subr.bf16.mxu0 0
        %1832 = vmatpush1.bf16.msra.mxu0 0
        %1833 = vmatprep.subr.bf16.mxu0 0
        %1834 = vmatpush1.bf16.msra.mxu0 0
        %1835 = vmatprep.subr.bf16.mxu0 0
        %1836 = vmatpush1.bf16.msra.mxu0 0
        %1837 = vmatprep.subr.bf16.mxu0 0
        %1838 = vmatpush1.bf16.msra.mxu0 0
        %1839 = vmatprep.subr.bf16.mxu0 0
        %1840 = vmatpush1.bf16.msra.mxu0 0
        %1841 = vmatprep.subr.bf16.mxu0 0
        %1842 = vmatpush1.bf16.msra.mxu0 0
        %1843 = vmatprep.subr.bf16.mxu0 0
        %1844 = vmatpush1.bf16.msra.mxu0 0
        %1845 = vmatprep.mubr.bf16.mxu0 0
        %1846 = vmatmul.mubr.bf16.gmra.mrb[0].mxu0 %v1766
        %v1847 = vpop.f32.mrb[0].mxu0
        %v1848 = vadd.f32 0.0, %v1847
        %v1849 = vpop.f32.mrb[0].mxu0
        %v1850 = vpop.f32.mrb[0].mxu0
        %v1851 = vadd.f32 0.0, %v1850
        %v1852 = vpop.f32.mrb[0].mxu0
        %1853 = vmatprep.mubr.bf16.mxu0 0
        %1854 = vmatmul.mubr.bf16.gmra.mrb[0].mxu0 %v1769
        %v1855 = vpop.f32.mrb[0].mxu0
        %v1856 = vadd.f32 0.0, %v1855
        %v1857 = vpop.f32.mrb[0].mxu0
        %v1858 = vpop.f32.mrb[0].mxu0
        %v1859 = vadd.f32 0.0, %v1858
        %v1860 = vpop.f32.mrb[0].mxu0
        %1861 = vmatprep.mubr.bf16.mxu0 0
        %1862 = vmatmul.mubr.bf16.gmra.mrb[0].mxu0 %v1772
        %v1863 = vpop.f32.mrb[0].mxu0
        %v1864 = vadd.f32 0.0, %v1863
        %v1865 = vpop.f32.mrb[0].mxu0
        %v1866 = vpop.f32.mrb[0].mxu0
        %v1867 = vadd.f32 0.0, %v1866
        %v1868 = vpop.f32.mrb[0].mxu0
        %1869 = vmatprep.mubr.bf16.mxu0 0
        %1870 = vmatmul.mubr.bf16.gmra.mrb[0].mxu0 %v1775
        %v1871 = vpop.f32.mrb[0].mxu0
        %v1872 = vadd.f32 0.0, %v1871
        %v1873 = vpop.f32.mrb[0].mxu0
        %v1874 = vpop.f32.mrb[0].mxu0
        %v1875 = vadd.f32 0.0, %v1874
        %v1876 = vpop.f32.mrb[0].mxu0
        %1877 = vmatprep.mubr.bf16.mxu0 0
        %1878 = vmatmul.mubr.bf16.gmra.mrb[0].mxu0 %v1778
        %v1879 = vpop.f32.mrb[0].mxu0
        %v1880 = vadd.f32 0.0, %v1879
        %v1881 = vpop.f32.mrb[0].mxu0
        %v1882 = vpop.f32.mrb[0].mxu0
        %v1883 = vadd.f32 0.0, %v1882
        %v1884 = vpop.f32.mrb[0].mxu0
        %1885 = vmatprep.mubr.bf16.mxu0 0
        %1886 = vmatmul.mubr.bf16.gmra.mrb[0].mxu0 %v1781
        %v1887 = vpop.f32.mrb[0].mxu0
        %v1888 = vadd.f32 0.0, %v1887
        %v1889 = vpop.f32.mrb[0].mxu0
        %v1890 = vpop.f32.mrb[0].mxu0
        %v1891 = vadd.f32 0.0, %v1890
        %v1892 = vpop.f32.mrb[0].mxu0
        %1893 = vmatprep.mubr.bf16.mxu0 0
        %1894 = vmatmul.mubr.bf16.gmra.mrb[0].mxu0 %v1784
        %v1895 = vpop.f32.mrb[0].mxu0
        %v1896 = vadd.f32 0.0, %v1895
        %v1897 = vpop.f32.mrb[0].mxu0
        %v1898 = vpop.f32.mrb[0].mxu0
        %v1899 = vadd.f32 0.0, %v1898
        %v1900 = vpop.f32.mrb[0].mxu0
        %1901 = vmatprep.mubr.bf16.mxu0 0
        %1902 = vmatmul.mubr.bf16.gmra.mrb[0].mxu0 %v1787
        %v1903 = vpop.f32.mrb[0].mxu0
        %v1904 = vadd.f32 0.0, %v1903
        %v1905 = vpop.f32.mrb[0].mxu0
        %v1906 = vpop.f32.mrb[0].mxu0
        %v1907 = vadd.f32 0.0, %v1906
        %v1908 = vpop.f32.mrb[0].mxu0
        %1909 = vmatprep.mubr.bf16.mxu0 0
        %1910 = vmatmul.mubr.bf16.gmra.mrb[0].mxu0 %v1790
        %v1911 = vpop.f32.mrb[0].mxu0
        %v1912 = vadd.f32 0.0, %v1911
        %v1913 = vpop.f32.mrb[0].mxu0
        %v1914 = vpop.f32.mrb[0].mxu0
        %v1915 = vadd.f32 0.0, %v1914
        %v1916 = vpop.f32.mrb[0].mxu0
        %1917 = vmatprep.mubr.bf16.mxu0 0
        %1918 = vmatmul.mubr.bf16.gmra.mrb[0].mxu0 %v1793
        %v1919 = vpop.f32.mrb[0].mxu0
        %v1920 = vadd.f32 0.0, %v1919
        %v1921 = vpop.f32.mrb[0].mxu0
        %v1922 = vpop.f32.mrb[0].mxu0
        %v1923 = vadd.f32 0.0, %v1922
        %v1924 = vpop.f32.mrb[0].mxu0
        %1925 = vmatprep.mubr.bf16.mxu0 0
        %1926 = vmatmul.mubr.bf16.gmra.mrb[0].mxu0 %v1796
        %v1927 = vpop.f32.mrb[0].mxu0
        %v1928 = vadd.f32 0.0, %v1927
        %v1929 = vpop.f32.mrb[0].mxu0
        %v1930 = vpop.f32.mrb[0].mxu0
        %v1931 = vadd.f32 0.0, %v1930
        %v1932 = vpop.f32.mrb[0].mxu0
        %1933 = vmatprep.mubr.bf16.mxu0 0
        %1934 = vmatmul.mubr.bf16.gmra.mrb[0].mxu0 %v1799
        %v1935 = vpop.f32.mrb[0].mxu0
        %v1936 = vadd.f32 0.0, %v1935
        %v1937 = vpop.f32.mrb[0].mxu0
        %v1938 = vpop.f32.mrb[0].mxu0
        %v1939 = vadd.f32 0.0, %v1938
        %v1940 = vpop.f32.mrb[0].mxu0
        %1941 = vmatprep.mubr.bf16.mxu0 0
        %1942 = vmatmul.mubr.bf16.gmra.mrb[0].mxu0 %v1802
        %v1943 = vpop.f32.mrb[0].mxu0
        %v1944 = vadd.f32 0.0, %v1943
        %v1945 = vpop.f32.mrb[0].mxu0
        %v1946 = vpop.f32.mrb[0].mxu0
        %v1947 = vadd.f32 0.0, %v1946
        %v1948 = vpop.f32.mrb[0].mxu0
        %1949 = vmatprep.mubr.bf16.mxu0 0
        %1950 = vmatmul.mubr.bf16.gmra.mrb[0].mxu0 %v1805
        %v1951 = vpop.f32.mrb[0].mxu0
        %v1952 = vadd.f32 0.0, %v1951
        %v1953 = vpop.f32.mrb[0].mxu0
        %v1954 = vpop.f32.mrb[0].mxu0
        %v1955 = vadd.f32 0.0, %v1954
        %v1956 = vpop.f32.mrb[0].mxu0
        %1957 = vmatprep.mubr.bf16.mxu0 0
        %1958 = vmatmul.mubr.bf16.gmra.mrb[0].mxu0 %v1808
        %v1959 = vpop.f32.mrb[0].mxu0
        %v1960 = vadd.f32 0.0, %v1959
        %v1961 = vpop.f32.mrb[0].mxu0
        %v1962 = vpop.f32.mrb[0].mxu0
        %v1963 = vadd.f32 0.0, %v1962
        %v1964 = vpop.f32.mrb[0].mxu0
        %1965 = vmatprep.mubr.bf16.mxu0 0
        %1966 = vmatmul.mubr.bf16.gmra.mrb[0].mxu0 %v1811
        %v1967 = vpop.f32.mrb[0].mxu0
        %v1968 = vadd.f32 0.0, %v1967
        %v1969 = vpop.f32.mrb[0].mxu0
        %v1970 = vpop.f32.mrb[0].mxu0
        %v1971 = vadd.f32 0.0, %v1970
        %v1972 = vpop.f32.mrb[0].mxu0
        %1973 = vdwg.mxu0
        %v1974 = vadd.f32 %v1411, %v1848
        %v1975 = vadd.f32 %v1414, %v1851
        %v1976 = vadd.f32 %v1419, %v1856
        %v1977 = vadd.f32 %v1422, %v1859
        %v1978 = vadd.f32 %v1427, %v1864
        %v1979 = vadd.f32 %v1430, %v1867
        %v1980 = vadd.f32 %v1435, %v1872
        %v1981 = vadd.f32 %v1438, %v1875
        %v1982 = vadd.f32 %v1443, %v1880
        %v1983 = vadd.f32 %v1446, %v1883
        %v1984 = vadd.f32 %v1451, %v1888
        %v1985 = vadd.f32 %v1454, %v1891
        %v1986 = vadd.f32 %v1459, %v1896
        %v1987 = vadd.f32 %v1462, %v1899
        %v1988 = vadd.f32 %v1467, %v1904
        %v1989 = vadd.f32 %v1470, %v1907
        %v1990 = vadd.f32 %v1475, %v1912
        %v1991 = vadd.f32 %v1478, %v1915
        %v1992 = vadd.f32 %v1483, %v1920
        %v1993 = vadd.f32 %v1486, %v1923
        %v1994 = vadd.f32 %v1491, %v1928
        %v1995 = vadd.f32 %v1494, %v1931
        %v1996 = vadd.f32 %v1499, %v1936
        %v1997 = vadd.f32 %v1502, %v1939
        %v1998 = vadd.f32 %v1507, %v1944
        %v1999 = vadd.f32 %v1510, %v1947
        %v2000 = vadd.f32 %v1515, %v1952
        %v2001 = vadd.f32 %v1518, %v1955
        %v2002 = vadd.f32 %v1523, %v1960
        %v2003 = vadd.f32 %v1526, %v1963
        %v2004 = vadd.f32 %v1531, %v1968
        %v2005 = vadd.f32 %v1534, %v1971
        %s2006 = scalar_lea.vmem [#allocation2], 12
        %v2007 = vld [vmem:[%s2006] sm:$0xf]
        %v2008 = vld [vmem:[%s2006 + $0x4] sm:$0xf]
        %v2009 = vld [vmem:[%s2006 + $0xc] sm:$0xf]
        %v2010 = vld [vmem:[%s2006 + $0x10] sm:$0xf]
        %v2011 = vld [vmem:[%s2006 + $0x18] sm:$0xf]
        %v2012 = vld [vmem:[%s2006 + $0x1c] sm:$0xf]
        %v2013 = vld [vmem:[%s2006 + $0x24] sm:$0xf]
        %v2014 = vld [vmem:[%s2006 + $0x28] sm:$0xf]
        %v2015 = vld [vmem:[%s2006 + $0x30] sm:$0xf]
        %v2016 = vld [vmem:[%s2006 + $0x34] sm:$0xf]
        %v2017 = vld [vmem:[%s2006 + $0x3c] sm:$0xf]
        %v2018 = vld [vmem:[%s2006 + $0x40] sm:$0xf]
        %v2019 = vld [vmem:[%s2006 + $0x48] sm:$0xf]
        %v2020 = vld [vmem:[%s2006 + $0x4c] sm:$0xf]
        %v2021 = vld [vmem:[%s2006 + $0x54] sm:$0xf]
        %v2022 = vld [vmem:[%s2006 + $0x58] sm:$0xf]
        %v2023 = vld [vmem:[%s2006 + $0x60] sm:$0xf]
        %v2024 = vld [vmem:[%s2006 + $0x64] sm:$0xf]
        %v2025 = vld [vmem:[%s2006 + $0x6c] sm:$0xf]
        %v2026 = vld [vmem:[%s2006 + $0x70] sm:$0xf]
        %v2027 = vld [vmem:[%s2006 + $0x78] sm:$0xf]
        %v2028 = vld [vmem:[%s2006 + $0x7c] sm:$0xf]
        %v2029 = vld [vmem:[%s2006 + $0x84] sm:$0xf]
        %v2030 = vld [vmem:[%s2006 + $0x88] sm:$0xf]
        %v2031 = vld [vmem:[%s2006 + $0x90] sm:$0xf]
        %v2032 = vld [vmem:[%s2006 + $0x94] sm:$0xf]
        %v2033 = vld [vmem:[%s2006 + $0x9c] sm:$0xf]
        %v2034 = vld [vmem:[%s2006 + $0xa0] sm:$0xf]
        %v2035 = vld [vmem:[%s2006 + $0xa8] sm:$0xf]
        %v2036 = vld [vmem:[%s2006 + $0xac] sm:$0xf]
        %v2037 = vld [vmem:[%s2006 + $0xb4] sm:$0xf]
        %v2038 = vld [vmem:[%s2006 + $0xb8] sm:$0xf]
        %s2039 = scalar_lea.vmem [#allocation9], 48
        %v2040 = vld [vmem:[%s2039] sm:$0xf]
        %v2041 = vld [vmem:[%s2039 + $0x4] sm:$0xf]
        %v2042 = vld [vmem:[%s2039 + $0x8] sm:$0xf]
        %v2043 = vld [vmem:[%s2039 + $0xc] sm:$0xf]
        %v2076 = vunpack.c.l.b16 %v2007
        %v2077 = vunpack.c.l.b16 %v2008
        %v2078 = vunpack.c.l.b16 %v2009
        %v2079 = vunpack.c.l.b16 %v2010
        %v2080 = vunpack.c.l.b16 %v2011
        %v2081 = vunpack.c.l.b16 %v2012
        %v2082 = vunpack.c.l.b16 %v2013
        %v2083 = vunpack.c.l.b16 %v2014
        %v2084 = vunpack.c.l.b16 %v2015
        %v2085 = vunpack.c.l.b16 %v2016
        %v2086 = vunpack.c.l.b16 %v2017
        %v2087 = vunpack.c.l.b16 %v2018
        %v2088 = vunpack.c.l.b16 %v2019
        %v2089 = vunpack.c.l.b16 %v2020
        %v2090 = vunpack.c.l.b16 %v2021
        %v2091 = vunpack.c.l.b16 %v2022
        %v2092 = vunpack.c.l.b16 %v2023
        %v2093 = vunpack.c.l.b16 %v2024
        %v2094 = vunpack.c.l.b16 %v2025
        %v2095 = vunpack.c.l.b16 %v2026
        %v2096 = vunpack.c.l.b16 %v2027
        %v2097 = vunpack.c.l.b16 %v2028
        %v2098 = vunpack.c.l.b16 %v2029
        %v2099 = vunpack.c.l.b16 %v2030
        %v2100 = vunpack.c.l.b16 %v2031
        %v2101 = vunpack.c.l.b16 %v2032
        %v2102 = vunpack.c.l.b16 %v2033
        %v2103 = vunpack.c.l.b16 %v2034
        %v2104 = vunpack.c.l.b16 %v2035
        %v2105 = vunpack.c.l.b16 %v2036
        %v2106 = vunpack.c.l.b16 %v2037
        %v2107 = vunpack.c.l.b16 %v2038
        %v2108 = vpack.c.b16 %v2077, %v2076
        %v2109 = vpack.c.b16 %v2079, %v2078
        %v2110 = vpack.c.b16 %v2081, %v2080
        %v2111 = vpack.c.b16 %v2083, %v2082
        %v2112 = vpack.c.b16 %v2085, %v2084
        %v2113 = vpack.c.b16 %v2087, %v2086
        %v2114 = vpack.c.b16 %v2089, %v2088
        %v2115 = vpack.c.b16 %v2091, %v2090
        %v2116 = vpack.c.b16 %v2093, %v2092
        %v2117 = vpack.c.b16 %v2095, %v2094
        %v2118 = vpack.c.b16 %v2097, %v2096
        %v2119 = vpack.c.b16 %v2099, %v2098
        %v2120 = vpack.c.b16 %v2101, %v2100
        %v2121 = vpack.c.b16 %v2103, %v2102
        %v2122 = vpack.c.b16 %v2105, %v2104
        %v2123 = vpack.c.b16 %v2107, %v2106
        %v2128 = vunpack.c.l.b16 %v2040
        %v2129 = vunpack.c.l.b16 %v2041
        %v2130 = vunpack.c.l.b16 %v2042
        %v2131 = vunpack.c.l.b16 %v2043
        %v2132 = vpack.c.b16 %v2129, %v2128
        %v2133 = vpack.c.b16 %v2131, %v2130
        %v2137 = vsel %vm1026, %v2108, 0
        %v2140 = vsel %vm1026, %v2109, 0
        %v2143 = vsel %vm1026, %v2110, 0
        %v2146 = vsel %vm1026, %v2111, 0
        %v2149 = vsel %vm1026, %v2112, 0
        %v2152 = vsel %vm1026, %v2113, 0
        %v2155 = vsel %vm1026, %v2114, 0
        %v2158 = vsel %vm1026, %v2115, 0
        %v2161 = vsel %vm1026, %v2116, 0
        %v2164 = vsel %vm1026, %v2117, 0
        %v2167 = vsel %vm1026, %v2118, 0
        %v2170 = vsel %vm1026, %v2119, 0
        %v2173 = vsel %vm1026, %v2120, 0
        %v2176 = vsel %vm1026, %v2121, 0
        %v2179 = vsel %vm1026, %v2122, 0
        %v2182 = vsel %vm1026, %v2123, 0
        %2184 = vmatprep.subr.bf16.mxu0 0
        %2185 = vmatpush1.bf16.msra.mxu0 %v2132
        %2186 = vmatprep.subr.bf16.mxu0 0
        %2187 = vmatpush1.bf16.msra.mxu0 %v2133
        %2188 = vmatprep.subr.bf16.mxu0 0
        %2189 = vmatpush1.bf16.msra.mxu0 0
        %2190 = vmatprep.subr.bf16.mxu0 0
        %2191 = vmatpush1.bf16.msra.mxu0 0
        %2192 = vmatprep.subr.bf16.mxu0 0
        %2193 = vmatpush1.bf16.msra.mxu0 0
        %2194 = vmatprep.subr.bf16.mxu0 0
        %2195 = vmatpush1.bf16.msra.mxu0 0
        %2196 = vmatprep.subr.bf16.mxu0 0
        %2197 = vmatpush1.bf16.msra.mxu0 0
        %2198 = vmatprep.subr.bf16.mxu0 0
        %2199 = vmatpush1.bf16.msra.mxu0 0
        %2200 = vmatprep.subr.bf16.mxu0 0
        %2201 = vmatpush1.bf16.msra.mxu0 0
        %2202 = vmatprep.subr.bf16.mxu0 0
        %2203 = vmatpush1.bf16.msra.mxu0 0
        %2204 = vmatprep.subr.bf16.mxu0 0
        %2205 = vmatpush1.bf16.msra.mxu0 0
        %2206 = vmatprep.subr.bf16.mxu0 0
        %2207 = vmatpush1.bf16.msra.mxu0 0
        %2208 = vmatprep.subr.bf16.mxu0 0
        %2209 = vmatpush1.bf16.msra.mxu0 0
        %2210 = vmatprep.subr.bf16.mxu0 0
        %2211 = vmatpush1.bf16.msra.mxu0 0
        %2212 = vmatprep.subr.bf16.mxu0 0
        %2213 = vmatpush1.bf16.msra.mxu0 0
        %2214 = vmatprep.subr.bf16.mxu0 0
        %2215 = vmatpush1.bf16.msra.mxu0 0
        %2216 = vmatprep.mubr.bf16.mxu0 0
        %2217 = vmatmul.mubr.bf16.gmra.mrb[0].mxu0 %v2137
        %v2218 = vpop.f32.mrb[0].mxu0
        %v2219 = vadd.f32 0.0, %v2218
        %v2220 = vpop.f32.mrb[0].mxu0
        %v2221 = vpop.f32.mrb[0].mxu0
        %v2222 = vadd.f32 0.0, %v2221
        %v2223 = vpop.f32.mrb[0].mxu0
        %2224 = vmatprep.mubr.bf16.mxu0 0
        %2225 = vmatmul.mubr.bf16.gmra.mrb[0].mxu0 %v2140
        %v2226 = vpop.f32.mrb[0].mxu0
        %v2227 = vadd.f32 0.0, %v2226
        %v2228 = vpop.f32.mrb[0].mxu0
        %v2229 = vpop.f32.mrb[0].mxu0
        %v2230 = vadd.f32 0.0, %v2229
        %v2231 = vpop.f32.mrb[0].mxu0
        %2232 = vmatprep.mubr.bf16.mxu0 0
        %2233 = vmatmul.mubr.bf16.gmra.mrb[0].mxu0 %v2143
        %v2234 = vpop.f32.mrb[0].mxu0
        %v2235 = vadd.f32 0.0, %v2234
        %v2236 = vpop.f32.mrb[0].mxu0
        %v2237 = vpop.f32.mrb[0].mxu0
        %v2238 = vadd.f32 0.0, %v2237
        %v2239 = vpop.f32.mrb[0].mxu0
        %2240 = vmatprep.mubr.bf16.mxu0 0
        %2241 = vmatmul.mubr.bf16.gmra.mrb[0].mxu0 %v2146
        %v2242 = vpop.f32.mrb[0].mxu0
        %v2243 = vadd.f32 0.0, %v2242
        %v2244 = vpop.f32.mrb[0].mxu0
        %v2245 = vpop.f32.mrb[0].mxu0
        %v2246 = vadd.f32 0.0, %v2245
        %v2247 = vpop.f32.mrb[0].mxu0
        %2248 = vmatprep.mubr.bf16.mxu0 0
        %2249 = vmatmul.mubr.bf16.gmra.mrb[0].mxu0 %v2149
        %v2250 = vpop.f32.mrb[0].mxu0
        %v2251 = vadd.f32 0.0, %v2250
        %v2252 = vpop.f32.mrb[0].mxu0
        %v2253 = vpop.f32.mrb[0].mxu0
        %v2254 = vadd.f32 0.0, %v2253
        %v2255 = vpop.f32.mrb[0].mxu0
        %2256 = vmatprep.mubr.bf16.mxu0 0
        %2257 = vmatmul.mubr.bf16.gmra.mrb[0].mxu0 %v2152
        %v2258 = vpop.f32.mrb[0].mxu0
        %v2259 = vadd.f32 0.0, %v2258
        %v2260 = vpop.f32.mrb[0].mxu0
        %v2261 = vpop.f32.mrb[0].mxu0
        %v2262 = vadd.f32 0.0, %v2261
        %v2263 = vpop.f32.mrb[0].mxu0
        %2264 = vmatprep.mubr.bf16.mxu0 0
        %2265 = vmatmul.mubr.bf16.gmra.mrb[0].mxu0 %v2155
        %v2266 = vpop.f32.mrb[0].mxu0
        %v2267 = vadd.f32 0.0, %v2266
        %v2268 = vpop.f32.mrb[0].mxu0
        %v2269 = vpop.f32.mrb[0].mxu0
        %v2270 = vadd.f32 0.0, %v2269
        %v2271 = vpop.f32.mrb[0].mxu0
        %2272 = vmatprep.mubr.bf16.mxu0 0
        %2273 = vmatmul.mubr.bf16.gmra.mrb[0].mxu0 %v2158
        %v2274 = vpop.f32.mrb[0].mxu0
        %v2275 = vadd.f32 0.0, %v2274
        %v2276 = vpop.f32.mrb[0].mxu0
        %v2277 = vpop.f32.mrb[0].mxu0
        %v2278 = vadd.f32 0.0, %v2277
        %v2279 = vpop.f32.mrb[0].mxu0
        %2280 = vmatprep.mubr.bf16.mxu0 0
        %2281 = vmatmul.mubr.bf16.gmra.mrb[0].mxu0 %v2161
        %v2282 = vpop.f32.mrb[0].mxu0
        %v2283 = vadd.f32 0.0, %v2282
        %v2284 = vpop.f32.mrb[0].mxu0
        %v2285 = vpop.f32.mrb[0].mxu0
        %v2286 = vadd.f32 0.0, %v2285
        %v2287 = vpop.f32.mrb[0].mxu0
        %2288 = vmatprep.mubr.bf16.mxu0 0
        %2289 = vmatmul.mubr.bf16.gmra.mrb[0].mxu0 %v2164
        %v2290 = vpop.f32.mrb[0].mxu0
        %v2291 = vadd.f32 0.0, %v2290
        %v2292 = vpop.f32.mrb[0].mxu0
        %v2293 = vpop.f32.mrb[0].mxu0
        %v2294 = vadd.f32 0.0, %v2293
        %v2295 = vpop.f32.mrb[0].mxu0
        %2296 = vmatprep.mubr.bf16.mxu0 0
        %2297 = vmatmul.mubr.bf16.gmra.mrb[0].mxu0 %v2167
        %v2298 = vpop.f32.mrb[0].mxu0
        %v2299 = vadd.f32 0.0, %v2298
        %v2300 = vpop.f32.mrb[0].mxu0
        %v2301 = vpop.f32.mrb[0].mxu0
        %v2302 = vadd.f32 0.0, %v2301
        %v2303 = vpop.f32.mrb[0].mxu0
        %2304 = vmatprep.mubr.bf16.mxu0 0
        %2305 = vmatmul.mubr.bf16.gmra.mrb[0].mxu0 %v2170
        %v2306 = vpop.f32.mrb[0].mxu0
        %v2307 = vadd.f32 0.0, %v2306
        %v2308 = vpop.f32.mrb[0].mxu0
        %v2309 = vpop.f32.mrb[0].mxu0
        %v2310 = vadd.f32 0.0, %v2309
        %v2311 = vpop.f32.mrb[0].mxu0
        %2312 = vmatprep.mubr.bf16.mxu0 0
        %2313 = vmatmul.mubr.bf16.gmra.mrb[0].mxu0 %v2173
        %v2314 = vpop.f32.mrb[0].mxu0
        %v2315 = vadd.f32 0.0, %v2314
        %v2316 = vpop.f32.mrb[0].mxu0
        %v2317 = vpop.f32.mrb[0].mxu0
        %v2318 = vadd.f32 0.0, %v2317
        %v2319 = vpop.f32.mrb[0].mxu0
        %2320 = vmatprep.mubr.bf16.mxu0 0
        %2321 = vmatmul.mubr.bf16.gmra.mrb[0].mxu0 %v2176
        %v2322 = vpop.f32.mrb[0].mxu0
        %v2323 = vadd.f32 0.0, %v2322
        %v2324 = vpop.f32.mrb[0].mxu0
        %v2325 = vpop.f32.mrb[0].mxu0
        %v2326 = vadd.f32 0.0, %v2325
        %v2327 = vpop.f32.mrb[0].mxu0
        %2328 = vmatprep.mubr.bf16.mxu0 0
        %2329 = vmatmul.mubr.bf16.gmra.mrb[0].mxu0 %v2179
        %v2330 = vpop.f32.mrb[0].mxu0
        %v2331 = vadd.f32 0.0, %v2330
        %v2332 = vpop.f32.mrb[0].mxu0
        %v2333 = vpop.f32.mrb[0].mxu0
        %v2334 = vadd.f32 0.0, %v2333
        %v2335 = vpop.f32.mrb[0].mxu0
        %2336 = vmatprep.mubr.bf16.mxu0 0
        %2337 = vmatmul.mubr.bf16.gmra.mrb[0].mxu0 %v2182
        %v2338 = vpop.f32.mrb[0].mxu0
        %v2339 = vadd.f32 0.0, %v2338
        %v2340 = vpop.f32.mrb[0].mxu0
        %v2341 = vpop.f32.mrb[0].mxu0
        %v2342 = vadd.f32 0.0, %v2341
        %v2343 = vpop.f32.mrb[0].mxu0
        %2344 = vdwg.mxu0
        %v2345 = vadd.f32 %v1974, %v2219
        %v2346 = vadd.f32 %v1975, %v2222
        %v2347 = vadd.f32 %v1976, %v2227
        %v2348 = vadd.f32 %v1977, %v2230
        %v2349 = vadd.f32 %v1978, %v2235
        %v2350 = vadd.f32 %v1979, %v2238
        %v2351 = vadd.f32 %v1980, %v2243
        %v2352 = vadd.f32 %v1981, %v2246
        %v2353 = vadd.f32 %v1982, %v2251
        %v2354 = vadd.f32 %v1983, %v2254
        %v2355 = vadd.f32 %v1984, %v2259
        %v2356 = vadd.f32 %v1985, %v2262
        %v2357 = vadd.f32 %v1986, %v2267
        %v2358 = vadd.f32 %v1987, %v2270
        %v2359 = vadd.f32 %v1988, %v2275
        %v2360 = vadd.f32 %v1989, %v2278
        %v2361 = vadd.f32 %v1990, %v2283
        %v2362 = vadd.f32 %v1991, %v2286
        %v2363 = vadd.f32 %v1992, %v2291
        %v2364 = vadd.f32 %v1993, %v2294
        %v2365 = vadd.f32 %v1994, %v2299
        %v2366 = vadd.f32 %v1995, %v2302
        %v2367 = vadd.f32 %v1996, %v2307
        %v2368 = vadd.f32 %v1997, %v2310
        %v2369 = vadd.f32 %v1998, %v2315
        %v2370 = vadd.f32 %v1999, %v2318
        %v2371 = vadd.f32 %v2000, %v2323
        %v2372 = vadd.f32 %v2001, %v2326
        %v2373 = vadd.f32 %v2002, %v2331
        %v2374 = vadd.f32 %v2003, %v2334
        %v2375 = vadd.f32 %v2004, %v2339
        %v2376 = vadd.f32 %v2005, %v2342
        %v2377 = vld [vmem:[%s2006] sm:$0xf]
        %v2378 = vld [vmem:[%s2006 + $0x4] sm:$0xf]
        %v2379 = vld [vmem:[%s2006 + $0x8] sm:$0x1]
        %v2380 = vld [vmem:[%s2006 + $0xc] sm:$0xf]
        %v2381 = vld [vmem:[%s2006 + $0x10] sm:$0xf]
        %v2382 = vld [vmem:[%s2006 + $0x14] sm:$0x1]
        %v2383 = vld [vmem:[%s2006 + $0x18] sm:$0xf]
        %v2384 = vld [vmem:[%s2006 + $0x1c] sm:$0xf]
        %v2385 = vld [vmem:[%s2006 + $0x20] sm:$0x1]
        %v2386 = vld [vmem:[%s2006 + $0x24] sm:$0xf]
        %v2387 = vld [vmem:[%s2006 + $0x28] sm:$0xf]
        %v2388 = vld [vmem:[%s2006 + $0x2c] sm:$0x1]
        %v2389 = vld [vmem:[%s2006 + $0x30] sm:$0xf]
        %v2390 = vld [vmem:[%s2006 + $0x34] sm:$0xf]
        %v2391 = vld [vmem:[%s2006 + $0x38] sm:$0x1]
        %v2392 = vld [vmem:[%s2006 + $0x3c] sm:$0xf]
        %v2393 = vld [vmem:[%s2006 + $0x40] sm:$0xf]
        %v2394 = vld [vmem:[%s2006 + $0x44] sm:$0x1]
        %v2395 = vld [vmem:[%s2006 + $0x48] sm:$0xf]
        %v2396 = vld [vmem:[%s2006 + $0x4c] sm:$0xf]
        %v2397 = vld [vmem:[%s2006 + $0x50] sm:$0x1]
        %v2398 = vld [vmem:[%s2006 + $0x54] sm:$0xf]
        %v2399 = vld [vmem:[%s2006 + $0x58] sm:$0xf]
        %v2400 = vld [vmem:[%s2006 + $0x5c] sm:$0x1]
        %v2401 = vld [vmem:[%s2006 + $0x60] sm:$0xf]
        %v2402 = vld [vmem:[%s2006 + $0x64] sm:$0xf]
        %v2403 = vld [vmem:[%s2006 + $0x68] sm:$0x1]
        %v2404 = vld [vmem:[%s2006 + $0x6c] sm:$0xf]
        %v2405 = vld [vmem:[%s2006 + $0x70] sm:$0xf]
        %v2406 = vld [vmem:[%s2006 + $0x74] sm:$0x1]
        %v2407 = vld [vmem:[%s2006 + $0x78] sm:$0xf]
        %v2408 = vld [vmem:[%s2006 + $0x7c] sm:$0xf]
        %v2409 = vld [vmem:[%s2006 + $0x80] sm:$0x1]
        %v2410 = vld [vmem:[%s2006 + $0x84] sm:$0xf]
        %v2411 = vld [vmem:[%s2006 + $0x88] sm:$0xf]
        %v2412 = vld [vmem:[%s2006 + $0x8c] sm:$0x1]
        %v2413 = vld [vmem:[%s2006 + $0x90] sm:$0xf]
        %v2414 = vld [vmem:[%s2006 + $0x94] sm:$0xf]
        %v2415 = vld [vmem:[%s2006 + $0x98] sm:$0x1]
        %v2416 = vld [vmem:[%s2006 + $0x9c] sm:$0xf]
        %v2417 = vld [vmem:[%s2006 + $0xa0] sm:$0xf]
        %v2418 = vld [vmem:[%s2006 + $0xa4] sm:$0x1]
        %v2419 = vld [vmem:[%s2006 + $0xa8] sm:$0xf]
        %v2420 = vld [vmem:[%s2006 + $0xac] sm:$0xf]
        %v2421 = vld [vmem:[%s2006 + $0xb0] sm:$0x1]
        %v2422 = vld [vmem:[%s2006 + $0xb4] sm:$0xf]
        %v2423 = vld [vmem:[%s2006 + $0xb8] sm:$0xf]
        %v2424 = vld [vmem:[%s2006 + $0xbc] sm:$0x1]
        %v2426 = vshrl.u32 %v2377, 16
        %v2428 = vrot.slane %v2426, 4
        %v2429 = vshll.u32 %v2377, 16
        %v2431 = vrot.slane %v2429, 5
        %v2432 = vor.u32 %v2428, %v2431
        %v2433 = vrot.slane %v2432, 4
        %v2435 = vshll.u32 %v2378, 16
        %v2437 = vrot.slane %v2435, 5
        %v2438 = vsel %vm576, %v2433, %v2437
        %v2439 = vshrl.u32 %v2378, 16
        %v2441 = vrot.slane %v2439, 4
        %v2442 = vor.u32 %v2441, %v2437
        %v2443 = vrot.slane %v2442, 4
        %v2445 = vshll.u32 %v2379, 16
        %v2447 = vrot.slane %v2445, 5
        %v2448 = vsel %vm576, %v2443, %v2447
        %v2450 = vshrl.u32 %v2380, 16
        %v2452 = vrot.slane %v2450, 4
        %v2453 = vshll.u32 %v2380, 16
        %v2455 = vrot.slane %v2453, 5
        %v2456 = vor.u32 %v2452, %v2455
        %v2457 = vrot.slane %v2456, 4
        %v2459 = vshll.u32 %v2381, 16
        %v2461 = vrot.slane %v2459, 5
        %v2462 = vsel %vm576, %v2457, %v2461
        %v2463 = vshrl.u32 %v2381, 16
        %v2465 = vrot.slane %v2463, 4
        %v2466 = vor.u32 %v2465, %v2461
        %v2467 = vrot.slane %v2466, 4
        %v2469 = vshll.u32 %v2382, 16
        %v2471 = vrot.slane %v2469, 5
        %v2472 = vsel %vm576, %v2467, %v2471
        %v2474 = vshrl.u32 %v2383, 16
        %v2476 = vrot.slane %v2474, 4
        %v2477 = vshll.u32 %v2383, 16
        %v2479 = vrot.slane %v2477, 5
        %v2480 = vor.u32 %v2476, %v2479
        %v2481 = vrot.slane %v2480, 4
        %v2483 = vshll.u32 %v2384, 16
        %v2485 = vrot.slane %v2483, 5
        %v2486 = vsel %vm576, %v2481, %v2485
        %v2487 = vshrl.u32 %v2384, 16
        %v2489 = vrot.slane %v2487, 4
        %v2490 = vor.u32 %v2489, %v2485
        %v2491 = vrot.slane %v2490, 4
        %v2493 = vshll.u32 %v2385, 16
        %v2495 = vrot.slane %v2493, 5
        %v2496 = vsel %vm576, %v2491, %v2495
        %v2498 = vshrl.u32 %v2386, 16
        %v2500 = vrot.slane %v2498, 4
        %v2501 = vshll.u32 %v2386, 16
        %v2503 = vrot.slane %v2501, 5
        %v2504 = vor.u32 %v2500, %v2503
        %v2505 = vrot.slane %v2504, 4
        %v2507 = vshll.u32 %v2387, 16
        %v2509 = vrot.slane %v2507, 5
        %v2510 = vsel %vm576, %v2505, %v2509
        %v2511 = vshrl.u32 %v2387, 16
        %v2513 = vrot.slane %v2511, 4
        %v2514 = vor.u32 %v2513, %v2509
        %v2515 = vrot.slane %v2514, 4
        %v2517 = vshll.u32 %v2388, 16
        %v2519 = vrot.slane %v2517, 5
        %v2520 = vsel %vm576, %v2515, %v2519
        %v2522 = vshrl.u32 %v2389, 16
        %v2524 = vrot.slane %v2522, 4
        %v2525 = vshll.u32 %v2389, 16
        %v2527 = vrot.slane %v2525, 5
        %v2528 = vor.u32 %v2524, %v2527
        %v2529 = vrot.slane %v2528, 4
        %v2531 = vshll.u32 %v2390, 16
        %v2533 = vrot.slane %v2531, 5
        %v2534 = vsel %vm576, %v2529, %v2533
        %v2535 = vshrl.u32 %v2390, 16
        %v2537 = vrot.slane %v2535, 4
        %v2538 = vor.u32 %v2537, %v2533
        %v2539 = vrot.slane %v2538, 4
        %v2541 = vshll.u32 %v2391, 16
        %v2543 = vrot.slane %v2541, 5
        %v2544 = vsel %vm576, %v2539, %v2543
        %v2546 = vshrl.u32 %v2392, 16
        %v2548 = vrot.slane %v2546, 4
        %v2549 = vshll.u32 %v2392, 16
        %v2551 = vrot.slane %v2549, 5
        %v2552 = vor.u32 %v2548, %v2551
        %v2553 = vrot.slane %v2552, 4
        %v2555 = vshll.u32 %v2393, 16
        %v2557 = vrot.slane %v2555, 5
        %v2558 = vsel %vm576, %v2553, %v2557
        %v2559 = vshrl.u32 %v2393, 16
        %v2561 = vrot.slane %v2559, 4
        %v2562 = vor.u32 %v2561, %v2557
        %v2563 = vrot.slane %v2562, 4
        %v2565 = vshll.u32 %v2394, 16
        %v2567 = vrot.slane %v2565, 5
        %v2568 = vsel %vm576, %v2563, %v2567
        %v2570 = vshrl.u32 %v2395, 16
        %v2572 = vrot.slane %v2570, 4
        %v2573 = vshll.u32 %v2395, 16
        %v2575 = vrot.slane %v2573, 5
        %v2576 = vor.u32 %v2572, %v2575
        %v2577 = vrot.slane %v2576, 4
        %v2579 = vshll.u32 %v2396, 16
        %v2581 = vrot.slane %v2579, 5
        %v2582 = vsel %vm576, %v2577, %v2581
        %v2583 = vshrl.u32 %v2396, 16
        %v2585 = vrot.slane %v2583, 4
        %v2586 = vor.u32 %v2585, %v2581
        %v2587 = vrot.slane %v2586, 4
        %v2589 = vshll.u32 %v2397, 16
        %v2591 = vrot.slane %v2589, 5
        %v2592 = vsel %vm576, %v2587, %v2591
        %v2594 = vshrl.u32 %v2398, 16
        %v2596 = vrot.slane %v2594, 4
        %v2597 = vshll.u32 %v2398, 16
        %v2599 = vrot.slane %v2597, 5
        %v2600 = vor.u32 %v2596, %v2599
        %v2601 = vrot.slane %v2600, 4
        %v2603 = vshll.u32 %v2399, 16
        %v2605 = vrot.slane %v2603, 5
        %v2606 = vsel %vm576, %v2601, %v2605
        %v2607 = vshrl.u32 %v2399, 16
        %v2609 = vrot.slane %v2607, 4
        %v2610 = vor.u32 %v2609, %v2605
        %v2611 = vrot.slane %v2610, 4
        %v2613 = vshll.u32 %v2400, 16
        %v2615 = vrot.slane %v2613, 5
        %v2616 = vsel %vm576, %v2611, %v2615
        %v2618 = vshrl.u32 %v2401, 16
        %v2620 = vrot.slane %v2618, 4
        %v2621 = vshll.u32 %v2401, 16
        %v2623 = vrot.slane %v2621, 5
        %v2624 = vor.u32 %v2620, %v2623
        %v2625 = vrot.slane %v2624, 4
        %v2627 = vshll.u32 %v2402, 16
        %v2629 = vrot.slane %v2627, 5
        %v2630 = vsel %vm576, %v2625, %v2629
        %v2631 = vshrl.u32 %v2402, 16
        %v2633 = vrot.slane %v2631, 4
        %v2634 = vor.u32 %v2633, %v2629
        %v2635 = vrot.slane %v2634, 4
        %v2637 = vshll.u32 %v2403, 16
        %v2639 = vrot.slane %v2637, 5
        %v2640 = vsel %vm576, %v2635, %v2639
        %v2642 = vshrl.u32 %v2404, 16
        %v2644 = vrot.slane %v2642, 4
        %v2645 = vshll.u32 %v2404, 16
        %v2647 = vrot.slane %v2645, 5
        %v2648 = vor.u32 %v2644, %v2647
        %v2649 = vrot.slane %v2648, 4
        %v2651 = vshll.u32 %v2405, 16
        %v2653 = vrot.slane %v2651, 5
        %v2654 = vsel %vm576, %v2649, %v2653
        %v2655 = vshrl.u32 %v2405, 16
        %v2657 = vrot.slane %v2655, 4
        %v2658 = vor.u32 %v2657, %v2653
        %v2659 = vrot.slane %v2658, 4
        %v2661 = vshll.u32 %v2406, 16
        %v2663 = vrot.slane %v2661, 5
        %v2664 = vsel %vm576, %v2659, %v2663
        %v2666 = vshrl.u32 %v2407, 16
        %v2668 = vrot.slane %v2666, 4
        %v2669 = vshll.u32 %v2407, 16
        %v2671 = vrot.slane %v2669, 5
        %v2672 = vor.u32 %v2668, %v2671
        %v2673 = vrot.slane %v2672, 4
        %v2675 = vshll.u32 %v2408, 16
        %v2677 = vrot.slane %v2675, 5
        %v2678 = vsel %vm576, %v2673, %v2677
        %v2679 = vshrl.u32 %v2408, 16
        %v2681 = vrot.slane %v2679, 4
        %v2682 = vor.u32 %v2681, %v2677
        %v2683 = vrot.slane %v2682, 4
        %v2685 = vshll.u32 %v2409, 16
        %v2687 = vrot.slane %v2685, 5
        %v2688 = vsel %vm576, %v2683, %v2687
        %v2690 = vshrl.u32 %v2410, 16
        %v2692 = vrot.slane %v2690, 4
        %v2693 = vshll.u32 %v2410, 16
        %v2695 = vrot.slane %v2693, 5
        %v2696 = vor.u32 %v2692, %v2695
        %v2697 = vrot.slane %v2696, 4
        %v2699 = vshll.u32 %v2411, 16
        %v2701 = vrot.slane %v2699, 5
        %v2702 = vsel %vm576, %v2697, %v2701
        %v2703 = vshrl.u32 %v2411, 16
        %v2705 = vrot.slane %v2703, 4
        %v2706 = vor.u32 %v2705, %v2701
        %v2707 = vrot.slane %v2706, 4
        %v2709 = vshll.u32 %v2412, 16
        %v2711 = vrot.slane %v2709, 5
        %v2712 = vsel %vm576, %v2707, %v2711
        %v2714 = vshrl.u32 %v2413, 16
        %v2716 = vrot.slane %v2714, 4
        %v2717 = vshll.u32 %v2413, 16
        %v2719 = vrot.slane %v2717, 5
        %v2720 = vor.u32 %v2716, %v2719
        %v2721 = vrot.slane %v2720, 4
        %v2723 = vshll.u32 %v2414, 16
        %v2725 = vrot.slane %v2723, 5
        %v2726 = vsel %vm576, %v2721, %v2725
        %v2727 = vshrl.u32 %v2414, 16
        %v2729 = vrot.slane %v2727, 4
        %v2730 = vor.u32 %v2729, %v2725
        %v2731 = vrot.slane %v2730, 4
        %v2733 = vshll.u32 %v2415, 16
        %v2735 = vrot.slane %v2733, 5
        %v2736 = vsel %vm576, %v2731, %v2735
        %v2738 = vshrl.u32 %v2416, 16
        %v2740 = vrot.slane %v2738, 4
        %v2741 = vshll.u32 %v2416, 16
        %v2743 = vrot.slane %v2741, 5
        %v2744 = vor.u32 %v2740, %v2743
        %v2745 = vrot.slane %v2744, 4
        %v2747 = vshll.u32 %v2417, 16
        %v2749 = vrot.slane %v2747, 5
        %v2750 = vsel %vm576, %v2745, %v2749
        %v2751 = vshrl.u32 %v2417, 16
        %v2753 = vrot.slane %v2751, 4
        %v2754 = vor.u32 %v2753, %v2749
        %v2755 = vrot.slane %v2754, 4
        %v2757 = vshll.u32 %v2418, 16
        %v2759 = vrot.slane %v2757, 5
        %v2760 = vsel %vm576, %v2755, %v2759
        %v2762 = vshrl.u32 %v2419, 16
        %v2764 = vrot.slane %v2762, 4
        %v2765 = vshll.u32 %v2419, 16
        %v2767 = vrot.slane %v2765, 5
        %v2768 = vor.u32 %v2764, %v2767
        %v2769 = vrot.slane %v2768, 4
        %v2771 = vshll.u32 %v2420, 16
        %v2773 = vrot.slane %v2771, 5
        %v2774 = vsel %vm576, %v2769, %v2773
        %v2775 = vshrl.u32 %v2420, 16
        %v2777 = vrot.slane %v2775, 4
        %v2778 = vor.u32 %v2777, %v2773
        %v2779 = vrot.slane %v2778, 4
        %v2781 = vshll.u32 %v2421, 16
        %v2783 = vrot.slane %v2781, 5
        %v2784 = vsel %vm576, %v2779, %v2783
        %v2786 = vshrl.u32 %v2422, 16
        %v2788 = vrot.slane %v2786, 4
        %v2789 = vshll.u32 %v2422, 16
        %v2791 = vrot.slane %v2789, 5
        %v2792 = vor.u32 %v2788, %v2791
        %v2793 = vrot.slane %v2792, 4
        %v2795 = vshll.u32 %v2423, 16
        %v2797 = vrot.slane %v2795, 5
        %v2798 = vsel %vm576, %v2793, %v2797
        %v2799 = vshrl.u32 %v2423, 16
        %v2801 = vrot.slane %v2799, 4
        %v2802 = vor.u32 %v2801, %v2797
        %v2803 = vrot.slane %v2802, 4
        %v2805 = vshll.u32 %v2424, 16
        %v2807 = vrot.slane %v2805, 5
        %v2808 = vsel %vm576, %v2803, %v2807
        %s2809 = scalar_lea.vmem [#allocation9], 64
        %v2810 = vld [vmem:[%s2809] sm:$0xf]
        %v2811 = vld [vmem:[%s2809 + $0x4] sm:$0xf]
        %v2812 = vld [vmem:[%s2809 + $0x8] sm:$0xf]
        %v2813 = vld [vmem:[%s2809 + $0xc] sm:$0xf]
        %v2814 = vunpack.c.l.b16 %v2438
        %v2815 = vunpack.c.l.b16 %v2448
        %v2816 = vunpack.c.l.b16 %v2462
        %v2817 = vunpack.c.l.b16 %v2472
        %v2818 = vunpack.c.l.b16 %v2486
        %v2819 = vunpack.c.l.b16 %v2496
        %v2820 = vunpack.c.l.b16 %v2510
        %v2821 = vunpack.c.l.b16 %v2520
        %v2822 = vunpack.c.l.b16 %v2534
        %v2823 = vunpack.c.l.b16 %v2544
        %v2824 = vunpack.c.l.b16 %v2558
        %v2825 = vunpack.c.l.b16 %v2568
        %v2826 = vunpack.c.l.b16 %v2582
        %v2827 = vunpack.c.l.b16 %v2592
        %v2828 = vunpack.c.l.b16 %v2606
        %v2829 = vunpack.c.l.b16 %v2616
        %v2830 = vunpack.c.l.b16 %v2630
        %v2831 = vunpack.c.l.b16 %v2640
        %v2832 = vunpack.c.l.b16 %v2654
        %v2833 = vunpack.c.l.b16 %v2664
        %v2834 = vunpack.c.l.b16 %v2678
        %v2835 = vunpack.c.l.b16 %v2688
        %v2836 = vunpack.c.l.b16 %v2702
        %v2837 = vunpack.c.l.b16 %v2712
        %v2838 = vunpack.c.l.b16 %v2726
        %v2839 = vunpack.c.l.b16 %v2736
        %v2840 = vunpack.c.l.b16 %v2750
        %v2841 = vunpack.c.l.b16 %v2760
        %v2842 = vunpack.c.l.b16 %v2774
        %v2843 = vunpack.c.l.b16 %v2784
        %v2844 = vunpack.c.l.b16 %v2798
        %v2845 = vunpack.c.l.b16 %v2808
        %v2846 = vpack.c.b16 %v2815, %v2814
        %v2847 = vpack.c.b16 %v2817, %v2816
        %v2848 = vpack.c.b16 %v2819, %v2818
        %v2849 = vpack.c.b16 %v2821, %v2820
        %v2850 = vpack.c.b16 %v2823, %v2822
        %v2851 = vpack.c.b16 %v2825, %v2824
        %v2852 = vpack.c.b16 %v2827, %v2826
        %v2853 = vpack.c.b16 %v2829, %v2828
        %v2854 = vpack.c.b16 %v2831, %v2830
        %v2855 = vpack.c.b16 %v2833, %v2832
        %v2856 = vpack.c.b16 %v2835, %v2834
        %v2857 = vpack.c.b16 %v2837, %v2836
        %v2858 = vpack.c.b16 %v2839, %v2838
        %v2859 = vpack.c.b16 %v2841, %v2840
        %v2860 = vpack.c.b16 %v2843, %v2842
        %v2861 = vpack.c.b16 %v2845, %v2844
        %v2866 = vunpack.c.l.b16 %v2810
        %v2867 = vunpack.c.l.b16 %v2811
        %v2868 = vunpack.c.l.b16 %v2812
        %v2869 = vunpack.c.l.b16 %v2813
        %v2870 = vpack.c.b16 %v2867, %v2866
        %v2871 = vpack.c.b16 %v2869, %v2868
        %v2875 = vsel %vm1026, %v2846, 0
        %v2878 = vsel %vm1026, %v2847, 0
        %v2881 = vsel %vm1026, %v2848, 0
        %v2884 = vsel %vm1026, %v2849, 0
        %v2887 = vsel %vm1026, %v2850, 0
        %v2890 = vsel %vm1026, %v2851, 0
        %v2893 = vsel %vm1026, %v2852, 0
        %v2896 = vsel %vm1026, %v2853, 0
        %v2899 = vsel %vm1026, %v2854, 0
        %v2902 = vsel %vm1026, %v2855, 0
        %v2905 = vsel %vm1026, %v2856, 0
        %v2908 = vsel %vm1026, %v2857, 0
        %v2911 = vsel %vm1026, %v2858, 0
        %v2914 = vsel %vm1026, %v2859, 0
        %v2917 = vsel %vm1026, %v2860, 0
        %v2920 = vsel %vm1026, %v2861, 0
        %2922 = vmatprep.subr.bf16.mxu0 0
        %2923 = vmatpush1.bf16.msra.mxu0 %v2870
        %2924 = vmatprep.subr.bf16.mxu0 0
        %2925 = vmatpush1.bf16.msra.mxu0 %v2871
        %2926 = vmatprep.subr.bf16.mxu0 0
        %2927 = vmatpush1.bf16.msra.mxu0 0
        %2928 = vmatprep.subr.bf16.mxu0 0
        %2929 = vmatpush1.bf16.msra.mxu0 0
        %2930 = vmatprep.subr.bf16.mxu0 0
        %2931 = vmatpush1.bf16.msra.mxu0 0
        %2932 = vmatprep.subr.bf16.mxu0 0
        %2933 = vmatpush1.bf16.msra.mxu0 0
        %2934 = vmatprep.subr.bf16.mxu0 0
        %2935 = vmatpush1.bf16.msra.mxu0 0
        %2936 = vmatprep.subr.bf16.mxu0 0
        %2937 = vmatpush1.bf16.msra.mxu0 0
        %2938 = vmatprep.subr.bf16.mxu0 0
        %2939 = vmatpush1.bf16.msra.mxu0 0
        %2940 = vmatprep.subr.bf16.mxu0 0
        %2941 = vmatpush1.bf16.msra.mxu0 0
        %2942 = vmatprep.subr.bf16.mxu0 0
        %2943 = vmatpush1.bf16.msra.mxu0 0
        %2944 = vmatprep.subr.bf16.mxu0 0
        %2945 = vmatpush1.bf16.msra.mxu0 0
        %2946 = vmatprep.subr.bf16.mxu0 0
        %2947 = vmatpush1.bf16.msra.mxu0 0
        %2948 = vmatprep.subr.bf16.mxu0 0
        %2949 = vmatpush1.bf16.msra.mxu0 0
        %2950 = vmatprep.subr.bf16.mxu0 0
        %2951 = vmatpush1.bf16.msra.mxu0 0
        %2952 = vmatprep.subr.bf16.mxu0 0
        %2953 = vmatpush1.bf16.msra.mxu0 0
        %2954 = vmatprep.mubr.bf16.mxu0 0
        %2955 = vmatmul.mubr.bf16.gmra.mrb[0].mxu0 %v2875
        %v2956 = vpop.f32.mrb[0].mxu0
        %v2957 = vadd.f32 0.0, %v2956
        %v2958 = vpop.f32.mrb[0].mxu0
        %v2959 = vpop.f32.mrb[0].mxu0
        %v2960 = vadd.f32 0.0, %v2959
        %v2961 = vpop.f32.mrb[0].mxu0
        %2962 = vmatprep.mubr.bf16.mxu0 0
        %2963 = vmatmul.mubr.bf16.gmra.mrb[0].mxu0 %v2878
        %v2964 = vpop.f32.mrb[0].mxu0
        %v2965 = vadd.f32 0.0, %v2964
        %v2966 = vpop.f32.mrb[0].mxu0
        %v2967 = vpop.f32.mrb[0].mxu0
        %v2968 = vadd.f32 0.0, %v2967
        %v2969 = vpop.f32.mrb[0].mxu0
        %2970 = vmatprep.mubr.bf16.mxu0 0
        %2971 = vmatmul.mubr.bf16.gmra.mrb[0].mxu0 %v2881
        %v2972 = vpop.f32.mrb[0].mxu0
        %v2973 = vadd.f32 0.0, %v2972
        %v2974 = vpop.f32.mrb[0].mxu0
        %v2975 = vpop.f32.mrb[0].mxu0
        %v2976 = vadd.f32 0.0, %v2975
        %v2977 = vpop.f32.mrb[0].mxu0
        %2978 = vmatprep.mubr.bf16.mxu0 0
        %2979 = vmatmul.mubr.bf16.gmra.mrb[0].mxu0 %v2884
        %v2980 = vpop.f32.mrb[0].mxu0
        %v2981 = vadd.f32 0.0, %v2980
        %v2982 = vpop.f32.mrb[0].mxu0
        %v2983 = vpop.f32.mrb[0].mxu0
        %v2984 = vadd.f32 0.0, %v2983
        %v2985 = vpop.f32.mrb[0].mxu0
        %2986 = vmatprep.mubr.bf16.mxu0 0
        %2987 = vmatmul.mubr.bf16.gmra.mrb[0].mxu0 %v2887
        %v2988 = vpop.f32.mrb[0].mxu0
        %v2989 = vadd.f32 0.0, %v2988
        %v2990 = vpop.f32.mrb[0].mxu0
        %v2991 = vpop.f32.mrb[0].mxu0
        %v2992 = vadd.f32 0.0, %v2991
        %v2993 = vpop.f32.mrb[0].mxu0
        %2994 = vmatprep.mubr.bf16.mxu0 0
        %2995 = vmatmul.mubr.bf16.gmra.mrb[0].mxu0 %v2890
        %v2996 = vpop.f32.mrb[0].mxu0
        %v2997 = vadd.f32 0.0, %v2996
        %v2998 = vpop.f32.mrb[0].mxu0
        %v2999 = vpop.f32.mrb[0].mxu0
        %v3000 = vadd.f32 0.0, %v2999
        %v3001 = vpop.f32.mrb[0].mxu0
        %3002 = vmatprep.mubr.bf16.mxu0 0
        %3003 = vmatmul.mubr.bf16.gmra.mrb[0].mxu0 %v2893
        %v3004 = vpop.f32.mrb[0].mxu0
        %v3005 = vadd.f32 0.0, %v3004
        %v3006 = vpop.f32.mrb[0].mxu0
        %v3007 = vpop.f32.mrb[0].mxu0
        %v3008 = vadd.f32 0.0, %v3007
        %v3009 = vpop.f32.mrb[0].mxu0
        %3010 = vmatprep.mubr.bf16.mxu0 0
        %3011 = vmatmul.mubr.bf16.gmra.mrb[0].mxu0 %v2896
        %v3012 = vpop.f32.mrb[0].mxu0
        %v3013 = vadd.f32 0.0, %v3012
        %v3014 = vpop.f32.mrb[0].mxu0
        %v3015 = vpop.f32.mrb[0].mxu0
        %v3016 = vadd.f32 0.0, %v3015
        %v3017 = vpop.f32.mrb[0].mxu0
        %3018 = vmatprep.mubr.bf16.mxu0 0
        %3019 = vmatmul.mubr.bf16.gmra.mrb[0].mxu0 %v2899
        %v3020 = vpop.f32.mrb[0].mxu0
        %v3021 = vadd.f32 0.0, %v3020
        %v3022 = vpop.f32.mrb[0].mxu0
        %v3023 = vpop.f32.mrb[0].mxu0
        %v3024 = vadd.f32 0.0, %v3023
        %v3025 = vpop.f32.mrb[0].mxu0
        %3026 = vmatprep.mubr.bf16.mxu0 0
        %3027 = vmatmul.mubr.bf16.gmra.mrb[0].mxu0 %v2902
        %v3028 = vpop.f32.mrb[0].mxu0
        %v3029 = vadd.f32 0.0, %v3028
        %v3030 = vpop.f32.mrb[0].mxu0
        %v3031 = vpop.f32.mrb[0].mxu0
        %v3032 = vadd.f32 0.0, %v3031
        %v3033 = vpop.f32.mrb[0].mxu0
        %3034 = vmatprep.mubr.bf16.mxu0 0
        %3035 = vmatmul.mubr.bf16.gmra.mrb[0].mxu0 %v2905
        %v3036 = vpop.f32.mrb[0].mxu0
        %v3037 = vadd.f32 0.0, %v3036
        %v3038 = vpop.f32.mrb[0].mxu0
        %v3039 = vpop.f32.mrb[0].mxu0
        %v3040 = vadd.f32 0.0, %v3039
        %v3041 = vpop.f32.mrb[0].mxu0
        %3042 = vmatprep.mubr.bf16.mxu0 0
        %3043 = vmatmul.mubr.bf16.gmra.mrb[0].mxu0 %v2908
        %v3044 = vpop.f32.mrb[0].mxu0
        %v3045 = vadd.f32 0.0, %v3044
        %v3046 = vpop.f32.mrb[0].mxu0
        %v3047 = vpop.f32.mrb[0].mxu0
        %v3048 = vadd.f32 0.0, %v3047
        %v3049 = vpop.f32.mrb[0].mxu0
        %3050 = vmatprep.mubr.bf16.mxu0 0
        %3051 = vmatmul.mubr.bf16.gmra.mrb[0].mxu0 %v2911
        %v3052 = vpop.f32.mrb[0].mxu0
        %v3053 = vadd.f32 0.0, %v3052
        %v3054 = vpop.f32.mrb[0].mxu0
        %v3055 = vpop.f32.mrb[0].mxu0
        %v3056 = vadd.f32 0.0, %v3055
        %v3057 = vpop.f32.mrb[0].mxu0
        %3058 = vmatprep.mubr.bf16.mxu0 0
        %3059 = vmatmul.mubr.bf16.gmra.mrb[0].mxu0 %v2914
        %v3060 = vpop.f32.mrb[0].mxu0
        %v3061 = vadd.f32 0.0, %v3060
        %v3062 = vpop.f32.mrb[0].mxu0
        %v3063 = vpop.f32.mrb[0].mxu0
        %v3064 = vadd.f32 0.0, %v3063
        %v3065 = vpop.f32.mrb[0].mxu0
        %3066 = vmatprep.mubr.bf16.mxu0 0
        %3067 = vmatmul.mubr.bf16.gmra.mrb[0].mxu0 %v2917
        %v3068 = vpop.f32.mrb[0].mxu0
        %v3069 = vadd.f32 0.0, %v3068
        %v3070 = vpop.f32.mrb[0].mxu0
        %v3071 = vpop.f32.mrb[0].mxu0
        %v3072 = vadd.f32 0.0, %v3071
        %v3073 = vpop.f32.mrb[0].mxu0
        %3074 = vmatprep.mubr.bf16.mxu0 0
        %3075 = vmatmul.mubr.bf16.gmra.mrb[0].mxu0 %v2920
        %v3076 = vpop.f32.mrb[0].mxu0
        %v3077 = vadd.f32 0.0, %v3076
        %v3078 = vpop.f32.mrb[0].mxu0
        %v3079 = vpop.f32.mrb[0].mxu0
        %v3080 = vadd.f32 0.0, %v3079
        %v3081 = vpop.f32.mrb[0].mxu0
        %3082 = vdwg.mxu0
        %v3083 = vadd.f32 %v2345, %v2957
        %v3084 = vadd.f32 %v2346, %v2960
        %v3085 = vadd.f32 %v2347, %v2965
        %v3086 = vadd.f32 %v2348, %v2968
        %v3087 = vadd.f32 %v2349, %v2973
        %v3088 = vadd.f32 %v2350, %v2976
        %v3089 = vadd.f32 %v2351, %v2981
        %v3090 = vadd.f32 %v2352, %v2984
        %v3091 = vadd.f32 %v2353, %v2989
        %v3092 = vadd.f32 %v2354, %v2992
        %v3093 = vadd.f32 %v2355, %v2997
        %v3094 = vadd.f32 %v2356, %v3000
        %v3095 = vadd.f32 %v2357, %v3005
        %v3096 = vadd.f32 %v2358, %v3008
        %v3097 = vadd.f32 %v2359, %v3013
        %v3098 = vadd.f32 %v2360, %v3016
        %v3099 = vadd.f32 %v2361, %v3021
        %v3100 = vadd.f32 %v2362, %v3024
        %v3101 = vadd.f32 %v2363, %v3029
        %v3102 = vadd.f32 %v2364, %v3032
        %v3103 = vadd.f32 %v2365, %v3037
        %v3104 = vadd.f32 %v2366, %v3040
        %v3105 = vadd.f32 %v2367, %v3045
        %v3106 = vadd.f32 %v2368, %v3048
        %v3107 = vadd.f32 %v2369, %v3053
        %v3108 = vadd.f32 %v2370, %v3056
        %v3109 = vadd.f32 %v2371, %v3061
        %v3110 = vadd.f32 %v2372, %v3064
        %v3111 = vadd.f32 %v2373, %v3069
        %v3112 = vadd.f32 %v2374, %v3072
        %v3113 = vadd.f32 %v2375, %v3077
        %v3114 = vadd.f32 %v2376, %v3080
        %v3115 = vld [vmem:[%s2006] sm:$0xe]
        %v3116 = vld [vmem:[%s2006 + $0xc] sm:$0xe]
        %v3117 = vld [vmem:[%s2006 + $0x18] sm:$0xe]
        %v3118 = vld [vmem:[%s2006 + $0x24] sm:$0xe]
        %v3119 = vld [vmem:[%s2006 + $0x30] sm:$0xe]
        %v3120 = vld [vmem:[%s2006 + $0x3c] sm:$0xe]
        %v3121 = vld [vmem:[%s2006 + $0x48] sm:$0xe]
        %v3122 = vld [vmem:[%s2006 + $0x54] sm:$0xe]
        %v3123 = vld [vmem:[%s2006 + $0x60] sm:$0xe]
        %v3124 = vld [vmem:[%s2006 + $0x6c] sm:$0xe]
        %v3125 = vld [vmem:[%s2006 + $0x78] sm:$0xe]
        %v3126 = vld [vmem:[%s2006 + $0x84] sm:$0xe]
        %v3127 = vld [vmem:[%s2006 + $0x90] sm:$0xe]
        %v3128 = vld [vmem:[%s2006 + $0x9c] sm:$0xe]
        %v3129 = vld [vmem:[%s2006 + $0xa8] sm:$0xe]
        %v3130 = vld [vmem:[%s2006 + $0xb4] sm:$0xe]
        %v3179 = vrot.slane %v3115, 5
        %v3180 = vrot.slane %v3179, 4
        %v3181 = vrot.slane %v2378, 5
        %v3182 = vsel %vm1587, %v3180, %v3181
        %v3183 = vrot.slane %v3181, 4
        %v3184 = vrot.slane %v2379, 5
        %v3185 = vsel %vm1587, %v3183, %v3184
        %v3186 = vrot.slane %v3116, 5
        %v3187 = vrot.slane %v3186, 4
        %v3188 = vrot.slane %v2381, 5
        %v3189 = vsel %vm1587, %v3187, %v3188
        %v3190 = vrot.slane %v3188, 4
        %v3191 = vrot.slane %v2382, 5
        %v3192 = vsel %vm1587, %v3190, %v3191
        %v3193 = vrot.slane %v3117, 5
        %v3194 = vrot.slane %v3193, 4
        %v3195 = vrot.slane %v2384, 5
        %v3196 = vsel %vm1587, %v3194, %v3195
        %v3197 = vrot.slane %v3195, 4
        %v3198 = vrot.slane %v2385, 5
        %v3199 = vsel %vm1587, %v3197, %v3198
        %v3200 = vrot.slane %v3118, 5
        %v3201 = vrot.slane %v3200, 4
        %v3202 = vrot.slane %v2387, 5
        %v3203 = vsel %vm1587, %v3201, %v3202
        %v3204 = vrot.slane %v3202, 4
        %v3205 = vrot.slane %v2388, 5
        %v3206 = vsel %vm1587, %v3204, %v3205
        %v3207 = vrot.slane %v3119, 5
        %v3208 = vrot.slane %v3207, 4
        %v3209 = vrot.slane %v2390, 5
        %v3210 = vsel %vm1587, %v3208, %v3209
        %v3211 = vrot.slane %v3209, 4
        %v3212 = vrot.slane %v2391, 5
        %v3213 = vsel %vm1587, %v3211, %v3212
        %v3214 = vrot.slane %v3120, 5
        %v3215 = vrot.slane %v3214, 4
        %v3216 = vrot.slane %v2393, 5
        %v3217 = vsel %vm1587, %v3215, %v3216
        %v3218 = vrot.slane %v3216, 4
        %v3219 = vrot.slane %v2394, 5
        %v3220 = vsel %vm1587, %v3218, %v3219
        %v3221 = vrot.slane %v3121, 5
        %v3222 = vrot.slane %v3221, 4
        %v3223 = vrot.slane %v2396, 5
        %v3224 = vsel %vm1587, %v3222, %v3223
        %v3225 = vrot.slane %v3223, 4
        %v3226 = vrot.slane %v2397, 5
        %v3227 = vsel %vm1587, %v3225, %v3226
        %v3228 = vrot.slane %v3122, 5
        %v3229 = vrot.slane %v3228, 4
        %v3230 = vrot.slane %v2399, 5
        %v3231 = vsel %vm1587, %v3229, %v3230
        %v3232 = vrot.slane %v3230, 4
        %v3233 = vrot.slane %v2400, 5
        %v3234 = vsel %vm1587, %v3232, %v3233
        %v3235 = vrot.slane %v3123, 5
        %v3236 = vrot.slane %v3235, 4
        %v3237 = vrot.slane %v2402, 5
        %v3238 = vsel %vm1587, %v3236, %v3237
        %v3239 = vrot.slane %v3237, 4
        %v3240 = vrot.slane %v2403, 5
        %v3241 = vsel %vm1587, %v3239, %v3240
        %v3242 = vrot.slane %v3124, 5
        %v3243 = vrot.slane %v3242, 4
        %v3244 = vrot.slane %v2405, 5
        %v3245 = vsel %vm1587, %v3243, %v3244
        %v3246 = vrot.slane %v3244, 4
        %v3247 = vrot.slane %v2406, 5
        %v3248 = vsel %vm1587, %v3246, %v3247
        %v3249 = vrot.slane %v3125, 5
        %v3250 = vrot.slane %v3249, 4
        %v3251 = vrot.slane %v2408, 5
        %v3252 = vsel %vm1587, %v3250, %v3251
        %v3253 = vrot.slane %v3251, 4
        %v3254 = vrot.slane %v2409, 5
        %v3255 = vsel %vm1587, %v3253, %v3254
        %v3256 = vrot.slane %v3126, 5
        %v3257 = vrot.slane %v3256, 4
        %v3258 = vrot.slane %v2411, 5
        %v3259 = vsel %vm1587, %v3257, %v3258
        %v3260 = vrot.slane %v3258, 4
        %v3261 = vrot.slane %v2412, 5
        %v3262 = vsel %vm1587, %v3260, %v3261
        %v3263 = vrot.slane %v3127, 5
        %v3264 = vrot.slane %v3263, 4
        %v3265 = vrot.slane %v2414, 5
        %v3266 = vsel %vm1587, %v3264, %v3265
        %v3267 = vrot.slane %v3265, 4
        %v3268 = vrot.slane %v2415, 5
        %v3269 = vsel %vm1587, %v3267, %v3268
        %v3270 = vrot.slane %v3128, 5
        %v3271 = vrot.slane %v3270, 4
        %v3272 = vrot.slane %v2417, 5
        %v3273 = vsel %vm1587, %v3271, %v3272
        %v3274 = vrot.slane %v3272, 4
        %v3275 = vrot.slane %v2418, 5
        %v3276 = vsel %vm1587, %v3274, %v3275
        %v3277 = vrot.slane %v3129, 5
        %v3278 = vrot.slane %v3277, 4
        %v3279 = vrot.slane %v2420, 5
        %v3280 = vsel %vm1587, %v3278, %v3279
        %v3281 = vrot.slane %v3279, 4
        %v3282 = vrot.slane %v2421, 5
        %v3283 = vsel %vm1587, %v3281, %v3282
        %v3284 = vrot.slane %v3130, 5
        %v3285 = vrot.slane %v3284, 4
        %v3286 = vrot.slane %v2423, 5
        %v3287 = vsel %vm1587, %v3285, %v3286
        %v3288 = vrot.slane %v3286, 4
        %v3289 = vrot.slane %v2424, 5
        %v3290 = vsel %vm1587, %v3288, %v3289
        %s3291 = scalar_lea.vmem [#allocation9], 80
        %v3292 = vld [vmem:[%s3291] sm:$0xf]
        %v3293 = vld [vmem:[%s3291 + $0x4] sm:$0xf]
        %v3294 = vld [vmem:[%s3291 + $0x8] sm:$0xf]
        %v3295 = vld [vmem:[%s3291 + $0xc] sm:$0xf]
        %v3296 = vunpack.c.l.b16 %v3182
        %v3297 = vunpack.c.l.b16 %v3185
        %v3298 = vunpack.c.l.b16 %v3189
        %v3299 = vunpack.c.l.b16 %v3192
        %v3300 = vunpack.c.l.b16 %v3196
        %v3301 = vunpack.c.l.b16 %v3199
        %v3302 = vunpack.c.l.b16 %v3203
        %v3303 = vunpack.c.l.b16 %v3206
        %v3304 = vunpack.c.l.b16 %v3210
        %v3305 = vunpack.c.l.b16 %v3213
        %v3306 = vunpack.c.l.b16 %v3217
        %v3307 = vunpack.c.l.b16 %v3220
        %v3308 = vunpack.c.l.b16 %v3224
        %v3309 = vunpack.c.l.b16 %v3227
        %v3310 = vunpack.c.l.b16 %v3231
        %v3311 = vunpack.c.l.b16 %v3234
        %v3312 = vunpack.c.l.b16 %v3238
        %v3313 = vunpack.c.l.b16 %v3241
        %v3314 = vunpack.c.l.b16 %v3245
        %v3315 = vunpack.c.l.b16 %v3248
        %v3316 = vunpack.c.l.b16 %v3252
        %v3317 = vunpack.c.l.b16 %v3255
        %v3318 = vunpack.c.l.b16 %v3259
        %v3319 = vunpack.c.l.b16 %v3262
        %v3320 = vunpack.c.l.b16 %v3266
        %v3321 = vunpack.c.l.b16 %v3269
        %v3322 = vunpack.c.l.b16 %v3273
        %v3323 = vunpack.c.l.b16 %v3276
        %v3324 = vunpack.c.l.b16 %v3280
        %v3325 = vunpack.c.l.b16 %v3283
        %v3326 = vunpack.c.l.b16 %v3287
        %v3327 = vunpack.c.l.b16 %v3290
        %v3328 = vpack.c.b16 %v3297, %v3296
        %v3329 = vpack.c.b16 %v3299, %v3298
        %v3330 = vpack.c.b16 %v3301, %v3300
        %v3331 = vpack.c.b16 %v3303, %v3302
        %v3332 = vpack.c.b16 %v3305, %v3304
        %v3333 = vpack.c.b16 %v3307, %v3306
        %v3334 = vpack.c.b16 %v3309, %v3308
        %v3335 = vpack.c.b16 %v3311, %v3310
        %v3336 = vpack.c.b16 %v3313, %v3312
        %v3337 = vpack.c.b16 %v3315, %v3314
        %v3338 = vpack.c.b16 %v3317, %v3316
        %v3339 = vpack.c.b16 %v3319, %v3318
        %v3340 = vpack.c.b16 %v3321, %v3320
        %v3341 = vpack.c.b16 %v3323, %v3322
        %v3342 = vpack.c.b16 %v3325, %v3324
        %v3343 = vpack.c.b16 %v3327, %v3326
        %v3348 = vunpack.c.l.b16 %v3292
        %v3349 = vunpack.c.l.b16 %v3293
        %v3350 = vunpack.c.l.b16 %v3294
        %v3351 = vunpack.c.l.b16 %v3295
        %v3352 = vpack.c.b16 %v3349, %v3348
        %v3353 = vpack.c.b16 %v3351, %v3350
        %v3357 = vsel %vm1026, %v3328, 0
        %v3360 = vsel %vm1026, %v3329, 0
        %v3363 = vsel %vm1026, %v3330, 0
        %v3366 = vsel %vm1026, %v3331, 0
        %v3369 = vsel %vm1026, %v3332, 0
        %v3372 = vsel %vm1026, %v3333, 0
        %v3375 = vsel %vm1026, %v3334, 0
        %v3378 = vsel %vm1026, %v3335, 0
        %v3381 = vsel %vm1026, %v3336, 0
        %v3384 = vsel %vm1026, %v3337, 0
        %v3387 = vsel %vm1026, %v3338, 0
        %v3390 = vsel %vm1026, %v3339, 0
        %v3393 = vsel %vm1026, %v3340, 0
        %v3396 = vsel %vm1026, %v3341, 0
        %v3399 = vsel %vm1026, %v3342, 0
        %v3402 = vsel %vm1026, %v3343, 0
        %3404 = vmatprep.subr.bf16.mxu0 0
        %3405 = vmatpush1.bf16.msra.mxu0 %v3352
        %3406 = vmatprep.subr.bf16.mxu0 0
        %3407 = vmatpush1.bf16.msra.mxu0 %v3353
        %3408 = vmatprep.subr.bf16.mxu0 0
        %3409 = vmatpush1.bf16.msra.mxu0 0
        %3410 = vmatprep.subr.bf16.mxu0 0
        %3411 = vmatpush1.bf16.msra.mxu0 0
        %3412 = vmatprep.subr.bf16.mxu0 0
        %3413 = vmatpush1.bf16.msra.mxu0 0
        %3414 = vmatprep.subr.bf16.mxu0 0
        %3415 = vmatpush1.bf16.msra.mxu0 0
        %3416 = vmatprep.subr.bf16.mxu0 0
        %3417 = vmatpush1.bf16.msra.mxu0 0
        %3418 = vmatprep.subr.bf16.mxu0 0
        %3419 = vmatpush1.bf16.msra.mxu0 0
        %3420 = vmatprep.subr.bf16.mxu0 0
        %3421 = vmatpush1.bf16.msra.mxu0 0
        %3422 = vmatprep.subr.bf16.mxu0 0
        %3423 = vmatpush1.bf16.msra.mxu0 0
        %3424 = vmatprep.subr.bf16.mxu0 0
        %3425 = vmatpush1.bf16.msra.mxu0 0
        %3426 = vmatprep.subr.bf16.mxu0 0
        %3427 = vmatpush1.bf16.msra.mxu0 0
        %3428 = vmatprep.subr.bf16.mxu0 0
        %3429 = vmatpush1.bf16.msra.mxu0 0
        %3430 = vmatprep.subr.bf16.mxu0 0
        %3431 = vmatpush1.bf16.msra.mxu0 0
        %3432 = vmatprep.subr.bf16.mxu0 0
        %3433 = vmatpush1.bf16.msra.mxu0 0
        %3434 = vmatprep.subr.bf16.mxu0 0
        %3435 = vmatpush1.bf16.msra.mxu0 0
        %3436 = vmatprep.mubr.bf16.mxu0 0
        %3437 = vmatmul.mubr.bf16.gmra.mrb[0].mxu0 %v3357
        %v3438 = vpop.f32.mrb[0].mxu0
        %v3439 = vadd.f32 0.0, %v3438
        %v3440 = vpop.f32.mrb[0].mxu0
        %v3441 = vpop.f32.mrb[0].mxu0
        %v3442 = vadd.f32 0.0, %v3441
        %v3443 = vpop.f32.mrb[0].mxu0
        %3444 = vmatprep.mubr.bf16.mxu0 0
        %3445 = vmatmul.mubr.bf16.gmra.mrb[0].mxu0 %v3360
        %v3446 = vpop.f32.mrb[0].mxu0
        %v3447 = vadd.f32 0.0, %v3446
        %v3448 = vpop.f32.mrb[0].mxu0
        %v3449 = vpop.f32.mrb[0].mxu0
        %v3450 = vadd.f32 0.0, %v3449
        %v3451 = vpop.f32.mrb[0].mxu0
        %3452 = vmatprep.mubr.bf16.mxu0 0
        %3453 = vmatmul.mubr.bf16.gmra.mrb[0].mxu0 %v3363
        %v3454 = vpop.f32.mrb[0].mxu0
        %v3455 = vadd.f32 0.0, %v3454
        %v3456 = vpop.f32.mrb[0].mxu0
        %v3457 = vpop.f32.mrb[0].mxu0
        %v3458 = vadd.f32 0.0, %v3457
        %v3459 = vpop.f32.mrb[0].mxu0
        %3460 = vmatprep.mubr.bf16.mxu0 0
        %3461 = vmatmul.mubr.bf16.gmra.mrb[0].mxu0 %v3366
        %v3462 = vpop.f32.mrb[0].mxu0
        %v3463 = vadd.f32 0.0, %v3462
        %v3464 = vpop.f32.mrb[0].mxu0
        %v3465 = vpop.f32.mrb[0].mxu0
        %v3466 = vadd.f32 0.0, %v3465
        %v3467 = vpop.f32.mrb[0].mxu0
        %3468 = vmatprep.mubr.bf16.mxu0 0
        %3469 = vmatmul.mubr.bf16.gmra.mrb[0].mxu0 %v3369
        %v3470 = vpop.f32.mrb[0].mxu0
        %v3471 = vadd.f32 0.0, %v3470
        %v3472 = vpop.f32.mrb[0].mxu0
        %v3473 = vpop.f32.mrb[0].mxu0
        %v3474 = vadd.f32 0.0, %v3473
        %v3475 = vpop.f32.mrb[0].mxu0
        %3476 = vmatprep.mubr.bf16.mxu0 0
        %3477 = vmatmul.mubr.bf16.gmra.mrb[0].mxu0 %v3372
        %v3478 = vpop.f32.mrb[0].mxu0
        %v3479 = vadd.f32 0.0, %v3478
        %v3480 = vpop.f32.mrb[0].mxu0
        %v3481 = vpop.f32.mrb[0].mxu0
        %v3482 = vadd.f32 0.0, %v3481
        %v3483 = vpop.f32.mrb[0].mxu0
        %3484 = vmatprep.mubr.bf16.mxu0 0
        %3485 = vmatmul.mubr.bf16.gmra.mrb[0].mxu0 %v3375
        %v3486 = vpop.f32.mrb[0].mxu0
        %v3487 = vadd.f32 0.0, %v3486
        %v3488 = vpop.f32.mrb[0].mxu0
        %v3489 = vpop.f32.mrb[0].mxu0
        %v3490 = vadd.f32 0.0, %v3489
        %v3491 = vpop.f32.mrb[0].mxu0
        %3492 = vmatprep.mubr.bf16.mxu0 0
        %3493 = vmatmul.mubr.bf16.gmra.mrb[0].mxu0 %v3378
        %v3494 = vpop.f32.mrb[0].mxu0
        %v3495 = vadd.f32 0.0, %v3494
        %v3496 = vpop.f32.mrb[0].mxu0
        %v3497 = vpop.f32.mrb[0].mxu0
        %v3498 = vadd.f32 0.0, %v3497
        %v3499 = vpop.f32.mrb[0].mxu0
        %3500 = vmatprep.mubr.bf16.mxu0 0
        %3501 = vmatmul.mubr.bf16.gmra.mrb[0].mxu0 %v3381
        %v3502 = vpop.f32.mrb[0].mxu0
        %v3503 = vadd.f32 0.0, %v3502
        %v3504 = vpop.f32.mrb[0].mxu0
        %v3505 = vpop.f32.mrb[0].mxu0
        %v3506 = vadd.f32 0.0, %v3505
        %v3507 = vpop.f32.mrb[0].mxu0
        %3508 = vmatprep.mubr.bf16.mxu0 0
        %3509 = vmatmul.mubr.bf16.gmra.mrb[0].mxu0 %v3384
        %v3510 = vpop.f32.mrb[0].mxu0
        %v3511 = vadd.f32 0.0, %v3510
        %v3512 = vpop.f32.mrb[0].mxu0
        %v3513 = vpop.f32.mrb[0].mxu0
        %v3514 = vadd.f32 0.0, %v3513
        %v3515 = vpop.f32.mrb[0].mxu0
        %3516 = vmatprep.mubr.bf16.mxu0 0
        %3517 = vmatmul.mubr.bf16.gmra.mrb[0].mxu0 %v3387
        %v3518 = vpop.f32.mrb[0].mxu0
        %v3519 = vadd.f32 0.0, %v3518
        %v3520 = vpop.f32.mrb[0].mxu0
        %v3521 = vpop.f32.mrb[0].mxu0
        %v3522 = vadd.f32 0.0, %v3521
        %v3523 = vpop.f32.mrb[0].mxu0
        %3524 = vmatprep.mubr.bf16.mxu0 0
        %3525 = vmatmul.mubr.bf16.gmra.mrb[0].mxu0 %v3390
        %v3526 = vpop.f32.mrb[0].mxu0
        %v3527 = vadd.f32 0.0, %v3526
        %v3528 = vpop.f32.mrb[0].mxu0
        %v3529 = vpop.f32.mrb[0].mxu0
        %v3530 = vadd.f32 0.0, %v3529
        %v3531 = vpop.f32.mrb[0].mxu0
        %3532 = vmatprep.mubr.bf16.mxu0 0
        %3533 = vmatmul.mubr.bf16.gmra.mrb[0].mxu0 %v3393
        %v3534 = vpop.f32.mrb[0].mxu0
        %v3535 = vadd.f32 0.0, %v3534
        %v3536 = vpop.f32.mrb[0].mxu0
        %v3537 = vpop.f32.mrb[0].mxu0
        %v3538 = vadd.f32 0.0, %v3537
        %v3539 = vpop.f32.mrb[0].mxu0
        %3540 = vmatprep.mubr.bf16.mxu0 0
        %3541 = vmatmul.mubr.bf16.gmra.mrb[0].mxu0 %v3396
        %v3542 = vpop.f32.mrb[0].mxu0
        %v3543 = vadd.f32 0.0, %v3542
        %v3544 = vpop.f32.mrb[0].mxu0
        %v3545 = vpop.f32.mrb[0].mxu0
        %v3546 = vadd.f32 0.0, %v3545
        %v3547 = vpop.f32.mrb[0].mxu0
        %3548 = vmatprep.mubr.bf16.mxu0 0
        %3549 = vmatmul.mubr.bf16.gmra.mrb[0].mxu0 %v3399
        %v3550 = vpop.f32.mrb[0].mxu0
        %v3551 = vadd.f32 0.0, %v3550
        %v3552 = vpop.f32.mrb[0].mxu0
        %v3553 = vpop.f32.mrb[0].mxu0
        %v3554 = vadd.f32 0.0, %v3553
        %v3555 = vpop.f32.mrb[0].mxu0
        %3556 = vmatprep.mubr.bf16.mxu0 0
        %3557 = vmatmul.mubr.bf16.gmra.mrb[0].mxu0 %v3402
        %v3558 = vpop.f32.mrb[0].mxu0
        %v3559 = vadd.f32 0.0, %v3558
        %v3560 = vpop.f32.mrb[0].mxu0
        %v3561 = vpop.f32.mrb[0].mxu0
        %v3562 = vadd.f32 0.0, %v3561
        %v3563 = vpop.f32.mrb[0].mxu0
        %3564 = vdwg.mxu0
        %v3565 = vadd.f32 %v3083, %v3439
        %v3566 = vadd.f32 %v3084, %v3442
        %v3567 = vadd.f32 %v3085, %v3447
        %v3568 = vadd.f32 %v3086, %v3450
        %v3569 = vadd.f32 %v3087, %v3455
        %v3570 = vadd.f32 %v3088, %v3458
        %v3571 = vadd.f32 %v3089, %v3463
        %v3572 = vadd.f32 %v3090, %v3466
        %v3573 = vadd.f32 %v3091, %v3471
        %v3574 = vadd.f32 %v3092, %v3474
        %v3575 = vadd.f32 %v3093, %v3479
        %v3576 = vadd.f32 %v3094, %v3482
        %v3577 = vadd.f32 %v3095, %v3487
        %v3578 = vadd.f32 %v3096, %v3490
        %v3579 = vadd.f32 %v3097, %v3495
        %v3580 = vadd.f32 %v3098, %v3498
        %v3581 = vadd.f32 %v3099, %v3503
        %v3582 = vadd.f32 %v3100, %v3506
        %v3583 = vadd.f32 %v3101, %v3511
        %v3584 = vadd.f32 %v3102, %v3514
        %v3585 = vadd.f32 %v3103, %v3519
        %v3586 = vadd.f32 %v3104, %v3522
        %v3587 = vadd.f32 %v3105, %v3527
        %v3588 = vadd.f32 %v3106, %v3530
        %v3589 = vadd.f32 %v3107, %v3535
        %v3590 = vadd.f32 %v3108, %v3538
        %v3591 = vadd.f32 %v3109, %v3543
        %v3592 = vadd.f32 %v3110, %v3546
        %v3593 = vadd.f32 %v3111, %v3551
        %v3594 = vadd.f32 %v3112, %v3554
        %v3595 = vadd.f32 %v3113, %v3559
        %v3596 = vadd.f32 %v3114, %v3562
        %s3597 = scalar_lea.vmem [#allocation2], 24
        %v3598 = vld [vmem:[%s3597] sm:$0xf]
        %v3599 = vld [vmem:[%s3597 + $0x4] sm:$0xf]
        %v3600 = vld [vmem:[%s3597 + $0xc] sm:$0xf]
        %v3601 = vld [vmem:[%s3597 + $0x10] sm:$0xf]
        %v3602 = vld [vmem:[%s3597 + $0x18] sm:$0xf]
        %v3603 = vld [vmem:[%s3597 + $0x1c] sm:$0xf]
        %v3604 = vld [vmem:[%s3597 + $0x24] sm:$0xf]
        %v3605 = vld [vmem:[%s3597 + $0x28] sm:$0xf]
        %v3606 = vld [vmem:[%s3597 + $0x30] sm:$0xf]
        %v3607 = vld [vmem:[%s3597 + $0x34] sm:$0xf]
        %v3608 = vld [vmem:[%s3597 + $0x3c] sm:$0xf]
        %v3609 = vld [vmem:[%s3597 + $0x40] sm:$0xf]
        %v3610 = vld [vmem:[%s3597 + $0x48] sm:$0xf]
        %v3611 = vld [vmem:[%s3597 + $0x4c] sm:$0xf]
        %v3612 = vld [vmem:[%s3597 + $0x54] sm:$0xf]
        %v3613 = vld [vmem:[%s3597 + $0x58] sm:$0xf]
        %v3614 = vld [vmem:[%s3597 + $0x60] sm:$0xf]
        %v3615 = vld [vmem:[%s3597 + $0x64] sm:$0xf]
        %v3616 = vld [vmem:[%s3597 + $0x6c] sm:$0xf]
        %v3617 = vld [vmem:[%s3597 + $0x70] sm:$0xf]
        %v3618 = vld [vmem:[%s3597 + $0x78] sm:$0xf]
        %v3619 = vld [vmem:[%s3597 + $0x7c] sm:$0xf]
        %v3620 = vld [vmem:[%s3597 + $0x84] sm:$0xf]
        %v3621 = vld [vmem:[%s3597 + $0x88] sm:$0xf]
        %v3622 = vld [vmem:[%s3597 + $0x90] sm:$0xf]
        %v3623 = vld [vmem:[%s3597 + $0x94] sm:$0xf]
        %v3624 = vld [vmem:[%s3597 + $0x9c] sm:$0xf]
        %v3625 = vld [vmem:[%s3597 + $0xa0] sm:$0xf]
        %v3626 = vld [vmem:[%s3597 + $0xa8] sm:$0xf]
        %v3627 = vld [vmem:[%s3597 + $0xac] sm:$0xf]
        %v3628 = vld [vmem:[%s3597 + $0xb4] sm:$0xf]
        %v3629 = vld [vmem:[%s3597 + $0xb8] sm:$0xf]
        %s3630 = scalar_lea.vmem [#allocation9], 96
        %v3631 = vld [vmem:[%s3630] sm:$0xf]
        %v3632 = vld [vmem:[%s3630 + $0x4] sm:$0xf]
        %v3633 = vld [vmem:[%s3630 + $0x8] sm:$0xf]
        %v3634 = vld [vmem:[%s3630 + $0xc] sm:$0xf]
        %v3667 = vunpack.c.l.b16 %v3598
        %v3668 = vunpack.c.l.b16 %v3599
        %v3669 = vunpack.c.l.b16 %v3600
        %v3670 = vunpack.c.l.b16 %v3601
        %v3671 = vunpack.c.l.b16 %v3602
        %v3672 = vunpack.c.l.b16 %v3603
        %v3673 = vunpack.c.l.b16 %v3604
        %v3674 = vunpack.c.l.b16 %v3605
        %v3675 = vunpack.c.l.b16 %v3606
        %v3676 = vunpack.c.l.b16 %v3607
        %v3677 = vunpack.c.l.b16 %v3608
        %v3678 = vunpack.c.l.b16 %v3609
        %v3679 = vunpack.c.l.b16 %v3610
        %v3680 = vunpack.c.l.b16 %v3611
        %v3681 = vunpack.c.l.b16 %v3612
        %v3682 = vunpack.c.l.b16 %v3613
        %v3683 = vunpack.c.l.b16 %v3614
        %v3684 = vunpack.c.l.b16 %v3615
        %v3685 = vunpack.c.l.b16 %v3616
        %v3686 = vunpack.c.l.b16 %v3617
        %v3687 = vunpack.c.l.b16 %v3618
        %v3688 = vunpack.c.l.b16 %v3619
        %v3689 = vunpack.c.l.b16 %v3620
        %v3690 = vunpack.c.l.b16 %v3621
        %v3691 = vunpack.c.l.b16 %v3622
        %v3692 = vunpack.c.l.b16 %v3623
        %v3693 = vunpack.c.l.b16 %v3624
        %v3694 = vunpack.c.l.b16 %v3625
        %v3695 = vunpack.c.l.b16 %v3626
        %v3696 = vunpack.c.l.b16 %v3627
        %v3697 = vunpack.c.l.b16 %v3628
        %v3698 = vunpack.c.l.b16 %v3629
        %v3699 = vpack.c.b16 %v3668, %v3667
        %v3700 = vpack.c.b16 %v3670, %v3669
        %v3701 = vpack.c.b16 %v3672, %v3671
        %v3702 = vpack.c.b16 %v3674, %v3673
        %v3703 = vpack.c.b16 %v3676, %v3675
        %v3704 = vpack.c.b16 %v3678, %v3677
        %v3705 = vpack.c.b16 %v3680, %v3679
        %v3706 = vpack.c.b16 %v3682, %v3681
        %v3707 = vpack.c.b16 %v3684, %v3683
        %v3708 = vpack.c.b16 %v3686, %v3685
        %v3709 = vpack.c.b16 %v3688, %v3687
        %v3710 = vpack.c.b16 %v3690, %v3689
        %v3711 = vpack.c.b16 %v3692, %v3691
        %v3712 = vpack.c.b16 %v3694, %v3693
        %v3713 = vpack.c.b16 %v3696, %v3695
        %v3714 = vpack.c.b16 %v3698, %v3697
        %v3719 = vunpack.c.l.b16 %v3631
        %v3720 = vunpack.c.l.b16 %v3632
        %v3721 = vunpack.c.l.b16 %v3633
        %v3722 = vunpack.c.l.b16 %v3634
        %v3723 = vpack.c.b16 %v3720, %v3719
        %v3724 = vpack.c.b16 %v3722, %v3721
        %v3728 = vsel %vm1026, %v3699, 0
        %v3731 = vsel %vm1026, %v3700, 0
        %v3734 = vsel %vm1026, %v3701, 0
        %v3737 = vsel %vm1026, %v3702, 0
        %v3740 = vsel %vm1026, %v3703, 0
        %v3743 = vsel %vm1026, %v3704, 0
        %v3746 = vsel %vm1026, %v3705, 0
        %v3749 = vsel %vm1026, %v3706, 0
        %v3752 = vsel %vm1026, %v3707, 0
        %v3755 = vsel %vm1026, %v3708, 0
        %v3758 = vsel %vm1026, %v3709, 0
        %v3761 = vsel %vm1026, %v3710, 0
        %v3764 = vsel %vm1026, %v3711, 0
        %v3767 = vsel %vm1026, %v3712, 0
        %v3770 = vsel %vm1026, %v3713, 0
        %v3773 = vsel %vm1026, %v3714, 0
        %3775 = vmatprep.subr.bf16.mxu0 0
        %3776 = vmatpush1.bf16.msra.mxu0 %v3723
        %3777 = vmatprep.subr.bf16.mxu0 0
        %3778 = vmatpush1.bf16.msra.mxu0 %v3724
        %3779 = vmatprep.subr.bf16.mxu0 0
        %3780 = vmatpush1.bf16.msra.mxu0 0
        %3781 = vmatprep.subr.bf16.mxu0 0
        %3782 = vmatpush1.bf16.msra.mxu0 0
        %3783 = vmatprep.subr.bf16.mxu0 0
        %3784 = vmatpush1.bf16.msra.mxu0 0
        %3785 = vmatprep.subr.bf16.mxu0 0
        %3786 = vmatpush1.bf16.msra.mxu0 0
        %3787 = vmatprep.subr.bf16.mxu0 0
        %3788 = vmatpush1.bf16.msra.mxu0 0
        %3789 = vmatprep.subr.bf16.mxu0 0
        %3790 = vmatpush1.bf16.msra.mxu0 0
        %3791 = vmatprep.subr.bf16.mxu0 0
        %3792 = vmatpush1.bf16.msra.mxu0 0
        %3793 = vmatprep.subr.bf16.mxu0 0
        %3794 = vmatpush1.bf16.msra.mxu0 0
        %3795 = vmatprep.subr.bf16.mxu0 0
        %3796 = vmatpush1.bf16.msra.mxu0 0
        %3797 = vmatprep.subr.bf16.mxu0 0
        %3798 = vmatpush1.bf16.msra.mxu0 0
        %3799 = vmatprep.subr.bf16.mxu0 0
        %3800 = vmatpush1.bf16.msra.mxu0 0
        %3801 = vmatprep.subr.bf16.mxu0 0
        %3802 = vmatpush1.bf16.msra.mxu0 0
        %3803 = vmatprep.subr.bf16.mxu0 0
        %3804 = vmatpush1.bf16.msra.mxu0 0
        %3805 = vmatprep.subr.bf16.mxu0 0
        %3806 = vmatpush1.bf16.msra.mxu0 0
        %3807 = vmatprep.mubr.bf16.mxu0 0
        %3808 = vmatmul.mubr.bf16.gmra.mrb[0].mxu0 %v3728
        %v3809 = vpop.f32.mrb[0].mxu0
        %v3810 = vadd.f32 0.0, %v3809
        %v3811 = vpop.f32.mrb[0].mxu0
        %v3812 = vpop.f32.mrb[0].mxu0
        %v3813 = vadd.f32 0.0, %v3812
        %v3814 = vpop.f32.mrb[0].mxu0
        %3815 = vmatprep.mubr.bf16.mxu0 0
        %3816 = vmatmul.mubr.bf16.gmra.mrb[0].mxu0 %v3731
        %v3817 = vpop.f32.mrb[0].mxu0
        %v3818 = vadd.f32 0.0, %v3817
        %v3819 = vpop.f32.mrb[0].mxu0
        %v3820 = vpop.f32.mrb[0].mxu0
        %v3821 = vadd.f32 0.0, %v3820
        %v3822 = vpop.f32.mrb[0].mxu0
        %3823 = vmatprep.mubr.bf16.mxu0 0
        %3824 = vmatmul.mubr.bf16.gmra.mrb[0].mxu0 %v3734
        %v3825 = vpop.f32.mrb[0].mxu0
        %v3826 = vadd.f32 0.0, %v3825
        %v3827 = vpop.f32.mrb[0].mxu0
        %v3828 = vpop.f32.mrb[0].mxu0
        %v3829 = vadd.f32 0.0, %v3828
        %v3830 = vpop.f32.mrb[0].mxu0
        %3831 = vmatprep.mubr.bf16.mxu0 0
        %3832 = vmatmul.mubr.bf16.gmra.mrb[0].mxu0 %v3737
        %v3833 = vpop.f32.mrb[0].mxu0
        %v3834 = vadd.f32 0.0, %v3833
        %v3835 = vpop.f32.mrb[0].mxu0
        %v3836 = vpop.f32.mrb[0].mxu0
        %v3837 = vadd.f32 0.0, %v3836
        %v3838 = vpop.f32.mrb[0].mxu0
        %3839 = vmatprep.mubr.bf16.mxu0 0
        %3840 = vmatmul.mubr.bf16.gmra.mrb[0].mxu0 %v3740
        %v3841 = vpop.f32.mrb[0].mxu0
        %v3842 = vadd.f32 0.0, %v3841
        %v3843 = vpop.f32.mrb[0].mxu0
        %v3844 = vpop.f32.mrb[0].mxu0
        %v3845 = vadd.f32 0.0, %v3844
        %v3846 = vpop.f32.mrb[0].mxu0
        %3847 = vmatprep.mubr.bf16.mxu0 0
        %3848 = vmatmul.mubr.bf16.gmra.mrb[0].mxu0 %v3743
        %v3849 = vpop.f32.mrb[0].mxu0
        %v3850 = vadd.f32 0.0, %v3849
        %v3851 = vpop.f32.mrb[0].mxu0
        %v3852 = vpop.f32.mrb[0].mxu0
        %v3853 = vadd.f32 0.0, %v3852
        %v3854 = vpop.f32.mrb[0].mxu0
        %3855 = vmatprep.mubr.bf16.mxu0 0
        %3856 = vmatmul.mubr.bf16.gmra.mrb[0].mxu0 %v3746
        %v3857 = vpop.f32.mrb[0].mxu0
        %v3858 = vadd.f32 0.0, %v3857
        %v3859 = vpop.f32.mrb[0].mxu0
        %v3860 = vpop.f32.mrb[0].mxu0
        %v3861 = vadd.f32 0.0, %v3860
        %v3862 = vpop.f32.mrb[0].mxu0
        %3863 = vmatprep.mubr.bf16.mxu0 0
        %3864 = vmatmul.mubr.bf16.gmra.mrb[0].mxu0 %v3749
        %v3865 = vpop.f32.mrb[0].mxu0
        %v3866 = vadd.f32 0.0, %v3865
        %v3867 = vpop.f32.mrb[0].mxu0
        %v3868 = vpop.f32.mrb[0].mxu0
        %v3869 = vadd.f32 0.0, %v3868
        %v3870 = vpop.f32.mrb[0].mxu0
        %3871 = vmatprep.mubr.bf16.mxu0 0
        %3872 = vmatmul.mubr.bf16.gmra.mrb[0].mxu0 %v3752
        %v3873 = vpop.f32.mrb[0].mxu0
        %v3874 = vadd.f32 0.0, %v3873
        %v3875 = vpop.f32.mrb[0].mxu0
        %v3876 = vpop.f32.mrb[0].mxu0
        %v3877 = vadd.f32 0.0, %v3876
        %v3878 = vpop.f32.mrb[0].mxu0
        %3879 = vmatprep.mubr.bf16.mxu0 0
        %3880 = vmatmul.mubr.bf16.gmra.mrb[0].mxu0 %v3755
        %v3881 = vpop.f32.mrb[0].mxu0
        %v3882 = vadd.f32 0.0, %v3881
        %v3883 = vpop.f32.mrb[0].mxu0
        %v3884 = vpop.f32.mrb[0].mxu0
        %v3885 = vadd.f32 0.0, %v3884
        %v3886 = vpop.f32.mrb[0].mxu0
        %3887 = vmatprep.mubr.bf16.mxu0 0
        %3888 = vmatmul.mubr.bf16.gmra.mrb[0].mxu0 %v3758
        %v3889 = vpop.f32.mrb[0].mxu0
        %v3890 = vadd.f32 0.0, %v3889
        %v3891 = vpop.f32.mrb[0].mxu0
        %v3892 = vpop.f32.mrb[0].mxu0
        %v3893 = vadd.f32 0.0, %v3892
        %v3894 = vpop.f32.mrb[0].mxu0
        %3895 = vmatprep.mubr.bf16.mxu0 0
        %3896 = vmatmul.mubr.bf16.gmra.mrb[0].mxu0 %v3761
        %v3897 = vpop.f32.mrb[0].mxu0
        %v3898 = vadd.f32 0.0, %v3897
        %v3899 = vpop.f32.mrb[0].mxu0
        %v3900 = vpop.f32.mrb[0].mxu0
        %v3901 = vadd.f32 0.0, %v3900
        %v3902 = vpop.f32.mrb[0].mxu0
        %3903 = vmatprep.mubr.bf16.mxu0 0
        %3904 = vmatmul.mubr.bf16.gmra.mrb[0].mxu0 %v3764
        %v3905 = vpop.f32.mrb[0].mxu0
        %v3906 = vadd.f32 0.0, %v3905
        %v3907 = vpop.f32.mrb[0].mxu0
        %v3908 = vpop.f32.mrb[0].mxu0
        %v3909 = vadd.f32 0.0, %v3908
        %v3910 = vpop.f32.mrb[0].mxu0
        %3911 = vmatprep.mubr.bf16.mxu0 0
        %3912 = vmatmul.mubr.bf16.gmra.mrb[0].mxu0 %v3767
        %v3913 = vpop.f32.mrb[0].mxu0
        %v3914 = vadd.f32 0.0, %v3913
        %v3915 = vpop.f32.mrb[0].mxu0
        %v3916 = vpop.f32.mrb[0].mxu0
        %v3917 = vadd.f32 0.0, %v3916
        %v3918 = vpop.f32.mrb[0].mxu0
        %3919 = vmatprep.mubr.bf16.mxu0 0
        %3920 = vmatmul.mubr.bf16.gmra.mrb[0].mxu0 %v3770
        %v3921 = vpop.f32.mrb[0].mxu0
        %v3922 = vadd.f32 0.0, %v3921
        %v3923 = vpop.f32.mrb[0].mxu0
        %v3924 = vpop.f32.mrb[0].mxu0
        %v3925 = vadd.f32 0.0, %v3924
        %v3926 = vpop.f32.mrb[0].mxu0
        %3927 = vmatprep.mubr.bf16.mxu0 0
        %3928 = vmatmul.mubr.bf16.gmra.mrb[0].mxu0 %v3773
        %v3929 = vpop.f32.mrb[0].mxu0
        %v3930 = vadd.f32 0.0, %v3929
        %v3931 = vpop.f32.mrb[0].mxu0
        %v3932 = vpop.f32.mrb[0].mxu0
        %v3933 = vadd.f32 0.0, %v3932
        %v3934 = vpop.f32.mrb[0].mxu0
        %3935 = vdwg.mxu0
        %v3936 = vadd.f32 %v3565, %v3810
        %v3937 = vadd.f32 %v3566, %v3813
        %v3938 = vadd.f32 %v3567, %v3818
        %v3939 = vadd.f32 %v3568, %v3821
        %v3940 = vadd.f32 %v3569, %v3826
        %v3941 = vadd.f32 %v3570, %v3829
        %v3942 = vadd.f32 %v3571, %v3834
        %v3943 = vadd.f32 %v3572, %v3837
        %v3944 = vadd.f32 %v3573, %v3842
        %v3945 = vadd.f32 %v3574, %v3845
        %v3946 = vadd.f32 %v3575, %v3850
        %v3947 = vadd.f32 %v3576, %v3853
        %v3948 = vadd.f32 %v3577, %v3858
        %v3949 = vadd.f32 %v3578, %v3861
        %v3950 = vadd.f32 %v3579, %v3866
        %v3951 = vadd.f32 %v3580, %v3869
        %v3952 = vadd.f32 %v3581, %v3874
        %v3953 = vadd.f32 %v3582, %v3877
        %v3954 = vadd.f32 %v3583, %v3882
        %v3955 = vadd.f32 %v3584, %v3885
        %v3956 = vadd.f32 %v3585, %v3890
        %v3957 = vadd.f32 %v3586, %v3893
        %v3958 = vadd.f32 %v3587, %v3898
        %v3959 = vadd.f32 %v3588, %v3901
        %v3960 = vadd.f32 %v3589, %v3906
        %v3961 = vadd.f32 %v3590, %v3909
        %v3962 = vadd.f32 %v3591, %v3914
        %v3963 = vadd.f32 %v3592, %v3917
        %v3964 = vadd.f32 %v3593, %v3922
        %v3965 = vadd.f32 %v3594, %v3925
        %v3966 = vadd.f32 %v3595, %v3930
        %v3967 = vadd.f32 %v3596, %v3933
        %v3968 = vld [vmem:[%s3597] sm:$0xf]
        %v3969 = vld [vmem:[%s3597 + $0x4] sm:$0xf]
        %v3970 = vld [vmem:[%s3597 + $0x8] sm:$0x1]
        %v3971 = vld [vmem:[%s3597 + $0xc] sm:$0xf]
        %v3972 = vld [vmem:[%s3597 + $0x10] sm:$0xf]
        %v3973 = vld [vmem:[%s3597 + $0x14] sm:$0x1]
        %v3974 = vld [vmem:[%s3597 + $0x18] sm:$0xf]
        %v3975 = vld [vmem:[%s3597 + $0x1c] sm:$0xf]
        %v3976 = vld [vmem:[%s3597 + $0x20] sm:$0x1]
        %v3977 = vld [vmem:[%s3597 + $0x24] sm:$0xf]
        %v3978 = vld [vmem:[%s3597 + $0x28] sm:$0xf]
        %v3979 = vld [vmem:[%s3597 + $0x2c] sm:$0x1]
        %v3980 = vld [vmem:[%s3597 + $0x30] sm:$0xf]
        %v3981 = vld [vmem:[%s3597 + $0x34] sm:$0xf]
        %v3982 = vld [vmem:[%s3597 + $0x38] sm:$0x1]
        %v3983 = vld [vmem:[%s3597 + $0x3c] sm:$0xf]
        %v3984 = vld [vmem:[%s3597 + $0x40] sm:$0xf]
        %v3985 = vld [vmem:[%s3597 + $0x44] sm:$0x1]
        %v3986 = vld [vmem:[%s3597 + $0x48] sm:$0xf]
        %v3987 = vld [vmem:[%s3597 + $0x4c] sm:$0xf]
        %v3988 = vld [vmem:[%s3597 + $0x50] sm:$0x1]
        %v3989 = vld [vmem:[%s3597 + $0x54] sm:$0xf]
        %v3990 = vld [vmem:[%s3597 + $0x58] sm:$0xf]
        %v3991 = vld [vmem:[%s3597 + $0x5c] sm:$0x1]
        %v3992 = vld [vmem:[%s3597 + $0x60] sm:$0xf]
        %v3993 = vld [vmem:[%s3597 + $0x64] sm:$0xf]
        %v3994 = vld [vmem:[%s3597 + $0x68] sm:$0x1]
        %v3995 = vld [vmem:[%s3597 + $0x6c] sm:$0xf]
        %v3996 = vld [vmem:[%s3597 + $0x70] sm:$0xf]
        %v3997 = vld [vmem:[%s3597 + $0x74] sm:$0x1]
        %v3998 = vld [vmem:[%s3597 + $0x78] sm:$0xf]
        %v3999 = vld [vmem:[%s3597 + $0x7c] sm:$0xf]
        %v4000 = vld [vmem:[%s3597 + $0x80] sm:$0x1]
        %v4001 = vld [vmem:[%s3597 + $0x84] sm:$0xf]
        %v4002 = vld [vmem:[%s3597 + $0x88] sm:$0xf]
        %v4003 = vld [vmem:[%s3597 + $0x8c] sm:$0x1]
        %v4004 = vld [vmem:[%s3597 + $0x90] sm:$0xf]
        %v4005 = vld [vmem:[%s3597 + $0x94] sm:$0xf]
        %v4006 = vld [vmem:[%s3597 + $0x98] sm:$0x1]
        %v4007 = vld [vmem:[%s3597 + $0x9c] sm:$0xf]
        %v4008 = vld [vmem:[%s3597 + $0xa0] sm:$0xf]
        %v4009 = vld [vmem:[%s3597 + $0xa4] sm:$0x1]
        %v4010 = vld [vmem:[%s3597 + $0xa8] sm:$0xf]
        %v4011 = vld [vmem:[%s3597 + $0xac] sm:$0xf]
        %v4012 = vld [vmem:[%s3597 + $0xb0] sm:$0x1]
        %v4013 = vld [vmem:[%s3597 + $0xb4] sm:$0xf]
        %v4014 = vld [vmem:[%s3597 + $0xb8] sm:$0xf]
        %v4015 = vld [vmem:[%s3597 + $0xbc] sm:$0x1]
        %v4017 = vshrl.u32 %v3968, 16
        %v4019 = vrot.slane %v4017, 4
        %v4020 = vshll.u32 %v3968, 16
        %v4022 = vrot.slane %v4020, 5
        %v4023 = vor.u32 %v4019, %v4022
        %v4024 = vrot.slane %v4023, 4
        %v4026 = vshll.u32 %v3969, 16
        %v4028 = vrot.slane %v4026, 5
        %v4029 = vsel %vm576, %v4024, %v4028
        %v4030 = vshrl.u32 %v3969, 16
        %v4032 = vrot.slane %v4030, 4
        %v4033 = vor.u32 %v4032, %v4028
        %v4034 = vrot.slane %v4033, 4
        %v4036 = vshll.u32 %v3970, 16
        %v4038 = vrot.slane %v4036, 5
        %v4039 = vsel %vm576, %v4034, %v4038
        %v4041 = vshrl.u32 %v3971, 16
        %v4043 = vrot.slane %v4041, 4
        %v4044 = vshll.u32 %v3971, 16
        %v4046 = vrot.slane %v4044, 5
        %v4047 = vor.u32 %v4043, %v4046
        %v4048 = vrot.slane %v4047, 4
        %v4050 = vshll.u32 %v3972, 16
        %v4052 = vrot.slane %v4050, 5
        %v4053 = vsel %vm576, %v4048, %v4052
        %v4054 = vshrl.u32 %v3972, 16
        %v4056 = vrot.slane %v4054, 4
        %v4057 = vor.u32 %v4056, %v4052
        %v4058 = vrot.slane %v4057, 4
        %v4060 = vshll.u32 %v3973, 16
        %v4062 = vrot.slane %v4060, 5
        %v4063 = vsel %vm576, %v4058, %v4062
        %v4065 = vshrl.u32 %v3974, 16
        %v4067 = vrot.slane %v4065, 4
        %v4068 = vshll.u32 %v3974, 16
        %v4070 = vrot.slane %v4068, 5
        %v4071 = vor.u32 %v4067, %v4070
        %v4072 = vrot.slane %v4071, 4
        %v4074 = vshll.u32 %v3975, 16
        %v4076 = vrot.slane %v4074, 5
        %v4077 = vsel %vm576, %v4072, %v4076
        %v4078 = vshrl.u32 %v3975, 16
        %v4080 = vrot.slane %v4078, 4
        %v4081 = vor.u32 %v4080, %v4076
        %v4082 = vrot.slane %v4081, 4
        %v4084 = vshll.u32 %v3976, 16
        %v4086 = vrot.slane %v4084, 5
        %v4087 = vsel %vm576, %v4082, %v4086
        %v4089 = vshrl.u32 %v3977, 16
        %v4091 = vrot.slane %v4089, 4
        %v4092 = vshll.u32 %v3977, 16
        %v4094 = vrot.slane %v4092, 5
        %v4095 = vor.u32 %v4091, %v4094
        %v4096 = vrot.slane %v4095, 4
        %v4098 = vshll.u32 %v3978, 16
        %v4100 = vrot.slane %v4098, 5
        %v4101 = vsel %vm576, %v4096, %v4100
        %v4102 = vshrl.u32 %v3978, 16
        %v4104 = vrot.slane %v4102, 4
        %v4105 = vor.u32 %v4104, %v4100
        %v4106 = vrot.slane %v4105, 4
        %v4108 = vshll.u32 %v3979, 16
        %v4110 = vrot.slane %v4108, 5
        %v4111 = vsel %vm576, %v4106, %v4110
        %v4113 = vshrl.u32 %v3980, 16
        %v4115 = vrot.slane %v4113, 4
        %v4116 = vshll.u32 %v3980, 16
        %v4118 = vrot.slane %v4116, 5
        %v4119 = vor.u32 %v4115, %v4118
        %v4120 = vrot.slane %v4119, 4
        %v4122 = vshll.u32 %v3981, 16
        %v4124 = vrot.slane %v4122, 5
        %v4125 = vsel %vm576, %v4120, %v4124
        %v4126 = vshrl.u32 %v3981, 16
        %v4128 = vrot.slane %v4126, 4
        %v4129 = vor.u32 %v4128, %v4124
        %v4130 = vrot.slane %v4129, 4
        %v4132 = vshll.u32 %v3982, 16
        %v4134 = vrot.slane %v4132, 5
        %v4135 = vsel %vm576, %v4130, %v4134
        %v4137 = vshrl.u32 %v3983, 16
        %v4139 = vrot.slane %v4137, 4
        %v4140 = vshll.u32 %v3983, 16
        %v4142 = vrot.slane %v4140, 5
        %v4143 = vor.u32 %v4139, %v4142
        %v4144 = vrot.slane %v4143, 4
        %v4146 = vshll.u32 %v3984, 16
        %v4148 = vrot.slane %v4146, 5
        %v4149 = vsel %vm576, %v4144, %v4148
        %v4150 = vshrl.u32 %v3984, 16
        %v4152 = vrot.slane %v4150, 4
        %v4153 = vor.u32 %v4152, %v4148
        %v4154 = vrot.slane %v4153, 4
        %v4156 = vshll.u32 %v3985, 16
        %v4158 = vrot.slane %v4156, 5
        %v4159 = vsel %vm576, %v4154, %v4158
        %v4161 = vshrl.u32 %v3986, 16
        %v4163 = vrot.slane %v4161, 4
        %v4164 = vshll.u32 %v3986, 16
        %v4166 = vrot.slane %v4164, 5
        %v4167 = vor.u32 %v4163, %v4166
        %v4168 = vrot.slane %v4167, 4
        %v4170 = vshll.u32 %v3987, 16
        %v4172 = vrot.slane %v4170, 5
        %v4173 = vsel %vm576, %v4168, %v4172
        %v4174 = vshrl.u32 %v3987, 16
        %v4176 = vrot.slane %v4174, 4
        %v4177 = vor.u32 %v4176, %v4172
        %v4178 = vrot.slane %v4177, 4
        %v4180 = vshll.u32 %v3988, 16
        %v4182 = vrot.slane %v4180, 5
        %v4183 = vsel %vm576, %v4178, %v4182
        %v4185 = vshrl.u32 %v3989, 16
        %v4187 = vrot.slane %v4185, 4
        %v4188 = vshll.u32 %v3989, 16
        %v4190 = vrot.slane %v4188, 5
        %v4191 = vor.u32 %v4187, %v4190
        %v4192 = vrot.slane %v4191, 4
        %v4194 = vshll.u32 %v3990, 16
        %v4196 = vrot.slane %v4194, 5
        %v4197 = vsel %vm576, %v4192, %v4196
        %v4198 = vshrl.u32 %v3990, 16
        %v4200 = vrot.slane %v4198, 4
        %v4201 = vor.u32 %v4200, %v4196
        %v4202 = vrot.slane %v4201, 4
        %v4204 = vshll.u32 %v3991, 16
        %v4206 = vrot.slane %v4204, 5
        %v4207 = vsel %vm576, %v4202, %v4206
        %v4209 = vshrl.u32 %v3992, 16
        %v4211 = vrot.slane %v4209, 4
        %v4212 = vshll.u32 %v3992, 16
        %v4214 = vrot.slane %v4212, 5
        %v4215 = vor.u32 %v4211, %v4214
        %v4216 = vrot.slane %v4215, 4
        %v4218 = vshll.u32 %v3993, 16
        %v4220 = vrot.slane %v4218, 5
        %v4221 = vsel %vm576, %v4216, %v4220
        %v4222 = vshrl.u32 %v3993, 16
        %v4224 = vrot.slane %v4222, 4
        %v4225 = vor.u32 %v4224, %v4220
        %v4226 = vrot.slane %v4225, 4
        %v4228 = vshll.u32 %v3994, 16
        %v4230 = vrot.slane %v4228, 5
        %v4231 = vsel %vm576, %v4226, %v4230
        %v4233 = vshrl.u32 %v3995, 16
        %v4235 = vrot.slane %v4233, 4
        %v4236 = vshll.u32 %v3995, 16
        %v4238 = vrot.slane %v4236, 5
        %v4239 = vor.u32 %v4235, %v4238
        %v4240 = vrot.slane %v4239, 4
        %v4242 = vshll.u32 %v3996, 16
        %v4244 = vrot.slane %v4242, 5
        %v4245 = vsel %vm576, %v4240, %v4244
        %v4246 = vshrl.u32 %v3996, 16
        %v4248 = vrot.slane %v4246, 4
        %v4249 = vor.u32 %v4248, %v4244
        %v4250 = vrot.slane %v4249, 4
        %v4252 = vshll.u32 %v3997, 16
        %v4254 = vrot.slane %v4252, 5
        %v4255 = vsel %vm576, %v4250, %v4254
        %v4257 = vshrl.u32 %v3998, 16
        %v4259 = vrot.slane %v4257, 4
        %v4260 = vshll.u32 %v3998, 16
        %v4262 = vrot.slane %v4260, 5
        %v4263 = vor.u32 %v4259, %v4262
        %v4264 = vrot.slane %v4263, 4
        %v4266 = vshll.u32 %v3999, 16
        %v4268 = vrot.slane %v4266, 5
        %v4269 = vsel %vm576, %v4264, %v4268
        %v4270 = vshrl.u32 %v3999, 16
        %v4272 = vrot.slane %v4270, 4
        %v4273 = vor.u32 %v4272, %v4268
        %v4274 = vrot.slane %v4273, 4
        %v4276 = vshll.u32 %v4000, 16
        %v4278 = vrot.slane %v4276, 5
        %v4279 = vsel %vm576, %v4274, %v4278
        %v4281 = vshrl.u32 %v4001, 16
        %v4283 = vrot.slane %v4281, 4
        %v4284 = vshll.u32 %v4001, 16
        %v4286 = vrot.slane %v4284, 5
        %v4287 = vor.u32 %v4283, %v4286
        %v4288 = vrot.slane %v4287, 4
        %v4290 = vshll.u32 %v4002, 16
        %v4292 = vrot.slane %v4290, 5
        %v4293 = vsel %vm576, %v4288, %v4292
        %v4294 = vshrl.u32 %v4002, 16
        %v4296 = vrot.slane %v4294, 4
        %v4297 = vor.u32 %v4296, %v4292
        %v4298 = vrot.slane %v4297, 4
        %v4300 = vshll.u32 %v4003, 16
        %v4302 = vrot.slane %v4300, 5
        %v4303 = vsel %vm576, %v4298, %v4302
        %v4305 = vshrl.u32 %v4004, 16
        %v4307 = vrot.slane %v4305, 4
        %v4308 = vshll.u32 %v4004, 16
        %v4310 = vrot.slane %v4308, 5
        %v4311 = vor.u32 %v4307, %v4310
        %v4312 = vrot.slane %v4311, 4
        %v4314 = vshll.u32 %v4005, 16
        %v4316 = vrot.slane %v4314, 5
        %v4317 = vsel %vm576, %v4312, %v4316
        %v4318 = vshrl.u32 %v4005, 16
        %v4320 = vrot.slane %v4318, 4
        %v4321 = vor.u32 %v4320, %v4316
        %v4322 = vrot.slane %v4321, 4
        %v4324 = vshll.u32 %v4006, 16
        %v4326 = vrot.slane %v4324, 5
        %v4327 = vsel %vm576, %v4322, %v4326
        %v4329 = vshrl.u32 %v4007, 16
        %v4331 = vrot.slane %v4329, 4
        %v4332 = vshll.u32 %v4007, 16
        %v4334 = vrot.slane %v4332, 5
        %v4335 = vor.u32 %v4331, %v4334
        %v4336 = vrot.slane %v4335, 4
        %v4338 = vshll.u32 %v4008, 16
        %v4340 = vrot.slane %v4338, 5
        %v4341 = vsel %vm576, %v4336, %v4340
        %v4342 = vshrl.u32 %v4008, 16
        %v4344 = vrot.slane %v4342, 4
        %v4345 = vor.u32 %v4344, %v4340
        %v4346 = vrot.slane %v4345, 4
        %v4348 = vshll.u32 %v4009, 16
        %v4350 = vrot.slane %v4348, 5
        %v4351 = vsel %vm576, %v4346, %v4350
        %v4353 = vshrl.u32 %v4010, 16
        %v4355 = vrot.slane %v4353, 4
        %v4356 = vshll.u32 %v4010, 16
        %v4358 = vrot.slane %v4356, 5
        %v4359 = vor.u32 %v4355, %v4358
        %v4360 = vrot.slane %v4359, 4
        %v4362 = vshll.u32 %v4011, 16
        %v4364 = vrot.slane %v4362, 5
        %v4365 = vsel %vm576, %v4360, %v4364
        %v4366 = vshrl.u32 %v4011, 16
        %v4368 = vrot.slane %v4366, 4
        %v4369 = vor.u32 %v4368, %v4364
        %v4370 = vrot.slane %v4369, 4
        %v4372 = vshll.u32 %v4012, 16
        %v4374 = vrot.slane %v4372, 5
        %v4375 = vsel %vm576, %v4370, %v4374
        %v4377 = vshrl.u32 %v4013, 16
        %v4379 = vrot.slane %v4377, 4
        %v4380 = vshll.u32 %v4013, 16
        %v4382 = vrot.slane %v4380, 5
        %v4383 = vor.u32 %v4379, %v4382
        %v4384 = vrot.slane %v4383, 4
        %v4386 = vshll.u32 %v4014, 16
        %v4388 = vrot.slane %v4386, 5
        %v4389 = vsel %vm576, %v4384, %v4388
        %v4390 = vshrl.u32 %v4014, 16
        %v4392 = vrot.slane %v4390, 4
        %v4393 = vor.u32 %v4392, %v4388
        %v4394 = vrot.slane %v4393, 4
        %v4396 = vshll.u32 %v4015, 16
        %v4398 = vrot.slane %v4396, 5
        %v4399 = vsel %vm576, %v4394, %v4398
        %s4400 = scalar_lea.vmem [#allocation9], 112
        %v4401 = vld [vmem:[%s4400] sm:$0xf]
        %v4402 = vld [vmem:[%s4400 + $0x4] sm:$0xf]
        %v4403 = vld [vmem:[%s4400 + $0x8] sm:$0xf]
        %v4404 = vld [vmem:[%s4400 + $0xc] sm:$0xf]
        %v4405 = vunpack.c.l.b16 %v4029
        %v4406 = vunpack.c.l.b16 %v4039
        %v4407 = vunpack.c.l.b16 %v4053
        %v4408 = vunpack.c.l.b16 %v4063
        %v4409 = vunpack.c.l.b16 %v4077
        %v4410 = vunpack.c.l.b16 %v4087
        %v4411 = vunpack.c.l.b16 %v4101
        %v4412 = vunpack.c.l.b16 %v4111
        %v4413 = vunpack.c.l.b16 %v4125
        %v4414 = vunpack.c.l.b16 %v4135
        %v4415 = vunpack.c.l.b16 %v4149
        %v4416 = vunpack.c.l.b16 %v4159
        %v4417 = vunpack.c.l.b16 %v4173
        %v4418 = vunpack.c.l.b16 %v4183
        %v4419 = vunpack.c.l.b16 %v4197
        %v4420 = vunpack.c.l.b16 %v4207
        %v4421 = vunpack.c.l.b16 %v4221
        %v4422 = vunpack.c.l.b16 %v4231
        %v4423 = vunpack.c.l.b16 %v4245
        %v4424 = vunpack.c.l.b16 %v4255
        %v4425 = vunpack.c.l.b16 %v4269
        %v4426 = vunpack.c.l.b16 %v4279
        %v4427 = vunpack.c.l.b16 %v4293
        %v4428 = vunpack.c.l.b16 %v4303
        %v4429 = vunpack.c.l.b16 %v4317
        %v4430 = vunpack.c.l.b16 %v4327
        %v4431 = vunpack.c.l.b16 %v4341
        %v4432 = vunpack.c.l.b16 %v4351
        %v4433 = vunpack.c.l.b16 %v4365
        %v4434 = vunpack.c.l.b16 %v4375
        %v4435 = vunpack.c.l.b16 %v4389
        %v4436 = vunpack.c.l.b16 %v4399
        %v4437 = vpack.c.b16 %v4406, %v4405
        %v4438 = vpack.c.b16 %v4408, %v4407
        %v4439 = vpack.c.b16 %v4410, %v4409
        %v4440 = vpack.c.b16 %v4412, %v4411
        %v4441 = vpack.c.b16 %v4414, %v4413
        %v4442 = vpack.c.b16 %v4416, %v4415
        %v4443 = vpack.c.b16 %v4418, %v4417
        %v4444 = vpack.c.b16 %v4420, %v4419
        %v4445 = vpack.c.b16 %v4422, %v4421
        %v4446 = vpack.c.b16 %v4424, %v4423
        %v4447 = vpack.c.b16 %v4426, %v4425
        %v4448 = vpack.c.b16 %v4428, %v4427
        %v4449 = vpack.c.b16 %v4430, %v4429
        %v4450 = vpack.c.b16 %v4432, %v4431
        %v4451 = vpack.c.b16 %v4434, %v4433
        %v4452 = vpack.c.b16 %v4436, %v4435
        %v4457 = vunpack.c.l.b16 %v4401
        %v4458 = vunpack.c.l.b16 %v4402
        %v4459 = vunpack.c.l.b16 %v4403
        %v4460 = vunpack.c.l.b16 %v4404
        %v4461 = vpack.c.b16 %v4458, %v4457
        %v4462 = vpack.c.b16 %v4460, %v4459
        %v4466 = vsel %vm1026, %v4437, 0
        %v4469 = vsel %vm1026, %v4438, 0
        %v4472 = vsel %vm1026, %v4439, 0
        %v4475 = vsel %vm1026, %v4440, 0
        %v4478 = vsel %vm1026, %v4441, 0
        %v4481 = vsel %vm1026, %v4442, 0
        %v4484 = vsel %vm1026, %v4443, 0
        %v4487 = vsel %vm1026, %v4444, 0
        %v4490 = vsel %vm1026, %v4445, 0
        %v4493 = vsel %vm1026, %v4446, 0
        %v4496 = vsel %vm1026, %v4447, 0
        %v4499 = vsel %vm1026, %v4448, 0
        %v4502 = vsel %vm1026, %v4449, 0
        %v4505 = vsel %vm1026, %v4450, 0
        %v4508 = vsel %vm1026, %v4451, 0
        %v4511 = vsel %vm1026, %v4452, 0
        %4513 = vmatprep.subr.bf16.mxu0 0
        %4514 = vmatpush1.bf16.msra.mxu0 %v4461
        %4515 = vmatprep.subr.bf16.mxu0 0
        %4516 = vmatpush1.bf16.msra.mxu0 %v4462
        %4517 = vmatprep.subr.bf16.mxu0 0
        %4518 = vmatpush1.bf16.msra.mxu0 0
        %4519 = vmatprep.subr.bf16.mxu0 0
        %4520 = vmatpush1.bf16.msra.mxu0 0
        %4521 = vmatprep.subr.bf16.mxu0 0
        %4522 = vmatpush1.bf16.msra.mxu0 0
        %4523 = vmatprep.subr.bf16.mxu0 0
        %4524 = vmatpush1.bf16.msra.mxu0 0
        %4525 = vmatprep.subr.bf16.mxu0 0
        %4526 = vmatpush1.bf16.msra.mxu0 0
        %4527 = vmatprep.subr.bf16.mxu0 0
        %4528 = vmatpush1.bf16.msra.mxu0 0
        %4529 = vmatprep.subr.bf16.mxu0 0
        %4530 = vmatpush1.bf16.msra.mxu0 0
        %4531 = vmatprep.subr.bf16.mxu0 0
        %4532 = vmatpush1.bf16.msra.mxu0 0
        %4533 = vmatprep.subr.bf16.mxu0 0
        %4534 = vmatpush1.bf16.msra.mxu0 0
        %4535 = vmatprep.subr.bf16.mxu0 0
        %4536 = vmatpush1.bf16.msra.mxu0 0
        %4537 = vmatprep.subr.bf16.mxu0 0
        %4538 = vmatpush1.bf16.msra.mxu0 0
        %4539 = vmatprep.subr.bf16.mxu0 0
        %4540 = vmatpush1.bf16.msra.mxu0 0
        %4541 = vmatprep.subr.bf16.mxu0 0
        %4542 = vmatpush1.bf16.msra.mxu0 0
        %4543 = vmatprep.subr.bf16.mxu0 0
        %4544 = vmatpush1.bf16.msra.mxu0 0
        %4545 = vmatprep.mubr.bf16.mxu0 0
        %4546 = vmatmul.mubr.bf16.gmra.mrb[0].mxu0 %v4466
        %v4547 = vpop.f32.mrb[0].mxu0
        %v4548 = vadd.f32 0.0, %v4547
        %v4549 = vpop.f32.mrb[0].mxu0
        %v4550 = vpop.f32.mrb[0].mxu0
        %v4551 = vadd.f32 0.0, %v4550
        %v4552 = vpop.f32.mrb[0].mxu0
        %4553 = vmatprep.mubr.bf16.mxu0 0
        %4554 = vmatmul.mubr.bf16.gmra.mrb[0].mxu0 %v4469
        %v4555 = vpop.f32.mrb[0].mxu0
        %v4556 = vadd.f32 0.0, %v4555
        %v4557 = vpop.f32.mrb[0].mxu0
        %v4558 = vpop.f32.mrb[0].mxu0
        %v4559 = vadd.f32 0.0, %v4558
        %v4560 = vpop.f32.mrb[0].mxu0
        %4561 = vmatprep.mubr.bf16.mxu0 0
        %4562 = vmatmul.mubr.bf16.gmra.mrb[0].mxu0 %v4472
        %v4563 = vpop.f32.mrb[0].mxu0
        %v4564 = vadd.f32 0.0, %v4563
        %v4565 = vpop.f32.mrb[0].mxu0
        %v4566 = vpop.f32.mrb[0].mxu0
        %v4567 = vadd.f32 0.0, %v4566
        %v4568 = vpop.f32.mrb[0].mxu0
        %4569 = vmatprep.mubr.bf16.mxu0 0
        %4570 = vmatmul.mubr.bf16.gmra.mrb[0].mxu0 %v4475
        %v4571 = vpop.f32.mrb[0].mxu0
        %v4572 = vadd.f32 0.0, %v4571
        %v4573 = vpop.f32.mrb[0].mxu0
        %v4574 = vpop.f32.mrb[0].mxu0
        %v4575 = vadd.f32 0.0, %v4574
        %v4576 = vpop.f32.mrb[0].mxu0
        %4577 = vmatprep.mubr.bf16.mxu0 0
        %4578 = vmatmul.mubr.bf16.gmra.mrb[0].mxu0 %v4478
        %v4579 = vpop.f32.mrb[0].mxu0
        %v4580 = vadd.f32 0.0, %v4579
        %v4581 = vpop.f32.mrb[0].mxu0
        %v4582 = vpop.f32.mrb[0].mxu0
        %v4583 = vadd.f32 0.0, %v4582
        %v4584 = vpop.f32.mrb[0].mxu0
        %4585 = vmatprep.mubr.bf16.mxu0 0
        %4586 = vmatmul.mubr.bf16.gmra.mrb[0].mxu0 %v4481
        %v4587 = vpop.f32.mrb[0].mxu0
        %v4588 = vadd.f32 0.0, %v4587
        %v4589 = vpop.f32.mrb[0].mxu0
        %v4590 = vpop.f32.mrb[0].mxu0
        %v4591 = vadd.f32 0.0, %v4590
        %v4592 = vpop.f32.mrb[0].mxu0
        %4593 = vmatprep.mubr.bf16.mxu0 0
        %4594 = vmatmul.mubr.bf16.gmra.mrb[0].mxu0 %v4484
        %v4595 = vpop.f32.mrb[0].mxu0
        %v4596 = vadd.f32 0.0, %v4595
        %v4597 = vpop.f32.mrb[0].mxu0
        %v4598 = vpop.f32.mrb[0].mxu0
        %v4599 = vadd.f32 0.0, %v4598
        %v4600 = vpop.f32.mrb[0].mxu0
        %4601 = vmatprep.mubr.bf16.mxu0 0
        %4602 = vmatmul.mubr.bf16.gmra.mrb[0].mxu0 %v4487
        %v4603 = vpop.f32.mrb[0].mxu0
        %v4604 = vadd.f32 0.0, %v4603
        %v4605 = vpop.f32.mrb[0].mxu0
        %v4606 = vpop.f32.mrb[0].mxu0
        %v4607 = vadd.f32 0.0, %v4606
        %v4608 = vpop.f32.mrb[0].mxu0
        %4609 = vmatprep.mubr.bf16.mxu0 0
        %4610 = vmatmul.mubr.bf16.gmra.mrb[0].mxu0 %v4490
        %v4611 = vpop.f32.mrb[0].mxu0
        %v4612 = vadd.f32 0.0, %v4611
        %v4613 = vpop.f32.mrb[0].mxu0
        %v4614 = vpop.f32.mrb[0].mxu0
        %v4615 = vadd.f32 0.0, %v4614
        %v4616 = vpop.f32.mrb[0].mxu0
        %4617 = vmatprep.mubr.bf16.mxu0 0
        %4618 = vmatmul.mubr.bf16.gmra.mrb[0].mxu0 %v4493
        %v4619 = vpop.f32.mrb[0].mxu0
        %v4620 = vadd.f32 0.0, %v4619
        %v4621 = vpop.f32.mrb[0].mxu0
        %v4622 = vpop.f32.mrb[0].mxu0
        %v4623 = vadd.f32 0.0, %v4622
        %v4624 = vpop.f32.mrb[0].mxu0
        %4625 = vmatprep.mubr.bf16.mxu0 0
        %4626 = vmatmul.mubr.bf16.gmra.mrb[0].mxu0 %v4496
        %v4627 = vpop.f32.mrb[0].mxu0
        %v4628 = vadd.f32 0.0, %v4627
        %v4629 = vpop.f32.mrb[0].mxu0
        %v4630 = vpop.f32.mrb[0].mxu0
        %v4631 = vadd.f32 0.0, %v4630
        %v4632 = vpop.f32.mrb[0].mxu0
        %4633 = vmatprep.mubr.bf16.mxu0 0
        %4634 = vmatmul.mubr.bf16.gmra.mrb[0].mxu0 %v4499
        %v4635 = vpop.f32.mrb[0].mxu0
        %v4636 = vadd.f32 0.0, %v4635
        %v4637 = vpop.f32.mrb[0].mxu0
        %v4638 = vpop.f32.mrb[0].mxu0
        %v4639 = vadd.f32 0.0, %v4638
        %v4640 = vpop.f32.mrb[0].mxu0
        %4641 = vmatprep.mubr.bf16.mxu0 0
        %4642 = vmatmul.mubr.bf16.gmra.mrb[0].mxu0 %v4502
        %v4643 = vpop.f32.mrb[0].mxu0
        %v4644 = vadd.f32 0.0, %v4643
        %v4645 = vpop.f32.mrb[0].mxu0
        %v4646 = vpop.f32.mrb[0].mxu0
        %v4647 = vadd.f32 0.0, %v4646
        %v4648 = vpop.f32.mrb[0].mxu0
        %4649 = vmatprep.mubr.bf16.mxu0 0
        %4650 = vmatmul.mubr.bf16.gmra.mrb[0].mxu0 %v4505
        %v4651 = vpop.f32.mrb[0].mxu0
        %v4652 = vadd.f32 0.0, %v4651
        %v4653 = vpop.f32.mrb[0].mxu0
        %v4654 = vpop.f32.mrb[0].mxu0
        %v4655 = vadd.f32 0.0, %v4654
        %v4656 = vpop.f32.mrb[0].mxu0
        %4657 = vmatprep.mubr.bf16.mxu0 0
        %4658 = vmatmul.mubr.bf16.gmra.mrb[0].mxu0 %v4508
        %v4659 = vpop.f32.mrb[0].mxu0
        %v4660 = vadd.f32 0.0, %v4659
        %v4661 = vpop.f32.mrb[0].mxu0
        %v4662 = vpop.f32.mrb[0].mxu0
        %v4663 = vadd.f32 0.0, %v4662
        %v4664 = vpop.f32.mrb[0].mxu0
        %4665 = vmatprep.mubr.bf16.mxu0 0
        %4666 = vmatmul.mubr.bf16.gmra.mrb[0].mxu0 %v4511
        %v4667 = vpop.f32.mrb[0].mxu0
        %v4668 = vadd.f32 0.0, %v4667
        %v4669 = vpop.f32.mrb[0].mxu0
        %v4670 = vpop.f32.mrb[0].mxu0
        %v4671 = vadd.f32 0.0, %v4670
        %v4672 = vpop.f32.mrb[0].mxu0
        %4673 = vdwg.mxu0
        %v4674 = vadd.f32 %v3936, %v4548
        %v4675 = vadd.f32 %v3937, %v4551
        %v4676 = vadd.f32 %v3938, %v4556
        %v4677 = vadd.f32 %v3939, %v4559
        %v4678 = vadd.f32 %v3940, %v4564
        %v4679 = vadd.f32 %v3941, %v4567
        %v4680 = vadd.f32 %v3942, %v4572
        %v4681 = vadd.f32 %v3943, %v4575
        %v4682 = vadd.f32 %v3944, %v4580
        %v4683 = vadd.f32 %v3945, %v4583
        %v4684 = vadd.f32 %v3946, %v4588
        %v4685 = vadd.f32 %v3947, %v4591
        %v4686 = vadd.f32 %v3948, %v4596
        %v4687 = vadd.f32 %v3949, %v4599
        %v4688 = vadd.f32 %v3950, %v4604
        %v4689 = vadd.f32 %v3951, %v4607
        %v4690 = vadd.f32 %v3952, %v4612
        %v4691 = vadd.f32 %v3953, %v4615
        %v4692 = vadd.f32 %v3954, %v4620
        %v4693 = vadd.f32 %v3955, %v4623
        %v4694 = vadd.f32 %v3956, %v4628
        %v4695 = vadd.f32 %v3957, %v4631
        %v4696 = vadd.f32 %v3958, %v4636
        %v4697 = vadd.f32 %v3959, %v4639
        %v4698 = vadd.f32 %v3960, %v4644
        %v4699 = vadd.f32 %v3961, %v4647
        %v4700 = vadd.f32 %v3962, %v4652
        %v4701 = vadd.f32 %v3963, %v4655
        %v4702 = vadd.f32 %v3964, %v4660
        %v4703 = vadd.f32 %v3965, %v4663
        %v4704 = vadd.f32 %v3966, %v4668
        %v4705 = vadd.f32 %v3967, %v4671
        %v4706 = vld [vmem:[%s3597] sm:$0xe]
        %v4707 = vld [vmem:[%s3597 + $0xc] sm:$0xe]
        %v4708 = vld [vmem:[%s3597 + $0x18] sm:$0xe]
        %v4709 = vld [vmem:[%s3597 + $0x24] sm:$0xe]
        %v4710 = vld [vmem:[%s3597 + $0x30] sm:$0xe]
        %v4711 = vld [vmem:[%s3597 + $0x3c] sm:$0xe]
        %v4712 = vld [vmem:[%s3597 + $0x48] sm:$0xe]
        %v4713 = vld [vmem:[%s3597 + $0x54] sm:$0xe]
        %v4714 = vld [vmem:[%s3597 + $0x60] sm:$0xe]
        %v4715 = vld [vmem:[%s3597 + $0x6c] sm:$0xe]
        %v4716 = vld [vmem:[%s3597 + $0x78] sm:$0xe]
        %v4717 = vld [vmem:[%s3597 + $0x84] sm:$0xe]
        %v4718 = vld [vmem:[%s3597 + $0x90] sm:$0xe]
        %v4719 = vld [vmem:[%s3597 + $0x9c] sm:$0xe]
        %v4720 = vld [vmem:[%s3597 + $0xa8] sm:$0xe]
        %v4721 = vld [vmem:[%s3597 + $0xb4] sm:$0xe]
        %v4770 = vrot.slane %v4706, 5
        %v4771 = vrot.slane %v4770, 4
        %v4772 = vrot.slane %v3969, 5
        %v4773 = vsel %vm1587, %v4771, %v4772
        %v4774 = vrot.slane %v4772, 4
        %v4775 = vrot.slane %v3970, 5
        %v4776 = vsel %vm1587, %v4774, %v4775
        %v4777 = vrot.slane %v4707, 5
        %v4778 = vrot.slane %v4777, 4
        %v4779 = vrot.slane %v3972, 5
        %v4780 = vsel %vm1587, %v4778, %v4779
        %v4781 = vrot.slane %v4779, 4
        %v4782 = vrot.slane %v3973, 5
        %v4783 = vsel %vm1587, %v4781, %v4782
        %v4784 = vrot.slane %v4708, 5
        %v4785 = vrot.slane %v4784, 4
        %v4786 = vrot.slane %v3975, 5
        %v4787 = vsel %vm1587, %v4785, %v4786
        %v4788 = vrot.slane %v4786, 4
        %v4789 = vrot.slane %v3976, 5
        %v4790 = vsel %vm1587, %v4788, %v4789
        %v4791 = vrot.slane %v4709, 5
        %v4792 = vrot.slane %v4791, 4
        %v4793 = vrot.slane %v3978, 5
        %v4794 = vsel %vm1587, %v4792, %v4793
        %v4795 = vrot.slane %v4793, 4
        %v4796 = vrot.slane %v3979, 5
        %v4797 = vsel %vm1587, %v4795, %v4796
        %v4798 = vrot.slane %v4710, 5
        %v4799 = vrot.slane %v4798, 4
        %v4800 = vrot.slane %v3981, 5
        %v4801 = vsel %vm1587, %v4799, %v4800
        %v4802 = vrot.slane %v4800, 4
        %v4803 = vrot.slane %v3982, 5
        %v4804 = vsel %vm1587, %v4802, %v4803
        %v4805 = vrot.slane %v4711, 5
        %v4806 = vrot.slane %v4805, 4
        %v4807 = vrot.slane %v3984, 5
        %v4808 = vsel %vm1587, %v4806, %v4807
        %v4809 = vrot.slane %v4807, 4
        %v4810 = vrot.slane %v3985, 5
        %v4811 = vsel %vm1587, %v4809, %v4810
        %v4812 = vrot.slane %v4712, 5
        %v4813 = vrot.slane %v4812, 4
        %v4814 = vrot.slane %v3987, 5
        %v4815 = vsel %vm1587, %v4813, %v4814
        %v4816 = vrot.slane %v4814, 4
        %v4817 = vrot.slane %v3988, 5
        %v4818 = vsel %vm1587, %v4816, %v4817
        %v4819 = vrot.slane %v4713, 5
        %v4820 = vrot.slane %v4819, 4
        %v4821 = vrot.slane %v3990, 5
        %v4822 = vsel %vm1587, %v4820, %v4821
        %v4823 = vrot.slane %v4821, 4
        %v4824 = vrot.slane %v3991, 5
        %v4825 = vsel %vm1587, %v4823, %v4824
        %v4826 = vrot.slane %v4714, 5
        %v4827 = vrot.slane %v4826, 4
        %v4828 = vrot.slane %v3993, 5
        %v4829 = vsel %vm1587, %v4827, %v4828
        %v4830 = vrot.slane %v4828, 4
        %v4831 = vrot.slane %v3994, 5
        %v4832 = vsel %vm1587, %v4830, %v4831
        %v4833 = vrot.slane %v4715, 5
        %v4834 = vrot.slane %v4833, 4
        %v4835 = vrot.slane %v3996, 5
        %v4836 = vsel %vm1587, %v4834, %v4835
        %v4837 = vrot.slane %v4835, 4
        %v4838 = vrot.slane %v3997, 5
        %v4839 = vsel %vm1587, %v4837, %v4838
        %v4840 = vrot.slane %v4716, 5
        %v4841 = vrot.slane %v4840, 4
        %v4842 = vrot.slane %v3999, 5
        %v4843 = vsel %vm1587, %v4841, %v4842
        %v4844 = vrot.slane %v4842, 4
        %v4845 = vrot.slane %v4000, 5
        %v4846 = vsel %vm1587, %v4844, %v4845
        %v4847 = vrot.slane %v4717, 5
        %v4848 = vrot.slane %v4847, 4
        %v4849 = vrot.slane %v4002, 5
        %v4850 = vsel %vm1587, %v4848, %v4849
        %v4851 = vrot.slane %v4849, 4
        %v4852 = vrot.slane %v4003, 5
        %v4853 = vsel %vm1587, %v4851, %v4852
        %v4854 = vrot.slane %v4718, 5
        %v4855 = vrot.slane %v4854, 4
        %v4856 = vrot.slane %v4005, 5
        %v4857 = vsel %vm1587, %v4855, %v4856
        %v4858 = vrot.slane %v4856, 4
        %v4859 = vrot.slane %v4006, 5
        %v4860 = vsel %vm1587, %v4858, %v4859
        %v4861 = vrot.slane %v4719, 5
        %v4862 = vrot.slane %v4861, 4
        %v4863 = vrot.slane %v4008, 5
        %v4864 = vsel %vm1587, %v4862, %v4863
        %v4865 = vrot.slane %v4863, 4
        %v4866 = vrot.slane %v4009, 5
        %v4867 = vsel %vm1587, %v4865, %v4866
        %v4868 = vrot.slane %v4720, 5
        %v4869 = vrot.slane %v4868, 4
        %v4870 = vrot.slane %v4011, 5
        %v4871 = vsel %vm1587, %v4869, %v4870
        %v4872 = vrot.slane %v4870, 4
        %v4873 = vrot.slane %v4012, 5
        %v4874 = vsel %vm1587, %v4872, %v4873
        %v4875 = vrot.slane %v4721, 5
        %v4876 = vrot.slane %v4875, 4
        %v4877 = vrot.slane %v4014, 5
        %v4878 = vsel %vm1587, %v4876, %v4877
        %v4879 = vrot.slane %v4877, 4
        %v4880 = vrot.slane %v4015, 5
        %v4881 = vsel %vm1587, %v4879, %v4880
        %s4882 = scalar_lea.vmem [#allocation9], 128
        %v4883 = vld [vmem:[%s4882] sm:$0xf]
        %v4884 = vld [vmem:[%s4882 + $0x4] sm:$0xf]
        %v4885 = vld [vmem:[%s4882 + $0x8] sm:$0xf]
        %v4886 = vld [vmem:[%s4882 + $0xc] sm:$0xf]
        %v4887 = vunpack.c.l.b16 %v4773
        %v4888 = vunpack.c.l.b16 %v4776
        %v4889 = vunpack.c.l.b16 %v4780
        %v4890 = vunpack.c.l.b16 %v4783
        %v4891 = vunpack.c.l.b16 %v4787
        %v4892 = vunpack.c.l.b16 %v4790
        %v4893 = vunpack.c.l.b16 %v4794
        %v4894 = vunpack.c.l.b16 %v4797
        %v4895 = vunpack.c.l.b16 %v4801
        %v4896 = vunpack.c.l.b16 %v4804
        %v4897 = vunpack.c.l.b16 %v4808
        %v4898 = vunpack.c.l.b16 %v4811
        %v4899 = vunpack.c.l.b16 %v4815
        %v4900 = vunpack.c.l.b16 %v4818
        %v4901 = vunpack.c.l.b16 %v4822
        %v4902 = vunpack.c.l.b16 %v4825
        %v4903 = vunpack.c.l.b16 %v4829
        %v4904 = vunpack.c.l.b16 %v4832
        %v4905 = vunpack.c.l.b16 %v4836
        %v4906 = vunpack.c.l.b16 %v4839
        %v4907 = vunpack.c.l.b16 %v4843
        %v4908 = vunpack.c.l.b16 %v4846
        %v4909 = vunpack.c.l.b16 %v4850
        %v4910 = vunpack.c.l.b16 %v4853
        %v4911 = vunpack.c.l.b16 %v4857
        %v4912 = vunpack.c.l.b16 %v4860
        %v4913 = vunpack.c.l.b16 %v4864
        %v4914 = vunpack.c.l.b16 %v4867
        %v4915 = vunpack.c.l.b16 %v4871
        %v4916 = vunpack.c.l.b16 %v4874
        %v4917 = vunpack.c.l.b16 %v4878
        %v4918 = vunpack.c.l.b16 %v4881
        %v4919 = vpack.c.b16 %v4888, %v4887
        %v4920 = vpack.c.b16 %v4890, %v4889
        %v4921 = vpack.c.b16 %v4892, %v4891
        %v4922 = vpack.c.b16 %v4894, %v4893
        %v4923 = vpack.c.b16 %v4896, %v4895
        %v4924 = vpack.c.b16 %v4898, %v4897
        %v4925 = vpack.c.b16 %v4900, %v4899
        %v4926 = vpack.c.b16 %v4902, %v4901
        %v4927 = vpack.c.b16 %v4904, %v4903
        %v4928 = vpack.c.b16 %v4906, %v4905
        %v4929 = vpack.c.b16 %v4908, %v4907
        %v4930 = vpack.c.b16 %v4910, %v4909
        %v4931 = vpack.c.b16 %v4912, %v4911
        %v4932 = vpack.c.b16 %v4914, %v4913
        %v4933 = vpack.c.b16 %v4916, %v4915
        %v4934 = vpack.c.b16 %v4918, %v4917
        %v4939 = vunpack.c.l.b16 %v4883
        %v4940 = vunpack.c.l.b16 %v4884
        %v4941 = vunpack.c.l.b16 %v4885
        %v4942 = vunpack.c.l.b16 %v4886
        %v4943 = vpack.c.b16 %v4940, %v4939
        %v4944 = vpack.c.b16 %v4942, %v4941
        %v4948 = vsel %vm1026, %v4919, 0
        %v4951 = vsel %vm1026, %v4920, 0
        %v4954 = vsel %vm1026, %v4921, 0
        %v4957 = vsel %vm1026, %v4922, 0
        %v4960 = vsel %vm1026, %v4923, 0
        %v4963 = vsel %vm1026, %v4924, 0
        %v4966 = vsel %vm1026, %v4925, 0
        %v4969 = vsel %vm1026, %v4926, 0
        %v4972 = vsel %vm1026, %v4927, 0
        %v4975 = vsel %vm1026, %v4928, 0
        %v4978 = vsel %vm1026, %v4929, 0
        %v4981 = vsel %vm1026, %v4930, 0
        %v4984 = vsel %vm1026, %v4931, 0
        %v4987 = vsel %vm1026, %v4932, 0
        %v4990 = vsel %vm1026, %v4933, 0
        %v4993 = vsel %vm1026, %v4934, 0
        %4995 = vmatprep.subr.bf16.mxu0 0
        %4996 = vmatpush1.bf16.msra.mxu0 %v4943
        %4997 = vmatprep.subr.bf16.mxu0 0
        %4998 = vmatpush1.bf16.msra.mxu0 %v4944
        %4999 = vmatprep.subr.bf16.mxu0 0
        %5000 = vmatpush1.bf16.msra.mxu0 0
        %5001 = vmatprep.subr.bf16.mxu0 0
        %5002 = vmatpush1.bf16.msra.mxu0 0
        %5003 = vmatprep.subr.bf16.mxu0 0
        %5004 = vmatpush1.bf16.msra.mxu0 0
        %5005 = vmatprep.subr.bf16.mxu0 0
        %5006 = vmatpush1.bf16.msra.mxu0 0
        %5007 = vmatprep.subr.bf16.mxu0 0
        %5008 = vmatpush1.bf16.msra.mxu0 0
        %5009 = vmatprep.subr.bf16.mxu0 0
        %5010 = vmatpush1.bf16.msra.mxu0 0
        %5011 = vmatprep.subr.bf16.mxu0 0
        %5012 = vmatpush1.bf16.msra.mxu0 0
        %5013 = vmatprep.subr.bf16.mxu0 0
        %5014 = vmatpush1.bf16.msra.mxu0 0
        %5015 = vmatprep.subr.bf16.mxu0 0
        %5016 = vmatpush1.bf16.msra.mxu0 0
        %5017 = vmatprep.subr.bf16.mxu0 0
        %5018 = vmatpush1.bf16.msra.mxu0 0
        %5019 = vmatprep.subr.bf16.mxu0 0
        %5020 = vmatpush1.bf16.msra.mxu0 0
        %5021 = vmatprep.subr.bf16.mxu0 0
        %5022 = vmatpush1.bf16.msra.mxu0 0
        %5023 = vmatprep.subr.bf16.mxu0 0
        %5024 = vmatpush1.bf16.msra.mxu0 0
        %5025 = vmatprep.subr.bf16.mxu0 0
        %5026 = vmatpush1.bf16.msra.mxu0 0
        %5027 = vmatprep.mubr.bf16.mxu0 0
        %5028 = vmatmul.mubr.bf16.gmra.mrb[0].mxu0 %v4948
        %v5029 = vpop.f32.mrb[0].mxu0
        %v5030 = vadd.f32 0.0, %v5029
        %v5031 = vpop.f32.mrb[0].mxu0
        %v5032 = vpop.f32.mrb[0].mxu0
        %v5033 = vadd.f32 0.0, %v5032
        %v5034 = vpop.f32.mrb[0].mxu0
        %5035 = vmatprep.mubr.bf16.mxu0 0
        %5036 = vmatmul.mubr.bf16.gmra.mrb[0].mxu0 %v4951
        %v5037 = vpop.f32.mrb[0].mxu0
        %v5038 = vadd.f32 0.0, %v5037
        %v5039 = vpop.f32.mrb[0].mxu0
        %v5040 = vpop.f32.mrb[0].mxu0
        %v5041 = vadd.f32 0.0, %v5040
        %v5042 = vpop.f32.mrb[0].mxu0
        %5043 = vmatprep.mubr.bf16.mxu0 0
        %5044 = vmatmul.mubr.bf16.gmra.mrb[0].mxu0 %v4954
        %v5045 = vpop.f32.mrb[0].mxu0
        %v5046 = vadd.f32 0.0, %v5045
        %v5047 = vpop.f32.mrb[0].mxu0
        %v5048 = vpop.f32.mrb[0].mxu0
        %v5049 = vadd.f32 0.0, %v5048
        %v5050 = vpop.f32.mrb[0].mxu0
        %5051 = vmatprep.mubr.bf16.mxu0 0
        %5052 = vmatmul.mubr.bf16.gmra.mrb[0].mxu0 %v4957
        %v5053 = vpop.f32.mrb[0].mxu0
        %v5054 = vadd.f32 0.0, %v5053
        %v5055 = vpop.f32.mrb[0].mxu0
        %v5056 = vpop.f32.mrb[0].mxu0
        %v5057 = vadd.f32 0.0, %v5056
        %v5058 = vpop.f32.mrb[0].mxu0
        %5059 = vmatprep.mubr.bf16.mxu0 0
        %5060 = vmatmul.mubr.bf16.gmra.mrb[0].mxu0 %v4960
        %v5061 = vpop.f32.mrb[0].mxu0
        %v5062 = vadd.f32 0.0, %v5061
        %v5063 = vpop.f32.mrb[0].mxu0
        %v5064 = vpop.f32.mrb[0].mxu0
        %v5065 = vadd.f32 0.0, %v5064
        %v5066 = vpop.f32.mrb[0].mxu0
        %5067 = vmatprep.mubr.bf16.mxu0 0
        %5068 = vmatmul.mubr.bf16.gmra.mrb[0].mxu0 %v4963
        %v5069 = vpop.f32.mrb[0].mxu0
        %v5070 = vadd.f32 0.0, %v5069
        %v5071 = vpop.f32.mrb[0].mxu0
        %v5072 = vpop.f32.mrb[0].mxu0
        %v5073 = vadd.f32 0.0, %v5072
        %v5074 = vpop.f32.mrb[0].mxu0
        %5075 = vmatprep.mubr.bf16.mxu0 0
        %5076 = vmatmul.mubr.bf16.gmra.mrb[0].mxu0 %v4966
        %v5077 = vpop.f32.mrb[0].mxu0
        %v5078 = vadd.f32 0.0, %v5077
        %v5079 = vpop.f32.mrb[0].mxu0
        %v5080 = vpop.f32.mrb[0].mxu0
        %v5081 = vadd.f32 0.0, %v5080
        %v5082 = vpop.f32.mrb[0].mxu0
        %5083 = vmatprep.mubr.bf16.mxu0 0
        %5084 = vmatmul.mubr.bf16.gmra.mrb[0].mxu0 %v4969
        %v5085 = vpop.f32.mrb[0].mxu0
        %v5086 = vadd.f32 0.0, %v5085
        %v5087 = vpop.f32.mrb[0].mxu0
        %v5088 = vpop.f32.mrb[0].mxu0
        %v5089 = vadd.f32 0.0, %v5088
        %v5090 = vpop.f32.mrb[0].mxu0
        %5091 = vmatprep.mubr.bf16.mxu0 0
        %5092 = vmatmul.mubr.bf16.gmra.mrb[0].mxu0 %v4972
        %v5093 = vpop.f32.mrb[0].mxu0
        %v5094 = vadd.f32 0.0, %v5093
        %v5095 = vpop.f32.mrb[0].mxu0
        %v5096 = vpop.f32.mrb[0].mxu0
        %v5097 = vadd.f32 0.0, %v5096
        %v5098 = vpop.f32.mrb[0].mxu0
        %5099 = vmatprep.mubr.bf16.mxu0 0
        %5100 = vmatmul.mubr.bf16.gmra.mrb[0].mxu0 %v4975
        %v5101 = vpop.f32.mrb[0].mxu0
        %v5102 = vadd.f32 0.0, %v5101
        %v5103 = vpop.f32.mrb[0].mxu0
        %v5104 = vpop.f32.mrb[0].mxu0
        %v5105 = vadd.f32 0.0, %v5104
        %v5106 = vpop.f32.mrb[0].mxu0
        %5107 = vmatprep.mubr.bf16.mxu0 0
        %5108 = vmatmul.mubr.bf16.gmra.mrb[0].mxu0 %v4978
        %v5109 = vpop.f32.mrb[0].mxu0
        %v5110 = vadd.f32 0.0, %v5109
        %v5111 = vpop.f32.mrb[0].mxu0
        %v5112 = vpop.f32.mrb[0].mxu0
        %v5113 = vadd.f32 0.0, %v5112
        %v5114 = vpop.f32.mrb[0].mxu0
        %5115 = vmatprep.mubr.bf16.mxu0 0
        %5116 = vmatmul.mubr.bf16.gmra.mrb[0].mxu0 %v4981
        %v5117 = vpop.f32.mrb[0].mxu0
        %v5118 = vadd.f32 0.0, %v5117
        %v5119 = vpop.f32.mrb[0].mxu0
        %v5120 = vpop.f32.mrb[0].mxu0
        %v5121 = vadd.f32 0.0, %v5120
        %v5122 = vpop.f32.mrb[0].mxu0
        %5123 = vmatprep.mubr.bf16.mxu0 0
        %5124 = vmatmul.mubr.bf16.gmra.mrb[0].mxu0 %v4984
        %v5125 = vpop.f32.mrb[0].mxu0
        %v5126 = vadd.f32 0.0, %v5125
        %v5127 = vpop.f32.mrb[0].mxu0
        %v5128 = vpop.f32.mrb[0].mxu0
        %v5129 = vadd.f32 0.0, %v5128
        %v5130 = vpop.f32.mrb[0].mxu0
        %5131 = vmatprep.mubr.bf16.mxu0 0
        %5132 = vmatmul.mubr.bf16.gmra.mrb[0].mxu0 %v4987
        %v5133 = vpop.f32.mrb[0].mxu0
        %v5134 = vadd.f32 0.0, %v5133
        %v5135 = vpop.f32.mrb[0].mxu0
        %v5136 = vpop.f32.mrb[0].mxu0
        %v5137 = vadd.f32 0.0, %v5136
        %v5138 = vpop.f32.mrb[0].mxu0
        %5139 = vmatprep.mubr.bf16.mxu0 0
        %5140 = vmatmul.mubr.bf16.gmra.mrb[0].mxu0 %v4990
        %v5141 = vpop.f32.mrb[0].mxu0
        %v5142 = vadd.f32 0.0, %v5141
        %v5143 = vpop.f32.mrb[0].mxu0
        %v5144 = vpop.f32.mrb[0].mxu0
        %v5145 = vadd.f32 0.0, %v5144
        %v5146 = vpop.f32.mrb[0].mxu0
        %5147 = vmatprep.mubr.bf16.mxu0 0
        %5148 = vmatmul.mubr.bf16.gmra.mrb[0].mxu0 %v4993
        %v5149 = vpop.f32.mrb[0].mxu0
        %v5150 = vadd.f32 0.0, %v5149
        %v5151 = vpop.f32.mrb[0].mxu0
        %v5152 = vpop.f32.mrb[0].mxu0
        %v5153 = vadd.f32 0.0, %v5152
        %v5154 = vpop.f32.mrb[0].mxu0
        %5155 = vdwg.mxu0
        %v5156 = vadd.f32 %v4674, %v5030
        %v5157 = vadd.f32 %v4675, %v5033
        %v5158 = vadd.f32 %v4676, %v5038
        %v5159 = vadd.f32 %v4677, %v5041
        %v5160 = vadd.f32 %v4678, %v5046
        %v5161 = vadd.f32 %v4679, %v5049
        %v5162 = vadd.f32 %v4680, %v5054
        %v5163 = vadd.f32 %v4681, %v5057
        %v5164 = vadd.f32 %v4682, %v5062
        %v5165 = vadd.f32 %v4683, %v5065
        %v5166 = vadd.f32 %v4684, %v5070
        %v5167 = vadd.f32 %v4685, %v5073
        %v5168 = vadd.f32 %v4686, %v5078
        %v5169 = vadd.f32 %v4687, %v5081
        %v5170 = vadd.f32 %v4688, %v5086
        %v5171 = vadd.f32 %v4689, %v5089
        %v5172 = vadd.f32 %v4690, %v5094
        %v5173 = vadd.f32 %v4691, %v5097
        %v5174 = vadd.f32 %v4692, %v5102
        %v5175 = vadd.f32 %v4693, %v5105
        %v5176 = vadd.f32 %v4694, %v5110
        %v5177 = vadd.f32 %v4695, %v5113
        %v5178 = vadd.f32 %v4696, %v5118
        %v5179 = vadd.f32 %v4697, %v5121
        %v5180 = vadd.f32 %v4698, %v5126
        %v5181 = vadd.f32 %v4699, %v5129
        %v5182 = vadd.f32 %v4700, %v5134
        %v5183 = vadd.f32 %v4701, %v5137
        %v5184 = vadd.f32 %v4702, %v5142
        %v5185 = vadd.f32 %v4703, %v5145
        %v5186 = vadd.f32 %v4704, %v5150
        %v5187 = vadd.f32 %v4705, %v5153
        %v5188 = vld [vmem:[#allocation11] sm:$0x1]
        %v5190 = vlaneseq
        %v5191 = vshrl.u32 %v5190, 7
        %v5192 = vsub.s32 0, %v5191
        %v5193 = vrot.slane %v5188, %v5192
        %v5195 = vadd.f32 %v5156, %v5193
        %v5196 = vadd.f32 %v5157, %v5193
        %v5197 = vadd.f32 %v5158, %v5193
        %v5198 = vadd.f32 %v5159, %v5193
        %v5199 = vadd.f32 %v5160, %v5193
        %v5200 = vadd.f32 %v5161, %v5193
        %v5201 = vadd.f32 %v5162, %v5193
        %v5202 = vadd.f32 %v5163, %v5193
        %v5203 = vadd.f32 %v5164, %v5193
        %v5204 = vadd.f32 %v5165, %v5193
        %v5205 = vadd.f32 %v5166, %v5193
        %v5206 = vadd.f32 %v5167, %v5193
        %v5207 = vadd.f32 %v5168, %v5193
        %v5208 = vadd.f32 %v5169, %v5193
        %v5209 = vadd.f32 %v5170, %v5193
        %v5210 = vadd.f32 %v5171, %v5193
        %v5211 = vadd.f32 %v5172, %v5193
        %v5212 = vadd.f32 %v5173, %v5193
        %v5213 = vadd.f32 %v5174, %v5193
        %v5214 = vadd.f32 %v5175, %v5193
        %v5215 = vadd.f32 %v5176, %v5193
        %v5216 = vadd.f32 %v5177, %v5193
        %v5217 = vadd.f32 %v5178, %v5193
        %v5218 = vadd.f32 %v5179, %v5193
        %v5219 = vadd.f32 %v5180, %v5193
        %v5220 = vadd.f32 %v5181, %v5193
        %v5221 = vadd.f32 %v5182, %v5193
        %v5222 = vadd.f32 %v5183, %v5193
        %v5223 = vadd.f32 %v5184, %v5193
        %v5224 = vadd.f32 %v5185, %v5193
        %v5225 = vadd.f32 %v5186, %v5193
        %v5226 = vadd.f32 %v5187, %v5193
        %v5227 = vmax.f32 %v5195, 0.0
        %v5228 = vmax.f32 %v5196, 0.0
        %v5229 = vmax.f32 %v5197, 0.0
        %v5230 = vmax.f32 %v5198, 0.0
        %v5231 = vmax.f32 %v5199, 0.0
        %v5232 = vmax.f32 %v5200, 0.0
        %v5233 = vmax.f32 %v5201, 0.0
        %v5234 = vmax.f32 %v5202, 0.0
        %v5235 = vmax.f32 %v5203, 0.0
        %v5236 = vmax.f32 %v5204, 0.0
        %v5237 = vmax.f32 %v5205, 0.0
        %v5238 = vmax.f32 %v5206, 0.0
        %v5239 = vmax.f32 %v5207, 0.0
        %v5240 = vmax.f32 %v5208, 0.0
        %v5241 = vmax.f32 %v5209, 0.0
        %v5242 = vmax.f32 %v5210, 0.0
        %v5243 = vmax.f32 %v5211, 0.0
        %v5244 = vmax.f32 %v5212, 0.0
        %v5245 = vmax.f32 %v5213, 0.0
        %v5246 = vmax.f32 %v5214, 0.0
        %v5247 = vmax.f32 %v5215, 0.0
        %v5248 = vmax.f32 %v5216, 0.0
        %v5249 = vmax.f32 %v5217, 0.0
        %v5250 = vmax.f32 %v5218, 0.0
        %v5251 = vmax.f32 %v5219, 0.0
        %v5252 = vmax.f32 %v5220, 0.0
        %v5253 = vmax.f32 %v5221, 0.0
        %v5254 = vmax.f32 %v5222, 0.0
        %v5255 = vmax.f32 %v5223, 0.0
        %v5256 = vmax.f32 %v5224, 0.0
        %v5257 = vmax.f32 %v5225, 0.0
        %v5258 = vmax.f32 %v5226, 0.0
        %v5259 = vpack.c.bf16 %v5228, %v5227
        %v5260 = vpack.c.bf16 %v5230, %v5229
        %v5261 = vpack.c.bf16 %v5232, %v5231
        %v5262 = vpack.c.bf16 %v5234, %v5233
        %v5263 = vpack.c.bf16 %v5236, %v5235
        %v5264 = vpack.c.bf16 %v5238, %v5237
        %v5265 = vpack.c.bf16 %v5240, %v5239
        %v5266 = vpack.c.bf16 %v5242, %v5241
        %v5267 = vpack.c.bf16 %v5244, %v5243
        %v5268 = vpack.c.bf16 %v5246, %v5245
        %v5269 = vpack.c.bf16 %v5248, %v5247
        %v5270 = vpack.c.bf16 %v5250, %v5249
        %v5271 = vpack.c.bf16 %v5252, %v5251
        %v5272 = vpack.c.bf16 %v5254, %v5253
        %v5273 = vpack.c.bf16 %v5256, %v5255
        %v5274 = vpack.c.bf16 %v5258, %v5257
        %v5291 = vunpack.c.l.b16 %v5259
        %v5292 = vunpack.c.h.b16 %v5259
        %v5293 = vunpack.c.l.b16 %v5260
        %v5294 = vunpack.c.h.b16 %v5260
        %v5295 = vunpack.c.l.b16 %v5261
        %v5296 = vunpack.c.h.b16 %v5261
        %v5297 = vunpack.c.l.b16 %v5262
        %v5298 = vunpack.c.h.b16 %v5262
        %v5299 = vunpack.c.l.b16 %v5263
        %v5300 = vunpack.c.h.b16 %v5263
        %v5301 = vunpack.c.l.b16 %v5264
        %v5302 = vunpack.c.h.b16 %v5264
        %v5303 = vunpack.c.l.b16 %v5265
        %v5304 = vunpack.c.h.b16 %v5265
        %v5305 = vunpack.c.l.b16 %v5266
        %v5306 = vunpack.c.h.b16 %v5266
        %v5307 = vunpack.c.l.b16 %v5267
        %v5308 = vunpack.c.h.b16 %v5267
        %v5309 = vunpack.c.l.b16 %v5268
        %v5310 = vunpack.c.h.b16 %v5268
        %v5311 = vunpack.c.l.b16 %v5269
        %v5312 = vunpack.c.h.b16 %v5269
        %v5313 = vunpack.c.l.b16 %v5270
        %v5314 = vunpack.c.h.b16 %v5270
        %v5315 = vunpack.c.l.b16 %v5271
        %v5316 = vunpack.c.h.b16 %v5271
        %v5317 = vunpack.c.l.b16 %v5272
        %v5318 = vunpack.c.h.b16 %v5272
        %v5319 = vunpack.c.l.b16 %v5273
        %v5320 = vunpack.c.h.b16 %v5273
        %v5321 = vunpack.c.l.b16 %v5274
        %v5322 = vunpack.c.h.b16 %v5274
        %v5323 = vpack.c.b16 %v5291, %v5291
        %v5324 = vpack.c.b16 %v5292, %v5292
        %v5325 = vpack.c.b16 %v5293, %v5293
        %v5326 = vpack.c.b16 %v5294, %v5294
        %v5327 = vpack.c.b16 %v5295, %v5295
        %v5328 = vpack.c.b16 %v5296, %v5296
        %v5329 = vpack.c.b16 %v5297, %v5297
        %v5330 = vpack.c.b16 %v5298, %v5298
        %v5331 = vpack.c.b16 %v5299, %v5299
        %v5332 = vpack.c.b16 %v5300, %v5300
        %v5333 = vpack.c.b16 %v5301, %v5301
        %v5334 = vpack.c.b16 %v5302, %v5302
        %v5335 = vpack.c.b16 %v5303, %v5303
        %v5336 = vpack.c.b16 %v5304, %v5304
        %v5337 = vpack.c.b16 %v5305, %v5305
        %v5338 = vpack.c.b16 %v5306, %v5306
        %v5339 = vpack.c.b16 %v5307, %v5307
        %v5340 = vpack.c.b16 %v5308, %v5308
        %v5341 = vpack.c.b16 %v5309, %v5309
        %v5342 = vpack.c.b16 %v5310, %v5310
        %v5343 = vpack.c.b16 %v5311, %v5311
        %v5344 = vpack.c.b16 %v5312, %v5312
        %v5345 = vpack.c.b16 %v5313, %v5313
        %v5346 = vpack.c.b16 %v5314, %v5314
        %v5347 = vpack.c.b16 %v5315, %v5315
        %v5348 = vpack.c.b16 %v5316, %v5316
        %v5349 = vpack.c.b16 %v5317, %v5317
        %v5350 = vpack.c.b16 %v5318, %v5318
        %v5351 = vpack.c.b16 %v5319, %v5319
        %v5352 = vpack.c.b16 %v5320, %v5320
        %v5353 = vpack.c.b16 %v5321, %v5321
        %v5354 = vpack.c.b16 %v5322, %v5322
        %5387 = vst.msk [vmem:[%s396] sm:$0xf] %vm458, %v5323
        %5388 = vst.msk [vmem:[%s396 + $0x4] sm:$0xf] %vm458, %v5324
        %5389 = vst.msk [vmem:[%s396 + $0x8] sm:$0xf] %vm458, %v5325
        %5390 = vst.msk [vmem:[%s396 + $0xc] sm:$0xf] %vm458, %v5326
        %5391 = vst.msk [vmem:[%s396 + $0x10] sm:$0xf] %vm458, %v5327
        %5392 = vst.msk [vmem:[%s396 + $0x14] sm:$0xf] %vm458, %v5328
        %5393 = vst.msk [vmem:[%s396 + $0x18] sm:$0xf] %vm458, %v5329
        %5394 = vst.msk [vmem:[%s396 + $0x1c] sm:$0xf] %vm458, %v5330
        %5395 = vst.msk [vmem:[%s396 + $0x20] sm:$0xf] %vm458, %v5331
        %5396 = vst.msk [vmem:[%s396 + $0x24] sm:$0xf] %vm458, %v5332
        %5397 = vst.msk [vmem:[%s396 + $0x28] sm:$0xf] %vm458, %v5333
        %5398 = vst.msk [vmem:[%s396 + $0x2c] sm:$0xf] %vm458, %v5334
        %5399 = vst.msk [vmem:[%s396 + $0x30] sm:$0xf] %vm458, %v5335
        %5400 = vst.msk [vmem:[%s396 + $0x34] sm:$0xf] %vm458, %v5336
        %5401 = vst.msk [vmem:[%s396 + $0x38] sm:$0xf] %vm458, %v5337
        %5402 = vst.msk [vmem:[%s396 + $0x3c] sm:$0xf] %vm458, %v5338
        %5403 = vst.msk [vmem:[%s396 + $0x40] sm:$0xf] %vm458, %v5339
        %5404 = vst.msk [vmem:[%s396 + $0x44] sm:$0xf] %vm458, %v5340
        %5405 = vst.msk [vmem:[%s396 + $0x48] sm:$0xf] %vm458, %v5341
        %5406 = vst.msk [vmem:[%s396 + $0x4c] sm:$0xf] %vm458, %v5342
        %5407 = vst.msk [vmem:[%s396 + $0x50] sm:$0xf] %vm458, %v5343
        %5408 = vst.msk [vmem:[%s396 + $0x54] sm:$0xf] %vm458, %v5344
        %5409 = vst.msk [vmem:[%s396 + $0x58] sm:$0xf] %vm458, %v5345
        %5410 = vst.msk [vmem:[%s396 + $0x5c] sm:$0xf] %vm458, %v5346
        %5411 = vst.msk [vmem:[%s396 + $0x60] sm:$0xf] %vm458, %v5347
        %5412 = vst.msk [vmem:[%s396 + $0x64] sm:$0xf] %vm458, %v5348
        %5413 = vst.msk [vmem:[%s396 + $0x68] sm:$0xf] %vm458, %v5349
        %5414 = vst.msk [vmem:[%s396 + $0x6c] sm:$0xf] %vm458, %v5350
        %5415 = vst.msk [vmem:[%s396 + $0x70] sm:$0xf] %vm458, %v5351
        %5416 = vst.msk [vmem:[%s396 + $0x74] sm:$0xf] %vm458, %v5352
        %5417 = vst.msk [vmem:[%s396 + $0x78] sm:$0xf] %vm458, %v5353
        %5418 = vst.msk [vmem:[%s396 + $0x7c] sm:$0xf] %vm458, %v5354
        %s5419 = sand.u32 %s184, 1
        %s5420 = scalar_lea.sflag [#allocation5], %s5419
        %s5421 = sand.u32 %s184, 1
        %s5422 = smul.addr %s5421, 128
        %s5423 = scalar_lea.vmem [#allocation12], %s5422
        // Predicated region
        $region61: #{residual_block_forward.3} parent=39 // pred_check
          %p5424 = pneg %p194
        $region62: #{residual_block_forward.3} parent=39 // pred_check_branch
          %5426 = sbr.rel (%p5424) target = $region64
        $region63: #{residual_block_forward.3} parent=39 // pred_region
          %s5427 = smul.u32 32, %s31
          %s5429 = ssub.s32 2048, 2048
          %5430 = vsyncadd %s5420, %s5429
          %s5431 = smul.addr %s30, 32
          %s5432 = sadd.s32 %s5427, %s5431
          %s5433 = smul.addr %s5432, 64
          %s5434 = scalar_lea.hbm %s5, %s5433
          %s5435 = sshll.u32 %s5423, 4
          %s5436 = int_to_ptr.vmem [resolvable:$true] %s5435
          %5441 = dma.vmem_to_hbm [thread:$0]  %s5436, 2048, %s5434, %s5420, 64, 64, 4
        $region64: #{residual_block_forward.3} parent=39 // pred_fallthru
          _
      $region40: #{residual_block_forward.3} parent=5 // pred_fallthru
        _
      %p5442 = scmp.le.s32.totalorder 2, %s21
      // Predicated region
      $region65: #{residual_block_forward.3} parent=5 // pred_check
        %p5443 = pneg %p5442
      $region66: #{residual_block_forward.3} parent=5 // pred_check_branch
        %5445 = sbr.rel (%p5443) target = $region68
      $region67: #{residual_block_forward.3} parent=5 // pred_region
        %s5446 = ssub.s32 %s21, 2
        // Predicated region
        $region69: #{residual_block_forward.3} parent=67 // pred_check
          %p5447 = pneg %p200
        $region70: #{residual_block_forward.3} parent=67 // pred_check_branch
          %5449 = sbr.rel (%p5447) target = $region72
        $region71: #{residual_block_forward.3} parent=67 // pred_region
          %s5450 = sand.u32 %s185, 1
          %s5451 = scalar_lea.sflag [#allocation5], %s5450
          %s5452 = sand.u32 %s185, 1
          %s5453 = smul.addr %s5452, 128
          %s5454 = scalar_lea.vmem [#allocation12], %s5453
          %5455 = dma.done %s5451, 2048
        $region72: #{residual_block_forward.3} parent=67 // pred_fallthru
          _
      $region68: #{residual_block_forward.3} parent=5 // pred_fallthru
        _
    $region6: #{residual_block_forward.3} parent=1 // loop_footer
      %s25 = sadd.s32 1, %s21
    $region7: #{residual_block_forward.3} parent=1 // loop_footer_branch
      %20 = sbr.rel target = $region3
    $region8: #{residual_block_forward.3} parent=1 // loop_exit
      _
    %5456 = vsyncpa [#allocation4], 1
    %s5457 = scalar_lea.sflag [#allocation4], 1
    %5458 = vsyncpa %s5457, 1
    %5459 = vsyncpa [#allocation7], 1
    %s5460 = scalar_lea.sflag [#allocation7], 1
    %5461 = vsyncpa %s5460, 1
    %5462 = vsyncpa [#allocation10], 1
    %5463 = vsyncpa [#allocation5], 1
    %s5464 = scalar_lea.sflag [#allocation5], 1
    %5465 = vsyncpa %s5464, 1

// kernel: residual_block_forward.4
$region0: #{residual_block_forward.4}
  #allocation0 [shape = 'u32[]', space=smem, size = 0x4, offset = 0x4, fixed_abs, tag = 'smem constant byte address 0x4 - core index']
  #allocation1 [shape = 'u32[144,128]{1,0:T(1,128)}', space=vmem, size = 0x12000, scoped, tag = 'internal scratch']
  #allocation2 [shape = 'bf16[1,18,18,32]{3,2,1,0:T(8,128)(2,1)}', space=vmem, size = 0x1b000, scoped, tag = 'scratch operand']
  %s0 = inlined_call_operand.hbm [shape: bf16[2,1,18,18,32], index: 0, kind: input, shape index: {}, may-alias: {0,1,2}]
  %s1 = inlined_call_operand.hbm [shape: bf16[2,1,18,18,32], index: 1, kind: input, shape index: {}, may-alias: {0,1,2}]
  %s2 = inlined_call_operand.hbm [shape: bf16[2,1,18,18,32], index: 2, kind: input, shape index: {}, may-alias: {0,1,2}]
  %s3 = inlined_call_operand.hbm [shape: bf16[9,32,32], index: 3, kind: input, shape index: {}]
  %s4 = inlined_call_operand.hbm [shape: f32[1,32], index: 4, kind: input, shape index: {}]
  %s5 = inlined_call_operand.hbm [shape: bf16[2,256,32], index: 5, kind: output, shape index: {0}]
  %s6 = inlined_call_operand.hbm [shape: f32[2,1,2,32], index: 6, kind: output, shape index: {1}]
  %7 = xla_tuple %s5, %s6
  %s8 = sld [smem:[#allocation0]]
  $region81: #{residual_block_forward.4} parent=0
    _
  %s10 = ssub.s32 1, %s8
  %s11 = scalar_select 0, %s10, %s8
  $region1: #{residual_block_forward.4} parent=0
    #allocation3 [shape = 'u8[196608]{0}', space=vmem, size = 0x30000, scoped, tag = 'input window, operand 0']
    #allocation4 [shape = 's32[2]{0}', space=sflag, size = 0x8, scoped, tag = 'scoped memory for residual_block_forward.4']
    #allocation5 [shape = 's32[2]{0}', space=sflag, size = 0x8, scoped, tag = 'scoped memory for residual_block_forward.4']
    #allocation6 [shape = 'u8[12288]{0}', space=vmem, size = 0x3000, scoped, tag = 'input window, operand 1']
    #allocation7 [shape = 's32[2]{0}', space=sflag, size = 0x8, scoped, tag = 'scoped memory for residual_block_forward.4']
    #allocation8 [shape = 'u8[12288]{0}', space=vmem, size = 0x3000, scoped, tag = 'input window, operand 2']
    #allocation9 [shape = 'u8[73728]{0}', space=vmem, size = 0x12000, scoped, tag = 'input window, operand 3, single buffered']
    #allocation10 [shape = 's32[1]{0}', space=sflag, size = 0x4, scoped, tag = 'scoped memory for residual_block_forward.4']
    #allocation11 [shape = 'u8[512]{0}', space=vmem, size = 0x400, scoped, tag = 'input window, operand 4, single buffered']
    #allocation12 [shape = 'u8[131072]{0}', space=vmem, size = 0x20000, scoped, tag = 'output window, operand 0']
    #allocation13 [shape = 'u8[2048]{0}', space=vmem, size = 0x800, scoped, tag = 'output window, operand 1']
    #allocation14 [shape = 's32[2]{0}', space=sflag, size = 0x8, scoped, tag = 'scoped memory for residual_block_forward.4']
    %12 = vsyncpa [#allocation4], 0
    %s13 = scalar_lea.sflag [#allocation4], 1
    %14 = vsyncpa %s13, 0
    %15 = vsyncpa [#allocation7], 0
    %s16 = scalar_lea.sflag [#allocation7], 1
    %17 = vsyncpa %s16, 0
    %18 = vsyncpa [#allocation10], 0
    %19 = vsyncpa [#allocation5], 0
    %s20 = scalar_lea.sflag [#allocation5], 1
    %21 = vsyncpa %s20, 0
    %22 = vsyncpa [#allocation14], 0
    %s23 = scalar_lea.sflag [#allocation14], 1
    %24 = vsyncpa %s23, 0
    loop: start=0, step=1, limit=4
    $region2: #{residual_block_forward.4} parent=1 // loop_pre_header
      _
    $region3: #{residual_block_forward.4} parent=1 // loop_header
      %s26 = sphi 0, %s30
      %p27 = scmp.ge.s32.totalorder %s26, 4
      %s33 = sphi 0, %s45
      %s34 = sphi 0, %s41
      %s35 = sphi 0, %s33
      %s36 = sphi 0, %s34
      %s37 = sphi 0, %s35
      %s38 = sphi 0, %s36
      %s50 = sphi 0, %s52
      %s53 = sphi 0, %s50
      %s54 = sphi 0, %s53
      %s70 = sphi 0, %s54
      %s82 = sphi 0, %s84
      %s85 = sphi 0, %s82
      %s86 = sphi 0, %s85
      %s102 = sphi 0, %s86
      %s116 = sphi 0, %s118
      %s119 = sphi 0, %s116
      %s120 = sphi 0, %s119
      %s136 = sphi 0, %s120
      %s140 = sphi 0, %s140
      %s142 = sphi 0, %s140
      %s143 = sphi 0, %s142
      %s157 = sphi 0, %s143
      %s161 = sphi 0, %s161
      %s163 = sphi 0, %s161
      %s164 = sphi 0, %s163
      %s178 = sphi 0, %s164
      %s186 = sphi 0, %s188
      %s189 = sphi 0, %s186
      %s190 = sphi 0, %s189
      %s206 = sphi 0, %s190
      %s214 = sphi 0, %s216
      %s217 = sphi 0, %s214
      %s218 = sphi 0, %s217
      %s234 = sphi 0, %s218
    $region4: #{residual_block_forward.4} parent=1 // loop_header_branch
      %29 = sbr.rel (%p27) target = $region8
    $region5: #{residual_block_forward.4} parent=1 // loop_body
      %s31 = ssub.s32 %s26, 1
      %s32 = ssub.s32 %s26, 2
      %s39 = sadd.s32 1, %s34
      %p40 = scmp.ge.s32.totalorder %s39, 1
      %s41 = scalar_select %p40, 0, %s39
      %s42 = sadd.s32 1, %s33
      %s43 = scalar_select %p40, %s42, %s33
      %p44 = scmp.ge.s32.totalorder %s43, 2
      %s45 = scalar_select %p44, 0, %s43
      %s46 = ssub.s32 %s33, %s45
      %s47 = ssub.s32 %s34, %s41
      %s48 = sor.u32 %s46, %s47
      %p49 = scmp.eq.s32.totalorder %s48, 0
      %s51 = sadd.s32 %s50, 1
      %s52 = scalar_select %p49, %s50, %s51
      %p55 = pneg %p49
      %p56 = scmp.eq.s32.totalorder %s26, 1
      %p57 = por %p55, %p56
      %p58 = scmp.ne.s32.totalorder %s50, %s53
      %p59 = scmp.eq.s32.totalorder %s26, 0
      %p60 = por %p58, %p59
      %p61 = scmp.ne.s32.totalorder %s50, %s53
      %p62 = scmp.eq.s32.totalorder %s31, 1
      %p63 = por %p61, %p62
      %p64 = scmp.ne.s32.totalorder %s53, %s54
      %p65 = scmp.eq.s32.totalorder %s31, 0
      %p66 = por %p64, %p65
      %p67 = scmp.ne.s32.totalorder %s53, %s54
      %p68 = scmp.eq.s32.totalorder %s32, 1
      %p69 = por %p67, %p68
      %p71 = scmp.ne.s32.totalorder %s54, %s70
      %p72 = scmp.eq.s32.totalorder %s32, 0
      %p73 = por %p71, %p72
      %s74 = sadd.s32 %s34, 1
      %s75 = smul.u32 %s74, 16
      %s76 = sadd.s32 %s41, 1
      %s77 = smul.u32 %s76, 16
      %s78 = ssub.s32 %s33, %s45
      %s79 = ssub.s32 %s75, %s77
      %s80 = sor.u32 %s78, %s79
      %p81 = scmp.eq.s32.totalorder %s80, 0
      %s83 = sadd.s32 %s82, 1
      %s84 = scalar_select %p81, %s82, %s83
      %p87 = pneg %p81
      %p88 = scmp.eq.s32.totalorder %s26, 1
      %p89 = por %p87, %p88
      %p90 = scmp.ne.s32.totalorder %s82, %s85
      %p91 = scmp.eq.s32.totalorder %s26, 0
      %p92 = por %p90, %p91
      %p93 = scmp.ne.s32.totalorder %s82, %s85
      %p94 = scmp.eq.s32.totalorder %s31, 1
      %p95 = por %p93, %p94
      %p96 = scmp.ne.s32.totalorder %s85, %s86
      %p97 = scmp.eq.s32.totalorder %s31, 0
      %p98 = por %p96, %p97
      %p99 = scmp.ne.s32.totalorder %s85, %s86
      %p100 = scmp.eq.s32.totalorder %s32, 1
      %p101 = por %p99, %p100
      %p103 = scmp.ne.s32.totalorder %s86, %s102
      %p104 = scmp.eq.s32.totalorder %s32, 0
      %p105 = por %p103, %p104
      %s106 = sadd.s32 %s34, 1
      %s107 = smul.u32 %s106, 16
      %s108 = sadd.s32 %s107, 1
      %s109 = sadd.s32 %s41, 1
      %s110 = smul.u32 %s109, 16
      %s111 = sadd.s32 %s110, 1
      %s112 = ssub.s32 %s33, %s45
      %s113 = ssub.s32 %s108, %s111
      %s114 = sor.u32 %s112, %s113
      %p115 = scmp.eq.s32.totalorder %s114, 0
      %s117 = sadd.s32 %s116, 1
      %s118 = scalar_select %p115, %s116, %s117
      %p121 = pneg %p115
      %p122 = scmp.eq.s32.totalorder %s26, 1
      %p123 = por %p121, %p122
      %p124 = scmp.ne.s32.totalorder %s116, %s119
      %p125 = scmp.eq.s32.totalorder %s26, 0
      %p126 = por %p124, %p125
      %p127 = scmp.ne.s32.totalorder %s116, %s119
      %p128 = scmp.eq.s32.totalorder %s31, 1
      %p129 = por %p127, %p128
      %p130 = scmp.ne.s32.totalorder %s119, %s120
      %p131 = scmp.eq.s32.totalorder %s31, 0
      %p132 = por %p130, %p131
      %p133 = scmp.ne.s32.totalorder %s119, %s120
      %p134 = scmp.eq.s32.totalorder %s32, 1
      %p135 = por %p133, %p134
      %p137 = scmp.ne.s32.totalorder %s120, %s136
      %p138 = scmp.eq.s32.totalorder %s32, 0
      %p139 = por %p137, %p138
      %s141 = sadd.s32 %s140, 1
      %p144 = scmp.eq.s32.totalorder %s26, 1
      %p145 = scmp.ne.s32.totalorder %s140, %s142
      %p146 = scmp.eq.s32.totalorder %s26, 0
      %p147 = por %p145, %p146
      %p148 = scmp.ne.s32.totalorder %s140, %s142
      %p149 = scmp.eq.s32.totalorder %s31, 1
      %p150 = por %p148, %p149
      %p151 = scmp.ne.s32.totalorder %s142, %s143
      %p152 = scmp.eq.s32.totalorder %s31, 0
      %p153 = por %p151, %p152
      %p154 = scmp.ne.s32.totalorder %s142, %s143
      %p155 = scmp.eq.s32.totalorder %s32, 1
      %p156 = por %p154, %p155
      %p158 = scmp.ne.s32.totalorder %s143, %s157
      %p159 = scmp.eq.s32.totalorder %s32, 0
      %p160 = por %p158, %p159
      %s162 = sadd.s32 %s161, 1
      %p165 = scmp.eq.s32.totalorder %s26, 1
      %p166 = scmp.ne.s32.totalorder %s161, %s163
      %p167 = scmp.eq.s32.totalorder %s26, 0
      %p168 = por %p166, %p167
      %p169 = scmp.ne.s32.totalorder %s161, %s163
      %p170 = scmp.eq.s32.totalorder %s31, 1
      %p171 = por %p169, %p170
      %p172 = scmp.ne.s32.totalorder %s163, %s164
      %p173 = scmp.eq.s32.totalorder %s31, 0
      %p174 = por %p172, %p173
      %p175 = scmp.ne.s32.totalorder %s163, %s164
      %p176 = scmp.eq.s32.totalorder %s32, 1
      %p177 = por %p175, %p176
      %p179 = scmp.ne.s32.totalorder %s164, %s178
      %p180 = scmp.eq.s32.totalorder %s32, 0
      %p181 = por %p179, %p180
      %s182 = ssub.s32 %s33, %s45
      %s183 = ssub.s32 %s34, %s41
      %s184 = sor.u32 %s182, %s183
      %p185 = scmp.eq.s32.totalorder %s184, 0
      %s187 = sadd.s32 %s186, 1
      %s188 = scalar_select %p185, %s186, %s187
      %p191 = pneg %p185
      %p192 = scmp.eq.s32.totalorder %s26, 1
      %p193 = por %p191, %p192
      %p194 = scmp.ne.s32.totalorder %s186, %s189
      %p195 = scmp.eq.s32.totalorder %s26, 0
      %p196 = por %p194, %p195
      %p197 = scmp.ne.s32.totalorder %s186, %s189
      %p198 = scmp.eq.s32.totalorder %s31, 1
      %p199 = por %p197, %p198
      %p200 = scmp.ne.s32.totalorder %s189, %s190
      %p201 = scmp.eq.s32.totalorder %s31, 0
      %p202 = por %p200, %p201
      %p203 = scmp.ne.s32.totalorder %s189, %s190
      %p204 = scmp.eq.s32.totalorder %s32, 1
      %p205 = por %p203, %p204
      %p207 = scmp.ne.s32.totalorder %s190, %s206
      %p208 = scmp.eq.s32.totalorder %s32, 0
      %p209 = por %p207, %p208
      %s210 = ssub.s32 %s33, %s45
      %s211 = ssub.s32 %s34, %s41
      %s212 = sor.u32 %s210, %s211
      %p213 = scmp.eq.s32.totalorder %s212, 0
      %s215 = sadd.s32 %s214, 1
      %s216 = scalar_select %p213, %s214, %s215
      %p219 = pneg %p213
      %p220 = scmp.eq.s32.totalorder %s26, 1
      %p221 = por %p219, %p220
      %p222 = scmp.ne.s32.totalorder %s214, %s217
      %p223 = scmp.eq.s32.totalorder %s26, 0
      %p224 = por %p222, %p223
      %p225 = scmp.ne.s32.totalorder %s214, %s217
      %p226 = scmp.eq.s32.totalorder %s31, 1
      %p227 = por %p225, %p226
      %p228 = scmp.ne.s32.totalorder %s217, %s218
      %p229 = scmp.eq.s32.totalorder %s31, 0
      %p230 = por %p228, %p229
      %p231 = scmp.ne.s32.totalorder %s217, %s218
      %p232 = scmp.eq.s32.totalorder %s32, 1
      %p233 = por %p231, %p232
      %p235 = scmp.ne.s32.totalorder %s218, %s234
      %p236 = scmp.eq.s32.totalorder %s32, 0
      %p237 = por %p235, %p236
      %p238 = scmp.le.s32.totalorder 1, %s26
      %p239 = scmp.lt.s32.totalorder %s26, 3
      %p240 = pnand %p238, %p239
      %p241 = pneg %p240
      // Predicated region
      $region9: #{residual_block_forward.4} parent=5 // pred_check
        _
      $region10: #{residual_block_forward.4} parent=5 // pred_check_branch
        %243 = sbr.rel (%p240) target = $region12
      $region11: #{residual_block_forward.4} parent=5 // pred_region
        %s244 = ssub.s32 %s26, 1
        // Predicated region
        $region13: #{residual_block_forward.4} parent=11 // pred_check
          %p245 = pneg %p153
        $region14: #{residual_block_forward.4} parent=11 // pred_check_branch
          %247 = sbr.rel (%p245) target = $region16
        $region15: #{residual_block_forward.4} parent=11 // pred_region
          %s249 = ssub.s32 2304, 2304
          %250 = vsyncadd [#allocation10], %s249
          %s251 = sshll.u32 [#allocation9], 4
          %s252 = int_to_ptr.vmem [resolvable:$true] %s251
          %257 = dma.hbm_to_vmem [thread:$0]  %s3, 2304, %s252, [#allocation10], 64, 64, 4
        $region16: #{residual_block_forward.4} parent=11 // pred_fallthru
          _
        // Predicated region
        $region17: #{residual_block_forward.4} parent=11 // pred_check
          %p258 = pneg %p174
        $region18: #{residual_block_forward.4} parent=11 // pred_check_branch
          %260 = sbr.rel (%p258) target = $region20
        $region19: #{residual_block_forward.4} parent=11 // pred_region
          %s262 = ssub.s32 16, 16
          %263 = vsyncadd [#allocation10], %s262
          %s265 = sshll.u32 [#allocation11], 4
          %s266 = int_to_ptr.vmem [resolvable:$true] %s265
          %268 = dma.hbm_to_vmem [thread:$0]  %s4, 16, %s266, [#allocation10]
        $region20: #{residual_block_forward.4} parent=11 // pred_fallthru
          _
      $region12: #{residual_block_forward.4} parent=5 // pred_fallthru
        _
      %p269 = scmp.lt.s32.totalorder %s26, 2
      // Predicated region
      $region21: #{residual_block_forward.4} parent=5 // pred_check
        %p270 = pneg %p269
      $region22: #{residual_block_forward.4} parent=5 // pred_check_branch
        %272 = sbr.rel (%p270) target = $region24
      $region23: #{residual_block_forward.4} parent=5 // pred_region
        // Predicated region
        $region25: #{residual_block_forward.4} parent=23 // pred_check
          %p273 = pneg %p60
        $region26: #{residual_block_forward.4} parent=23 // pred_check_branch
          %275 = sbr.rel (%p273) target = $region28
        $region27: #{residual_block_forward.4} parent=23 // pred_region
          %s276 = sand.u32 %s50, 1
          %s277 = scalar_lea.sflag [#allocation4], %s276
          %s278 = sand.u32 %s50, 1
          %s279 = smul.addr %s278, 192
          %s280 = scalar_lea.vmem [#allocation3], %s279
          %s281 = smul.u32 16, %s34
          %s282 = ssub.s32 18, %s281
          %p283 = scmp.lt.s32.totalorder %s282, 16
          %s284 = scalar_select %p283, %s282, 16
          %s285 = smul.u32 64, %s284
          %s286 = smul.u32 %s285, 3
          %s288 = ssub.s32 3072, %s286
          %289 = vsyncadd %s277, %s288
          %p290 = scmp.ne.s32.totalorder 0, %s286
          %s291 = smul.addr %s281, 3
          %s292 = smul.addr %s33, 54
          %s293 = sadd.s32 %s291, %s292
          %s294 = smul.addr %s293, 64
          %s295 = scalar_lea.hbm %s0, %s294
          %s296 = smul.u32 %s284, 3
          %s297 = smul.u32 4, %s296
          %s298 = sshll.u32 %s280, 4
          %s299 = int_to_ptr.vmem [resolvable:$true] %s298
          %s300 = sshll.u32 %s297, 4
          %304 = dma.hbm_to_vmem [thread:$0]  (%p290), %s295, %s300, %s299, %s277, 64, 64, 4
        $region28: #{residual_block_forward.4} parent=23 // pred_fallthru
          _
        // Predicated region
        $region29: #{residual_block_forward.4} parent=23 // pred_check
          %p305 = pneg %p92
        $region30: #{residual_block_forward.4} parent=23 // pred_check_branch
          %307 = sbr.rel (%p305) target = $region32
        $region31: #{residual_block_forward.4} parent=23 // pred_region
          %s308 = sand.u32 %s26, 1
          %s309 = scalar_lea.sflag [#allocation7], %s308
          %s310 = sand.u32 %s82, 1
          %s311 = smul.addr %s310, 12
          %s312 = scalar_lea.vmem [#allocation6], %s311
          %s313 = sadd.s32 %s34, 1
          %s314 = smul.u32 %s313, 16
          %s316 = ssub.s32 192, 192
          %317 = vsyncadd %s309, %s316
          %s318 = smul.addr %s314, 3
          %s319 = smul.addr %s33, 54
          %s320 = sadd.s32 %s318, %s319
          %s321 = smul.addr %s320, 64
          %s322 = scalar_lea.hbm %s1, %s321
          %s323 = sshll.u32 %s312, 4
          %s324 = int_to_ptr.vmem [resolvable:$true] %s323
          %329 = dma.hbm_to_vmem [thread:$0]  %s322, 192, %s324, %s309, 64, 64, 4
        $region32: #{residual_block_forward.4} parent=23 // pred_fallthru
          _
        // Predicated region
        $region33: #{residual_block_forward.4} parent=23 // pred_check
          %p330 = pneg %p126
        $region34: #{residual_block_forward.4} parent=23 // pred_check_branch
          %332 = sbr.rel (%p330) target = $region36
        $region35: #{residual_block_forward.4} parent=23 // pred_region
          %s333 = sand.u32 %s26, 1
          %s334 = scalar_lea.sflag [#allocation7], %s333
          %s335 = sand.u32 %s116, 1
          %s336 = smul.addr %s335, 12
          %s337 = scalar_lea.vmem [#allocation8], %s336
          %s338 = sadd.s32 %s34, 1
          %s339 = smul.u32 %s338, 16
          %s340 = sadd.s32 %s339, 1
          %s342 = ssub.s32 192, 192
          %343 = vsyncadd %s334, %s342
          %s344 = smul.addr %s340, 3
          %s345 = smul.addr %s33, 54
          %s346 = sadd.s32 %s344, %s345
          %s347 = smul.addr %s346, 64
          %s348 = scalar_lea.hbm %s2, %s347
          %s349 = sshll.u32 %s337, 4
          %s350 = int_to_ptr.vmem [resolvable:$true] %s349
          %355 = dma.hbm_to_vmem [thread:$0]  %s348, 192, %s350, %s334, 64, 64, 4
        $region36: #{residual_block_forward.4} parent=23 // pred_fallthru
          _
      $region24: #{residual_block_forward.4} parent=5 // pred_fallthru
        _
      %p356 = scmp.le.s32.totalorder 1, %s26
      %p357 = scmp.lt.s32.totalorder %s26, 3
      %p358 = pnand %p356, %p357
      %p359 = pneg %p358
      // Predicated region
      $region37: #{residual_block_forward.4} parent=5 // pred_check
        _
      $region38: #{residual_block_forward.4} parent=5 // pred_check_branch
        %361 = sbr.rel (%p358) target = $region40
      $region39: #{residual_block_forward.4} parent=5 // pred_region
        %s362 = ssub.s32 %s26, 1
        %s363 = sand.u32 %s53, 1
        %s364 = scalar_lea.sflag [#allocation4], %s363
        %s365 = sand.u32 %s53, 1
        %s366 = smul.addr %s365, 192
        %s367 = scalar_lea.vmem [#allocation3], %s366
        // Predicated region
        $region41: #{residual_block_forward.4} parent=39 // pred_check
          %p368 = pneg %p66
        $region42: #{residual_block_forward.4} parent=39 // pred_check_branch
          %370 = sbr.rel (%p368) target = $region44
        $region43: #{residual_block_forward.4} parent=39 // pred_region
          %371 = dma.done %s364, 3072
        $region44: #{residual_block_forward.4} parent=39 // pred_fallthru
          _
        %s372 = sand.u32 %s31, 1
        %s373 = scalar_lea.sflag [#allocation7], %s372
        %s374 = sand.u32 %s85, 1
        %s375 = smul.addr %s374, 12
        %s376 = scalar_lea.vmem [#allocation6], %s375
        // Predicated region
        $region45: #{residual_block_forward.4} parent=39 // pred_check
          %p377 = pneg %p98
        $region46: #{residual_block_forward.4} parent=39 // pred_check_branch
          %379 = sbr.rel (%p377) target = $region48
        $region47: #{residual_block_forward.4} parent=39 // pred_region
          %380 = dma.done %s373, 192
        $region48: #{residual_block_forward.4} parent=39 // pred_fallthru
          _
        %s381 = sand.u32 %s31, 1
        %s382 = scalar_lea.sflag [#allocation7], %s381
        %s383 = sand.u32 %s119, 1
        %s384 = smul.addr %s383, 12
        %s385 = scalar_lea.vmem [#allocation8], %s384
        // Predicated region
        $region49: #{residual_block_forward.4} parent=39 // pred_check
          %p386 = pneg %p132
        $region50: #{residual_block_forward.4} parent=39 // pred_check_branch
          %388 = sbr.rel (%p386) target = $region52
        $region51: #{residual_block_forward.4} parent=39 // pred_region
          %389 = dma.done %s382, 192
        $region52: #{residual_block_forward.4} parent=39 // pred_fallthru
          _
        // Predicated region
        $region53: #{residual_block_forward.4} parent=39 // pred_check
          %p390 = pneg %p153
        $region54: #{residual_block_forward.4} parent=39 // pred_check_branch
          %392 = sbr.rel (%p390) target = $region56
        $region55: #{residual_block_forward.4} parent=39 // pred_region
          %393 = dma.done [#allocation10], 2304
        $region56: #{residual_block_forward.4} parent=39 // pred_fallthru
          _
        // Predicated region
        $region57: #{residual_block_forward.4} parent=39 // pred_check
          %p394 = pneg %p174
        $region58: #{residual_block_forward.4} parent=39 // pred_check_branch
          %396 = sbr.rel (%p394) target = $region60
        $region59: #{residual_block_forward.4} parent=39 // pred_region
          %397 = dma.done [#allocation10], 16
        $region60: #{residual_block_forward.4} parent=39 // pred_fallthru
          _
        %s398 = sand.u32 %s53, 1
        %s399 = scalar_lea.sflag [#allocation4], %s398
        %s400 = sand.u32 %s53, 1
        %s401 = smul.addr %s400, 192
        %s402 = scalar_lea.vmem [#allocation3], %s401
        %p403 = pneg %p66
        %p404 = pneg %p63
        %s405 = sand.u32 %s31, 1
        %s406 = scalar_lea.sflag [#allocation7], %s405
        %s407 = sand.u32 %s85, 1
        %s408 = smul.addr %s407, 12
        %s409 = scalar_lea.vmem [#allocation6], %s408
        %p410 = pneg %p98
        %p411 = pneg %p95
        %s412 = sand.u32 %s31, 1
        %s413 = scalar_lea.sflag [#allocation7], %s412
        %s414 = sand.u32 %s119, 1
        %s415 = smul.addr %s414, 12
        %s416 = scalar_lea.vmem [#allocation8], %s415
        %p417 = pneg %p132
        %p418 = pneg %p129
        %p419 = pneg %p153
        %p420 = pneg %p150
        %p421 = pneg %p174
        %p422 = pneg %p171
        %p423 = pneg %p202
        %p424 = pneg %p199
        %s425 = sand.u32 %s189, 1
        %s426 = scalar_lea.sflag [#allocation5], %s425
        %s427 = sand.u32 %s189, 1
        %s428 = smul.addr %s427, 128
        %s429 = scalar_lea.vmem [#allocation12], %s428
        %p430 = pneg %p230
        %p431 = pneg %p227
        %s432 = sand.u32 %s217, 1
        %s433 = scalar_lea.sflag [#allocation14], %s432
        %s434 = sand.u32 %s217, 1
        %s435 = smul.addr %s434, 2
        %s436 = scalar_lea.vmem [#allocation13], %s435
        %s437 = smul.u32 16, %s36
        %s438 = ssub.s32 18, %s437
        %p439 = scmp.lt.s32.totalorder %s438, 16
        %s440 = scalar_select %p439, %s438, 16
        %s441 = smul.u32 64, %s440
        %s442 = smul.u32 %s441, 3
        %s443 = sadd.s32 %s36, 1
        %s444 = smul.u32 %s443, 16
        %s445 = sadd.s32 %s36, 1
        %s446 = smul.u32 %s445, 16
        %s447 = sadd.s32 %s446, 1
        %s448 = smul.u32 32, %s36
        %v450 = vld [vmem:[%s367] sm:$0xf]
        %v451 = vld [vmem:[%s367 + $0x4] sm:$0xf]
        %v452 = vld [vmem:[%s367 + $0x8] sm:$0x1]
        %v453 = vld [vmem:[%s367 + $0xc] sm:$0xf]
        %v454 = vld [vmem:[%s367 + $0x10] sm:$0xf]
        %v455 = vld [vmem:[%s367 + $0x14] sm:$0x1]
        %v456 = vld [vmem:[%s367 + $0x18] sm:$0xf]
        %v457 = vld [vmem:[%s367 + $0x1c] sm:$0xf]
        %v458 = vld [vmem:[%s367 + $0x20] sm:$0x1]
        %v459 = vld [vmem:[%s367 + $0x24] sm:$0xf]
        %v460 = vld [vmem:[%s367 + $0x28] sm:$0xf]
        %v461 = vld [vmem:[%s367 + $0x2c] sm:$0x1]
        %v462 = vld [vmem:[%s367 + $0x30] sm:$0xf]
        %v463 = vld [vmem:[%s367 + $0x34] sm:$0xf]
        %v464 = vld [vmem:[%s367 + $0x38] sm:$0x1]
        %v465 = vld [vmem:[%s367 + $0x3c] sm:$0xf]
        %v466 = vld [vmem:[%s367 + $0x40] sm:$0xf]
        %v467 = vld [vmem:[%s367 + $0x44] sm:$0x1]
        %v468 = vld [vmem:[%s367 + $0x48] sm:$0xf]
        %v469 = vld [vmem:[%s367 + $0x4c] sm:$0xf]
        %v470 = vld [vmem:[%s367 + $0x50] sm:$0x1]
        %v471 = vld [vmem:[%s367 + $0x54] sm:$0xf]
        %v472 = vld [vmem:[%s367 + $0x58] sm:$0xf]
        %v473 = vld [vmem:[%s367 + $0x5c] sm:$0x1]
        %v474 = vld [vmem:[%s367 + $0x60] sm:$0xf]
        %v475 = vld [vmem:[%s367 + $0x64] sm:$0xf]
        %v476 = vld [vmem:[%s367 + $0x68] sm:$0x1]
        %v477 = vld [vmem:[%s367 + $0x6c] sm:$0xf]
        %v478 = vld [vmem:[%s367 + $0x70] sm:$0xf]
        %v479 = vld [vmem:[%s367 + $0x74] sm:$0x1]
        %v480 = vld [vmem:[%s367 + $0x78] sm:$0xf]
        %v481 = vld [vmem:[%s367 + $0x7c] sm:$0xf]
        %v482 = vld [vmem:[%s367 + $0x80] sm:$0x1]
        %v483 = vld [vmem:[%s367 + $0x84] sm:$0xf]
        %v484 = vld [vmem:[%s367 + $0x88] sm:$0xf]
        %v485 = vld [vmem:[%s367 + $0x8c] sm:$0x1]
        %v486 = vld [vmem:[%s367 + $0x90] sm:$0xf]
        %v487 = vld [vmem:[%s367 + $0x94] sm:$0xf]
        %v488 = vld [vmem:[%s367 + $0x98] sm:$0x1]
        %v489 = vld [vmem:[%s367 + $0x9c] sm:$0xf]
        %v490 = vld [vmem:[%s367 + $0xa0] sm:$0xf]
        %v491 = vld [vmem:[%s367 + $0xa4] sm:$0x1]
        %v492 = vld [vmem:[%s367 + $0xa8] sm:$0xf]
        %v493 = vld [vmem:[%s367 + $0xac] sm:$0xf]
        %v494 = vld [vmem:[%s367 + $0xb0] sm:$0x1]
        %v495 = vld [vmem:[%s367 + $0xb4] sm:$0xf]
        %v496 = vld [vmem:[%s367 + $0xb8] sm:$0xf]
        %v497 = vld [vmem:[%s367 + $0xbc] sm:$0x1]
        %vm498 = vcmask 257024
        %499 = vst.msk [vmem:[#allocation2] sm:$0xf] %vm498, %v450
        %500 = vst.msk [vmem:[#allocation2 + $0x4] sm:$0xf] %vm498, %v451
        %vm501 = vcmask 253952
        %502 = vst.msk [vmem:[#allocation2 + $0x8] sm:$0x1] %vm501, %v452
        %503 = vst.msk [vmem:[#allocation2 + $0xc] sm:$0xf] %vm498, %v453
        %504 = vst.msk [vmem:[#allocation2 + $0x10] sm:$0xf] %vm498, %v454
        %505 = vst.msk [vmem:[#allocation2 + $0x14] sm:$0x1] %vm501, %v455
        %506 = vst.msk [vmem:[#allocation2 + $0x18] sm:$0xf] %vm498, %v456
        %507 = vst.msk [vmem:[#allocation2 + $0x1c] sm:$0xf] %vm498, %v457
        %508 = vst.msk [vmem:[#allocation2 + $0x20] sm:$0x1] %vm501, %v458
        %509 = vst.msk [vmem:[#allocation2 + $0x24] sm:$0xf] %vm498, %v459
        %510 = vst.msk [vmem:[#allocation2 + $0x28] sm:$0xf] %vm498, %v460
        %511 = vst.msk [vmem:[#allocation2 + $0x2c] sm:$0x1] %vm501, %v461
        %512 = vst.msk [vmem:[#allocation2 + $0x30] sm:$0xf] %vm498, %v462
        %513 = vst.msk [vmem:[#allocation2 + $0x34] sm:$0xf] %vm498, %v463
        %514 = vst.msk [vmem:[#allocation2 + $0x38] sm:$0x1] %vm501, %v464
        %515 = vst.msk [vmem:[#allocation2 + $0x3c] sm:$0xf] %vm498, %v465
        %516 = vst.msk [vmem:[#allocation2 + $0x40] sm:$0xf] %vm498, %v466
        %517 = vst.msk [vmem:[#allocation2 + $0x44] sm:$0x1] %vm501, %v467
        %518 = vst.msk [vmem:[#allocation2 + $0x48] sm:$0xf] %vm498, %v468
        %519 = vst.msk [vmem:[#allocation2 + $0x4c] sm:$0xf] %vm498, %v469
        %520 = vst.msk [vmem:[#allocation2 + $0x50] sm:$0x1] %vm501, %v470
        %521 = vst.msk [vmem:[#allocation2 + $0x54] sm:$0xf] %vm498, %v471
        %522 = vst.msk [vmem:[#allocation2 + $0x58] sm:$0xf] %vm498, %v472
        %523 = vst.msk [vmem:[#allocation2 + $0x5c] sm:$0x1] %vm501, %v473
        %524 = vst.msk [vmem:[#allocation2 + $0x60] sm:$0xf] %vm498, %v474
        %525 = vst.msk [vmem:[#allocation2 + $0x64] sm:$0xf] %vm498, %v475
        %526 = vst.msk [vmem:[#allocation2 + $0x68] sm:$0x1] %vm501, %v476
        %527 = vst.msk [vmem:[#allocation2 + $0x6c] sm:$0xf] %vm498, %v477
        %528 = vst.msk [vmem:[#allocation2 + $0x70] sm:$0xf] %vm498, %v478
        %529 = vst.msk [vmem:[#allocation2 + $0x74] sm:$0x1] %vm501, %v479
        %530 = vst.msk [vmem:[#allocation2 + $0x78] sm:$0xf] %vm498, %v480
        %531 = vst.msk [vmem:[#allocation2 + $0x7c] sm:$0xf] %vm498, %v481
        %532 = vst.msk [vmem:[#allocation2 + $0x80] sm:$0x1] %vm501, %v482
        %533 = vst.msk [vmem:[#allocation2 + $0x84] sm:$0xf] %vm498, %v483
        %534 = vst.msk [vmem:[#allocation2 + $0x88] sm:$0xf] %vm498, %v484
        %535 = vst.msk [vmem:[#allocation2 + $0x8c] sm:$0x1] %vm501, %v485
        %536 = vst.msk [vmem:[#allocation2 + $0x90] sm:$0xf] %vm498, %v486
        %537 = vst.msk [vmem:[#allocation2 + $0x94] sm:$0xf] %vm498, %v487
        %538 = vst.msk [vmem:[#allocation2 + $0x98] sm:$0x1] %vm501, %v488
        %539 = vst.msk [vmem:[#allocation2 + $0x9c] sm:$0xf] %vm498, %v489
        %540 = vst.msk [vmem:[#allocation2 + $0xa0] sm:$0xf] %vm498, %v490
        %541 = vst.msk [vmem:[#allocation2 + $0xa4] sm:$0x1] %vm501, %v491
        %542 = vst.msk [vmem:[#allocation2 + $0xa8] sm:$0xf] %vm498, %v492
        %543 = vst.msk [vmem:[#allocation2 + $0xac] sm:$0xf] %vm498, %v493
        %544 = vst.msk [vmem:[#allocation2 + $0xb0] sm:$0x1] %vm501, %v494
        %545 = vst.msk [vmem:[#allocation2 + $0xb4] sm:$0xf] %vm498, %v495
        %546 = vst.msk [vmem:[#allocation2 + $0xb8] sm:$0xf] %vm498, %v496
        %547 = vst.msk [vmem:[#allocation2 + $0xbc] sm:$0x1] %vm501, %v497
        %v548 = vld [vmem:[%s376] sm:$0xf]
        %v549 = vld [vmem:[%s376 + $0x4] sm:$0xf]
        %v550 = vld [vmem:[%s376 + $0x8] sm:$0x1]
        %s551 = scalar_lea.vmem [#allocation2], 192
        %552 = vst.msk [vmem:[%s551] sm:$0xf] %vm498, %v548
        %553 = vst.msk [vmem:[%s551 + $0x4] sm:$0xf] %vm498, %v549
        %554 = vst.msk [vmem:[%s551 + $0x8] sm:$0x1] %vm501, %v550
        %v555 = vld [vmem:[%s385] sm:$0xf]
        %v556 = vld [vmem:[%s385 + $0x4] sm:$0xf]
        %v557 = vld [vmem:[%s385 + $0x8] sm:$0x1]
        %s558 = scalar_lea.vmem [#allocation2], 204
        %559 = vst.msk [vmem:[%s558] sm:$0xf] %vm498, %v555
        %560 = vst.msk [vmem:[%s558 + $0x4] sm:$0xf] %vm498, %v556
        %561 = vst.msk [vmem:[%s558 + $0x8] sm:$0x1] %vm501, %v557
        %v562 = vld [vmem:[#allocation2] sm:$0xf]
        %v563 = vld [vmem:[#allocation2 + $0x4] sm:$0xf]
        %v564 = vld [vmem:[#allocation2 + $0xc] sm:$0xf]
        %v565 = vld [vmem:[#allocation2 + $0x10] sm:$0xf]
        %v566 = vld [vmem:[#allocation2 + $0x18] sm:$0xf]
        %v567 = vld [vmem:[#allocation2 + $0x1c] sm:$0xf]
        %v568 = vld [vmem:[#allocation2 + $0x24] sm:$0xf]
        %v569 = vld [vmem:[#allocation2 + $0x28] sm:$0xf]
        %v570 = vld [vmem:[#allocation2 + $0x30] sm:$0xf]
        %v571 = vld [vmem:[#allocation2 + $0x34] sm:$0xf]
        %v572 = vld [vmem:[#allocation2 + $0x3c] sm:$0xf]
        %v573 = vld [vmem:[#allocation2 + $0x40] sm:$0xf]
        %v574 = vld [vmem:[#allocation2 + $0x48] sm:$0xf]
        %v575 = vld [vmem:[#allocation2 + $0x4c] sm:$0xf]
        %v576 = vld [vmem:[#allocation2 + $0x54] sm:$0xf]
        %v577 = vld [vmem:[#allocation2 + $0x58] sm:$0xf]
        %v578 = vld [vmem:[#allocation2 + $0x60] sm:$0xf]
        %v579 = vld [vmem:[#allocation2 + $0x64] sm:$0xf]
        %v580 = vld [vmem:[#allocation2 + $0x6c] sm:$0xf]
        %v581 = vld [vmem:[#allocation2 + $0x70] sm:$0xf]
        %v582 = vld [vmem:[#allocation2 + $0x78] sm:$0xf]
        %v583 = vld [vmem:[#allocation2 + $0x7c] sm:$0xf]
        %v584 = vld [vmem:[#allocation2 + $0x84] sm:$0xf]
        %v585 = vld [vmem:[#allocation2 + $0x88] sm:$0xf]
        %v586 = vld [vmem:[#allocation2 + $0x90] sm:$0xf]
        %v587 = vld [vmem:[#allocation2 + $0x94] sm:$0xf]
        %v588 = vld [vmem:[#allocation2 + $0x9c] sm:$0xf]
        %v589 = vld [vmem:[#allocation2 + $0xa0] sm:$0xf]
        %v590 = vld [vmem:[#allocation2 + $0xa8] sm:$0xf]
        %v591 = vld [vmem:[#allocation2 + $0xac] sm:$0xf]
        %v592 = vld [vmem:[#allocation2 + $0xb4] sm:$0xf]
        %v593 = vld [vmem:[#allocation2 + $0xb8] sm:$0xf]
        %v594 = vld [vmem:[#allocation9] sm:$0xf]
        %v595 = vld [vmem:[#allocation9 + $0x4] sm:$0xf]
        %v596 = vld [vmem:[#allocation9 + $0x8] sm:$0xf]
        %v597 = vld [vmem:[#allocation9 + $0xc] sm:$0xf]
        %v598 = vld [vmem:[#allocation2 + $0x8] sm:$0x1]
        %v599 = vld [vmem:[#allocation2 + $0x14] sm:$0x1]
        %v600 = vld [vmem:[#allocation2 + $0x20] sm:$0x1]
        %v601 = vld [vmem:[#allocation2 + $0x2c] sm:$0x1]
        %v602 = vld [vmem:[#allocation2 + $0x38] sm:$0x1]
        %v603 = vld [vmem:[#allocation2 + $0x44] sm:$0x1]
        %v604 = vld [vmem:[#allocation2 + $0x50] sm:$0x1]
        %v605 = vld [vmem:[#allocation2 + $0x5c] sm:$0x1]
        %v606 = vld [vmem:[#allocation2 + $0x68] sm:$0x1]
        %v607 = vld [vmem:[#allocation2 + $0x74] sm:$0x1]
        %v608 = vld [vmem:[#allocation2 + $0x80] sm:$0x1]
        %v609 = vld [vmem:[#allocation2 + $0x8c] sm:$0x1]
        %v610 = vld [vmem:[#allocation2 + $0x98] sm:$0x1]
        %v611 = vld [vmem:[#allocation2 + $0xa4] sm:$0x1]
        %v612 = vld [vmem:[#allocation2 + $0xb0] sm:$0x1]
        %v613 = vld [vmem:[#allocation2 + $0xbc] sm:$0x1]
        %vm614 = vsmask.f32 3328
        %vm615 = vsmask.f32 7440
        %vm616 = vmor %vm614, %vm615
        %v618 = vshrl.u32 %v562, 16
        %v620 = vrot.slane %v618, 4
        %v621 = vshll.u32 %v562, 16
        %v623 = vrot.slane %v621, 5
        %v624 = vor.u32 %v620, %v623
        %v625 = vrot.slane %v624, 4
        %v627 = vshll.u32 %v563, 16
        %v629 = vrot.slane %v627, 5
        %v630 = vsel %vm616, %v625, %v629
        %v631 = vshrl.u32 %v563, 16
        %v633 = vrot.slane %v631, 4
        %v634 = vor.u32 %v633, %v629
        %v635 = vrot.slane %v634, 4
        %v637 = vshll.u32 %v598, 16
        %v639 = vrot.slane %v637, 5
        %v640 = vsel %vm616, %v635, %v639
        %v642 = vshrl.u32 %v564, 16
        %v644 = vrot.slane %v642, 4
        %v645 = vshll.u32 %v564, 16
        %v647 = vrot.slane %v645, 5
        %v648 = vor.u32 %v644, %v647
        %v649 = vrot.slane %v648, 4
        %v651 = vshll.u32 %v565, 16
        %v653 = vrot.slane %v651, 5
        %v654 = vsel %vm616, %v649, %v653
        %v655 = vshrl.u32 %v565, 16
        %v657 = vrot.slane %v655, 4
        %v658 = vor.u32 %v657, %v653
        %v659 = vrot.slane %v658, 4
        %v661 = vshll.u32 %v599, 16
        %v663 = vrot.slane %v661, 5
        %v664 = vsel %vm616, %v659, %v663
        %v666 = vshrl.u32 %v566, 16
        %v668 = vrot.slane %v666, 4
        %v669 = vshll.u32 %v566, 16
        %v671 = vrot.slane %v669, 5
        %v672 = vor.u32 %v668, %v671
        %v673 = vrot.slane %v672, 4
        %v675 = vshll.u32 %v567, 16
        %v677 = vrot.slane %v675, 5
        %v678 = vsel %vm616, %v673, %v677
        %v679 = vshrl.u32 %v567, 16
        %v681 = vrot.slane %v679, 4
        %v682 = vor.u32 %v681, %v677
        %v683 = vrot.slane %v682, 4
        %v685 = vshll.u32 %v600, 16
        %v687 = vrot.slane %v685, 5
        %v688 = vsel %vm616, %v683, %v687
        %v690 = vshrl.u32 %v568, 16
        %v692 = vrot.slane %v690, 4
        %v693 = vshll.u32 %v568, 16
        %v695 = vrot.slane %v693, 5
        %v696 = vor.u32 %v692, %v695
        %v697 = vrot.slane %v696, 4
        %v699 = vshll.u32 %v569, 16
        %v701 = vrot.slane %v699, 5
        %v702 = vsel %vm616, %v697, %v701
        %v703 = vshrl.u32 %v569, 16
        %v705 = vrot.slane %v703, 4
        %v706 = vor.u32 %v705, %v701
        %v707 = vrot.slane %v706, 4
        %v709 = vshll.u32 %v601, 16
        %v711 = vrot.slane %v709, 5
        %v712 = vsel %vm616, %v707, %v711
        %v714 = vshrl.u32 %v570, 16
        %v716 = vrot.slane %v714, 4
        %v717 = vshll.u32 %v570, 16
        %v719 = vrot.slane %v717, 5
        %v720 = vor.u32 %v716, %v719
        %v721 = vrot.slane %v720, 4
        %v723 = vshll.u32 %v571, 16
        %v725 = vrot.slane %v723, 5
        %v726 = vsel %vm616, %v721, %v725
        %v727 = vshrl.u32 %v571, 16
        %v729 = vrot.slane %v727, 4
        %v730 = vor.u32 %v729, %v725
        %v731 = vrot.slane %v730, 4
        %v733 = vshll.u32 %v602, 16
        %v735 = vrot.slane %v733, 5
        %v736 = vsel %vm616, %v731, %v735
        %v738 = vshrl.u32 %v572, 16
        %v740 = vrot.slane %v738, 4
        %v741 = vshll.u32 %v572, 16
        %v743 = vrot.slane %v741, 5
        %v744 = vor.u32 %v740, %v743
        %v745 = vrot.slane %v744, 4
        %v747 = vshll.u32 %v573, 16
        %v749 = vrot.slane %v747, 5
        %v750 = vsel %vm616, %v745, %v749
        %v751 = vshrl.u32 %v573, 16
        %v753 = vrot.slane %v751, 4
        %v754 = vor.u32 %v753, %v749
        %v755 = vrot.slane %v754, 4
        %v757 = vshll.u32 %v603, 16
        %v759 = vrot.slane %v757, 5
        %v760 = vsel %vm616, %v755, %v759
        %v762 = vshrl.u32 %v574, 16
        %v764 = vrot.slane %v762, 4
        %v765 = vshll.u32 %v574, 16
        %v767 = vrot.slane %v765, 5
        %v768 = vor.u32 %v764, %v767
        %v769 = vrot.slane %v768, 4
        %v771 = vshll.u32 %v575, 16
        %v773 = vrot.slane %v771, 5
        %v774 = vsel %vm616, %v769, %v773
        %v775 = vshrl.u32 %v575, 16
        %v777 = vrot.slane %v775, 4
        %v778 = vor.u32 %v777, %v773
        %v779 = vrot.slane %v778, 4
        %v781 = vshll.u32 %v604, 16
        %v783 = vrot.slane %v781, 5
        %v784 = vsel %vm616, %v779, %v783
        %v786 = vshrl.u32 %v576, 16
        %v788 = vrot.slane %v786, 4
        %v789 = vshll.u32 %v576, 16
        %v791 = vrot.slane %v789, 5
        %v792 = vor.u32 %v788, %v791
        %v793 = vrot.slane %v792, 4
        %v795 = vshll.u32 %v577, 16
        %v797 = vrot.slane %v795, 5
        %v798 = vsel %vm616, %v793, %v797
        %v799 = vshrl.u32 %v577, 16
        %v801 = vrot.slane %v799, 4
        %v802 = vor.u32 %v801, %v797
        %v803 = vrot.slane %v802, 4
        %v805 = vshll.u32 %v605, 16
        %v807 = vrot.slane %v805, 5
        %v808 = vsel %vm616, %v803, %v807
        %v810 = vshrl.u32 %v578, 16
        %v812 = vrot.slane %v810, 4
        %v813 = vshll.u32 %v578, 16
        %v815 = vrot.slane %v813, 5
        %v816 = vor.u32 %v812, %v815
        %v817 = vrot.slane %v816, 4
        %v819 = vshll.u32 %v579, 16
        %v821 = vrot.slane %v819, 5
        %v822 = vsel %vm616, %v817, %v821
        %v823 = vshrl.u32 %v579, 16
        %v825 = vrot.slane %v823, 4
        %v826 = vor.u32 %v825, %v821
        %v827 = vrot.slane %v826, 4
        %v829 = vshll.u32 %v606, 16
        %v831 = vrot.slane %v829, 5
        %v832 = vsel %vm616, %v827, %v831
        %v834 = vshrl.u32 %v580, 16
        %v836 = vrot.slane %v834, 4
        %v837 = vshll.u32 %v580, 16
        %v839 = vrot.slane %v837, 5
        %v840 = vor.u32 %v836, %v839
        %v841 = vrot.slane %v840, 4
        %v843 = vshll.u32 %v581, 16
        %v845 = vrot.slane %v843, 5
        %v846 = vsel %vm616, %v841, %v845
        %v847 = vshrl.u32 %v581, 16
        %v849 = vrot.slane %v847, 4
        %v850 = vor.u32 %v849, %v845
        %v851 = vrot.slane %v850, 4
        %v853 = vshll.u32 %v607, 16
        %v855 = vrot.slane %v853, 5
        %v856 = vsel %vm616, %v851, %v855
        %v858 = vshrl.u32 %v582, 16
        %v860 = vrot.slane %v858, 4
        %v861 = vshll.u32 %v582, 16
        %v863 = vrot.slane %v861, 5
        %v864 = vor.u32 %v860, %v863
        %v865 = vrot.slane %v864, 4
        %v867 = vshll.u32 %v583, 16
        %v869 = vrot.slane %v867, 5
        %v870 = vsel %vm616, %v865, %v869
        %v871 = vshrl.u32 %v583, 16
        %v873 = vrot.slane %v871, 4
        %v874 = vor.u32 %v873, %v869
        %v875 = vrot.slane %v874, 4
        %v877 = vshll.u32 %v608, 16
        %v879 = vrot.slane %v877, 5
        %v880 = vsel %vm616, %v875, %v879
        %v882 = vshrl.u32 %v584, 16
        %v884 = vrot.slane %v882, 4
        %v885 = vshll.u32 %v584, 16
        %v887 = vrot.slane %v885, 5
        %v888 = vor.u32 %v884, %v887
        %v889 = vrot.slane %v888, 4
        %v891 = vshll.u32 %v585, 16
        %v893 = vrot.slane %v891, 5
        %v894 = vsel %vm616, %v889, %v893
        %v895 = vshrl.u32 %v585, 16
        %v897 = vrot.slane %v895, 4
        %v898 = vor.u32 %v897, %v893
        %v899 = vrot.slane %v898, 4
        %v901 = vshll.u32 %v609, 16
        %v903 = vrot.slane %v901, 5
        %v904 = vsel %vm616, %v899, %v903
        %v906 = vshrl.u32 %v586, 16
        %v908 = vrot.slane %v906, 4
        %v909 = vshll.u32 %v586, 16
        %v911 = vrot.slane %v909, 5
        %v912 = vor.u32 %v908, %v911
        %v913 = vrot.slane %v912, 4
        %v915 = vshll.u32 %v587, 16
        %v917 = vrot.slane %v915, 5
        %v918 = vsel %vm616, %v913, %v917
        %v919 = vshrl.u32 %v587, 16
        %v921 = vrot.slane %v919, 4
        %v922 = vor.u32 %v921, %v917
        %v923 = vrot.slane %v922, 4
        %v925 = vshll.u32 %v610, 16
        %v927 = vrot.slane %v925, 5
        %v928 = vsel %vm616, %v923, %v927
        %v930 = vshrl.u32 %v588, 16
        %v932 = vrot.slane %v930, 4
        %v933 = vshll.u32 %v588, 16
        %v935 = vrot.slane %v933, 5
        %v936 = vor.u32 %v932, %v935
        %v937 = vrot.slane %v936, 4
        %v939 = vshll.u32 %v589, 16
        %v941 = vrot.slane %v939, 5
        %v942 = vsel %vm616, %v937, %v941
        %v943 = vshrl.u32 %v589, 16
        %v945 = vrot.slane %v943, 4
        %v946 = vor.u32 %v945, %v941
        %v947 = vrot.slane %v946, 4
        %v949 = vshll.u32 %v611, 16
        %v951 = vrot.slane %v949, 5
        %v952 = vsel %vm616, %v947, %v951
        %v954 = vshrl.u32 %v590, 16
        %v956 = vrot.slane %v954, 4
        %v957 = vshll.u32 %v590, 16
        %v959 = vrot.slane %v957, 5
        %v960 = vor.u32 %v956, %v959
        %v961 = vrot.slane %v960, 4
        %v963 = vshll.u32 %v591, 16
        %v965 = vrot.slane %v963, 5
        %v966 = vsel %vm616, %v961, %v965
        %v967 = vshrl.u32 %v591, 16
        %v969 = vrot.slane %v967, 4
        %v970 = vor.u32 %v969, %v965
        %v971 = vrot.slane %v970, 4
        %v973 = vshll.u32 %v612, 16
        %v975 = vrot.slane %v973, 5
        %v976 = vsel %vm616, %v971, %v975
        %v978 = vshrl.u32 %v592, 16
        %v980 = vrot.slane %v978, 4
        %v981 = vshll.u32 %v592, 16
        %v983 = vrot.slane %v981, 5
        %v984 = vor.u32 %v980, %v983
        %v985 = vrot.slane %v984, 4
        %v987 = vshll.u32 %v593, 16
        %v989 = vrot.slane %v987, 5
        %v990 = vsel %vm616, %v985, %v989
        %v991 = vshrl.u32 %v593, 16
        %v993 = vrot.slane %v991, 4
        %v994 = vor.u32 %v993, %v989
        %v995 = vrot.slane %v994, 4
        %v997 = vshll.u32 %v613, 16
        %v999 = vrot.slane %v997, 5
        %v1000 = vsel %vm616, %v995, %v999
        %s1001 = scalar_lea.vmem [#allocation9], 16
        %v1002 = vld [vmem:[%s1001] sm:$0xf]
        %v1003 = vld [vmem:[%s1001 + $0x4] sm:$0xf]
        %v1004 = vld [vmem:[%s1001 + $0x8] sm:$0xf]
        %v1005 = vld [vmem:[%s1001 + $0xc] sm:$0xf]
        %v1006 = vunpack.c.l.b16 %v630
        %v1007 = vunpack.c.l.b16 %v640
        %v1008 = vunpack.c.l.b16 %v654
        %v1009 = vunpack.c.l.b16 %v664
        %v1010 = vunpack.c.l.b16 %v678
        %v1011 = vunpack.c.l.b16 %v688
        %v1012 = vunpack.c.l.b16 %v702
        %v1013 = vunpack.c.l.b16 %v712
        %v1014 = vunpack.c.l.b16 %v726
        %v1015 = vunpack.c.l.b16 %v736
        %v1016 = vunpack.c.l.b16 %v750
        %v1017 = vunpack.c.l.b16 %v760
        %v1018 = vunpack.c.l.b16 %v774
        %v1019 = vunpack.c.l.b16 %v784
        %v1020 = vunpack.c.l.b16 %v798
        %v1021 = vunpack.c.l.b16 %v808
        %v1022 = vunpack.c.l.b16 %v822
        %v1023 = vunpack.c.l.b16 %v832
        %v1024 = vunpack.c.l.b16 %v846
        %v1025 = vunpack.c.l.b16 %v856
        %v1026 = vunpack.c.l.b16 %v870
        %v1027 = vunpack.c.l.b16 %v880
        %v1028 = vunpack.c.l.b16 %v894
        %v1029 = vunpack.c.l.b16 %v904
        %v1030 = vunpack.c.l.b16 %v918
        %v1031 = vunpack.c.l.b16 %v928
        %v1032 = vunpack.c.l.b16 %v942
        %v1033 = vunpack.c.l.b16 %v952
        %v1034 = vunpack.c.l.b16 %v966
        %v1035 = vunpack.c.l.b16 %v976
        %v1036 = vunpack.c.l.b16 %v990
        %v1037 = vunpack.c.l.b16 %v1000
        %v1038 = vpack.c.b16 %v1007, %v1006
        %v1039 = vpack.c.b16 %v1009, %v1008
        %v1040 = vpack.c.b16 %v1011, %v1010
        %v1041 = vpack.c.b16 %v1013, %v1012
        %v1042 = vpack.c.b16 %v1015, %v1014
        %v1043 = vpack.c.b16 %v1017, %v1016
        %v1044 = vpack.c.b16 %v1019, %v1018
        %v1045 = vpack.c.b16 %v1021, %v1020
        %v1046 = vpack.c.b16 %v1023, %v1022
        %v1047 = vpack.c.b16 %v1025, %v1024
        %v1048 = vpack.c.b16 %v1027, %v1026
        %v1049 = vpack.c.b16 %v1029, %v1028
        %v1050 = vpack.c.b16 %v1031, %v1030
        %v1051 = vpack.c.b16 %v1033, %v1032
        %v1052 = vpack.c.b16 %v1035, %v1034
        %v1053 = vpack.c.b16 %v1037, %v1036
        %v1058 = vunpack.c.l.b16 %v1002
        %v1059 = vunpack.c.l.b16 %v1003
        %v1060 = vunpack.c.l.b16 %v1004
        %v1061 = vunpack.c.l.b16 %v1005
        %v1062 = vpack.c.b16 %v1059, %v1058
        %v1063 = vpack.c.b16 %v1061, %v1060
        %vm1066 = vcmask 261120
        %v1068 = vsel %vm1066, %v1038, 0
        %v1071 = vsel %vm1066, %v1039, 0
        %v1074 = vsel %vm1066, %v1040, 0
        %v1077 = vsel %vm1066, %v1041, 0
        %v1080 = vsel %vm1066, %v1042, 0
        %v1083 = vsel %vm1066, %v1043, 0
        %v1086 = vsel %vm1066, %v1044, 0
        %v1089 = vsel %vm1066, %v1045, 0
        %v1092 = vsel %vm1066, %v1046, 0
        %v1095 = vsel %vm1066, %v1047, 0
        %v1098 = vsel %vm1066, %v1048, 0
        %v1101 = vsel %vm1066, %v1049, 0
        %v1104 = vsel %vm1066, %v1050, 0
        %v1107 = vsel %vm1066, %v1051, 0
        %v1110 = vsel %vm1066, %v1052, 0
        %v1113 = vsel %vm1066, %v1053, 0
        %1115 = vmatprep.subr.bf16.mxu0 0
        %1116 = vmatpush1.bf16.msra.mxu0 %v1062
        %1117 = vmatprep.subr.bf16.mxu0 0
        %1118 = vmatpush1.bf16.msra.mxu0 %v1063
        %1119 = vmatprep.subr.bf16.mxu0 0
        %1120 = vmatpush1.bf16.msra.mxu0 0
        %1121 = vmatprep.subr.bf16.mxu0 0
        %1122 = vmatpush1.bf16.msra.mxu0 0
        %1123 = vmatprep.subr.bf16.mxu0 0
        %1124 = vmatpush1.bf16.msra.mxu0 0
        %1125 = vmatprep.subr.bf16.mxu0 0
        %1126 = vmatpush1.bf16.msra.mxu0 0
        %1127 = vmatprep.subr.bf16.mxu0 0
        %1128 = vmatpush1.bf16.msra.mxu0 0
        %1129 = vmatprep.subr.bf16.mxu0 0
        %1130 = vmatpush1.bf16.msra.mxu0 0
        %1131 = vmatprep.subr.bf16.mxu0 0
        %1132 = vmatpush1.bf16.msra.mxu0 0
        %1133 = vmatprep.subr.bf16.mxu0 0
        %1134 = vmatpush1.bf16.msra.mxu0 0
        %1135 = vmatprep.subr.bf16.mxu0 0
        %1136 = vmatpush1.bf16.msra.mxu0 0
        %1137 = vmatprep.subr.bf16.mxu0 0
        %1138 = vmatpush1.bf16.msra.mxu0 0
        %1139 = vmatprep.subr.bf16.mxu0 0
        %1140 = vmatpush1.bf16.msra.mxu0 0
        %1141 = vmatprep.subr.bf16.mxu0 0
        %1142 = vmatpush1.bf16.msra.mxu0 0
        %1143 = vmatprep.subr.bf16.mxu0 0
        %1144 = vmatpush1.bf16.msra.mxu0 0
        %1145 = vmatprep.subr.bf16.mxu0 0
        %1146 = vmatpush1.bf16.msra.mxu0 0
        %1147 = vmatprep.mubr.bf16.mxu0 0
        %1148 = vmatmul.mubr.bf16.gmra.mrb[0].mxu0 %v1068
        %v1149 = vpop.f32.mrb[0].mxu0
        %v1150 = vadd.f32 0.0, %v1149
        %v1151 = vpop.f32.mrb[0].mxu0
        %v1152 = vpop.f32.mrb[0].mxu0
        %v1153 = vadd.f32 0.0, %v1152
        %v1154 = vpop.f32.mrb[0].mxu0
        %1155 = vmatprep.mubr.bf16.mxu0 0
        %1156 = vmatmul.mubr.bf16.gmra.mrb[0].mxu0 %v1071
        %v1157 = vpop.f32.mrb[0].mxu0
        %v1158 = vadd.f32 0.0, %v1157
        %v1159 = vpop.f32.mrb[0].mxu0
        %v1160 = vpop.f32.mrb[0].mxu0
        %v1161 = vadd.f32 0.0, %v1160
        %v1162 = vpop.f32.mrb[0].mxu0
        %1163 = vmatprep.mubr.bf16.mxu0 0
        %1164 = vmatmul.mubr.bf16.gmra.mrb[0].mxu0 %v1074
        %v1165 = vpop.f32.mrb[0].mxu0
        %v1166 = vadd.f32 0.0, %v1165
        %v1167 = vpop.f32.mrb[0].mxu0
        %v1168 = vpop.f32.mrb[0].mxu0
        %v1169 = vadd.f32 0.0, %v1168
        %v1170 = vpop.f32.mrb[0].mxu0
        %1171 = vmatprep.mubr.bf16.mxu0 0
        %1172 = vmatmul.mubr.bf16.gmra.mrb[0].mxu0 %v1077
        %v1173 = vpop.f32.mrb[0].mxu0
        %v1174 = vadd.f32 0.0, %v1173
        %v1175 = vpop.f32.mrb[0].mxu0
        %v1176 = vpop.f32.mrb[0].mxu0
        %v1177 = vadd.f32 0.0, %v1176
        %v1178 = vpop.f32.mrb[0].mxu0
        %1179 = vmatprep.mubr.bf16.mxu0 0
        %1180 = vmatmul.mubr.bf16.gmra.mrb[0].mxu0 %v1080
        %v1181 = vpop.f32.mrb[0].mxu0
        %v1182 = vadd.f32 0.0, %v1181
        %v1183 = vpop.f32.mrb[0].mxu0
        %v1184 = vpop.f32.mrb[0].mxu0
        %v1185 = vadd.f32 0.0, %v1184
        %v1186 = vpop.f32.mrb[0].mxu0
        %1187 = vmatprep.mubr.bf16.mxu0 0
        %1188 = vmatmul.mubr.bf16.gmra.mrb[0].mxu0 %v1083
        %v1189 = vpop.f32.mrb[0].mxu0
        %v1190 = vadd.f32 0.0, %v1189
        %v1191 = vpop.f32.mrb[0].mxu0
        %v1192 = vpop.f32.mrb[0].mxu0
        %v1193 = vadd.f32 0.0, %v1192
        %v1194 = vpop.f32.mrb[0].mxu0
        %1195 = vmatprep.mubr.bf16.mxu0 0
        %1196 = vmatmul.mubr.bf16.gmra.mrb[0].mxu0 %v1086
        %v1197 = vpop.f32.mrb[0].mxu0
        %v1198 = vadd.f32 0.0, %v1197
        %v1199 = vpop.f32.mrb[0].mxu0
        %v1200 = vpop.f32.mrb[0].mxu0
        %v1201 = vadd.f32 0.0, %v1200
        %v1202 = vpop.f32.mrb[0].mxu0
        %1203 = vmatprep.mubr.bf16.mxu0 0
        %1204 = vmatmul.mubr.bf16.gmra.mrb[0].mxu0 %v1089
        %v1205 = vpop.f32.mrb[0].mxu0
        %v1206 = vadd.f32 0.0, %v1205
        %v1207 = vpop.f32.mrb[0].mxu0
        %v1208 = vpop.f32.mrb[0].mxu0
        %v1209 = vadd.f32 0.0, %v1208
        %v1210 = vpop.f32.mrb[0].mxu0
        %1211 = vmatprep.mubr.bf16.mxu0 0
        %1212 = vmatmul.mubr.bf16.gmra.mrb[0].mxu0 %v1092
        %v1213 = vpop.f32.mrb[0].mxu0
        %v1214 = vadd.f32 0.0, %v1213
        %v1215 = vpop.f32.mrb[0].mxu0
        %v1216 = vpop.f32.mrb[0].mxu0
        %v1217 = vadd.f32 0.0, %v1216
        %v1218 = vpop.f32.mrb[0].mxu0
        %1219 = vmatprep.mubr.bf16.mxu0 0
        %1220 = vmatmul.mubr.bf16.gmra.mrb[0].mxu0 %v1095
        %v1221 = vpop.f32.mrb[0].mxu0
        %v1222 = vadd.f32 0.0, %v1221
        %v1223 = vpop.f32.mrb[0].mxu0
        %v1224 = vpop.f32.mrb[0].mxu0
        %v1225 = vadd.f32 0.0, %v1224
        %v1226 = vpop.f32.mrb[0].mxu0
        %1227 = vmatprep.mubr.bf16.mxu0 0
        %1228 = vmatmul.mubr.bf16.gmra.mrb[0].mxu0 %v1098
        %v1229 = vpop.f32.mrb[0].mxu0
        %v1230 = vadd.f32 0.0, %v1229
        %v1231 = vpop.f32.mrb[0].mxu0
        %v1232 = vpop.f32.mrb[0].mxu0
        %v1233 = vadd.f32 0.0, %v1232
        %v1234 = vpop.f32.mrb[0].mxu0
        %1235 = vmatprep.mubr.bf16.mxu0 0
        %1236 = vmatmul.mubr.bf16.gmra.mrb[0].mxu0 %v1101
        %v1237 = vpop.f32.mrb[0].mxu0
        %v1238 = vadd.f32 0.0, %v1237
        %v1239 = vpop.f32.mrb[0].mxu0
        %v1240 = vpop.f32.mrb[0].mxu0
        %v1241 = vadd.f32 0.0, %v1240
        %v1242 = vpop.f32.mrb[0].mxu0
        %1243 = vmatprep.mubr.bf16.mxu0 0
        %1244 = vmatmul.mubr.bf16.gmra.mrb[0].mxu0 %v1104
        %v1245 = vpop.f32.mrb[0].mxu0
        %v1246 = vadd.f32 0.0, %v1245
        %v1247 = vpop.f32.mrb[0].mxu0
        %v1248 = vpop.f32.mrb[0].mxu0
        %v1249 = vadd.f32 0.0, %v1248
        %v1250 = vpop.f32.mrb[0].mxu0
        %1251 = vmatprep.mubr.bf16.mxu0 0
        %1252 = vmatmul.mubr.bf16.gmra.mrb[0].mxu0 %v1107
        %v1253 = vpop.f32.mrb[0].mxu0
        %v1254 = vadd.f32 0.0, %v1253
        %v1255 = vpop.f32.mrb[0].mxu0
        %v1256 = vpop.f32.mrb[0].mxu0
        %v1257 = vadd.f32 0.0, %v1256
        %v1258 = vpop.f32.mrb[0].mxu0
        %1259 = vmatprep.mubr.bf16.mxu0 0
        %1260 = vmatmul.mubr.bf16.gmra.mrb[0].mxu0 %v1110
        %v1261 = vpop.f32.mrb[0].mxu0
        %v1262 = vadd.f32 0.0, %v1261
        %v1263 = vpop.f32.mrb[0].mxu0
        %v1264 = vpop.f32.mrb[0].mxu0
        %v1265 = vadd.f32 0.0, %v1264
        %v1266 = vpop.f32.mrb[0].mxu0
        %1267 = vmatprep.mubr.bf16.mxu0 0
        %1268 = vmatmul.mubr.bf16.gmra.mrb[0].mxu0 %v1113
        %v1269 = vpop.f32.mrb[0].mxu0
        %v1270 = vadd.f32 0.0, %v1269
        %v1271 = vpop.f32.mrb[0].mxu0
        %v1272 = vpop.f32.mrb[0].mxu0
        %v1273 = vadd.f32 0.0, %v1272
        %v1274 = vpop.f32.mrb[0].mxu0
        %1275 = vdwg.mxu0
        %v1308 = vunpack.c.l.b16 %v562
        %v1309 = vunpack.c.l.b16 %v563
        %v1310 = vunpack.c.l.b16 %v564
        %v1311 = vunpack.c.l.b16 %v565
        %v1312 = vunpack.c.l.b16 %v566
        %v1313 = vunpack.c.l.b16 %v567
        %v1314 = vunpack.c.l.b16 %v568
        %v1315 = vunpack.c.l.b16 %v569
        %v1316 = vunpack.c.l.b16 %v570
        %v1317 = vunpack.c.l.b16 %v571
        %v1318 = vunpack.c.l.b16 %v572
        %v1319 = vunpack.c.l.b16 %v573
        %v1320 = vunpack.c.l.b16 %v574
        %v1321 = vunpack.c.l.b16 %v575
        %v1322 = vunpack.c.l.b16 %v576
        %v1323 = vunpack.c.l.b16 %v577
        %v1324 = vunpack.c.l.b16 %v578
        %v1325 = vunpack.c.l.b16 %v579
        %v1326 = vunpack.c.l.b16 %v580
        %v1327 = vunpack.c.l.b16 %v581
        %v1328 = vunpack.c.l.b16 %v582
        %v1329 = vunpack.c.l.b16 %v583
        %v1330 = vunpack.c.l.b16 %v584
        %v1331 = vunpack.c.l.b16 %v585
        %v1332 = vunpack.c.l.b16 %v586
        %v1333 = vunpack.c.l.b16 %v587
        %v1334 = vunpack.c.l.b16 %v588
        %v1335 = vunpack.c.l.b16 %v589
        %v1336 = vunpack.c.l.b16 %v590
        %v1337 = vunpack.c.l.b16 %v591
        %v1338 = vunpack.c.l.b16 %v592
        %v1339 = vunpack.c.l.b16 %v593
        %v1340 = vpack.c.b16 %v1309, %v1308
        %v1341 = vpack.c.b16 %v1311, %v1310
        %v1342 = vpack.c.b16 %v1313, %v1312
        %v1343 = vpack.c.b16 %v1315, %v1314
        %v1344 = vpack.c.b16 %v1317, %v1316
        %v1345 = vpack.c.b16 %v1319, %v1318
        %v1346 = vpack.c.b16 %v1321, %v1320
        %v1347 = vpack.c.b16 %v1323, %v1322
        %v1348 = vpack.c.b16 %v1325, %v1324
        %v1349 = vpack.c.b16 %v1327, %v1326
        %v1350 = vpack.c.b16 %v1329, %v1328
        %v1351 = vpack.c.b16 %v1331, %v1330
        %v1352 = vpack.c.b16 %v1333, %v1332
        %v1353 = vpack.c.b16 %v1335, %v1334
        %v1354 = vpack.c.b16 %v1337, %v1336
        %v1355 = vpack.c.b16 %v1339, %v1338
        %v1360 = vunpack.c.l.b16 %v594
        %v1361 = vunpack.c.l.b16 %v595
        %v1362 = vunpack.c.l.b16 %v596
        %v1363 = vunpack.c.l.b16 %v597
        %v1364 = vpack.c.b16 %v1361, %v1360
        %v1365 = vpack.c.b16 %v1363, %v1362
        %v1369 = vsel %vm1066, %v1340, 0
        %v1372 = vsel %vm1066, %v1341, 0
        %v1375 = vsel %vm1066, %v1342, 0
        %v1378 = vsel %vm1066, %v1343, 0
        %v1381 = vsel %vm1066, %v1344, 0
        %v1384 = vsel %vm1066, %v1345, 0
        %v1387 = vsel %vm1066, %v1346, 0
        %v1390 = vsel %vm1066, %v1347, 0
        %v1393 = vsel %vm1066, %v1348, 0
        %v1396 = vsel %vm1066, %v1349, 0
        %v1399 = vsel %vm1066, %v1350, 0
        %v1402 = vsel %vm1066, %v1351, 0
        %v1405 = vsel %vm1066, %v1352, 0
        %v1408 = vsel %vm1066, %v1353, 0
        %v1411 = vsel %vm1066, %v1354, 0
        %v1414 = vsel %vm1066, %v1355, 0
        %1416 = vmatprep.subr.bf16.mxu0 0
        %1417 = vmatpush1.bf16.msra.mxu0 %v1364
        %1418 = vmatprep.subr.bf16.mxu0 0
        %1419 = vmatpush1.bf16.msra.mxu0 %v1365
        %1420 = vmatprep.subr.bf16.mxu0 0
        %1421 = vmatpush1.bf16.msra.mxu0 0
        %1422 = vmatprep.subr.bf16.mxu0 0
        %1423 = vmatpush1.bf16.msra.mxu0 0
        %1424 = vmatprep.subr.bf16.mxu0 0
        %1425 = vmatpush1.bf16.msra.mxu0 0
        %1426 = vmatprep.subr.bf16.mxu0 0
        %1427 = vmatpush1.bf16.msra.mxu0 0
        %1428 = vmatprep.subr.bf16.mxu0 0
        %1429 = vmatpush1.bf16.msra.mxu0 0
        %1430 = vmatprep.subr.bf16.mxu0 0
        %1431 = vmatpush1.bf16.msra.mxu0 0
        %1432 = vmatprep.subr.bf16.mxu0 0
        %1433 = vmatpush1.bf16.msra.mxu0 0
        %1434 = vmatprep.subr.bf16.mxu0 0
        %1435 = vmatpush1.bf16.msra.mxu0 0
        %1436 = vmatprep.subr.bf16.mxu0 0
        %1437 = vmatpush1.bf16.msra.mxu0 0
        %1438 = vmatprep.subr.bf16.mxu0 0
        %1439 = vmatpush1.bf16.msra.mxu0 0
        %1440 = vmatprep.subr.bf16.mxu0 0
        %1441 = vmatpush1.bf16.msra.mxu0 0
        %1442 = vmatprep.subr.bf16.mxu0 0
        %1443 = vmatpush1.bf16.msra.mxu0 0
        %1444 = vmatprep.subr.bf16.mxu0 0
        %1445 = vmatpush1.bf16.msra.mxu0 0
        %1446 = vmatprep.subr.bf16.mxu0 0
        %1447 = vmatpush1.bf16.msra.mxu0 0
        %1448 = vmatprep.mubr.bf16.mxu0 0
        %1449 = vmatmul.mubr.bf16.gmra.mrb[0].mxu0 %v1369
        %v1450 = vpop.f32.mrb[0].mxu0
        %v1451 = vadd.f32 %v1150, %v1450
        %v1452 = vpop.f32.mrb[0].mxu0
        %v1453 = vpop.f32.mrb[0].mxu0
        %v1454 = vadd.f32 %v1153, %v1453
        %v1455 = vpop.f32.mrb[0].mxu0
        %1456 = vmatprep.mubr.bf16.mxu0 0
        %1457 = vmatmul.mubr.bf16.gmra.mrb[0].mxu0 %v1372
        %v1458 = vpop.f32.mrb[0].mxu0
        %v1459 = vadd.f32 %v1158, %v1458
        %v1460 = vpop.f32.mrb[0].mxu0
        %v1461 = vpop.f32.mrb[0].mxu0
        %v1462 = vadd.f32 %v1161, %v1461
        %v1463 = vpop.f32.mrb[0].mxu0
        %1464 = vmatprep.mubr.bf16.mxu0 0
        %1465 = vmatmul.mubr.bf16.gmra.mrb[0].mxu0 %v1375
        %v1466 = vpop.f32.mrb[0].mxu0
        %v1467 = vadd.f32 %v1166, %v1466
        %v1468 = vpop.f32.mrb[0].mxu0
        %v1469 = vpop.f32.mrb[0].mxu0
        %v1470 = vadd.f32 %v1169, %v1469
        %v1471 = vpop.f32.mrb[0].mxu0
        %1472 = vmatprep.mubr.bf16.mxu0 0
        %1473 = vmatmul.mubr.bf16.gmra.mrb[0].mxu0 %v1378
        %v1474 = vpop.f32.mrb[0].mxu0
        %v1475 = vadd.f32 %v1174, %v1474
        %v1476 = vpop.f32.mrb[0].mxu0
        %v1477 = vpop.f32.mrb[0].mxu0
        %v1478 = vadd.f32 %v1177, %v1477
        %v1479 = vpop.f32.mrb[0].mxu0
        %1480 = vmatprep.mubr.bf16.mxu0 0
        %1481 = vmatmul.mubr.bf16.gmra.mrb[0].mxu0 %v1381
        %v1482 = vpop.f32.mrb[0].mxu0
        %v1483 = vadd.f32 %v1182, %v1482
        %v1484 = vpop.f32.mrb[0].mxu0
        %v1485 = vpop.f32.mrb[0].mxu0
        %v1486 = vadd.f32 %v1185, %v1485
        %v1487 = vpop.f32.mrb[0].mxu0
        %1488 = vmatprep.mubr.bf16.mxu0 0
        %1489 = vmatmul.mubr.bf16.gmra.mrb[0].mxu0 %v1384
        %v1490 = vpop.f32.mrb[0].mxu0
        %v1491 = vadd.f32 %v1190, %v1490
        %v1492 = vpop.f32.mrb[0].mxu0
        %v1493 = vpop.f32.mrb[0].mxu0
        %v1494 = vadd.f32 %v1193, %v1493
        %v1495 = vpop.f32.mrb[0].mxu0
        %1496 = vmatprep.mubr.bf16.mxu0 0
        %1497 = vmatmul.mubr.bf16.gmra.mrb[0].mxu0 %v1387
        %v1498 = vpop.f32.mrb[0].mxu0
        %v1499 = vadd.f32 %v1198, %v1498
        %v1500 = vpop.f32.mrb[0].mxu0
        %v1501 = vpop.f32.mrb[0].mxu0
        %v1502 = vadd.f32 %v1201, %v1501
        %v1503 = vpop.f32.mrb[0].mxu0
        %1504 = vmatprep.mubr.bf16.mxu0 0
        %1505 = vmatmul.mubr.bf16.gmra.mrb[0].mxu0 %v1390
        %v1506 = vpop.f32.mrb[0].mxu0
        %v1507 = vadd.f32 %v1206, %v1506
        %v1508 = vpop.f32.mrb[0].mxu0
        %v1509 = vpop.f32.mrb[0].mxu0
        %v1510 = vadd.f32 %v1209, %v1509
        %v1511 = vpop.f32.mrb[0].mxu0
        %1512 = vmatprep.mubr.bf16.mxu0 0
        %1513 = vmatmul.mubr.bf16.gmra.mrb[0].mxu0 %v1393
        %v1514 = vpop.f32.mrb[0].mxu0
        %v1515 = vadd.f32 %v1214, %v1514
        %v1516 = vpop.f32.mrb[0].mxu0
        %v1517 = vpop.f32.mrb[0].mxu0
        %v1518 = vadd.f32 %v1217, %v1517
        %v1519 = vpop.f32.mrb[0].mxu0
        %1520 = vmatprep.mubr.bf16.mxu0 0
        %1521 = vmatmul.mubr.bf16.gmra.mrb[0].mxu0 %v1396
        %v1522 = vpop.f32.mrb[0].mxu0
        %v1523 = vadd.f32 %v1222, %v1522
        %v1524 = vpop.f32.mrb[0].mxu0
        %v1525 = vpop.f32.mrb[0].mxu0
        %v1526 = vadd.f32 %v1225, %v1525
        %v1527 = vpop.f32.mrb[0].mxu0
        %1528 = vmatprep.mubr.bf16.mxu0 0
        %1529 = vmatmul.mubr.bf16.gmra.mrb[0].mxu0 %v1399
        %v1530 = vpop.f32.mrb[0].mxu0
        %v1531 = vadd.f32 %v1230, %v1530
        %v1532 = vpop.f32.mrb[0].mxu0
        %v1533 = vpop.f32.mrb[0].mxu0
        %v1534 = vadd.f32 %v1233, %v1533
        %v1535 = vpop.f32.mrb[0].mxu0
        %1536 = vmatprep.mubr.bf16.mxu0 0
        %1537 = vmatmul.mubr.bf16.gmra.mrb[0].mxu0 %v1402
        %v1538 = vpop.f32.mrb[0].mxu0
        %v1539 = vadd.f32 %v1238, %v1538
        %v1540 = vpop.f32.mrb[0].mxu0
        %v1541 = vpop.f32.mrb[0].mxu0
        %v1542 = vadd.f32 %v1241, %v1541
        %v1543 = vpop.f32.mrb[0].mxu0
        %1544 = vmatprep.mubr.bf16.mxu0 0
        %1545 = vmatmul.mubr.bf16.gmra.mrb[0].mxu0 %v1405
        %v1546 = vpop.f32.mrb[0].mxu0
        %v1547 = vadd.f32 %v1246, %v1546
        %v1548 = vpop.f32.mrb[0].mxu0
        %v1549 = vpop.f32.mrb[0].mxu0
        %v1550 = vadd.f32 %v1249, %v1549
        %v1551 = vpop.f32.mrb[0].mxu0
        %1552 = vmatprep.mubr.bf16.mxu0 0
        %1553 = vmatmul.mubr.bf16.gmra.mrb[0].mxu0 %v1408
        %v1554 = vpop.f32.mrb[0].mxu0
        %v1555 = vadd.f32 %v1254, %v1554
        %v1556 = vpop.f32.mrb[0].mxu0
        %v1557 = vpop.f32.mrb[0].mxu0
        %v1558 = vadd.f32 %v1257, %v1557
        %v1559 = vpop.f32.mrb[0].mxu0
        %1560 = vmatprep.mubr.bf16.mxu0 0
        %1561 = vmatmul.mubr.bf16.gmra.mrb[0].mxu0 %v1411
        %v1562 = vpop.f32.mrb[0].mxu0
        %v1563 = vadd.f32 %v1262, %v1562
        %v1564 = vpop.f32.mrb[0].mxu0
        %v1565 = vpop.f32.mrb[0].mxu0
        %v1566 = vadd.f32 %v1265, %v1565
        %v1567 = vpop.f32.mrb[0].mxu0
        %1568 = vmatprep.mubr.bf16.mxu0 0
        %1569 = vmatmul.mubr.bf16.gmra.mrb[0].mxu0 %v1414
        %v1570 = vpop.f32.mrb[0].mxu0
        %v1571 = vadd.f32 %v1270, %v1570
        %v1572 = vpop.f32.mrb[0].mxu0
        %v1573 = vpop.f32.mrb[0].mxu0
        %v1574 = vadd.f32 %v1273, %v1573
        %v1575 = vpop.f32.mrb[0].mxu0
        %1576 = vdwg.mxu0
        %v1577 = vld [vmem:[#allocation2] sm:$0xe]
        %v1578 = vld [vmem:[#allocation2 + $0xc] sm:$0xe]
        %v1579 = vld [vmem:[#allocation2 + $0x18] sm:$0xe]
        %v1580 = vld [vmem:[#allocation2 + $0x24] sm:$0xe]
        %v1581 = vld [vmem:[#allocation2 + $0x30] sm:$0xe]
        %v1582 = vld [vmem:[#allocation2 + $0x3c] sm:$0xe]
        %v1583 = vld [vmem:[#allocation2 + $0x48] sm:$0xe]
        %v1584 = vld [vmem:[#allocation2 + $0x54] sm:$0xe]
        %v1585 = vld [vmem:[#allocation2 + $0x60] sm:$0xe]
        %v1586 = vld [vmem:[#allocation2 + $0x6c] sm:$0xe]
        %v1587 = vld [vmem:[#allocation2 + $0x78] sm:$0xe]
        %v1588 = vld [vmem:[#allocation2 + $0x84] sm:$0xe]
        %v1589 = vld [vmem:[#allocation2 + $0x90] sm:$0xe]
        %v1590 = vld [vmem:[#allocation2 + $0x9c] sm:$0xe]
        %v1591 = vld [vmem:[#allocation2 + $0xa8] sm:$0xe]
        %v1592 = vld [vmem:[#allocation2 + $0xb4] sm:$0xe]
        %vm1625 = vcmask 1042432
        %vm1626 = vcmask 1046532
        %vm1627 = vmor %vm1625, %vm1626
        %v1628 = vrot.slane %v1577, 5
        %v1629 = vrot.slane %v1628, 4
        %v1630 = vrot.slane %v563, 5
        %v1631 = vsel %vm1627, %v1629, %v1630
        %v1632 = vrot.slane %v1630, 4
        %v1633 = vrot.slane %v598, 5
        %v1634 = vsel %vm1627, %v1632, %v1633
        %v1635 = vrot.slane %v1578, 5
        %v1636 = vrot.slane %v1635, 4
        %v1637 = vrot.slane %v565, 5
        %v1638 = vsel %vm1627, %v1636, %v1637
        %v1639 = vrot.slane %v1637, 4
        %v1640 = vrot.slane %v599, 5
        %v1641 = vsel %vm1627, %v1639, %v1640
        %v1642 = vrot.slane %v1579, 5
        %v1643 = vrot.slane %v1642, 4
        %v1644 = vrot.slane %v567, 5
        %v1645 = vsel %vm1627, %v1643, %v1644
        %v1646 = vrot.slane %v1644, 4
        %v1647 = vrot.slane %v600, 5
        %v1648 = vsel %vm1627, %v1646, %v1647
        %v1649 = vrot.slane %v1580, 5
        %v1650 = vrot.slane %v1649, 4
        %v1651 = vrot.slane %v569, 5
        %v1652 = vsel %vm1627, %v1650, %v1651
        %v1653 = vrot.slane %v1651, 4
        %v1654 = vrot.slane %v601, 5
        %v1655 = vsel %vm1627, %v1653, %v1654
        %v1656 = vrot.slane %v1581, 5
        %v1657 = vrot.slane %v1656, 4
        %v1658 = vrot.slane %v571, 5
        %v1659 = vsel %vm1627, %v1657, %v1658
        %v1660 = vrot.slane %v1658, 4
        %v1661 = vrot.slane %v602, 5
        %v1662 = vsel %vm1627, %v1660, %v1661
        %v1663 = vrot.slane %v1582, 5
        %v1664 = vrot.slane %v1663, 4
        %v1665 = vrot.slane %v573, 5
        %v1666 = vsel %vm1627, %v1664, %v1665
        %v1667 = vrot.slane %v1665, 4
        %v1668 = vrot.slane %v603, 5
        %v1669 = vsel %vm1627, %v1667, %v1668
        %v1670 = vrot.slane %v1583, 5
        %v1671 = vrot.slane %v1670, 4
        %v1672 = vrot.slane %v575, 5
        %v1673 = vsel %vm1627, %v1671, %v1672
        %v1674 = vrot.slane %v1672, 4
        %v1675 = vrot.slane %v604, 5
        %v1676 = vsel %vm1627, %v1674, %v1675
        %v1677 = vrot.slane %v1584, 5
        %v1678 = vrot.slane %v1677, 4
        %v1679 = vrot.slane %v577, 5
        %v1680 = vsel %vm1627, %v1678, %v1679
        %v1681 = vrot.slane %v1679, 4
        %v1682 = vrot.slane %v605, 5
        %v1683 = vsel %vm1627, %v1681, %v1682
        %v1684 = vrot.slane %v1585, 5
        %v1685 = vrot.slane %v1684, 4
        %v1686 = vrot.slane %v579, 5
        %v1687 = vsel %vm1627, %v1685, %v1686
        %v1688 = vrot.slane %v1686, 4
        %v1689 = vrot.slane %v606, 5
        %v1690 = vsel %vm1627, %v1688, %v1689
        %v1691 = vrot.slane %v1586, 5
        %v1692 = vrot.slane %v1691, 4
        %v1693 = vrot.slane %v581, 5
        %v1694 = vsel %vm1627, %v1692, %v1693
        %v1695 = vrot.slane %v1693, 4
        %v1696 = vrot.slane %v607, 5
        %v1697 = vsel %vm1627, %v1695, %v1696
        %v1698 = vrot.slane %v1587, 5
        %v1699 = vrot.slane %v1698, 4
        %v1700 = vrot.slane %v583, 5
        %v1701 = vsel %vm1627, %v1699, %v1700
        %v1702 = vrot.slane %v1700, 4
        %v1703 = vrot.slane %v608, 5
        %v1704 = vsel %vm1627, %v1702, %v1703
        %v1705 = vrot.slane %v1588, 5
        %v1706 = vrot.slane %v1705, 4
        %v1707 = vrot.slane %v585, 5
        %v1708 = vsel %vm1627, %v1706, %v1707
        %v1709 = vrot.slane %v1707, 4
        %v1710 = vrot.slane %v609, 5
        %v1711 = vsel %vm1627, %v1709, %v1710
        %v1712 = vrot.slane %v1589, 5
        %v1713 = vrot.slane %v1712, 4
        %v1714 = vrot.slane %v587, 5
        %v1715 = vsel %vm1627, %v1713, %v1714
        %v1716 = vrot.slane %v1714, 4
        %v1717 = vrot.slane %v610, 5
        %v1718 = vsel %vm1627, %v1716, %v1717
        %v1719 = vrot.slane %v1590, 5
        %v1720 = vrot.slane %v1719, 4
        %v1721 = vrot.slane %v589, 5
        %v1722 = vsel %vm1627, %v1720, %v1721
        %v1723 = vrot.slane %v1721, 4
        %v1724 = vrot.slane %v611, 5
        %v1725 = vsel %vm1627, %v1723, %v1724
        %v1726 = vrot.slane %v1591, 5
        %v1727 = vrot.slane %v1726, 4
        %v1728 = vrot.slane %v591, 5
        %v1729 = vsel %vm1627, %v1727, %v1728
        %v1730 = vrot.slane %v1728, 4
        %v1731 = vrot.slane %v612, 5
        %v1732 = vsel %vm1627, %v1730, %v1731
        %v1733 = vrot.slane %v1592, 5
        %v1734 = vrot.slane %v1733, 4
        %v1735 = vrot.slane %v593, 5
        %v1736 = vsel %vm1627, %v1734, %v1735
        %v1737 = vrot.slane %v1735, 4
        %v1738 = vrot.slane %v613, 5
        %v1739 = vsel %vm1627, %v1737, %v1738
        %s1740 = scalar_lea.vmem [#allocation9], 32
        %v1741 = vld [vmem:[%s1740] sm:$0xf]
        %v1742 = vld [vmem:[%s1740 + $0x4] sm:$0xf]
        %v1743 = vld [vmem:[%s1740 + $0x8] sm:$0xf]
        %v1744 = vld [vmem:[%s1740 + $0xc] sm:$0xf]
        %v1745 = vunpack.c.l.b16 %v1631
        %v1746 = vunpack.c.l.b16 %v1634
        %v1747 = vunpack.c.l.b16 %v1638
        %v1748 = vunpack.c.l.b16 %v1641
        %v1749 = vunpack.c.l.b16 %v1645
        %v1750 = vunpack.c.l.b16 %v1648
        %v1751 = vunpack.c.l.b16 %v1652
        %v1752 = vunpack.c.l.b16 %v1655
        %v1753 = vunpack.c.l.b16 %v1659
        %v1754 = vunpack.c.l.b16 %v1662
        %v1755 = vunpack.c.l.b16 %v1666
        %v1756 = vunpack.c.l.b16 %v1669
        %v1757 = vunpack.c.l.b16 %v1673
        %v1758 = vunpack.c.l.b16 %v1676
        %v1759 = vunpack.c.l.b16 %v1680
        %v1760 = vunpack.c.l.b16 %v1683
        %v1761 = vunpack.c.l.b16 %v1687
        %v1762 = vunpack.c.l.b16 %v1690
        %v1763 = vunpack.c.l.b16 %v1694
        %v1764 = vunpack.c.l.b16 %v1697
        %v1765 = vunpack.c.l.b16 %v1701
        %v1766 = vunpack.c.l.b16 %v1704
        %v1767 = vunpack.c.l.b16 %v1708
        %v1768 = vunpack.c.l.b16 %v1711
        %v1769 = vunpack.c.l.b16 %v1715
        %v1770 = vunpack.c.l.b16 %v1718
        %v1771 = vunpack.c.l.b16 %v1722
        %v1772 = vunpack.c.l.b16 %v1725
        %v1773 = vunpack.c.l.b16 %v1729
        %v1774 = vunpack.c.l.b16 %v1732
        %v1775 = vunpack.c.l.b16 %v1736
        %v1776 = vunpack.c.l.b16 %v1739
        %v1777 = vpack.c.b16 %v1746, %v1745
        %v1778 = vpack.c.b16 %v1748, %v1747
        %v1779 = vpack.c.b16 %v1750, %v1749
        %v1780 = vpack.c.b16 %v1752, %v1751
        %v1781 = vpack.c.b16 %v1754, %v1753
        %v1782 = vpack.c.b16 %v1756, %v1755
        %v1783 = vpack.c.b16 %v1758, %v1757
        %v1784 = vpack.c.b16 %v1760, %v1759
        %v1785 = vpack.c.b16 %v1762, %v1761
        %v1786 = vpack.c.b16 %v1764, %v1763
        %v1787 = vpack.c.b16 %v1766, %v1765
        %v1788 = vpack.c.b16 %v1768, %v1767
        %v1789 = vpack.c.b16 %v1770, %v1769
        %v1790 = vpack.c.b16 %v1772, %v1771
        %v1791 = vpack.c.b16 %v1774, %v1773
        %v1792 = vpack.c.b16 %v1776, %v1775
        %v1797 = vunpack.c.l.b16 %v1741
        %v1798 = vunpack.c.l.b16 %v1742
        %v1799 = vunpack.c.l.b16 %v1743
        %v1800 = vunpack.c.l.b16 %v1744
        %v1801 = vpack.c.b16 %v1798, %v1797
        %v1802 = vpack.c.b16 %v1800, %v1799
        %v1806 = vsel %vm1066, %v1777, 0
        %v1809 = vsel %vm1066, %v1778, 0
        %v1812 = vsel %vm1066, %v1779, 0
        %v1815 = vsel %vm1066, %v1780, 0
        %v1818 = vsel %vm1066, %v1781, 0
        %v1821 = vsel %vm1066, %v1782, 0
        %v1824 = vsel %vm1066, %v1783, 0
        %v1827 = vsel %vm1066, %v1784, 0
        %v1830 = vsel %vm1066, %v1785, 0
        %v1833 = vsel %vm1066, %v1786, 0
        %v1836 = vsel %vm1066, %v1787, 0
        %v1839 = vsel %vm1066, %v1788, 0
        %v1842 = vsel %vm1066, %v1789, 0
        %v1845 = vsel %vm1066, %v1790, 0
        %v1848 = vsel %vm1066, %v1791, 0
        %v1851 = vsel %vm1066, %v1792, 0
        %1853 = vmatprep.subr.bf16.mxu0 0
        %1854 = vmatpush1.bf16.msra.mxu0 %v1801
        %1855 = vmatprep.subr.bf16.mxu0 0
        %1856 = vmatpush1.bf16.msra.mxu0 %v1802
        %1857 = vmatprep.subr.bf16.mxu0 0
        %1858 = vmatpush1.bf16.msra.mxu0 0
        %1859 = vmatprep.subr.bf16.mxu0 0
        %1860 = vmatpush1.bf16.msra.mxu0 0
        %1861 = vmatprep.subr.bf16.mxu0 0
        %1862 = vmatpush1.bf16.msra.mxu0 0
        %1863 = vmatprep.subr.bf16.mxu0 0
        %1864 = vmatpush1.bf16.msra.mxu0 0
        %1865 = vmatprep.subr.bf16.mxu0 0
        %1866 = vmatpush1.bf16.msra.mxu0 0
        %1867 = vmatprep.subr.bf16.mxu0 0
        %1868 = vmatpush1.bf16.msra.mxu0 0
        %1869 = vmatprep.subr.bf16.mxu0 0
        %1870 = vmatpush1.bf16.msra.mxu0 0
        %1871 = vmatprep.subr.bf16.mxu0 0
        %1872 = vmatpush1.bf16.msra.mxu0 0
        %1873 = vmatprep.subr.bf16.mxu0 0
        %1874 = vmatpush1.bf16.msra.mxu0 0
        %1875 = vmatprep.subr.bf16.mxu0 0
        %1876 = vmatpush1.bf16.msra.mxu0 0
        %1877 = vmatprep.subr.bf16.mxu0 0
        %1878 = vmatpush1.bf16.msra.mxu0 0
        %1879 = vmatprep.subr.bf16.mxu0 0
        %1880 = vmatpush1.bf16.msra.mxu0 0
        %1881 = vmatprep.subr.bf16.mxu0 0
        %1882 = vmatpush1.bf16.msra.mxu0 0
        %1883 = vmatprep.subr.bf16.mxu0 0
        %1884 = vmatpush1.bf16.msra.mxu0 0
        %1885 = vmatprep.mubr.bf16.mxu0 0
        %1886 = vmatmul.mubr.bf16.gmra.mrb[0].mxu0 %v1806
        %v1887 = vpop.f32.mrb[0].mxu0
        %v1888 = vadd.f32 0.0, %v1887
        %v1889 = vpop.f32.mrb[0].mxu0
        %v1890 = vpop.f32.mrb[0].mxu0
        %v1891 = vadd.f32 0.0, %v1890
        %v1892 = vpop.f32.mrb[0].mxu0
        %1893 = vmatprep.mubr.bf16.mxu0 0
        %1894 = vmatmul.mubr.bf16.gmra.mrb[0].mxu0 %v1809
        %v1895 = vpop.f32.mrb[0].mxu0
        %v1896 = vadd.f32 0.0, %v1895
        %v1897 = vpop.f32.mrb[0].mxu0
        %v1898 = vpop.f32.mrb[0].mxu0
        %v1899 = vadd.f32 0.0, %v1898
        %v1900 = vpop.f32.mrb[0].mxu0
        %1901 = vmatprep.mubr.bf16.mxu0 0
        %1902 = vmatmul.mubr.bf16.gmra.mrb[0].mxu0 %v1812
        %v1903 = vpop.f32.mrb[0].mxu0
        %v1904 = vadd.f32 0.0, %v1903
        %v1905 = vpop.f32.mrb[0].mxu0
        %v1906 = vpop.f32.mrb[0].mxu0
        %v1907 = vadd.f32 0.0, %v1906
        %v1908 = vpop.f32.mrb[0].mxu0
        %1909 = vmatprep.mubr.bf16.mxu0 0
        %1910 = vmatmul.mubr.bf16.gmra.mrb[0].mxu0 %v1815
        %v1911 = vpop.f32.mrb[0].mxu0
        %v1912 = vadd.f32 0.0, %v1911
        %v1913 = vpop.f32.mrb[0].mxu0
        %v1914 = vpop.f32.mrb[0].mxu0
        %v1915 = vadd.f32 0.0, %v1914
        %v1916 = vpop.f32.mrb[0].mxu0
        %1917 = vmatprep.mubr.bf16.mxu0 0
        %1918 = vmatmul.mubr.bf16.gmra.mrb[0].mxu0 %v1818
        %v1919 = vpop.f32.mrb[0].mxu0
        %v1920 = vadd.f32 0.0, %v1919
        %v1921 = vpop.f32.mrb[0].mxu0
        %v1922 = vpop.f32.mrb[0].mxu0
        %v1923 = vadd.f32 0.0, %v1922
        %v1924 = vpop.f32.mrb[0].mxu0
        %1925 = vmatprep.mubr.bf16.mxu0 0
        %1926 = vmatmul.mubr.bf16.gmra.mrb[0].mxu0 %v1821
        %v1927 = vpop.f32.mrb[0].mxu0
        %v1928 = vadd.f32 0.0, %v1927
        %v1929 = vpop.f32.mrb[0].mxu0
        %v1930 = vpop.f32.mrb[0].mxu0
        %v1931 = vadd.f32 0.0, %v1930
        %v1932 = vpop.f32.mrb[0].mxu0
        %1933 = vmatprep.mubr.bf16.mxu0 0
        %1934 = vmatmul.mubr.bf16.gmra.mrb[0].mxu0 %v1824
        %v1935 = vpop.f32.mrb[0].mxu0
        %v1936 = vadd.f32 0.0, %v1935
        %v1937 = vpop.f32.mrb[0].mxu0
        %v1938 = vpop.f32.mrb[0].mxu0
        %v1939 = vadd.f32 0.0, %v1938
        %v1940 = vpop.f32.mrb[0].mxu0
        %1941 = vmatprep.mubr.bf16.mxu0 0
        %1942 = vmatmul.mubr.bf16.gmra.mrb[0].mxu0 %v1827
        %v1943 = vpop.f32.mrb[0].mxu0
        %v1944 = vadd.f32 0.0, %v1943
        %v1945 = vpop.f32.mrb[0].mxu0
        %v1946 = vpop.f32.mrb[0].mxu0
        %v1947 = vadd.f32 0.0, %v1946
        %v1948 = vpop.f32.mrb[0].mxu0
        %1949 = vmatprep.mubr.bf16.mxu0 0
        %1950 = vmatmul.mubr.bf16.gmra.mrb[0].mxu0 %v1830
        %v1951 = vpop.f32.mrb[0].mxu0
        %v1952 = vadd.f32 0.0, %v1951
        %v1953 = vpop.f32.mrb[0].mxu0
        %v1954 = vpop.f32.mrb[0].mxu0
        %v1955 = vadd.f32 0.0, %v1954
        %v1956 = vpop.f32.mrb[0].mxu0
        %1957 = vmatprep.mubr.bf16.mxu0 0
        %1958 = vmatmul.mubr.bf16.gmra.mrb[0].mxu0 %v1833
        %v1959 = vpop.f32.mrb[0].mxu0
        %v1960 = vadd.f32 0.0, %v1959
        %v1961 = vpop.f32.mrb[0].mxu0
        %v1962 = vpop.f32.mrb[0].mxu0
        %v1963 = vadd.f32 0.0, %v1962
        %v1964 = vpop.f32.mrb[0].mxu0
        %1965 = vmatprep.mubr.bf16.mxu0 0
        %1966 = vmatmul.mubr.bf16.gmra.mrb[0].mxu0 %v1836
        %v1967 = vpop.f32.mrb[0].mxu0
        %v1968 = vadd.f32 0.0, %v1967
        %v1969 = vpop.f32.mrb[0].mxu0
        %v1970 = vpop.f32.mrb[0].mxu0
        %v1971 = vadd.f32 0.0, %v1970
        %v1972 = vpop.f32.mrb[0].mxu0
        %1973 = vmatprep.mubr.bf16.mxu0 0
        %1974 = vmatmul.mubr.bf16.gmra.mrb[0].mxu0 %v1839
        %v1975 = vpop.f32.mrb[0].mxu0
        %v1976 = vadd.f32 0.0, %v1975
        %v1977 = vpop.f32.mrb[0].mxu0
        %v1978 = vpop.f32.mrb[0].mxu0
        %v1979 = vadd.f32 0.0, %v1978
        %v1980 = vpop.f32.mrb[0].mxu0
        %1981 = vmatprep.mubr.bf16.mxu0 0
        %1982 = vmatmul.mubr.bf16.gmra.mrb[0].mxu0 %v1842
        %v1983 = vpop.f32.mrb[0].mxu0
        %v1984 = vadd.f32 0.0, %v1983
        %v1985 = vpop.f32.mrb[0].mxu0
        %v1986 = vpop.f32.mrb[0].mxu0
        %v1987 = vadd.f32 0.0, %v1986
        %v1988 = vpop.f32.mrb[0].mxu0
        %1989 = vmatprep.mubr.bf16.mxu0 0
        %1990 = vmatmul.mubr.bf16.gmra.mrb[0].mxu0 %v1845
        %v1991 = vpop.f32.mrb[0].mxu0
        %v1992 = vadd.f32 0.0, %v1991
        %v1993 = vpop.f32.mrb[0].mxu0
        %v1994 = vpop.f32.mrb[0].mxu0
        %v1995 = vadd.f32 0.0, %v1994
        %v1996 = vpop.f32.mrb[0].mxu0
        %1997 = vmatprep.mubr.bf16.mxu0 0
        %1998 = vmatmul.mubr.bf16.gmra.mrb[0].mxu0 %v1848
        %v1999 = vpop.f32.mrb[0].mxu0
        %v2000 = vadd.f32 0.0, %v1999
        %v2001 = vpop.f32.mrb[0].mxu0
        %v2002 = vpop.f32.mrb[0].mxu0
        %v2003 = vadd.f32 0.0, %v2002
        %v2004 = vpop.f32.mrb[0].mxu0
        %2005 = vmatprep.mubr.bf16.mxu0 0
        %2006 = vmatmul.mubr.bf16.gmra.mrb[0].mxu0 %v1851
        %v2007 = vpop.f32.mrb[0].mxu0
        %v2008 = vadd.f32 0.0, %v2007
        %v2009 = vpop.f32.mrb[0].mxu0
        %v2010 = vpop.f32.mrb[0].mxu0
        %v2011 = vadd.f32 0.0, %v2010
        %v2012 = vpop.f32.mrb[0].mxu0
        %2013 = vdwg.mxu0
        %v2014 = vadd.f32 %v1451, %v1888
        %v2015 = vadd.f32 %v1454, %v1891
        %v2016 = vadd.f32 %v1459, %v1896
        %v2017 = vadd.f32 %v1462, %v1899
        %v2018 = vadd.f32 %v1467, %v1904
        %v2019 = vadd.f32 %v1470, %v1907
        %v2020 = vadd.f32 %v1475, %v1912
        %v2021 = vadd.f32 %v1478, %v1915
        %v2022 = vadd.f32 %v1483, %v1920
        %v2023 = vadd.f32 %v1486, %v1923
        %v2024 = vadd.f32 %v1491, %v1928
        %v2025 = vadd.f32 %v1494, %v1931
        %v2026 = vadd.f32 %v1499, %v1936
        %v2027 = vadd.f32 %v1502, %v1939
        %v2028 = vadd.f32 %v1507, %v1944
        %v2029 = vadd.f32 %v1510, %v1947
        %v2030 = vadd.f32 %v1515, %v1952
        %v2031 = vadd.f32 %v1518, %v1955
        %v2032 = vadd.f32 %v1523, %v1960
        %v2033 = vadd.f32 %v1526, %v1963
        %v2034 = vadd.f32 %v1531, %v1968
        %v2035 = vadd.f32 %v1534, %v1971
        %v2036 = vadd.f32 %v1539, %v1976
        %v2037 = vadd.f32 %v1542, %v1979
        %v2038 = vadd.f32 %v1547, %v1984
        %v2039 = vadd.f32 %v1550, %v1987
        %v2040 = vadd.f32 %v1555, %v1992
        %v2041 = vadd.f32 %v1558, %v1995
        %v2042 = vadd.f32 %v1563, %v2000
        %v2043 = vadd.f32 %v1566, %v2003
        %v2044 = vadd.f32 %v1571, %v2008
        %v2045 = vadd.f32 %v1574, %v2011
        %s2046 = scalar_lea.vmem [#allocation2], 12
        %v2047 = vld [vmem:[%s2046] sm:$0xf]
        %v2048 = vld [vmem:[%s2046 + $0x4] sm:$0xf]
        %v2049 = vld [vmem:[%s2046 + $0xc] sm:$0xf]
        %v2050 = vld [vmem:[%s2046 + $0x10] sm:$0xf]
        %v2051 = vld [vmem:[%s2046 + $0x18] sm:$0xf]
        %v2052 = vld [vmem:[%s2046 + $0x1c] sm:$0xf]
        %v2053 = vld [vmem:[%s2046 + $0x24] sm:$0xf]
        %v2054 = vld [vmem:[%s2046 + $0x28] sm:$0xf]
        %v2055 = vld [vmem:[%s2046 + $0x30] sm:$0xf]
        %v2056 = vld [vmem:[%s2046 + $0x34] sm:$0xf]
        %v2057 = vld [vmem:[%s2046 + $0x3c] sm:$0xf]
        %v2058 = vld [vmem:[%s2046 + $0x40] sm:$0xf]
        %v2059 = vld [vmem:[%s2046 + $0x48] sm:$0xf]
        %v2060 = vld [vmem:[%s2046 + $0x4c] sm:$0xf]
        %v2061 = vld [vmem:[%s2046 + $0x54] sm:$0xf]
        %v2062 = vld [vmem:[%s2046 + $0x58] sm:$0xf]
        %v2063 = vld [vmem:[%s2046 + $0x60] sm:$0xf]
        %v2064 = vld [vmem:[%s2046 + $0x64] sm:$0xf]
        %v2065 = vld [vmem:[%s2046 + $0x6c] sm:$0xf]
        %v2066 = vld [vmem:[%s2046 + $0x70] sm:$0xf]
        %v2067 = vld [vmem:[%s2046 + $0x78] sm:$0xf]
        %v2068 = vld [vmem:[%s2046 + $0x7c] sm:$0xf]
        %v2069 = vld [vmem:[%s2046 + $0x84] sm:$0xf]
        %v2070 = vld [vmem:[%s2046 + $0x88] sm:$0xf]
        %v2071 = vld [vmem:[%s2046 + $0x90] sm:$0xf]
        %v2072 = vld [vmem:[%s2046 + $0x94] sm:$0xf]
        %v2073 = vld [vmem:[%s2046 + $0x9c] sm:$0xf]
        %v2074 = vld [vmem:[%s2046 + $0xa0] sm:$0xf]
        %v2075 = vld [vmem:[%s2046 + $0xa8] sm:$0xf]
        %v2076 = vld [vmem:[%s2046 + $0xac] sm:$0xf]
        %v2077 = vld [vmem:[%s2046 + $0xb4] sm:$0xf]
        %v2078 = vld [vmem:[%s2046 + $0xb8] sm:$0xf]
        %s2079 = scalar_lea.vmem [#allocation9], 48
        %v2080 = vld [vmem:[%s2079] sm:$0xf]
        %v2081 = vld [vmem:[%s2079 + $0x4] sm:$0xf]
        %v2082 = vld [vmem:[%s2079 + $0x8] sm:$0xf]
        %v2083 = vld [vmem:[%s2079 + $0xc] sm:$0xf]
        %v2116 = vunpack.c.l.b16 %v2047
        %v2117 = vunpack.c.l.b16 %v2048
        %v2118 = vunpack.c.l.b16 %v2049
        %v2119 = vunpack.c.l.b16 %v2050
        %v2120 = vunpack.c.l.b16 %v2051
        %v2121 = vunpack.c.l.b16 %v2052
        %v2122 = vunpack.c.l.b16 %v2053
        %v2123 = vunpack.c.l.b16 %v2054
        %v2124 = vunpack.c.l.b16 %v2055
        %v2125 = vunpack.c.l.b16 %v2056
        %v2126 = vunpack.c.l.b16 %v2057
        %v2127 = vunpack.c.l.b16 %v2058
        %v2128 = vunpack.c.l.b16 %v2059
        %v2129 = vunpack.c.l.b16 %v2060
        %v2130 = vunpack.c.l.b16 %v2061
        %v2131 = vunpack.c.l.b16 %v2062
        %v2132 = vunpack.c.l.b16 %v2063
        %v2133 = vunpack.c.l.b16 %v2064
        %v2134 = vunpack.c.l.b16 %v2065
        %v2135 = vunpack.c.l.b16 %v2066
        %v2136 = vunpack.c.l.b16 %v2067
        %v2137 = vunpack.c.l.b16 %v2068
        %v2138 = vunpack.c.l.b16 %v2069
        %v2139 = vunpack.c.l.b16 %v2070
        %v2140 = vunpack.c.l.b16 %v2071
        %v2141 = vunpack.c.l.b16 %v2072
        %v2142 = vunpack.c.l.b16 %v2073
        %v2143 = vunpack.c.l.b16 %v2074
        %v2144 = vunpack.c.l.b16 %v2075
        %v2145 = vunpack.c.l.b16 %v2076
        %v2146 = vunpack.c.l.b16 %v2077
        %v2147 = vunpack.c.l.b16 %v2078
        %v2148 = vpack.c.b16 %v2117, %v2116
        %v2149 = vpack.c.b16 %v2119, %v2118
        %v2150 = vpack.c.b16 %v2121, %v2120
        %v2151 = vpack.c.b16 %v2123, %v2122
        %v2152 = vpack.c.b16 %v2125, %v2124
        %v2153 = vpack.c.b16 %v2127, %v2126
        %v2154 = vpack.c.b16 %v2129, %v2128
        %v2155 = vpack.c.b16 %v2131, %v2130
        %v2156 = vpack.c.b16 %v2133, %v2132
        %v2157 = vpack.c.b16 %v2135, %v2134
        %v2158 = vpack.c.b16 %v2137, %v2136
        %v2159 = vpack.c.b16 %v2139, %v2138
        %v2160 = vpack.c.b16 %v2141, %v2140
        %v2161 = vpack.c.b16 %v2143, %v2142
        %v2162 = vpack.c.b16 %v2145, %v2144
        %v2163 = vpack.c.b16 %v2147, %v2146
        %v2168 = vunpack.c.l.b16 %v2080
        %v2169 = vunpack.c.l.b16 %v2081
        %v2170 = vunpack.c.l.b16 %v2082
        %v2171 = vunpack.c.l.b16 %v2083
        %v2172 = vpack.c.b16 %v2169, %v2168
        %v2173 = vpack.c.b16 %v2171, %v2170
        %v2177 = vsel %vm1066, %v2148, 0
        %v2180 = vsel %vm1066, %v2149, 0
        %v2183 = vsel %vm1066, %v2150, 0
        %v2186 = vsel %vm1066, %v2151, 0
        %v2189 = vsel %vm1066, %v2152, 0
        %v2192 = vsel %vm1066, %v2153, 0
        %v2195 = vsel %vm1066, %v2154, 0
        %v2198 = vsel %vm1066, %v2155, 0
        %v2201 = vsel %vm1066, %v2156, 0
        %v2204 = vsel %vm1066, %v2157, 0
        %v2207 = vsel %vm1066, %v2158, 0
        %v2210 = vsel %vm1066, %v2159, 0
        %v2213 = vsel %vm1066, %v2160, 0
        %v2216 = vsel %vm1066, %v2161, 0
        %v2219 = vsel %vm1066, %v2162, 0
        %v2222 = vsel %vm1066, %v2163, 0
        %2224 = vmatprep.subr.bf16.mxu0 0
        %2225 = vmatpush1.bf16.msra.mxu0 %v2172
        %2226 = vmatprep.subr.bf16.mxu0 0
        %2227 = vmatpush1.bf16.msra.mxu0 %v2173
        %2228 = vmatprep.subr.bf16.mxu0 0
        %2229 = vmatpush1.bf16.msra.mxu0 0
        %2230 = vmatprep.subr.bf16.mxu0 0
        %2231 = vmatpush1.bf16.msra.mxu0 0
        %2232 = vmatprep.subr.bf16.mxu0 0
        %2233 = vmatpush1.bf16.msra.mxu0 0
        %2234 = vmatprep.subr.bf16.mxu0 0
        %2235 = vmatpush1.bf16.msra.mxu0 0
        %2236 = vmatprep.subr.bf16.mxu0 0
        %2237 = vmatpush1.bf16.msra.mxu0 0
        %2238 = vmatprep.subr.bf16.mxu0 0
        %2239 = vmatpush1.bf16.msra.mxu0 0
        %2240 = vmatprep.subr.bf16.mxu0 0
        %2241 = vmatpush1.bf16.msra.mxu0 0
        %2242 = vmatprep.subr.bf16.mxu0 0
        %2243 = vmatpush1.bf16.msra.mxu0 0
        %2244 = vmatprep.subr.bf16.mxu0 0
        %2245 = vmatpush1.bf16.msra.mxu0 0
        %2246 = vmatprep.subr.bf16.mxu0 0
        %2247 = vmatpush1.bf16.msra.mxu0 0
        %2248 = vmatprep.subr.bf16.mxu0 0
        %2249 = vmatpush1.bf16.msra.mxu0 0
        %2250 = vmatprep.subr.bf16.mxu0 0
        %2251 = vmatpush1.bf16.msra.mxu0 0
        %2252 = vmatprep.subr.bf16.mxu0 0
        %2253 = vmatpush1.bf16.msra.mxu0 0
        %2254 = vmatprep.subr.bf16.mxu0 0
        %2255 = vmatpush1.bf16.msra.mxu0 0
        %2256 = vmatprep.mubr.bf16.mxu0 0
        %2257 = vmatmul.mubr.bf16.gmra.mrb[0].mxu0 %v2177
        %v2258 = vpop.f32.mrb[0].mxu0
        %v2259 = vadd.f32 0.0, %v2258
        %v2260 = vpop.f32.mrb[0].mxu0
        %v2261 = vpop.f32.mrb[0].mxu0
        %v2262 = vadd.f32 0.0, %v2261
        %v2263 = vpop.f32.mrb[0].mxu0
        %2264 = vmatprep.mubr.bf16.mxu0 0
        %2265 = vmatmul.mubr.bf16.gmra.mrb[0].mxu0 %v2180
        %v2266 = vpop.f32.mrb[0].mxu0
        %v2267 = vadd.f32 0.0, %v2266
        %v2268 = vpop.f32.mrb[0].mxu0
        %v2269 = vpop.f32.mrb[0].mxu0
        %v2270 = vadd.f32 0.0, %v2269
        %v2271 = vpop.f32.mrb[0].mxu0
        %2272 = vmatprep.mubr.bf16.mxu0 0
        %2273 = vmatmul.mubr.bf16.gmra.mrb[0].mxu0 %v2183
        %v2274 = vpop.f32.mrb[0].mxu0
        %v2275 = vadd.f32 0.0, %v2274
        %v2276 = vpop.f32.mrb[0].mxu0
        %v2277 = vpop.f32.mrb[0].mxu0
        %v2278 = vadd.f32 0.0, %v2277
        %v2279 = vpop.f32.mrb[0].mxu0
        %2280 = vmatprep.mubr.bf16.mxu0 0
        %2281 = vmatmul.mubr.bf16.gmra.mrb[0].mxu0 %v2186
        %v2282 = vpop.f32.mrb[0].mxu0
        %v2283 = vadd.f32 0.0, %v2282
        %v2284 = vpop.f32.mrb[0].mxu0
        %v2285 = vpop.f32.mrb[0].mxu0
        %v2286 = vadd.f32 0.0, %v2285
        %v2287 = vpop.f32.mrb[0].mxu0
        %2288 = vmatprep.mubr.bf16.mxu0 0
        %2289 = vmatmul.mubr.bf16.gmra.mrb[0].mxu0 %v2189
        %v2290 = vpop.f32.mrb[0].mxu0
        %v2291 = vadd.f32 0.0, %v2290
        %v2292 = vpop.f32.mrb[0].mxu0
        %v2293 = vpop.f32.mrb[0].mxu0
        %v2294 = vadd.f32 0.0, %v2293
        %v2295 = vpop.f32.mrb[0].mxu0
        %2296 = vmatprep.mubr.bf16.mxu0 0
        %2297 = vmatmul.mubr.bf16.gmra.mrb[0].mxu0 %v2192
        %v2298 = vpop.f32.mrb[0].mxu0
        %v2299 = vadd.f32 0.0, %v2298
        %v2300 = vpop.f32.mrb[0].mxu0
        %v2301 = vpop.f32.mrb[0].mxu0
        %v2302 = vadd.f32 0.0, %v2301
        %v2303 = vpop.f32.mrb[0].mxu0
        %2304 = vmatprep.mubr.bf16.mxu0 0
        %2305 = vmatmul.mubr.bf16.gmra.mrb[0].mxu0 %v2195
        %v2306 = vpop.f32.mrb[0].mxu0
        %v2307 = vadd.f32 0.0, %v2306
        %v2308 = vpop.f32.mrb[0].mxu0
        %v2309 = vpop.f32.mrb[0].mxu0
        %v2310 = vadd.f32 0.0, %v2309
        %v2311 = vpop.f32.mrb[0].mxu0
        %2312 = vmatprep.mubr.bf16.mxu0 0
        %2313 = vmatmul.mubr.bf16.gmra.mrb[0].mxu0 %v2198
        %v2314 = vpop.f32.mrb[0].mxu0
        %v2315 = vadd.f32 0.0, %v2314
        %v2316 = vpop.f32.mrb[0].mxu0
        %v2317 = vpop.f32.mrb[0].mxu0
        %v2318 = vadd.f32 0.0, %v2317
        %v2319 = vpop.f32.mrb[0].mxu0
        %2320 = vmatprep.mubr.bf16.mxu0 0
        %2321 = vmatmul.mubr.bf16.gmra.mrb[0].mxu0 %v2201
        %v2322 = vpop.f32.mrb[0].mxu0
        %v2323 = vadd.f32 0.0, %v2322
        %v2324 = vpop.f32.mrb[0].mxu0
        %v2325 = vpop.f32.mrb[0].mxu0
        %v2326 = vadd.f32 0.0, %v2325
        %v2327 = vpop.f32.mrb[0].mxu0
        %2328 = vmatprep.mubr.bf16.mxu0 0
        %2329 = vmatmul.mubr.bf16.gmra.mrb[0].mxu0 %v2204
        %v2330 = vpop.f32.mrb[0].mxu0
        %v2331 = vadd.f32 0.0, %v2330
        %v2332 = vpop.f32.mrb[0].mxu0
        %v2333 = vpop.f32.mrb[0].mxu0
        %v2334 = vadd.f32 0.0, %v2333
        %v2335 = vpop.f32.mrb[0].mxu0
        %2336 = vmatprep.mubr.bf16.mxu0 0
        %2337 = vmatmul.mubr.bf16.gmra.mrb[0].mxu0 %v2207
        %v2338 = vpop.f32.mrb[0].mxu0
        %v2339 = vadd.f32 0.0, %v2338
        %v2340 = vpop.f32.mrb[0].mxu0
        %v2341 = vpop.f32.mrb[0].mxu0
        %v2342 = vadd.f32 0.0, %v2341
        %v2343 = vpop.f32.mrb[0].mxu0
        %2344 = vmatprep.mubr.bf16.mxu0 0
        %2345 = vmatmul.mubr.bf16.gmra.mrb[0].mxu0 %v2210
        %v2346 = vpop.f32.mrb[0].mxu0
        %v2347 = vadd.f32 0.0, %v2346
        %v2348 = vpop.f32.mrb[0].mxu0
        %v2349 = vpop.f32.mrb[0].mxu0
        %v2350 = vadd.f32 0.0, %v2349
        %v2351 = vpop.f32.mrb[0].mxu0
        %2352 = vmatprep.mubr.bf16.mxu0 0
        %2353 = vmatmul.mubr.bf16.gmra.mrb[0].mxu0 %v2213
        %v2354 = vpop.f32.mrb[0].mxu0
        %v2355 = vadd.f32 0.0, %v2354
        %v2356 = vpop.f32.mrb[0].mxu0
        %v2357 = vpop.f32.mrb[0].mxu0
        %v2358 = vadd.f32 0.0, %v2357
        %v2359 = vpop.f32.mrb[0].mxu0
        %2360 = vmatprep.mubr.bf16.mxu0 0
        %2361 = vmatmul.mubr.bf16.gmra.mrb[0].mxu0 %v2216
        %v2362 = vpop.f32.mrb[0].mxu0
        %v2363 = vadd.f32 0.0, %v2362
        %v2364 = vpop.f32.mrb[0].mxu0
        %v2365 = vpop.f32.mrb[0].mxu0
        %v2366 = vadd.f32 0.0, %v2365
        %v2367 = vpop.f32.mrb[0].mxu0
        %2368 = vmatprep.mubr.bf16.mxu0 0
        %2369 = vmatmul.mubr.bf16.gmra.mrb[0].mxu0 %v2219
        %v2370 = vpop.f32.mrb[0].mxu0
        %v2371 = vadd.f32 0.0, %v2370
        %v2372 = vpop.f32.mrb[0].mxu0
        %v2373 = vpop.f32.mrb[0].mxu0
        %v2374 = vadd.f32 0.0, %v2373
        %v2375 = vpop.f32.mrb[0].mxu0
        %2376 = vmatprep.mubr.bf16.mxu0 0
        %2377 = vmatmul.mubr.bf16.gmra.mrb[0].mxu0 %v2222
        %v2378 = vpop.f32.mrb[0].mxu0
        %v2379 = vadd.f32 0.0, %v2378
        %v2380 = vpop.f32.mrb[0].mxu0
        %v2381 = vpop.f32.mrb[0].mxu0
        %v2382 = vadd.f32 0.0, %v2381
        %v2383 = vpop.f32.mrb[0].mxu0
        %2384 = vdwg.mxu0
        %v2385 = vadd.f32 %v2014, %v2259
        %v2386 = vadd.f32 %v2015, %v2262
        %v2387 = vadd.f32 %v2016, %v2267
        %v2388 = vadd.f32 %v2017, %v2270
        %v2389 = vadd.f32 %v2018, %v2275
        %v2390 = vadd.f32 %v2019, %v2278
        %v2391 = vadd.f32 %v2020, %v2283
        %v2392 = vadd.f32 %v2021, %v2286
        %v2393 = vadd.f32 %v2022, %v2291
        %v2394 = vadd.f32 %v2023, %v2294
        %v2395 = vadd.f32 %v2024, %v2299
        %v2396 = vadd.f32 %v2025, %v2302
        %v2397 = vadd.f32 %v2026, %v2307
        %v2398 = vadd.f32 %v2027, %v2310
        %v2399 = vadd.f32 %v2028, %v2315
        %v2400 = vadd.f32 %v2029, %v2318
        %v2401 = vadd.f32 %v2030, %v2323
        %v2402 = vadd.f32 %v2031, %v2326
        %v2403 = vadd.f32 %v2032, %v2331
        %v2404 = vadd.f32 %v2033, %v2334
        %v2405 = vadd.f32 %v2034, %v2339
        %v2406 = vadd.f32 %v2035, %v2342
        %v2407 = vadd.f32 %v2036, %v2347
        %v2408 = vadd.f32 %v2037, %v2350
        %v2409 = vadd.f32 %v2038, %v2355
        %v2410 = vadd.f32 %v2039, %v2358
        %v2411 = vadd.f32 %v2040, %v2363
        %v2412 = vadd.f32 %v2041, %v2366
        %v2413 = vadd.f32 %v2042, %v2371
        %v2414 = vadd.f32 %v2043, %v2374
        %v2415 = vadd.f32 %v2044, %v2379
        %v2416 = vadd.f32 %v2045, %v2382
        %v2417 = vld [vmem:[%s2046] sm:$0xf]
        %v2418 = vld [vmem:[%s2046 + $0x4] sm:$0xf]
        %v2419 = vld [vmem:[%s2046 + $0x8] sm:$0x1]
        %v2420 = vld [vmem:[%s2046 + $0xc] sm:$0xf]
        %v2421 = vld [vmem:[%s2046 + $0x10] sm:$0xf]
        %v2422 = vld [vmem:[%s2046 + $0x14] sm:$0x1]
        %v2423 = vld [vmem:[%s2046 + $0x18] sm:$0xf]
        %v2424 = vld [vmem:[%s2046 + $0x1c] sm:$0xf]
        %v2425 = vld [vmem:[%s2046 + $0x20] sm:$0x1]
        %v2426 = vld [vmem:[%s2046 + $0x24] sm:$0xf]
        %v2427 = vld [vmem:[%s2046 + $0x28] sm:$0xf]
        %v2428 = vld [vmem:[%s2046 + $0x2c] sm:$0x1]
        %v2429 = vld [vmem:[%s2046 + $0x30] sm:$0xf]
        %v2430 = vld [vmem:[%s2046 + $0x34] sm:$0xf]
        %v2431 = vld [vmem:[%s2046 + $0x38] sm:$0x1]
        %v2432 = vld [vmem:[%s2046 + $0x3c] sm:$0xf]
        %v2433 = vld [vmem:[%s2046 + $0x40] sm:$0xf]
        %v2434 = vld [vmem:[%s2046 + $0x44] sm:$0x1]
        %v2435 = vld [vmem:[%s2046 + $0x48] sm:$0xf]
        %v2436 = vld [vmem:[%s2046 + $0x4c] sm:$0xf]
        %v2437 = vld [vmem:[%s2046 + $0x50] sm:$0x1]
        %v2438 = vld [vmem:[%s2046 + $0x54] sm:$0xf]
        %v2439 = vld [vmem:[%s2046 + $0x58] sm:$0xf]
        %v2440 = vld [vmem:[%s2046 + $0x5c] sm:$0x1]
        %v2441 = vld [vmem:[%s2046 + $0x60] sm:$0xf]
        %v2442 = vld [vmem:[%s2046 + $0x64] sm:$0xf]
        %v2443 = vld [vmem:[%s2046 + $0x68] sm:$0x1]
        %v2444 = vld [vmem:[%s2046 + $0x6c] sm:$0xf]
        %v2445 = vld [vmem:[%s2046 + $0x70] sm:$0xf]
        %v2446 = vld [vmem:[%s2046 + $0x74] sm:$0x1]
        %v2447 = vld [vmem:[%s2046 + $0x78] sm:$0xf]
        %v2448 = vld [vmem:[%s2046 + $0x7c] sm:$0xf]
        %v2449 = vld [vmem:[%s2046 + $0x80] sm:$0x1]
        %v2450 = vld [vmem:[%s2046 + $0x84] sm:$0xf]
        %v2451 = vld [vmem:[%s2046 + $0x88] sm:$0xf]
        %v2452 = vld [vmem:[%s2046 + $0x8c] sm:$0x1]
        %v2453 = vld [vmem:[%s2046 + $0x90] sm:$0xf]
        %v2454 = vld [vmem:[%s2046 + $0x94] sm:$0xf]
        %v2455 = vld [vmem:[%s2046 + $0x98] sm:$0x1]
        %v2456 = vld [vmem:[%s2046 + $0x9c] sm:$0xf]
        %v2457 = vld [vmem:[%s2046 + $0xa0] sm:$0xf]
        %v2458 = vld [vmem:[%s2046 + $0xa4] sm:$0x1]
        %v2459 = vld [vmem:[%s2046 + $0xa8] sm:$0xf]
        %v2460 = vld [vmem:[%s2046 + $0xac] sm:$0xf]
        %v2461 = vld [vmem:[%s2046 + $0xb0] sm:$0x1]
        %v2462 = vld [vmem:[%s2046 + $0xb4] sm:$0xf]
        %v2463 = vld [vmem:[%s2046 + $0xb8] sm:$0xf]
        %v2464 = vld [vmem:[%s2046 + $0xbc] sm:$0x1]
        %v2466 = vshrl.u32 %v2417, 16
        %v2468 = vrot.slane %v2466, 4
        %v2469 = vshll.u32 %v2417, 16
        %v2471 = vrot.slane %v2469, 5
        %v2472 = vor.u32 %v2468, %v2471
        %v2473 = vrot.slane %v2472, 4
        %v2475 = vshll.u32 %v2418, 16
        %v2477 = vrot.slane %v2475, 5
        %v2478 = vsel %vm616, %v2473, %v2477
        %v2479 = vshrl.u32 %v2418, 16
        %v2481 = vrot.slane %v2479, 4
        %v2482 = vor.u32 %v2481, %v2477
        %v2483 = vrot.slane %v2482, 4
        %v2485 = vshll.u32 %v2419, 16
        %v2487 = vrot.slane %v2485, 5
        %v2488 = vsel %vm616, %v2483, %v2487
        %v2490 = vshrl.u32 %v2420, 16
        %v2492 = vrot.slane %v2490, 4
        %v2493 = vshll.u32 %v2420, 16
        %v2495 = vrot.slane %v2493, 5
        %v2496 = vor.u32 %v2492, %v2495
        %v2497 = vrot.slane %v2496, 4
        %v2499 = vshll.u32 %v2421, 16
        %v2501 = vrot.slane %v2499, 5
        %v2502 = vsel %vm616, %v2497, %v2501
        %v2503 = vshrl.u32 %v2421, 16
        %v2505 = vrot.slane %v2503, 4
        %v2506 = vor.u32 %v2505, %v2501
        %v2507 = vrot.slane %v2506, 4
        %v2509 = vshll.u32 %v2422, 16
        %v2511 = vrot.slane %v2509, 5
        %v2512 = vsel %vm616, %v2507, %v2511
        %v2514 = vshrl.u32 %v2423, 16
        %v2516 = vrot.slane %v2514, 4
        %v2517 = vshll.u32 %v2423, 16
        %v2519 = vrot.slane %v2517, 5
        %v2520 = vor.u32 %v2516, %v2519
        %v2521 = vrot.slane %v2520, 4
        %v2523 = vshll.u32 %v2424, 16
        %v2525 = vrot.slane %v2523, 5
        %v2526 = vsel %vm616, %v2521, %v2525
        %v2527 = vshrl.u32 %v2424, 16
        %v2529 = vrot.slane %v2527, 4
        %v2530 = vor.u32 %v2529, %v2525
        %v2531 = vrot.slane %v2530, 4
        %v2533 = vshll.u32 %v2425, 16
        %v2535 = vrot.slane %v2533, 5
        %v2536 = vsel %vm616, %v2531, %v2535
        %v2538 = vshrl.u32 %v2426, 16
        %v2540 = vrot.slane %v2538, 4
        %v2541 = vshll.u32 %v2426, 16
        %v2543 = vrot.slane %v2541, 5
        %v2544 = vor.u32 %v2540, %v2543
        %v2545 = vrot.slane %v2544, 4
        %v2547 = vshll.u32 %v2427, 16
        %v2549 = vrot.slane %v2547, 5
        %v2550 = vsel %vm616, %v2545, %v2549
        %v2551 = vshrl.u32 %v2427, 16
        %v2553 = vrot.slane %v2551, 4
        %v2554 = vor.u32 %v2553, %v2549
        %v2555 = vrot.slane %v2554, 4
        %v2557 = vshll.u32 %v2428, 16
        %v2559 = vrot.slane %v2557, 5
        %v2560 = vsel %vm616, %v2555, %v2559
        %v2562 = vshrl.u32 %v2429, 16
        %v2564 = vrot.slane %v2562, 4
        %v2565 = vshll.u32 %v2429, 16
        %v2567 = vrot.slane %v2565, 5
        %v2568 = vor.u32 %v2564, %v2567
        %v2569 = vrot.slane %v2568, 4
        %v2571 = vshll.u32 %v2430, 16
        %v2573 = vrot.slane %v2571, 5
        %v2574 = vsel %vm616, %v2569, %v2573
        %v2575 = vshrl.u32 %v2430, 16
        %v2577 = vrot.slane %v2575, 4
        %v2578 = vor.u32 %v2577, %v2573
        %v2579 = vrot.slane %v2578, 4
        %v2581 = vshll.u32 %v2431, 16
        %v2583 = vrot.slane %v2581, 5
        %v2584 = vsel %vm616, %v2579, %v2583
        %v2586 = vshrl.u32 %v2432, 16
        %v2588 = vrot.slane %v2586, 4
        %v2589 = vshll.u32 %v2432, 16
        %v2591 = vrot.slane %v2589, 5
        %v2592 = vor.u32 %v2588, %v2591
        %v2593 = vrot.slane %v2592, 4
        %v2595 = vshll.u32 %v2433, 16
        %v2597 = vrot.slane %v2595, 5
        %v2598 = vsel %vm616, %v2593, %v2597
        %v2599 = vshrl.u32 %v2433, 16
        %v2601 = vrot.slane %v2599, 4
        %v2602 = vor.u32 %v2601, %v2597
        %v2603 = vrot.slane %v2602, 4
        %v2605 = vshll.u32 %v2434, 16
        %v2607 = vrot.slane %v2605, 5
        %v2608 = vsel %vm616, %v2603, %v2607
        %v2610 = vshrl.u32 %v2435, 16
        %v2612 = vrot.slane %v2610, 4
        %v2613 = vshll.u32 %v2435, 16
        %v2615 = vrot.slane %v2613, 5
        %v2616 = vor.u32 %v2612, %v2615
        %v2617 = vrot.slane %v2616, 4
        %v2619 = vshll.u32 %v2436, 16
        %v2621 = vrot.slane %v2619, 5
        %v2622 = vsel %vm616, %v2617, %v2621
        %v2623 = vshrl.u32 %v2436, 16
        %v2625 = vrot.slane %v2623, 4
        %v2626 = vor.u32 %v2625, %v2621
        %v2627 = vrot.slane %v2626, 4
        %v2629 = vshll.u32 %v2437, 16
        %v2631 = vrot.slane %v2629, 5
        %v2632 = vsel %vm616, %v2627, %v2631
        %v2634 = vshrl.u32 %v2438, 16
        %v2636 = vrot.slane %v2634, 4
        %v2637 = vshll.u32 %v2438, 16
        %v2639 = vrot.slane %v2637, 5
        %v2640 = vor.u32 %v2636, %v2639
        %v2641 = vrot.slane %v2640, 4
        %v2643 = vshll.u32 %v2439, 16
        %v2645 = vrot.slane %v2643, 5
        %v2646 = vsel %vm616, %v2641, %v2645
        %v2647 = vshrl.u32 %v2439, 16
        %v2649 = vrot.slane %v2647, 4
        %v2650 = vor.u32 %v2649, %v2645
        %v2651 = vrot.slane %v2650, 4
        %v2653 = vshll.u32 %v2440, 16
        %v2655 = vrot.slane %v2653, 5
        %v2656 = vsel %vm616, %v2651, %v2655
        %v2658 = vshrl.u32 %v2441, 16
        %v2660 = vrot.slane %v2658, 4
        %v2661 = vshll.u32 %v2441, 16
        %v2663 = vrot.slane %v2661, 5
        %v2664 = vor.u32 %v2660, %v2663
        %v2665 = vrot.slane %v2664, 4
        %v2667 = vshll.u32 %v2442, 16
        %v2669 = vrot.slane %v2667, 5
        %v2670 = vsel %vm616, %v2665, %v2669
        %v2671 = vshrl.u32 %v2442, 16
        %v2673 = vrot.slane %v2671, 4
        %v2674 = vor.u32 %v2673, %v2669
        %v2675 = vrot.slane %v2674, 4
        %v2677 = vshll.u32 %v2443, 16
        %v2679 = vrot.slane %v2677, 5
        %v2680 = vsel %vm616, %v2675, %v2679
        %v2682 = vshrl.u32 %v2444, 16
        %v2684 = vrot.slane %v2682, 4
        %v2685 = vshll.u32 %v2444, 16
        %v2687 = vrot.slane %v2685, 5
        %v2688 = vor.u32 %v2684, %v2687
        %v2689 = vrot.slane %v2688, 4
        %v2691 = vshll.u32 %v2445, 16
        %v2693 = vrot.slane %v2691, 5
        %v2694 = vsel %vm616, %v2689, %v2693
        %v2695 = vshrl.u32 %v2445, 16
        %v2697 = vrot.slane %v2695, 4
        %v2698 = vor.u32 %v2697, %v2693
        %v2699 = vrot.slane %v2698, 4
        %v2701 = vshll.u32 %v2446, 16
        %v2703 = vrot.slane %v2701, 5
        %v2704 = vsel %vm616, %v2699, %v2703
        %v2706 = vshrl.u32 %v2447, 16
        %v2708 = vrot.slane %v2706, 4
        %v2709 = vshll.u32 %v2447, 16
        %v2711 = vrot.slane %v2709, 5
        %v2712 = vor.u32 %v2708, %v2711
        %v2713 = vrot.slane %v2712, 4
        %v2715 = vshll.u32 %v2448, 16
        %v2717 = vrot.slane %v2715, 5
        %v2718 = vsel %vm616, %v2713, %v2717
        %v2719 = vshrl.u32 %v2448, 16
        %v2721 = vrot.slane %v2719, 4
        %v2722 = vor.u32 %v2721, %v2717
        %v2723 = vrot.slane %v2722, 4
        %v2725 = vshll.u32 %v2449, 16
        %v2727 = vrot.slane %v2725, 5
        %v2728 = vsel %vm616, %v2723, %v2727
        %v2730 = vshrl.u32 %v2450, 16
        %v2732 = vrot.slane %v2730, 4
        %v2733 = vshll.u32 %v2450, 16
        %v2735 = vrot.slane %v2733, 5
        %v2736 = vor.u32 %v2732, %v2735
        %v2737 = vrot.slane %v2736, 4
        %v2739 = vshll.u32 %v2451, 16
        %v2741 = vrot.slane %v2739, 5
        %v2742 = vsel %vm616, %v2737, %v2741
        %v2743 = vshrl.u32 %v2451, 16
        %v2745 = vrot.slane %v2743, 4
        %v2746 = vor.u32 %v2745, %v2741
        %v2747 = vrot.slane %v2746, 4
        %v2749 = vshll.u32 %v2452, 16
        %v2751 = vrot.slane %v2749, 5
        %v2752 = vsel %vm616, %v2747, %v2751
        %v2754 = vshrl.u32 %v2453, 16
        %v2756 = vrot.slane %v2754, 4
        %v2757 = vshll.u32 %v2453, 16
        %v2759 = vrot.slane %v2757, 5
        %v2760 = vor.u32 %v2756, %v2759
        %v2761 = vrot.slane %v2760, 4
        %v2763 = vshll.u32 %v2454, 16
        %v2765 = vrot.slane %v2763, 5
        %v2766 = vsel %vm616, %v2761, %v2765
        %v2767 = vshrl.u32 %v2454, 16
        %v2769 = vrot.slane %v2767, 4
        %v2770 = vor.u32 %v2769, %v2765
        %v2771 = vrot.slane %v2770, 4
        %v2773 = vshll.u32 %v2455, 16
        %v2775 = vrot.slane %v2773, 5
        %v2776 = vsel %vm616, %v2771, %v2775
        %v2778 = vshrl.u32 %v2456, 16
        %v2780 = vrot.slane %v2778, 4
        %v2781 = vshll.u32 %v2456, 16
        %v2783 = vrot.slane %v2781, 5
        %v2784 = vor.u32 %v2780, %v2783
        %v2785 = vrot.slane %v2784, 4
        %v2787 = vshll.u32 %v2457, 16
        %v2789 = vrot.slane %v2787, 5
        %v2790 = vsel %vm616, %v2785, %v2789
        %v2791 = vshrl.u32 %v2457, 16
        %v2793 = vrot.slane %v2791, 4
        %v2794 = vor.u32 %v2793, %v2789
        %v2795 = vrot.slane %v2794, 4
        %v2797 = vshll.u32 %v2458, 16
        %v2799 = vrot.slane %v2797, 5
        %v2800 = vsel %vm616, %v2795, %v2799
        %v2802 = vshrl.u32 %v2459, 16
        %v2804 = vrot.slane %v2802, 4
        %v2805 = vshll.u32 %v2459, 16
        %v2807 = vrot.slane %v2805, 5
        %v2808 = vor.u32 %v2804, %v2807
        %v2809 = vrot.slane %v2808, 4
        %v2811 = vshll.u32 %v2460, 16
        %v2813 = vrot.slane %v2811, 5
        %v2814 = vsel %vm616, %v2809, %v2813
        %v2815 = vshrl.u32 %v2460, 16
        %v2817 = vrot.slane %v2815, 4
        %v2818 = vor.u32 %v2817, %v2813
        %v2819 = vrot.slane %v2818, 4
        %v2821 = vshll.u32 %v2461, 16
        %v2823 = vrot.slane %v2821, 5
        %v2824 = vsel %vm616, %v2819, %v2823
        %v2826 = vshrl.u32 %v2462, 16
        %v2828 = vrot.slane %v2826, 4
        %v2829 = vshll.u32 %v2462, 16
        %v2831 = vrot.slane %v2829, 5
        %v2832 = vor.u32 %v2828, %v2831
        %v2833 = vrot.slane %v2832, 4
        %v2835 = vshll.u32 %v2463, 16
        %v2837 = vrot.slane %v2835, 5
        %v2838 = vsel %vm616, %v2833, %v2837
        %v2839 = vshrl.u32 %v2463, 16
        %v2841 = vrot.slane %v2839, 4
        %v2842 = vor.u32 %v2841, %v2837
        %v2843 = vrot.slane %v2842, 4
        %v2845 = vshll.u32 %v2464, 16
        %v2847 = vrot.slane %v2845, 5
        %v2848 = vsel %vm616, %v2843, %v2847
        %s2849 = scalar_lea.vmem [#allocation9], 64
        %v2850 = vld [vmem:[%s2849] sm:$0xf]
        %v2851 = vld [vmem:[%s2849 + $0x4] sm:$0xf]
        %v2852 = vld [vmem:[%s2849 + $0x8] sm:$0xf]
        %v2853 = vld [vmem:[%s2849 + $0xc] sm:$0xf]
        %v2854 = vunpack.c.l.b16 %v2478
        %v2855 = vunpack.c.l.b16 %v2488
        %v2856 = vunpack.c.l.b16 %v2502
        %v2857 = vunpack.c.l.b16 %v2512
        %v2858 = vunpack.c.l.b16 %v2526
        %v2859 = vunpack.c.l.b16 %v2536
        %v2860 = vunpack.c.l.b16 %v2550
        %v2861 = vunpack.c.l.b16 %v2560
        %v2862 = vunpack.c.l.b16 %v2574
        %v2863 = vunpack.c.l.b16 %v2584
        %v2864 = vunpack.c.l.b16 %v2598
        %v2865 = vunpack.c.l.b16 %v2608
        %v2866 = vunpack.c.l.b16 %v2622
        %v2867 = vunpack.c.l.b16 %v2632
        %v2868 = vunpack.c.l.b16 %v2646
        %v2869 = vunpack.c.l.b16 %v2656
        %v2870 = vunpack.c.l.b16 %v2670
        %v2871 = vunpack.c.l.b16 %v2680
        %v2872 = vunpack.c.l.b16 %v2694
        %v2873 = vunpack.c.l.b16 %v2704
        %v2874 = vunpack.c.l.b16 %v2718
        %v2875 = vunpack.c.l.b16 %v2728
        %v2876 = vunpack.c.l.b16 %v2742
        %v2877 = vunpack.c.l.b16 %v2752
        %v2878 = vunpack.c.l.b16 %v2766
        %v2879 = vunpack.c.l.b16 %v2776
        %v2880 = vunpack.c.l.b16 %v2790
        %v2881 = vunpack.c.l.b16 %v2800
        %v2882 = vunpack.c.l.b16 %v2814
        %v2883 = vunpack.c.l.b16 %v2824
        %v2884 = vunpack.c.l.b16 %v2838
        %v2885 = vunpack.c.l.b16 %v2848
        %v2886 = vpack.c.b16 %v2855, %v2854
        %v2887 = vpack.c.b16 %v2857, %v2856
        %v2888 = vpack.c.b16 %v2859, %v2858
        %v2889 = vpack.c.b16 %v2861, %v2860
        %v2890 = vpack.c.b16 %v2863, %v2862
        %v2891 = vpack.c.b16 %v2865, %v2864
        %v2892 = vpack.c.b16 %v2867, %v2866
        %v2893 = vpack.c.b16 %v2869, %v2868
        %v2894 = vpack.c.b16 %v2871, %v2870
        %v2895 = vpack.c.b16 %v2873, %v2872
        %v2896 = vpack.c.b16 %v2875, %v2874
        %v2897 = vpack.c.b16 %v2877, %v2876
        %v2898 = vpack.c.b16 %v2879, %v2878
        %v2899 = vpack.c.b16 %v2881, %v2880
        %v2900 = vpack.c.b16 %v2883, %v2882
        %v2901 = vpack.c.b16 %v2885, %v2884
        %v2906 = vunpack.c.l.b16 %v2850
        %v2907 = vunpack.c.l.b16 %v2851
        %v2908 = vunpack.c.l.b16 %v2852
        %v2909 = vunpack.c.l.b16 %v2853
        %v2910 = vpack.c.b16 %v2907, %v2906
        %v2911 = vpack.c.b16 %v2909, %v2908
        %v2915 = vsel %vm1066, %v2886, 0
        %v2918 = vsel %vm1066, %v2887, 0
        %v2921 = vsel %vm1066, %v2888, 0
        %v2924 = vsel %vm1066, %v2889, 0
        %v2927 = vsel %vm1066, %v2890, 0
        %v2930 = vsel %vm1066, %v2891, 0
        %v2933 = vsel %vm1066, %v2892, 0
        %v2936 = vsel %vm1066, %v2893, 0
        %v2939 = vsel %vm1066, %v2894, 0
        %v2942 = vsel %vm1066, %v2895, 0
        %v2945 = vsel %vm1066, %v2896, 0
        %v2948 = vsel %vm1066, %v2897, 0
        %v2951 = vsel %vm1066, %v2898, 0
        %v2954 = vsel %vm1066, %v2899, 0
        %v2957 = vsel %vm1066, %v2900, 0
        %v2960 = vsel %vm1066, %v2901, 0
        %2962 = vmatprep.subr.bf16.mxu0 0
        %2963 = vmatpush1.bf16.msra.mxu0 %v2910
        %2964 = vmatprep.subr.bf16.mxu0 0
        %2965 = vmatpush1.bf16.msra.mxu0 %v2911
        %2966 = vmatprep.subr.bf16.mxu0 0
        %2967 = vmatpush1.bf16.msra.mxu0 0
        %2968 = vmatprep.subr.bf16.mxu0 0
        %2969 = vmatpush1.bf16.msra.mxu0 0
        %2970 = vmatprep.subr.bf16.mxu0 0
        %2971 = vmatpush1.bf16.msra.mxu0 0
        %2972 = vmatprep.subr.bf16.mxu0 0
        %2973 = vmatpush1.bf16.msra.mxu0 0
        %2974 = vmatprep.subr.bf16.mxu0 0
        %2975 = vmatpush1.bf16.msra.mxu0 0
        %2976 = vmatprep.subr.bf16.mxu0 0
        %2977 = vmatpush1.bf16.msra.mxu0 0
        %2978 = vmatprep.subr.bf16.mxu0 0
        %2979 = vmatpush1.bf16.msra.mxu0 0
        %2980 = vmatprep.subr.bf16.mxu0 0
        %2981 = vmatpush1.bf16.msra.mxu0 0
        %2982 = vmatprep.subr.bf16.mxu0 0
        %2983 = vmatpush1.bf16.msra.mxu0 0
        %2984 = vmatprep.subr.bf16.mxu0 0
        %2985 = vmatpush1.bf16.msra.mxu0 0
        %2986 = vmatprep.subr.bf16.mxu0 0
        %2987 = vmatpush1.bf16.msra.mxu0 0
        %2988 = vmatprep.subr.bf16.mxu0 0
        %2989 = vmatpush1.bf16.msra.mxu0 0
        %2990 = vmatprep.subr.bf16.mxu0 0
        %2991 = vmatpush1.bf16.msra.mxu0 0
        %2992 = vmatprep.subr.bf16.mxu0 0
        %2993 = vmatpush1.bf16.msra.mxu0 0
        %2994 = vmatprep.mubr.bf16.mxu0 0
        %2995 = vmatmul.mubr.bf16.gmra.mrb[0].mxu0 %v2915
        %v2996 = vpop.f32.mrb[0].mxu0
        %v2997 = vadd.f32 0.0, %v2996
        %v2998 = vpop.f32.mrb[0].mxu0
        %v2999 = vpop.f32.mrb[0].mxu0
        %v3000 = vadd.f32 0.0, %v2999
        %v3001 = vpop.f32.mrb[0].mxu0
        %3002 = vmatprep.mubr.bf16.mxu0 0
        %3003 = vmatmul.mubr.bf16.gmra.mrb[0].mxu0 %v2918
        %v3004 = vpop.f32.mrb[0].mxu0
        %v3005 = vadd.f32 0.0, %v3004
        %v3006 = vpop.f32.mrb[0].mxu0
        %v3007 = vpop.f32.mrb[0].mxu0
        %v3008 = vadd.f32 0.0, %v3007
        %v3009 = vpop.f32.mrb[0].mxu0
        %3010 = vmatprep.mubr.bf16.mxu0 0
        %3011 = vmatmul.mubr.bf16.gmra.mrb[0].mxu0 %v2921
        %v3012 = vpop.f32.mrb[0].mxu0
        %v3013 = vadd.f32 0.0, %v3012
        %v3014 = vpop.f32.mrb[0].mxu0
        %v3015 = vpop.f32.mrb[0].mxu0
        %v3016 = vadd.f32 0.0, %v3015
        %v3017 = vpop.f32.mrb[0].mxu0
        %3018 = vmatprep.mubr.bf16.mxu0 0
        %3019 = vmatmul.mubr.bf16.gmra.mrb[0].mxu0 %v2924
        %v3020 = vpop.f32.mrb[0].mxu0
        %v3021 = vadd.f32 0.0, %v3020
        %v3022 = vpop.f32.mrb[0].mxu0
        %v3023 = vpop.f32.mrb[0].mxu0
        %v3024 = vadd.f32 0.0, %v3023
        %v3025 = vpop.f32.mrb[0].mxu0
        %3026 = vmatprep.mubr.bf16.mxu0 0
        %3027 = vmatmul.mubr.bf16.gmra.mrb[0].mxu0 %v2927
        %v3028 = vpop.f32.mrb[0].mxu0
        %v3029 = vadd.f32 0.0, %v3028
        %v3030 = vpop.f32.mrb[0].mxu0
        %v3031 = vpop.f32.mrb[0].mxu0
        %v3032 = vadd.f32 0.0, %v3031
        %v3033 = vpop.f32.mrb[0].mxu0
        %3034 = vmatprep.mubr.bf16.mxu0 0
        %3035 = vmatmul.mubr.bf16.gmra.mrb[0].mxu0 %v2930
        %v3036 = vpop.f32.mrb[0].mxu0
        %v3037 = vadd.f32 0.0, %v3036
        %v3038 = vpop.f32.mrb[0].mxu0
        %v3039 = vpop.f32.mrb[0].mxu0
        %v3040 = vadd.f32 0.0, %v3039
        %v3041 = vpop.f32.mrb[0].mxu0
        %3042 = vmatprep.mubr.bf16.mxu0 0
        %3043 = vmatmul.mubr.bf16.gmra.mrb[0].mxu0 %v2933
        %v3044 = vpop.f32.mrb[0].mxu0
        %v3045 = vadd.f32 0.0, %v3044
        %v3046 = vpop.f32.mrb[0].mxu0
        %v3047 = vpop.f32.mrb[0].mxu0
        %v3048 = vadd.f32 0.0, %v3047
        %v3049 = vpop.f32.mrb[0].mxu0
        %3050 = vmatprep.mubr.bf16.mxu0 0
        %3051 = vmatmul.mubr.bf16.gmra.mrb[0].mxu0 %v2936
        %v3052 = vpop.f32.mrb[0].mxu0
        %v3053 = vadd.f32 0.0, %v3052
        %v3054 = vpop.f32.mrb[0].mxu0
        %v3055 = vpop.f32.mrb[0].mxu0
        %v3056 = vadd.f32 0.0, %v3055
        %v3057 = vpop.f32.mrb[0].mxu0
        %3058 = vmatprep.mubr.bf16.mxu0 0
        %3059 = vmatmul.mubr.bf16.gmra.mrb[0].mxu0 %v2939
        %v3060 = vpop.f32.mrb[0].mxu0
        %v3061 = vadd.f32 0.0, %v3060
        %v3062 = vpop.f32.mrb[0].mxu0
        %v3063 = vpop.f32.mrb[0].mxu0
        %v3064 = vadd.f32 0.0, %v3063
        %v3065 = vpop.f32.mrb[0].mxu0
        %3066 = vmatprep.mubr.bf16.mxu0 0
        %3067 = vmatmul.mubr.bf16.gmra.mrb[0].mxu0 %v2942
        %v3068 = vpop.f32.mrb[0].mxu0
        %v3069 = vadd.f32 0.0, %v3068
        %v3070 = vpop.f32.mrb[0].mxu0
        %v3071 = vpop.f32.mrb[0].mxu0
        %v3072 = vadd.f32 0.0, %v3071
        %v3073 = vpop.f32.mrb[0].mxu0
        %3074 = vmatprep.mubr.bf16.mxu0 0
        %3075 = vmatmul.mubr.bf16.gmra.mrb[0].mxu0 %v2945
        %v3076 = vpop.f32.mrb[0].mxu0
        %v3077 = vadd.f32 0.0, %v3076
        %v3078 = vpop.f32.mrb[0].mxu0
        %v3079 = vpop.f32.mrb[0].mxu0
        %v3080 = vadd.f32 0.0, %v3079
        %v3081 = vpop.f32.mrb[0].mxu0
        %3082 = vmatprep.mubr.bf16.mxu0 0
        %3083 = vmatmul.mubr.bf16.gmra.mrb[0].mxu0 %v2948
        %v3084 = vpop.f32.mrb[0].mxu0
        %v3085 = vadd.f32 0.0, %v3084
        %v3086 = vpop.f32.mrb[0].mxu0
        %v3087 = vpop.f32.mrb[0].mxu0
        %v3088 = vadd.f32 0.0, %v3087
        %v3089 = vpop.f32.mrb[0].mxu0
        %3090 = vmatprep.mubr.bf16.mxu0 0
        %3091 = vmatmul.mubr.bf16.gmra.mrb[0].mxu0 %v2951
        %v3092 = vpop.f32.mrb[0].mxu0
        %v3093 = vadd.f32 0.0, %v3092
        %v3094 = vpop.f32.mrb[0].mxu0
        %v3095 = vpop.f32.mrb[0].mxu0
        %v3096 = vadd.f32 0.0, %v3095
        %v3097 = vpop.f32.mrb[0].mxu0
        %3098 = vmatprep.mubr.bf16.mxu0 0
        %3099 = vmatmul.mubr.bf16.gmra.mrb[0].mxu0 %v2954
        %v3100 = vpop.f32.mrb[0].mxu0
        %v3101 = vadd.f32 0.0, %v3100
        %v3102 = vpop.f32.mrb[0].mxu0
        %v3103 = vpop.f32.mrb[0].mxu0
        %v3104 = vadd.f32 0.0, %v3103
        %v3105 = vpop.f32.mrb[0].mxu0
        %3106 = vmatprep.mubr.bf16.mxu0 0
        %3107 = vmatmul.mubr.bf16.gmra.mrb[0].mxu0 %v2957
        %v3108 = vpop.f32.mrb[0].mxu0
        %v3109 = vadd.f32 0.0, %v3108
        %v3110 = vpop.f32.mrb[0].mxu0
        %v3111 = vpop.f32.mrb[0].mxu0
        %v3112 = vadd.f32 0.0, %v3111
        %v3113 = vpop.f32.mrb[0].mxu0
        %3114 = vmatprep.mubr.bf16.mxu0 0
        %3115 = vmatmul.mubr.bf16.gmra.mrb[0].mxu0 %v2960
        %v3116 = vpop.f32.mrb[0].mxu0
        %v3117 = vadd.f32 0.0, %v3116
        %v3118 = vpop.f32.mrb[0].mxu0
        %v3119 = vpop.f32.mrb[0].mxu0
        %v3120 = vadd.f32 0.0, %v3119
        %v3121 = vpop.f32.mrb[0].mxu0
        %3122 = vdwg.mxu0
        %v3123 = vadd.f32 %v2385, %v2997
        %v3124 = vadd.f32 %v2386, %v3000
        %v3125 = vadd.f32 %v2387, %v3005
        %v3126 = vadd.f32 %v2388, %v3008
        %v3127 = vadd.f32 %v2389, %v3013
        %v3128 = vadd.f32 %v2390, %v3016
        %v3129 = vadd.f32 %v2391, %v3021
        %v3130 = vadd.f32 %v2392, %v3024
        %v3131 = vadd.f32 %v2393, %v3029
        %v3132 = vadd.f32 %v2394, %v3032
        %v3133 = vadd.f32 %v2395, %v3037
        %v3134 = vadd.f32 %v2396, %v3040
        %v3135 = vadd.f32 %v2397, %v3045
        %v3136 = vadd.f32 %v2398, %v3048
        %v3137 = vadd.f32 %v2399, %v3053
        %v3138 = vadd.f32 %v2400, %v3056
        %v3139 = vadd.f32 %v2401, %v3061
        %v3140 = vadd.f32 %v2402, %v3064
        %v3141 = vadd.f32 %v2403, %v3069
        %v3142 = vadd.f32 %v2404, %v3072
        %v3143 = vadd.f32 %v2405, %v3077
        %v3144 = vadd.f32 %v2406, %v3080
        %v3145 = vadd.f32 %v2407, %v3085
        %v3146 = vadd.f32 %v2408, %v3088
        %v3147 = vadd.f32 %v2409, %v3093
        %v3148 = vadd.f32 %v2410, %v3096
        %v3149 = vadd.f32 %v2411, %v3101
        %v3150 = vadd.f32 %v2412, %v3104
        %v3151 = vadd.f32 %v2413, %v3109
        %v3152 = vadd.f32 %v2414, %v3112
        %v3153 = vadd.f32 %v2415, %v3117
        %v3154 = vadd.f32 %v2416, %v3120
        %v3155 = vld [vmem:[%s2046] sm:$0xe]
        %v3156 = vld [vmem:[%s2046 + $0xc] sm:$0xe]
        %v3157 = vld [vmem:[%s2046 + $0x18] sm:$0xe]
        %v3158 = vld [vmem:[%s2046 + $0x24] sm:$0xe]
        %v3159 = vld [vmem:[%s2046 + $0x30] sm:$0xe]
        %v3160 = vld [vmem:[%s2046 + $0x3c] sm:$0xe]
        %v3161 = vld [vmem:[%s2046 + $0x48] sm:$0xe]
        %v3162 = vld [vmem:[%s2046 + $0x54] sm:$0xe]
        %v3163 = vld [vmem:[%s2046 + $0x60] sm:$0xe]
        %v3164 = vld [vmem:[%s2046 + $0x6c] sm:$0xe]
        %v3165 = vld [vmem:[%s2046 + $0x78] sm:$0xe]
        %v3166 = vld [vmem:[%s2046 + $0x84] sm:$0xe]
        %v3167 = vld [vmem:[%s2046 + $0x90] sm:$0xe]
        %v3168 = vld [vmem:[%s2046 + $0x9c] sm:$0xe]
        %v3169 = vld [vmem:[%s2046 + $0xa8] sm:$0xe]
        %v3170 = vld [vmem:[%s2046 + $0xb4] sm:$0xe]
        %v3219 = vrot.slane %v3155, 5
        %v3220 = vrot.slane %v3219, 4
        %v3221 = vrot.slane %v2418, 5
        %v3222 = vsel %vm1627, %v3220, %v3221
        %v3223 = vrot.slane %v3221, 4
        %v3224 = vrot.slane %v2419, 5
        %v3225 = vsel %vm1627, %v3223, %v3224
        %v3226 = vrot.slane %v3156, 5
        %v3227 = vrot.slane %v3226, 4
        %v3228 = vrot.slane %v2421, 5
        %v3229 = vsel %vm1627, %v3227, %v3228
        %v3230 = vrot.slane %v3228, 4
        %v3231 = vrot.slane %v2422, 5
        %v3232 = vsel %vm1627, %v3230, %v3231
        %v3233 = vrot.slane %v3157, 5
        %v3234 = vrot.slane %v3233, 4
        %v3235 = vrot.slane %v2424, 5
        %v3236 = vsel %vm1627, %v3234, %v3235
        %v3237 = vrot.slane %v3235, 4
        %v3238 = vrot.slane %v2425, 5
        %v3239 = vsel %vm1627, %v3237, %v3238
        %v3240 = vrot.slane %v3158, 5
        %v3241 = vrot.slane %v3240, 4
        %v3242 = vrot.slane %v2427, 5
        %v3243 = vsel %vm1627, %v3241, %v3242
        %v3244 = vrot.slane %v3242, 4
        %v3245 = vrot.slane %v2428, 5
        %v3246 = vsel %vm1627, %v3244, %v3245
        %v3247 = vrot.slane %v3159, 5
        %v3248 = vrot.slane %v3247, 4
        %v3249 = vrot.slane %v2430, 5
        %v3250 = vsel %vm1627, %v3248, %v3249
        %v3251 = vrot.slane %v3249, 4
        %v3252 = vrot.slane %v2431, 5
        %v3253 = vsel %vm1627, %v3251, %v3252
        %v3254 = vrot.slane %v3160, 5
        %v3255 = vrot.slane %v3254, 4
        %v3256 = vrot.slane %v2433, 5
        %v3257 = vsel %vm1627, %v3255, %v3256
        %v3258 = vrot.slane %v3256, 4
        %v3259 = vrot.slane %v2434, 5
        %v3260 = vsel %vm1627, %v3258, %v3259
        %v3261 = vrot.slane %v3161, 5
        %v3262 = vrot.slane %v3261, 4
        %v3263 = vrot.slane %v2436, 5
        %v3264 = vsel %vm1627, %v3262, %v3263
        %v3265 = vrot.slane %v3263, 4
        %v3266 = vrot.slane %v2437, 5
        %v3267 = vsel %vm1627, %v3265, %v3266
        %v3268 = vrot.slane %v3162, 5
        %v3269 = vrot.slane %v3268, 4
        %v3270 = vrot.slane %v2439, 5
        %v3271 = vsel %vm1627, %v3269, %v3270
        %v3272 = vrot.slane %v3270, 4
        %v3273 = vrot.slane %v2440, 5
        %v3274 = vsel %vm1627, %v3272, %v3273
        %v3275 = vrot.slane %v3163, 5
        %v3276 = vrot.slane %v3275, 4
        %v3277 = vrot.slane %v2442, 5
        %v3278 = vsel %vm1627, %v3276, %v3277
        %v3279 = vrot.slane %v3277, 4
        %v3280 = vrot.slane %v2443, 5
        %v3281 = vsel %vm1627, %v3279, %v3280
        %v3282 = vrot.slane %v3164, 5
        %v3283 = vrot.slane %v3282, 4
        %v3284 = vrot.slane %v2445, 5
        %v3285 = vsel %vm1627, %v3283, %v3284
        %v3286 = vrot.slane %v3284, 4
        %v3287 = vrot.slane %v2446, 5
        %v3288 = vsel %vm1627, %v3286, %v3287
        %v3289 = vrot.slane %v3165, 5
        %v3290 = vrot.slane %v3289, 4
        %v3291 = vrot.slane %v2448, 5
        %v3292 = vsel %vm1627, %v3290, %v3291
        %v3293 = vrot.slane %v3291, 4
        %v3294 = vrot.slane %v2449, 5
        %v3295 = vsel %vm1627, %v3293, %v3294
        %v3296 = vrot.slane %v3166, 5
        %v3297 = vrot.slane %v3296, 4
        %v3298 = vrot.slane %v2451, 5
        %v3299 = vsel %vm1627, %v3297, %v3298
        %v3300 = vrot.slane %v3298, 4
        %v3301 = vrot.slane %v2452, 5
        %v3302 = vsel %vm1627, %v3300, %v3301
        %v3303 = vrot.slane %v3167, 5
        %v3304 = vrot.slane %v3303, 4
        %v3305 = vrot.slane %v2454, 5
        %v3306 = vsel %vm1627, %v3304, %v3305
        %v3307 = vrot.slane %v3305, 4
        %v3308 = vrot.slane %v2455, 5
        %v3309 = vsel %vm1627, %v3307, %v3308
        %v3310 = vrot.slane %v3168, 5
        %v3311 = vrot.slane %v3310, 4
        %v3312 = vrot.slane %v2457, 5
        %v3313 = vsel %vm1627, %v3311, %v3312
        %v3314 = vrot.slane %v3312, 4
        %v3315 = vrot.slane %v2458, 5
        %v3316 = vsel %vm1627, %v3314, %v3315
        %v3317 = vrot.slane %v3169, 5
        %v3318 = vrot.slane %v3317, 4
        %v3319 = vrot.slane %v2460, 5
        %v3320 = vsel %vm1627, %v3318, %v3319
        %v3321 = vrot.slane %v3319, 4
        %v3322 = vrot.slane %v2461, 5
        %v3323 = vsel %vm1627, %v3321, %v3322
        %v3324 = vrot.slane %v3170, 5
        %v3325 = vrot.slane %v3324, 4
        %v3326 = vrot.slane %v2463, 5
        %v3327 = vsel %vm1627, %v3325, %v3326
        %v3328 = vrot.slane %v3326, 4
        %v3329 = vrot.slane %v2464, 5
        %v3330 = vsel %vm1627, %v3328, %v3329
        %s3331 = scalar_lea.vmem [#allocation9], 80
        %v3332 = vld [vmem:[%s3331] sm:$0xf]
        %v3333 = vld [vmem:[%s3331 + $0x4] sm:$0xf]
        %v3334 = vld [vmem:[%s3331 + $0x8] sm:$0xf]
        %v3335 = vld [vmem:[%s3331 + $0xc] sm:$0xf]
        %v3336 = vunpack.c.l.b16 %v3222
        %v3337 = vunpack.c.l.b16 %v3225
        %v3338 = vunpack.c.l.b16 %v3229
        %v3339 = vunpack.c.l.b16 %v3232
        %v3340 = vunpack.c.l.b16 %v3236
        %v3341 = vunpack.c.l.b16 %v3239
        %v3342 = vunpack.c.l.b16 %v3243
        %v3343 = vunpack.c.l.b16 %v3246
        %v3344 = vunpack.c.l.b16 %v3250
        %v3345 = vunpack.c.l.b16 %v3253
        %v3346 = vunpack.c.l.b16 %v3257
        %v3347 = vunpack.c.l.b16 %v3260
        %v3348 = vunpack.c.l.b16 %v3264
        %v3349 = vunpack.c.l.b16 %v3267
        %v3350 = vunpack.c.l.b16 %v3271
        %v3351 = vunpack.c.l.b16 %v3274
        %v3352 = vunpack.c.l.b16 %v3278
        %v3353 = vunpack.c.l.b16 %v3281
        %v3354 = vunpack.c.l.b16 %v3285
        %v3355 = vunpack.c.l.b16 %v3288
        %v3356 = vunpack.c.l.b16 %v3292
        %v3357 = vunpack.c.l.b16 %v3295
        %v3358 = vunpack.c.l.b16 %v3299
        %v3359 = vunpack.c.l.b16 %v3302
        %v3360 = vunpack.c.l.b16 %v3306
        %v3361 = vunpack.c.l.b16 %v3309
        %v3362 = vunpack.c.l.b16 %v3313
        %v3363 = vunpack.c.l.b16 %v3316
        %v3364 = vunpack.c.l.b16 %v3320
        %v3365 = vunpack.c.l.b16 %v3323
        %v3366 = vunpack.c.l.b16 %v3327
        %v3367 = vunpack.c.l.b16 %v3330
        %v3368 = vpack.c.b16 %v3337, %v3336
        %v3369 = vpack.c.b16 %v3339, %v3338
        %v3370 = vpack.c.b16 %v3341, %v3340
        %v3371 = vpack.c.b16 %v3343, %v3342
        %v3372 = vpack.c.b16 %v3345, %v3344
        %v3373 = vpack.c.b16 %v3347, %v3346
        %v3374 = vpack.c.b16 %v3349, %v3348
        %v3375 = vpack.c.b16 %v3351, %v3350
        %v3376 = vpack.c.b16 %v3353, %v3352
        %v3377 = vpack.c.b16 %v3355, %v3354
        %v3378 = vpack.c.b16 %v3357, %v3356
        %v3379 = vpack.c.b16 %v3359, %v3358
        %v3380 = vpack.c.b16 %v3361, %v3360
        %v3381 = vpack.c.b16 %v3363, %v3362
        %v3382 = vpack.c.b16 %v3365, %v3364
        %v3383 = vpack.c.b16 %v3367, %v3366
        %v3388 = vunpack.c.l.b16 %v3332
        %v3389 = vunpack.c.l.b16 %v3333
        %v3390 = vunpack.c.l.b16 %v3334
        %v3391 = vunpack.c.l.b16 %v3335
        %v3392 = vpack.c.b16 %v3389, %v3388
        %v3393 = vpack.c.b16 %v3391, %v3390
        %v3397 = vsel %vm1066, %v3368, 0
        %v3400 = vsel %vm1066, %v3369, 0
        %v3403 = vsel %vm1066, %v3370, 0
        %v3406 = vsel %vm1066, %v3371, 0
        %v3409 = vsel %vm1066, %v3372, 0
        %v3412 = vsel %vm1066, %v3373, 0
        %v3415 = vsel %vm1066, %v3374, 0
        %v3418 = vsel %vm1066, %v3375, 0
        %v3421 = vsel %vm1066, %v3376, 0
        %v3424 = vsel %vm1066, %v3377, 0
        %v3427 = vsel %vm1066, %v3378, 0
        %v3430 = vsel %vm1066, %v3379, 0
        %v3433 = vsel %vm1066, %v3380, 0
        %v3436 = vsel %vm1066, %v3381, 0
        %v3439 = vsel %vm1066, %v3382, 0
        %v3442 = vsel %vm1066, %v3383, 0
        %3444 = vmatprep.subr.bf16.mxu0 0
        %3445 = vmatpush1.bf16.msra.mxu0 %v3392
        %3446 = vmatprep.subr.bf16.mxu0 0
        %3447 = vmatpush1.bf16.msra.mxu0 %v3393
        %3448 = vmatprep.subr.bf16.mxu0 0
        %3449 = vmatpush1.bf16.msra.mxu0 0
        %3450 = vmatprep.subr.bf16.mxu0 0
        %3451 = vmatpush1.bf16.msra.mxu0 0
        %3452 = vmatprep.subr.bf16.mxu0 0
        %3453 = vmatpush1.bf16.msra.mxu0 0
        %3454 = vmatprep.subr.bf16.mxu0 0
        %3455 = vmatpush1.bf16.msra.mxu0 0
        %3456 = vmatprep.subr.bf16.mxu0 0
        %3457 = vmatpush1.bf16.msra.mxu0 0
        %3458 = vmatprep.subr.bf16.mxu0 0
        %3459 = vmatpush1.bf16.msra.mxu0 0
        %3460 = vmatprep.subr.bf16.mxu0 0
        %3461 = vmatpush1.bf16.msra.mxu0 0
        %3462 = vmatprep.subr.bf16.mxu0 0
        %3463 = vmatpush1.bf16.msra.mxu0 0
        %3464 = vmatprep.subr.bf16.mxu0 0
        %3465 = vmatpush1.bf16.msra.mxu0 0
        %3466 = vmatprep.subr.bf16.mxu0 0
        %3467 = vmatpush1.bf16.msra.mxu0 0
        %3468 = vmatprep.subr.bf16.mxu0 0
        %3469 = vmatpush1.bf16.msra.mxu0 0
        %3470 = vmatprep.subr.bf16.mxu0 0
        %3471 = vmatpush1.bf16.msra.mxu0 0
        %3472 = vmatprep.subr.bf16.mxu0 0
        %3473 = vmatpush1.bf16.msra.mxu0 0
        %3474 = vmatprep.subr.bf16.mxu0 0
        %3475 = vmatpush1.bf16.msra.mxu0 0
        %3476 = vmatprep.mubr.bf16.mxu0 0
        %3477 = vmatmul.mubr.bf16.gmra.mrb[0].mxu0 %v3397
        %v3478 = vpop.f32.mrb[0].mxu0
        %v3479 = vadd.f32 0.0, %v3478
        %v3480 = vpop.f32.mrb[0].mxu0
        %v3481 = vpop.f32.mrb[0].mxu0
        %v3482 = vadd.f32 0.0, %v3481
        %v3483 = vpop.f32.mrb[0].mxu0
        %3484 = vmatprep.mubr.bf16.mxu0 0
        %3485 = vmatmul.mubr.bf16.gmra.mrb[0].mxu0 %v3400
        %v3486 = vpop.f32.mrb[0].mxu0
        %v3487 = vadd.f32 0.0, %v3486
        %v3488 = vpop.f32.mrb[0].mxu0
        %v3489 = vpop.f32.mrb[0].mxu0
        %v3490 = vadd.f32 0.0, %v3489
        %v3491 = vpop.f32.mrb[0].mxu0
        %3492 = vmatprep.mubr.bf16.mxu0 0
        %3493 = vmatmul.mubr.bf16.gmra.mrb[0].mxu0 %v3403
        %v3494 = vpop.f32.mrb[0].mxu0
        %v3495 = vadd.f32 0.0, %v3494
        %v3496 = vpop.f32.mrb[0].mxu0
        %v3497 = vpop.f32.mrb[0].mxu0
        %v3498 = vadd.f32 0.0, %v3497
        %v3499 = vpop.f32.mrb[0].mxu0
        %3500 = vmatprep.mubr.bf16.mxu0 0
        %3501 = vmatmul.mubr.bf16.gmra.mrb[0].mxu0 %v3406
        %v3502 = vpop.f32.mrb[0].mxu0
        %v3503 = vadd.f32 0.0, %v3502
        %v3504 = vpop.f32.mrb[0].mxu0
        %v3505 = vpop.f32.mrb[0].mxu0
        %v3506 = vadd.f32 0.0, %v3505
        %v3507 = vpop.f32.mrb[0].mxu0
        %3508 = vmatprep.mubr.bf16.mxu0 0
        %3509 = vmatmul.mubr.bf16.gmra.mrb[0].mxu0 %v3409
        %v3510 = vpop.f32.mrb[0].mxu0
        %v3511 = vadd.f32 0.0, %v3510
        %v3512 = vpop.f32.mrb[0].mxu0
        %v3513 = vpop.f32.mrb[0].mxu0
        %v3514 = vadd.f32 0.0, %v3513
        %v3515 = vpop.f32.mrb[0].mxu0
        %3516 = vmatprep.mubr.bf16.mxu0 0
        %3517 = vmatmul.mubr.bf16.gmra.mrb[0].mxu0 %v3412
        %v3518 = vpop.f32.mrb[0].mxu0
        %v3519 = vadd.f32 0.0, %v3518
        %v3520 = vpop.f32.mrb[0].mxu0
        %v3521 = vpop.f32.mrb[0].mxu0
        %v3522 = vadd.f32 0.0, %v3521
        %v3523 = vpop.f32.mrb[0].mxu0
        %3524 = vmatprep.mubr.bf16.mxu0 0
        %3525 = vmatmul.mubr.bf16.gmra.mrb[0].mxu0 %v3415
        %v3526 = vpop.f32.mrb[0].mxu0
        %v3527 = vadd.f32 0.0, %v3526
        %v3528 = vpop.f32.mrb[0].mxu0
        %v3529 = vpop.f32.mrb[0].mxu0
        %v3530 = vadd.f32 0.0, %v3529
        %v3531 = vpop.f32.mrb[0].mxu0
        %3532 = vmatprep.mubr.bf16.mxu0 0
        %3533 = vmatmul.mubr.bf16.gmra.mrb[0].mxu0 %v3418
        %v3534 = vpop.f32.mrb[0].mxu0
        %v3535 = vadd.f32 0.0, %v3534
        %v3536 = vpop.f32.mrb[0].mxu0
        %v3537 = vpop.f32.mrb[0].mxu0
        %v3538 = vadd.f32 0.0, %v3537
        %v3539 = vpop.f32.mrb[0].mxu0
        %3540 = vmatprep.mubr.bf16.mxu0 0
        %3541 = vmatmul.mubr.bf16.gmra.mrb[0].mxu0 %v3421
        %v3542 = vpop.f32.mrb[0].mxu0
        %v3543 = vadd.f32 0.0, %v3542
        %v3544 = vpop.f32.mrb[0].mxu0
        %v3545 = vpop.f32.mrb[0].mxu0
        %v3546 = vadd.f32 0.0, %v3545
        %v3547 = vpop.f32.mrb[0].mxu0
        %3548 = vmatprep.mubr.bf16.mxu0 0
        %3549 = vmatmul.mubr.bf16.gmra.mrb[0].mxu0 %v3424
        %v3550 = vpop.f32.mrb[0].mxu0
        %v3551 = vadd.f32 0.0, %v3550
        %v3552 = vpop.f32.mrb[0].mxu0
        %v3553 = vpop.f32.mrb[0].mxu0
        %v3554 = vadd.f32 0.0, %v3553
        %v3555 = vpop.f32.mrb[0].mxu0
        %3556 = vmatprep.mubr.bf16.mxu0 0
        %3557 = vmatmul.mubr.bf16.gmra.mrb[0].mxu0 %v3427
        %v3558 = vpop.f32.mrb[0].mxu0
        %v3559 = vadd.f32 0.0, %v3558
        %v3560 = vpop.f32.mrb[0].mxu0
        %v3561 = vpop.f32.mrb[0].mxu0
        %v3562 = vadd.f32 0.0, %v3561
        %v3563 = vpop.f32.mrb[0].mxu0
        %3564 = vmatprep.mubr.bf16.mxu0 0
        %3565 = vmatmul.mubr.bf16.gmra.mrb[0].mxu0 %v3430
        %v3566 = vpop.f32.mrb[0].mxu0
        %v3567 = vadd.f32 0.0, %v3566
        %v3568 = vpop.f32.mrb[0].mxu0
        %v3569 = vpop.f32.mrb[0].mxu0
        %v3570 = vadd.f32 0.0, %v3569
        %v3571 = vpop.f32.mrb[0].mxu0
        %3572 = vmatprep.mubr.bf16.mxu0 0
        %3573 = vmatmul.mubr.bf16.gmra.mrb[0].mxu0 %v3433
        %v3574 = vpop.f32.mrb[0].mxu0
        %v3575 = vadd.f32 0.0, %v3574
        %v3576 = vpop.f32.mrb[0].mxu0
        %v3577 = vpop.f32.mrb[0].mxu0
        %v3578 = vadd.f32 0.0, %v3577
        %v3579 = vpop.f32.mrb[0].mxu0
        %3580 = vmatprep.mubr.bf16.mxu0 0
        %3581 = vmatmul.mubr.bf16.gmra.mrb[0].mxu0 %v3436
        %v3582 = vpop.f32.mrb[0].mxu0
        %v3583 = vadd.f32 0.0, %v3582
        %v3584 = vpop.f32.mrb[0].mxu0
        %v3585 = vpop.f32.mrb[0].mxu0
        %v3586 = vadd.f32 0.0, %v3585
        %v3587 = vpop.f32.mrb[0].mxu0
        %3588 = vmatprep.mubr.bf16.mxu0 0
        %3589 = vmatmul.mubr.bf16.gmra.mrb[0].mxu0 %v3439
        %v3590 = vpop.f32.mrb[0].mxu0
        %v3591 = vadd.f32 0.0, %v3590
        %v3592 = vpop.f32.mrb[0].mxu0
        %v3593 = vpop.f32.mrb[0].mxu0
        %v3594 = vadd.f32 0.0, %v3593
        %v3595 = vpop.f32.mrb[0].mxu0
        %3596 = vmatprep.mubr.bf16.mxu0 0
        %3597 = vmatmul.mubr.bf16.gmra.mrb[0].mxu0 %v3442
        %v3598 = vpop.f32.mrb[0].mxu0
        %v3599 = vadd.f32 0.0, %v3598
        %v3600 = vpop.f32.mrb[0].mxu0
        %v3601 = vpop.f32.mrb[0].mxu0
        %v3602 = vadd.f32 0.0, %v3601
        %v3603 = vpop.f32.mrb[0].mxu0
        %3604 = vdwg.mxu0
        %v3605 = vadd.f32 %v3123, %v3479
        %v3606 = vadd.f32 %v3124, %v3482
        %v3607 = vadd.f32 %v3125, %v3487
        %v3608 = vadd.f32 %v3126, %v3490
        %v3609 = vadd.f32 %v3127, %v3495
        %v3610 = vadd.f32 %v3128, %v3498
        %v3611 = vadd.f32 %v3129, %v3503
        %v3612 = vadd.f32 %v3130, %v3506
        %v3613 = vadd.f32 %v3131, %v3511
        %v3614 = vadd.f32 %v3132, %v3514
        %v3615 = vadd.f32 %v3133, %v3519
        %v3616 = vadd.f32 %v3134, %v3522
        %v3617 = vadd.f32 %v3135, %v3527
        %v3618 = vadd.f32 %v3136, %v3530
        %v3619 = vadd.f32 %v3137, %v3535
        %v3620 = vadd.f32 %v3138, %v3538
        %v3621 = vadd.f32 %v3139, %v3543
        %v3622 = vadd.f32 %v3140, %v3546
        %v3623 = vadd.f32 %v3141, %v3551
        %v3624 = vadd.f32 %v3142, %v3554
        %v3625 = vadd.f32 %v3143, %v3559
        %v3626 = vadd.f32 %v3144, %v3562
        %v3627 = vadd.f32 %v3145, %v3567
        %v3628 = vadd.f32 %v3146, %v3570
        %v3629 = vadd.f32 %v3147, %v3575
        %v3630 = vadd.f32 %v3148, %v3578
        %v3631 = vadd.f32 %v3149, %v3583
        %v3632 = vadd.f32 %v3150, %v3586
        %v3633 = vadd.f32 %v3151, %v3591
        %v3634 = vadd.f32 %v3152, %v3594
        %v3635 = vadd.f32 %v3153, %v3599
        %v3636 = vadd.f32 %v3154, %v3602
        %s3637 = scalar_lea.vmem [#allocation2], 24
        %v3638 = vld [vmem:[%s3637] sm:$0xf]
        %v3639 = vld [vmem:[%s3637 + $0x4] sm:$0xf]
        %v3640 = vld [vmem:[%s3637 + $0xc] sm:$0xf]
        %v3641 = vld [vmem:[%s3637 + $0x10] sm:$0xf]
        %v3642 = vld [vmem:[%s3637 + $0x18] sm:$0xf]
        %v3643 = vld [vmem:[%s3637 + $0x1c] sm:$0xf]
        %v3644 = vld [vmem:[%s3637 + $0x24] sm:$0xf]
        %v3645 = vld [vmem:[%s3637 + $0x28] sm:$0xf]
        %v3646 = vld [vmem:[%s3637 + $0x30] sm:$0xf]
        %v3647 = vld [vmem:[%s3637 + $0x34] sm:$0xf]
        %v3648 = vld [vmem:[%s3637 + $0x3c] sm:$0xf]
        %v3649 = vld [vmem:[%s3637 + $0x40] sm:$0xf]
        %v3650 = vld [vmem:[%s3637 + $0x48] sm:$0xf]
        %v3651 = vld [vmem:[%s3637 + $0x4c] sm:$0xf]
        %v3652 = vld [vmem:[%s3637 + $0x54] sm:$0xf]
        %v3653 = vld [vmem:[%s3637 + $0x58] sm:$0xf]
        %v3654 = vld [vmem:[%s3637 + $0x60] sm:$0xf]
        %v3655 = vld [vmem:[%s3637 + $0x64] sm:$0xf]
        %v3656 = vld [vmem:[%s3637 + $0x6c] sm:$0xf]
        %v3657 = vld [vmem:[%s3637 + $0x70] sm:$0xf]
        %v3658 = vld [vmem:[%s3637 + $0x78] sm:$0xf]
        %v3659 = vld [vmem:[%s3637 + $0x7c] sm:$0xf]
        %v3660 = vld [vmem:[%s3637 + $0x84] sm:$0xf]
        %v3661 = vld [vmem:[%s3637 + $0x88] sm:$0xf]
        %v3662 = vld [vmem:[%s3637 + $0x90] sm:$0xf]
        %v3663 = vld [vmem:[%s3637 + $0x94] sm:$0xf]
        %v3664 = vld [vmem:[%s3637 + $0x9c] sm:$0xf]
        %v3665 = vld [vmem:[%s3637 + $0xa0] sm:$0xf]
        %v3666 = vld [vmem:[%s3637 + $0xa8] sm:$0xf]
        %v3667 = vld [vmem:[%s3637 + $0xac] sm:$0xf]
        %v3668 = vld [vmem:[%s3637 + $0xb4] sm:$0xf]
        %v3669 = vld [vmem:[%s3637 + $0xb8] sm:$0xf]
        %s3670 = scalar_lea.vmem [#allocation9], 96
        %v3671 = vld [vmem:[%s3670] sm:$0xf]
        %v3672 = vld [vmem:[%s3670 + $0x4] sm:$0xf]
        %v3673 = vld [vmem:[%s3670 + $0x8] sm:$0xf]
        %v3674 = vld [vmem:[%s3670 + $0xc] sm:$0xf]
        %v3707 = vunpack.c.l.b16 %v3638
        %v3708 = vunpack.c.l.b16 %v3639
        %v3709 = vunpack.c.l.b16 %v3640
        %v3710 = vunpack.c.l.b16 %v3641
        %v3711 = vunpack.c.l.b16 %v3642
        %v3712 = vunpack.c.l.b16 %v3643
        %v3713 = vunpack.c.l.b16 %v3644
        %v3714 = vunpack.c.l.b16 %v3645
        %v3715 = vunpack.c.l.b16 %v3646
        %v3716 = vunpack.c.l.b16 %v3647
        %v3717 = vunpack.c.l.b16 %v3648
        %v3718 = vunpack.c.l.b16 %v3649
        %v3719 = vunpack.c.l.b16 %v3650
        %v3720 = vunpack.c.l.b16 %v3651
        %v3721 = vunpack.c.l.b16 %v3652
        %v3722 = vunpack.c.l.b16 %v3653
        %v3723 = vunpack.c.l.b16 %v3654
        %v3724 = vunpack.c.l.b16 %v3655
        %v3725 = vunpack.c.l.b16 %v3656
        %v3726 = vunpack.c.l.b16 %v3657
        %v3727 = vunpack.c.l.b16 %v3658
        %v3728 = vunpack.c.l.b16 %v3659
        %v3729 = vunpack.c.l.b16 %v3660
        %v3730 = vunpack.c.l.b16 %v3661
        %v3731 = vunpack.c.l.b16 %v3662
        %v3732 = vunpack.c.l.b16 %v3663
        %v3733 = vunpack.c.l.b16 %v3664
        %v3734 = vunpack.c.l.b16 %v3665
        %v3735 = vunpack.c.l.b16 %v3666
        %v3736 = vunpack.c.l.b16 %v3667
        %v3737 = vunpack.c.l.b16 %v3668
        %v3738 = vunpack.c.l.b16 %v3669
        %v3739 = vpack.c.b16 %v3708, %v3707
        %v3740 = vpack.c.b16 %v3710, %v3709
        %v3741 = vpack.c.b16 %v3712, %v3711
        %v3742 = vpack.c.b16 %v3714, %v3713
        %v3743 = vpack.c.b16 %v3716, %v3715
        %v3744 = vpack.c.b16 %v3718, %v3717
        %v3745 = vpack.c.b16 %v3720, %v3719
        %v3746 = vpack.c.b16 %v3722, %v3721
        %v3747 = vpack.c.b16 %v3724, %v3723
        %v3748 = vpack.c.b16 %v3726, %v3725
        %v3749 = vpack.c.b16 %v3728, %v3727
        %v3750 = vpack.c.b16 %v3730, %v3729
        %v3751 = vpack.c.b16 %v3732, %v3731
        %v3752 = vpack.c.b16 %v3734, %v3733
        %v3753 = vpack.c.b16 %v3736, %v3735
        %v3754 = vpack.c.b16 %v3738, %v3737
        %v3759 = vunpack.c.l.b16 %v3671
        %v3760 = vunpack.c.l.b16 %v3672
        %v3761 = vunpack.c.l.b16 %v3673
        %v3762 = vunpack.c.l.b16 %v3674
        %v3763 = vpack.c.b16 %v3760, %v3759
        %v3764 = vpack.c.b16 %v3762, %v3761
        %v3768 = vsel %vm1066, %v3739, 0
        %v3771 = vsel %vm1066, %v3740, 0
        %v3774 = vsel %vm1066, %v3741, 0
        %v3777 = vsel %vm1066, %v3742, 0
        %v3780 = vsel %vm1066, %v3743, 0
        %v3783 = vsel %vm1066, %v3744, 0
        %v3786 = vsel %vm1066, %v3745, 0
        %v3789 = vsel %vm1066, %v3746, 0
        %v3792 = vsel %vm1066, %v3747, 0
        %v3795 = vsel %vm1066, %v3748, 0
        %v3798 = vsel %vm1066, %v3749, 0
        %v3801 = vsel %vm1066, %v3750, 0
        %v3804 = vsel %vm1066, %v3751, 0
        %v3807 = vsel %vm1066, %v3752, 0
        %v3810 = vsel %vm1066, %v3753, 0
        %v3813 = vsel %vm1066, %v3754, 0
        %3815 = vmatprep.subr.bf16.mxu0 0
        %3816 = vmatpush1.bf16.msra.mxu0 %v3763
        %3817 = vmatprep.subr.bf16.mxu0 0
        %3818 = vmatpush1.bf16.msra.mxu0 %v3764
        %3819 = vmatprep.subr.bf16.mxu0 0
        %3820 = vmatpush1.bf16.msra.mxu0 0
        %3821 = vmatprep.subr.bf16.mxu0 0
        %3822 = vmatpush1.bf16.msra.mxu0 0
        %3823 = vmatprep.subr.bf16.mxu0 0
        %3824 = vmatpush1.bf16.msra.mxu0 0
        %3825 = vmatprep.subr.bf16.mxu0 0
        %3826 = vmatpush1.bf16.msra.mxu0 0
        %3827 = vmatprep.subr.bf16.mxu0 0
        %3828 = vmatpush1.bf16.msra.mxu0 0
        %3829 = vmatprep.subr.bf16.mxu0 0
        %3830 = vmatpush1.bf16.msra.mxu0 0
        %3831 = vmatprep.subr.bf16.mxu0 0
        %3832 = vmatpush1.bf16.msra.mxu0 0
        %3833 = vmatprep.subr.bf16.mxu0 0
        %3834 = vmatpush1.bf16.msra.mxu0 0
        %3835 = vmatprep.subr.bf16.mxu0 0
        %3836 = vmatpush1.bf16.msra.mxu0 0
        %3837 = vmatprep.subr.bf16.mxu0 0
        %3838 = vmatpush1.bf16.msra.mxu0 0
        %3839 = vmatprep.subr.bf16.mxu0 0
        %3840 = vmatpush1.bf16.msra.mxu0 0
        %3841 = vmatprep.subr.bf16.mxu0 0
        %3842 = vmatpush1.bf16.msra.mxu0 0
        %3843 = vmatprep.subr.bf16.mxu0 0
        %3844 = vmatpush1.bf16.msra.mxu0 0
        %3845 = vmatprep.subr.bf16.mxu0 0
        %3846 = vmatpush1.bf16.msra.mxu0 0
        %3847 = vmatprep.mubr.bf16.mxu0 0
        %3848 = vmatmul.mubr.bf16.gmra.mrb[0].mxu0 %v3768
        %v3849 = vpop.f32.mrb[0].mxu0
        %v3850 = vadd.f32 0.0, %v3849
        %v3851 = vpop.f32.mrb[0].mxu0
        %v3852 = vpop.f32.mrb[0].mxu0
        %v3853 = vadd.f32 0.0, %v3852
        %v3854 = vpop.f32.mrb[0].mxu0
        %3855 = vmatprep.mubr.bf16.mxu0 0
        %3856 = vmatmul.mubr.bf16.gmra.mrb[0].mxu0 %v3771
        %v3857 = vpop.f32.mrb[0].mxu0
        %v3858 = vadd.f32 0.0, %v3857
        %v3859 = vpop.f32.mrb[0].mxu0
        %v3860 = vpop.f32.mrb[0].mxu0
        %v3861 = vadd.f32 0.0, %v3860
        %v3862 = vpop.f32.mrb[0].mxu0
        %3863 = vmatprep.mubr.bf16.mxu0 0
        %3864 = vmatmul.mubr.bf16.gmra.mrb[0].mxu0 %v3774
        %v3865 = vpop.f32.mrb[0].mxu0
        %v3866 = vadd.f32 0.0, %v3865
        %v3867 = vpop.f32.mrb[0].mxu0
        %v3868 = vpop.f32.mrb[0].mxu0
        %v3869 = vadd.f32 0.0, %v3868
        %v3870 = vpop.f32.mrb[0].mxu0
        %3871 = vmatprep.mubr.bf16.mxu0 0
        %3872 = vmatmul.mubr.bf16.gmra.mrb[0].mxu0 %v3777
        %v3873 = vpop.f32.mrb[0].mxu0
        %v3874 = vadd.f32 0.0, %v3873
        %v3875 = vpop.f32.mrb[0].mxu0
        %v3876 = vpop.f32.mrb[0].mxu0
        %v3877 = vadd.f32 0.0, %v3876
        %v3878 = vpop.f32.mrb[0].mxu0
        %3879 = vmatprep.mubr.bf16.mxu0 0
        %3880 = vmatmul.mubr.bf16.gmra.mrb[0].mxu0 %v3780
        %v3881 = vpop.f32.mrb[0].mxu0
        %v3882 = vadd.f32 0.0, %v3881
        %v3883 = vpop.f32.mrb[0].mxu0
        %v3884 = vpop.f32.mrb[0].mxu0
        %v3885 = vadd.f32 0.0, %v3884
        %v3886 = vpop.f32.mrb[0].mxu0
        %3887 = vmatprep.mubr.bf16.mxu0 0
        %3888 = vmatmul.mubr.bf16.gmra.mrb[0].mxu0 %v3783
        %v3889 = vpop.f32.mrb[0].mxu0
        %v3890 = vadd.f32 0.0, %v3889
        %v3891 = vpop.f32.mrb[0].mxu0
        %v3892 = vpop.f32.mrb[0].mxu0
        %v3893 = vadd.f32 0.0, %v3892
        %v3894 = vpop.f32.mrb[0].mxu0
        %3895 = vmatprep.mubr.bf16.mxu0 0
        %3896 = vmatmul.mubr.bf16.gmra.mrb[0].mxu0 %v3786
        %v3897 = vpop.f32.mrb[0].mxu0
        %v3898 = vadd.f32 0.0, %v3897
        %v3899 = vpop.f32.mrb[0].mxu0
        %v3900 = vpop.f32.mrb[0].mxu0
        %v3901 = vadd.f32 0.0, %v3900
        %v3902 = vpop.f32.mrb[0].mxu0
        %3903 = vmatprep.mubr.bf16.mxu0 0
        %3904 = vmatmul.mubr.bf16.gmra.mrb[0].mxu0 %v3789
        %v3905 = vpop.f32.mrb[0].mxu0
        %v3906 = vadd.f32 0.0, %v3905
        %v3907 = vpop.f32.mrb[0].mxu0
        %v3908 = vpop.f32.mrb[0].mxu0
        %v3909 = vadd.f32 0.0, %v3908
        %v3910 = vpop.f32.mrb[0].mxu0
        %3911 = vmatprep.mubr.bf16.mxu0 0
        %3912 = vmatmul.mubr.bf16.gmra.mrb[0].mxu0 %v3792
        %v3913 = vpop.f32.mrb[0].mxu0
        %v3914 = vadd.f32 0.0, %v3913
        %v3915 = vpop.f32.mrb[0].mxu0
        %v3916 = vpop.f32.mrb[0].mxu0
        %v3917 = vadd.f32 0.0, %v3916
        %v3918 = vpop.f32.mrb[0].mxu0
        %3919 = vmatprep.mubr.bf16.mxu0 0
        %3920 = vmatmul.mubr.bf16.gmra.mrb[0].mxu0 %v3795
        %v3921 = vpop.f32.mrb[0].mxu0
        %v3922 = vadd.f32 0.0, %v3921
        %v3923 = vpop.f32.mrb[0].mxu0
        %v3924 = vpop.f32.mrb[0].mxu0
        %v3925 = vadd.f32 0.0, %v3924
        %v3926 = vpop.f32.mrb[0].mxu0
        %3927 = vmatprep.mubr.bf16.mxu0 0
        %3928 = vmatmul.mubr.bf16.gmra.mrb[0].mxu0 %v3798
        %v3929 = vpop.f32.mrb[0].mxu0
        %v3930 = vadd.f32 0.0, %v3929
        %v3931 = vpop.f32.mrb[0].mxu0
        %v3932 = vpop.f32.mrb[0].mxu0
        %v3933 = vadd.f32 0.0, %v3932
        %v3934 = vpop.f32.mrb[0].mxu0
        %3935 = vmatprep.mubr.bf16.mxu0 0
        %3936 = vmatmul.mubr.bf16.gmra.mrb[0].mxu0 %v3801
        %v3937 = vpop.f32.mrb[0].mxu0
        %v3938 = vadd.f32 0.0, %v3937
        %v3939 = vpop.f32.mrb[0].mxu0
        %v3940 = vpop.f32.mrb[0].mxu0
        %v3941 = vadd.f32 0.0, %v3940
        %v3942 = vpop.f32.mrb[0].mxu0
        %3943 = vmatprep.mubr.bf16.mxu0 0
        %3944 = vmatmul.mubr.bf16.gmra.mrb[0].mxu0 %v3804
        %v3945 = vpop.f32.mrb[0].mxu0
        %v3946 = vadd.f32 0.0, %v3945
        %v3947 = vpop.f32.mrb[0].mxu0
        %v3948 = vpop.f32.mrb[0].mxu0
        %v3949 = vadd.f32 0.0, %v3948
        %v3950 = vpop.f32.mrb[0].mxu0
        %3951 = vmatprep.mubr.bf16.mxu0 0
        %3952 = vmatmul.mubr.bf16.gmra.mrb[0].mxu0 %v3807
        %v3953 = vpop.f32.mrb[0].mxu0
        %v3954 = vadd.f32 0.0, %v3953
        %v3955 = vpop.f32.mrb[0].mxu0
        %v3956 = vpop.f32.mrb[0].mxu0
        %v3957 = vadd.f32 0.0, %v3956
        %v3958 = vpop.f32.mrb[0].mxu0
        %3959 = vmatprep.mubr.bf16.mxu0 0
        %3960 = vmatmul.mubr.bf16.gmra.mrb[0].mxu0 %v3810
        %v3961 = vpop.f32.mrb[0].mxu0
        %v3962 = vadd.f32 0.0, %v3961
        %v3963 = vpop.f32.mrb[0].mxu0
        %v3964 = vpop.f32.mrb[0].mxu0
        %v3965 = vadd.f32 0.0, %v3964
        %v3966 = vpop.f32.mrb[0].mxu0
        %3967 = vmatprep.mubr.bf16.mxu0 0
        %3968 = vmatmul.mubr.bf16.gmra.mrb[0].mxu0 %v3813
        %v3969 = vpop.f32.mrb[0].mxu0
        %v3970 = vadd.f32 0.0, %v3969
        %v3971 = vpop.f32.mrb[0].mxu0
        %v3972 = vpop.f32.mrb[0].mxu0
        %v3973 = vadd.f32 0.0, %v3972
        %v3974 = vpop.f32.mrb[0].mxu0
        %3975 = vdwg.mxu0
        %v3976 = vadd.f32 %v3605, %v3850
        %v3977 = vadd.f32 %v3606, %v3853
        %v3978 = vadd.f32 %v3607, %v3858
        %v3979 = vadd.f32 %v3608, %v3861
        %v3980 = vadd.f32 %v3609, %v3866
        %v3981 = vadd.f32 %v3610, %v3869
        %v3982 = vadd.f32 %v3611, %v3874
        %v3983 = vadd.f32 %v3612, %v3877
        %v3984 = vadd.f32 %v3613, %v3882
        %v3985 = vadd.f32 %v3614, %v3885
        %v3986 = vadd.f32 %v3615, %v3890
        %v3987 = vadd.f32 %v3616, %v3893
        %v3988 = vadd.f32 %v3617, %v3898
        %v3989 = vadd.f32 %v3618, %v3901
        %v3990 = vadd.f32 %v3619, %v3906
        %v3991 = vadd.f32 %v3620, %v3909
        %v3992 = vadd.f32 %v3621, %v3914
        %v3993 = vadd.f32 %v3622, %v3917
        %v3994 = vadd.f32 %v3623, %v3922
        %v3995 = vadd.f32 %v3624, %v3925
        %v3996 = vadd.f32 %v3625, %v3930
        %v3997 = vadd.f32 %v3626, %v3933
        %v3998 = vadd.f32 %v3627, %v3938
        %v3999 = vadd.f32 %v3628, %v3941
        %v4000 = vadd.f32 %v3629, %v3946
        %v4001 = vadd.f32 %v3630, %v3949
        %v4002 = vadd.f32 %v3631, %v3954
        %v4003 = vadd.f32 %v3632, %v3957
        %v4004 = vadd.f32 %v3633, %v3962
        %v4005 = vadd.f32 %v3634, %v3965
        %v4006 = vadd.f32 %v3635, %v3970
        %v4007 = vadd.f32 %v3636, %v3973
        %v4008 = vld [vmem:[%s3637] sm:$0xf]
        %v4009 = vld [vmem:[%s3637 + $0x4] sm:$0xf]
        %v4010 = vld [vmem:[%s3637 + $0x8] sm:$0x1]
        %v4011 = vld [vmem:[%s3637 + $0xc] sm:$0xf]
        %v4012 = vld [vmem:[%s3637 + $0x10] sm:$0xf]
        %v4013 = vld [vmem:[%s3637 + $0x14] sm:$0x1]
        %v4014 = vld [vmem:[%s3637 + $0x18] sm:$0xf]
        %v4015 = vld [vmem:[%s3637 + $0x1c] sm:$0xf]
        %v4016 = vld [vmem:[%s3637 + $0x20] sm:$0x1]
        %v4017 = vld [vmem:[%s3637 + $0x24] sm:$0xf]
        %v4018 = vld [vmem:[%s3637 + $0x28] sm:$0xf]
        %v4019 = vld [vmem:[%s3637 + $0x2c] sm:$0x1]
        %v4020 = vld [vmem:[%s3637 + $0x30] sm:$0xf]
        %v4021 = vld [vmem:[%s3637 + $0x34] sm:$0xf]
        %v4022 = vld [vmem:[%s3637 + $0x38] sm:$0x1]
        %v4023 = vld [vmem:[%s3637 + $0x3c] sm:$0xf]
        %v4024 = vld [vmem:[%s3637 + $0x40] sm:$0xf]
        %v4025 = vld [vmem:[%s3637 + $0x44] sm:$0x1]
        %v4026 = vld [vmem:[%s3637 + $0x48] sm:$0xf]
        %v4027 = vld [vmem:[%s3637 + $0x4c] sm:$0xf]
        %v4028 = vld [vmem:[%s3637 + $0x50] sm:$0x1]
        %v4029 = vld [vmem:[%s3637 + $0x54] sm:$0xf]
        %v4030 = vld [vmem:[%s3637 + $0x58] sm:$0xf]
        %v4031 = vld [vmem:[%s3637 + $0x5c] sm:$0x1]
        %v4032 = vld [vmem:[%s3637 + $0x60] sm:$0xf]
        %v4033 = vld [vmem:[%s3637 + $0x64] sm:$0xf]
        %v4034 = vld [vmem:[%s3637 + $0x68] sm:$0x1]
        %v4035 = vld [vmem:[%s3637 + $0x6c] sm:$0xf]
        %v4036 = vld [vmem:[%s3637 + $0x70] sm:$0xf]
        %v4037 = vld [vmem:[%s3637 + $0x74] sm:$0x1]
        %v4038 = vld [vmem:[%s3637 + $0x78] sm:$0xf]
        %v4039 = vld [vmem:[%s3637 + $0x7c] sm:$0xf]
        %v4040 = vld [vmem:[%s3637 + $0x80] sm:$0x1]
        %v4041 = vld [vmem:[%s3637 + $0x84] sm:$0xf]
        %v4042 = vld [vmem:[%s3637 + $0x88] sm:$0xf]
        %v4043 = vld [vmem:[%s3637 + $0x8c] sm:$0x1]
        %v4044 = vld [vmem:[%s3637 + $0x90] sm:$0xf]
        %v4045 = vld [vmem:[%s3637 + $0x94] sm:$0xf]
        %v4046 = vld [vmem:[%s3637 + $0x98] sm:$0x1]
        %v4047 = vld [vmem:[%s3637 + $0x9c] sm:$0xf]
        %v4048 = vld [vmem:[%s3637 + $0xa0] sm:$0xf]
        %v4049 = vld [vmem:[%s3637 + $0xa4] sm:$0x1]
        %v4050 = vld [vmem:[%s3637 + $0xa8] sm:$0xf]
        %v4051 = vld [vmem:[%s3637 + $0xac] sm:$0xf]
        %v4052 = vld [vmem:[%s3637 + $0xb0] sm:$0x1]
        %v4053 = vld [vmem:[%s3637 + $0xb4] sm:$0xf]
        %v4054 = vld [vmem:[%s3637 + $0xb8] sm:$0xf]
        %v4055 = vld [vmem:[%s3637 + $0xbc] sm:$0x1]
        %v4057 = vshrl.u32 %v4008, 16
        %v4059 = vrot.slane %v4057, 4
        %v4060 = vshll.u32 %v4008, 16
        %v4062 = vrot.slane %v4060, 5
        %v4063 = vor.u32 %v4059, %v4062
        %v4064 = vrot.slane %v4063, 4
        %v4066 = vshll.u32 %v4009, 16
        %v4068 = vrot.slane %v4066, 5
        %v4069 = vsel %vm616, %v4064, %v4068
        %v4070 = vshrl.u32 %v4009, 16
        %v4072 = vrot.slane %v4070, 4
        %v4073 = vor.u32 %v4072, %v4068
        %v4074 = vrot.slane %v4073, 4
        %v4076 = vshll.u32 %v4010, 16
        %v4078 = vrot.slane %v4076, 5
        %v4079 = vsel %vm616, %v4074, %v4078
        %v4081 = vshrl.u32 %v4011, 16
        %v4083 = vrot.slane %v4081, 4
        %v4084 = vshll.u32 %v4011, 16
        %v4086 = vrot.slane %v4084, 5
        %v4087 = vor.u32 %v4083, %v4086
        %v4088 = vrot.slane %v4087, 4
        %v4090 = vshll.u32 %v4012, 16
        %v4092 = vrot.slane %v4090, 5
        %v4093 = vsel %vm616, %v4088, %v4092
        %v4094 = vshrl.u32 %v4012, 16
        %v4096 = vrot.slane %v4094, 4
        %v4097 = vor.u32 %v4096, %v4092
        %v4098 = vrot.slane %v4097, 4
        %v4100 = vshll.u32 %v4013, 16
        %v4102 = vrot.slane %v4100, 5
        %v4103 = vsel %vm616, %v4098, %v4102
        %v4105 = vshrl.u32 %v4014, 16
        %v4107 = vrot.slane %v4105, 4
        %v4108 = vshll.u32 %v4014, 16
        %v4110 = vrot.slane %v4108, 5
        %v4111 = vor.u32 %v4107, %v4110
        %v4112 = vrot.slane %v4111, 4
        %v4114 = vshll.u32 %v4015, 16
        %v4116 = vrot.slane %v4114, 5
        %v4117 = vsel %vm616, %v4112, %v4116
        %v4118 = vshrl.u32 %v4015, 16
        %v4120 = vrot.slane %v4118, 4
        %v4121 = vor.u32 %v4120, %v4116
        %v4122 = vrot.slane %v4121, 4
        %v4124 = vshll.u32 %v4016, 16
        %v4126 = vrot.slane %v4124, 5
        %v4127 = vsel %vm616, %v4122, %v4126
        %v4129 = vshrl.u32 %v4017, 16
        %v4131 = vrot.slane %v4129, 4
        %v4132 = vshll.u32 %v4017, 16
        %v4134 = vrot.slane %v4132, 5
        %v4135 = vor.u32 %v4131, %v4134
        %v4136 = vrot.slane %v4135, 4
        %v4138 = vshll.u32 %v4018, 16
        %v4140 = vrot.slane %v4138, 5
        %v4141 = vsel %vm616, %v4136, %v4140
        %v4142 = vshrl.u32 %v4018, 16
        %v4144 = vrot.slane %v4142, 4
        %v4145 = vor.u32 %v4144, %v4140
        %v4146 = vrot.slane %v4145, 4
        %v4148 = vshll.u32 %v4019, 16
        %v4150 = vrot.slane %v4148, 5
        %v4151 = vsel %vm616, %v4146, %v4150
        %v4153 = vshrl.u32 %v4020, 16
        %v4155 = vrot.slane %v4153, 4
        %v4156 = vshll.u32 %v4020, 16
        %v4158 = vrot.slane %v4156, 5
        %v4159 = vor.u32 %v4155, %v4158
        %v4160 = vrot.slane %v4159, 4
        %v4162 = vshll.u32 %v4021, 16
        %v4164 = vrot.slane %v4162, 5
        %v4165 = vsel %vm616, %v4160, %v4164
        %v4166 = vshrl.u32 %v4021, 16
        %v4168 = vrot.slane %v4166, 4
        %v4169 = vor.u32 %v4168, %v4164
        %v4170 = vrot.slane %v4169, 4
        %v4172 = vshll.u32 %v4022, 16
        %v4174 = vrot.slane %v4172, 5
        %v4175 = vsel %vm616, %v4170, %v4174
        %v4177 = vshrl.u32 %v4023, 16
        %v4179 = vrot.slane %v4177, 4
        %v4180 = vshll.u32 %v4023, 16
        %v4182 = vrot.slane %v4180, 5
        %v4183 = vor.u32 %v4179, %v4182
        %v4184 = vrot.slane %v4183, 4
        %v4186 = vshll.u32 %v4024, 16
        %v4188 = vrot.slane %v4186, 5
        %v4189 = vsel %vm616, %v4184, %v4188
        %v4190 = vshrl.u32 %v4024, 16
        %v4192 = vrot.slane %v4190, 4
        %v4193 = vor.u32 %v4192, %v4188
        %v4194 = vrot.slane %v4193, 4
        %v4196 = vshll.u32 %v4025, 16
        %v4198 = vrot.slane %v4196, 5
        %v4199 = vsel %vm616, %v4194, %v4198
        %v4201 = vshrl.u32 %v4026, 16
        %v4203 = vrot.slane %v4201, 4
        %v4204 = vshll.u32 %v4026, 16
        %v4206 = vrot.slane %v4204, 5
        %v4207 = vor.u32 %v4203, %v4206
        %v4208 = vrot.slane %v4207, 4
        %v4210 = vshll.u32 %v4027, 16
        %v4212 = vrot.slane %v4210, 5
        %v4213 = vsel %vm616, %v4208, %v4212
        %v4214 = vshrl.u32 %v4027, 16
        %v4216 = vrot.slane %v4214, 4
        %v4217 = vor.u32 %v4216, %v4212
        %v4218 = vrot.slane %v4217, 4
        %v4220 = vshll.u32 %v4028, 16
        %v4222 = vrot.slane %v4220, 5
        %v4223 = vsel %vm616, %v4218, %v4222
        %v4225 = vshrl.u32 %v4029, 16
        %v4227 = vrot.slane %v4225, 4
        %v4228 = vshll.u32 %v4029, 16
        %v4230 = vrot.slane %v4228, 5
        %v4231 = vor.u32 %v4227, %v4230
        %v4232 = vrot.slane %v4231, 4
        %v4234 = vshll.u32 %v4030, 16
        %v4236 = vrot.slane %v4234, 5
        %v4237 = vsel %vm616, %v4232, %v4236
        %v4238 = vshrl.u32 %v4030, 16
        %v4240 = vrot.slane %v4238, 4
        %v4241 = vor.u32 %v4240, %v4236
        %v4242 = vrot.slane %v4241, 4
        %v4244 = vshll.u32 %v4031, 16
        %v4246 = vrot.slane %v4244, 5
        %v4247 = vsel %vm616, %v4242, %v4246
        %v4249 = vshrl.u32 %v4032, 16
        %v4251 = vrot.slane %v4249, 4
        %v4252 = vshll.u32 %v4032, 16
        %v4254 = vrot.slane %v4252, 5
        %v4255 = vor.u32 %v4251, %v4254
        %v4256 = vrot.slane %v4255, 4
        %v4258 = vshll.u32 %v4033, 16
        %v4260 = vrot.slane %v4258, 5
        %v4261 = vsel %vm616, %v4256, %v4260
        %v4262 = vshrl.u32 %v4033, 16
        %v4264 = vrot.slane %v4262, 4
        %v4265 = vor.u32 %v4264, %v4260
        %v4266 = vrot.slane %v4265, 4
        %v4268 = vshll.u32 %v4034, 16
        %v4270 = vrot.slane %v4268, 5
        %v4271 = vsel %vm616, %v4266, %v4270
        %v4273 = vshrl.u32 %v4035, 16
        %v4275 = vrot.slane %v4273, 4
        %v4276 = vshll.u32 %v4035, 16
        %v4278 = vrot.slane %v4276, 5
        %v4279 = vor.u32 %v4275, %v4278
        %v4280 = vrot.slane %v4279, 4
        %v4282 = vshll.u32 %v4036, 16
        %v4284 = vrot.slane %v4282, 5
        %v4285 = vsel %vm616, %v4280, %v4284
        %v4286 = vshrl.u32 %v4036, 16
        %v4288 = vrot.slane %v4286, 4
        %v4289 = vor.u32 %v4288, %v4284
        %v4290 = vrot.slane %v4289, 4
        %v4292 = vshll.u32 %v4037, 16
        %v4294 = vrot.slane %v4292, 5
        %v4295 = vsel %vm616, %v4290, %v4294
        %v4297 = vshrl.u32 %v4038, 16
        %v4299 = vrot.slane %v4297, 4
        %v4300 = vshll.u32 %v4038, 16
        %v4302 = vrot.slane %v4300, 5
        %v4303 = vor.u32 %v4299, %v4302
        %v4304 = vrot.slane %v4303, 4
        %v4306 = vshll.u32 %v4039, 16
        %v4308 = vrot.slane %v4306, 5
        %v4309 = vsel %vm616, %v4304, %v4308
        %v4310 = vshrl.u32 %v4039, 16
        %v4312 = vrot.slane %v4310, 4
        %v4313 = vor.u32 %v4312, %v4308
        %v4314 = vrot.slane %v4313, 4
        %v4316 = vshll.u32 %v4040, 16
        %v4318 = vrot.slane %v4316, 5
        %v4319 = vsel %vm616, %v4314, %v4318
        %v4321 = vshrl.u32 %v4041, 16
        %v4323 = vrot.slane %v4321, 4
        %v4324 = vshll.u32 %v4041, 16
        %v4326 = vrot.slane %v4324, 5
        %v4327 = vor.u32 %v4323, %v4326
        %v4328 = vrot.slane %v4327, 4
        %v4330 = vshll.u32 %v4042, 16
        %v4332 = vrot.slane %v4330, 5
        %v4333 = vsel %vm616, %v4328, %v4332
        %v4334 = vshrl.u32 %v4042, 16
        %v4336 = vrot.slane %v4334, 4
        %v4337 = vor.u32 %v4336, %v4332
        %v4338 = vrot.slane %v4337, 4
        %v4340 = vshll.u32 %v4043, 16
        %v4342 = vrot.slane %v4340, 5
        %v4343 = vsel %vm616, %v4338, %v4342
        %v4345 = vshrl.u32 %v4044, 16
        %v4347 = vrot.slane %v4345, 4
        %v4348 = vshll.u32 %v4044, 16
        %v4350 = vrot.slane %v4348, 5
        %v4351 = vor.u32 %v4347, %v4350
        %v4352 = vrot.slane %v4351, 4
        %v4354 = vshll.u32 %v4045, 16
        %v4356 = vrot.slane %v4354, 5
        %v4357 = vsel %vm616, %v4352, %v4356
        %v4358 = vshrl.u32 %v4045, 16
        %v4360 = vrot.slane %v4358, 4
        %v4361 = vor.u32 %v4360, %v4356
        %v4362 = vrot.slane %v4361, 4
        %v4364 = vshll.u32 %v4046, 16
        %v4366 = vrot.slane %v4364, 5
        %v4367 = vsel %vm616, %v4362, %v4366
        %v4369 = vshrl.u32 %v4047, 16
        %v4371 = vrot.slane %v4369, 4
        %v4372 = vshll.u32 %v4047, 16
        %v4374 = vrot.slane %v4372, 5
        %v4375 = vor.u32 %v4371, %v4374
        %v4376 = vrot.slane %v4375, 4
        %v4378 = vshll.u32 %v4048, 16
        %v4380 = vrot.slane %v4378, 5
        %v4381 = vsel %vm616, %v4376, %v4380
        %v4382 = vshrl.u32 %v4048, 16
        %v4384 = vrot.slane %v4382, 4
        %v4385 = vor.u32 %v4384, %v4380
        %v4386 = vrot.slane %v4385, 4
        %v4388 = vshll.u32 %v4049, 16
        %v4390 = vrot.slane %v4388, 5
        %v4391 = vsel %vm616, %v4386, %v4390
        %v4393 = vshrl.u32 %v4050, 16
        %v4395 = vrot.slane %v4393, 4
        %v4396 = vshll.u32 %v4050, 16
        %v4398 = vrot.slane %v4396, 5
        %v4399 = vor.u32 %v4395, %v4398
        %v4400 = vrot.slane %v4399, 4
        %v4402 = vshll.u32 %v4051, 16
        %v4404 = vrot.slane %v4402, 5
        %v4405 = vsel %vm616, %v4400, %v4404
        %v4406 = vshrl.u32 %v4051, 16
        %v4408 = vrot.slane %v4406, 4
        %v4409 = vor.u32 %v4408, %v4404
        %v4410 = vrot.slane %v4409, 4
        %v4412 = vshll.u32 %v4052, 16
        %v4414 = vrot.slane %v4412, 5
        %v4415 = vsel %vm616, %v4410, %v4414
        %v4417 = vshrl.u32 %v4053, 16
        %v4419 = vrot.slane %v4417, 4
        %v4420 = vshll.u32 %v4053, 16
        %v4422 = vrot.slane %v4420, 5
        %v4423 = vor.u32 %v4419, %v4422
        %v4424 = vrot.slane %v4423, 4
        %v4426 = vshll.u32 %v4054, 16
        %v4428 = vrot.slane %v4426, 5
        %v4429 = vsel %vm616, %v4424, %v4428
        %v4430 = vshrl.u32 %v4054, 16
        %v4432 = vrot.slane %v4430, 4
        %v4433 = vor.u32 %v4432, %v4428
        %v4434 = vrot.slane %v4433, 4
        %v4436 = vshll.u32 %v4055, 16
        %v4438 = vrot.slane %v4436, 5
        %v4439 = vsel %vm616, %v4434, %v4438
        %s4440 = scalar_lea.vmem [#allocation9], 112
        %v4441 = vld [vmem:[%s4440] sm:$0xf]
        %v4442 = vld [vmem:[%s4440 + $0x4] sm:$0xf]
        %v4443 = vld [vmem:[%s4440 + $0x8] sm:$0xf]
        %v4444 = vld [vmem:[%s4440 + $0xc] sm:$0xf]
        %v4445 = vunpack.c.l.b16 %v4069
        %v4446 = vunpack.c.l.b16 %v4079
        %v4447 = vunpack.c.l.b16 %v4093
        %v4448 = vunpack.c.l.b16 %v4103
        %v4449 = vunpack.c.l.b16 %v4117
        %v4450 = vunpack.c.l.b16 %v4127
        %v4451 = vunpack.c.l.b16 %v4141
        %v4452 = vunpack.c.l.b16 %v4151
        %v4453 = vunpack.c.l.b16 %v4165
        %v4454 = vunpack.c.l.b16 %v4175
        %v4455 = vunpack.c.l.b16 %v4189
        %v4456 = vunpack.c.l.b16 %v4199
        %v4457 = vunpack.c.l.b16 %v4213
        %v4458 = vunpack.c.l.b16 %v4223
        %v4459 = vunpack.c.l.b16 %v4237
        %v4460 = vunpack.c.l.b16 %v4247
        %v4461 = vunpack.c.l.b16 %v4261
        %v4462 = vunpack.c.l.b16 %v4271
        %v4463 = vunpack.c.l.b16 %v4285
        %v4464 = vunpack.c.l.b16 %v4295
        %v4465 = vunpack.c.l.b16 %v4309
        %v4466 = vunpack.c.l.b16 %v4319
        %v4467 = vunpack.c.l.b16 %v4333
        %v4468 = vunpack.c.l.b16 %v4343
        %v4469 = vunpack.c.l.b16 %v4357
        %v4470 = vunpack.c.l.b16 %v4367
        %v4471 = vunpack.c.l.b16 %v4381
        %v4472 = vunpack.c.l.b16 %v4391
        %v4473 = vunpack.c.l.b16 %v4405
        %v4474 = vunpack.c.l.b16 %v4415
        %v4475 = vunpack.c.l.b16 %v4429
        %v4476 = vunpack.c.l.b16 %v4439
        %v4477 = vpack.c.b16 %v4446, %v4445
        %v4478 = vpack.c.b16 %v4448, %v4447
        %v4479 = vpack.c.b16 %v4450, %v4449
        %v4480 = vpack.c.b16 %v4452, %v4451
        %v4481 = vpack.c.b16 %v4454, %v4453
        %v4482 = vpack.c.b16 %v4456, %v4455
        %v4483 = vpack.c.b16 %v4458, %v4457
        %v4484 = vpack.c.b16 %v4460, %v4459
        %v4485 = vpack.c.b16 %v4462, %v4461
        %v4486 = vpack.c.b16 %v4464, %v4463
        %v4487 = vpack.c.b16 %v4466, %v4465
        %v4488 = vpack.c.b16 %v4468, %v4467
        %v4489 = vpack.c.b16 %v4470, %v4469
        %v4490 = vpack.c.b16 %v4472, %v4471
        %v4491 = vpack.c.b16 %v4474, %v4473
        %v4492 = vpack.c.b16 %v4476, %v4475
        %v4497 = vunpack.c.l.b16 %v4441
        %v4498 = vunpack.c.l.b16 %v4442
        %v4499 = vunpack.c.l.b16 %v4443
        %v4500 = vunpack.c.l.b16 %v4444
        %v4501 = vpack.c.b16 %v4498, %v4497
        %v4502 = vpack.c.b16 %v4500, %v4499
        %v4506 = vsel %vm1066, %v4477, 0
        %v4509 = vsel %vm1066, %v4478, 0
        %v4512 = vsel %vm1066, %v4479, 0
        %v4515 = vsel %vm1066, %v4480, 0
        %v4518 = vsel %vm1066, %v4481, 0
        %v4521 = vsel %vm1066, %v4482, 0
        %v4524 = vsel %vm1066, %v4483, 0
        %v4527 = vsel %vm1066, %v4484, 0
        %v4530 = vsel %vm1066, %v4485, 0
        %v4533 = vsel %vm1066, %v4486, 0
        %v4536 = vsel %vm1066, %v4487, 0
        %v4539 = vsel %vm1066, %v4488, 0
        %v4542 = vsel %vm1066, %v4489, 0
        %v4545 = vsel %vm1066, %v4490, 0
        %v4548 = vsel %vm1066, %v4491, 0
        %v4551 = vsel %vm1066, %v4492, 0
        %4553 = vmatprep.subr.bf16.mxu0 0
        %4554 = vmatpush1.bf16.msra.mxu0 %v4501
        %4555 = vmatprep.subr.bf16.mxu0 0
        %4556 = vmatpush1.bf16.msra.mxu0 %v4502
        %4557 = vmatprep.subr.bf16.mxu0 0
        %4558 = vmatpush1.bf16.msra.mxu0 0
        %4559 = vmatprep.subr.bf16.mxu0 0
        %4560 = vmatpush1.bf16.msra.mxu0 0
        %4561 = vmatprep.subr.bf16.mxu0 0
        %4562 = vmatpush1.bf16.msra.mxu0 0
        %4563 = vmatprep.subr.bf16.mxu0 0
        %4564 = vmatpush1.bf16.msra.mxu0 0
        %4565 = vmatprep.subr.bf16.mxu0 0
        %4566 = vmatpush1.bf16.msra.mxu0 0
        %4567 = vmatprep.subr.bf16.mxu0 0
        %4568 = vmatpush1.bf16.msra.mxu0 0
        %4569 = vmatprep.subr.bf16.mxu0 0
        %4570 = vmatpush1.bf16.msra.mxu0 0
        %4571 = vmatprep.subr.bf16.mxu0 0
        %4572 = vmatpush1.bf16.msra.mxu0 0
        %4573 = vmatprep.subr.bf16.mxu0 0
        %4574 = vmatpush1.bf16.msra.mxu0 0
        %4575 = vmatprep.subr.bf16.mxu0 0
        %4576 = vmatpush1.bf16.msra.mxu0 0
        %4577 = vmatprep.subr.bf16.mxu0 0
        %4578 = vmatpush1.bf16.msra.mxu0 0
        %4579 = vmatprep.subr.bf16.mxu0 0
        %4580 = vmatpush1.bf16.msra.mxu0 0
        %4581 = vmatprep.subr.bf16.mxu0 0
        %4582 = vmatpush1.bf16.msra.mxu0 0
        %4583 = vmatprep.subr.bf16.mxu0 0
        %4584 = vmatpush1.bf16.msra.mxu0 0
        %4585 = vmatprep.mubr.bf16.mxu0 0
        %4586 = vmatmul.mubr.bf16.gmra.mrb[0].mxu0 %v4506
        %v4587 = vpop.f32.mrb[0].mxu0
        %v4588 = vadd.f32 0.0, %v4587
        %v4589 = vpop.f32.mrb[0].mxu0
        %v4590 = vpop.f32.mrb[0].mxu0
        %v4591 = vadd.f32 0.0, %v4590
        %v4592 = vpop.f32.mrb[0].mxu0
        %4593 = vmatprep.mubr.bf16.mxu0 0
        %4594 = vmatmul.mubr.bf16.gmra.mrb[0].mxu0 %v4509
        %v4595 = vpop.f32.mrb[0].mxu0
        %v4596 = vadd.f32 0.0, %v4595
        %v4597 = vpop.f32.mrb[0].mxu0
        %v4598 = vpop.f32.mrb[0].mxu0
        %v4599 = vadd.f32 0.0, %v4598
        %v4600 = vpop.f32.mrb[0].mxu0
        %4601 = vmatprep.mubr.bf16.mxu0 0
        %4602 = vmatmul.mubr.bf16.gmra.mrb[0].mxu0 %v4512
        %v4603 = vpop.f32.mrb[0].mxu0
        %v4604 = vadd.f32 0.0, %v4603
        %v4605 = vpop.f32.mrb[0].mxu0
        %v4606 = vpop.f32.mrb[0].mxu0
        %v4607 = vadd.f32 0.0, %v4606
        %v4608 = vpop.f32.mrb[0].mxu0
        %4609 = vmatprep.mubr.bf16.mxu0 0
        %4610 = vmatmul.mubr.bf16.gmra.mrb[0].mxu0 %v4515
        %v4611 = vpop.f32.mrb[0].mxu0
        %v4612 = vadd.f32 0.0, %v4611
        %v4613 = vpop.f32.mrb[0].mxu0
        %v4614 = vpop.f32.mrb[0].mxu0
        %v4615 = vadd.f32 0.0, %v4614
        %v4616 = vpop.f32.mrb[0].mxu0
        %4617 = vmatprep.mubr.bf16.mxu0 0
        %4618 = vmatmul.mubr.bf16.gmra.mrb[0].mxu0 %v4518
        %v4619 = vpop.f32.mrb[0].mxu0
        %v4620 = vadd.f32 0.0, %v4619
        %v4621 = vpop.f32.mrb[0].mxu0
        %v4622 = vpop.f32.mrb[0].mxu0
        %v4623 = vadd.f32 0.0, %v4622
        %v4624 = vpop.f32.mrb[0].mxu0
        %4625 = vmatprep.mubr.bf16.mxu0 0
        %4626 = vmatmul.mubr.bf16.gmra.mrb[0].mxu0 %v4521
        %v4627 = vpop.f32.mrb[0].mxu0
        %v4628 = vadd.f32 0.0, %v4627
        %v4629 = vpop.f32.mrb[0].mxu0
        %v4630 = vpop.f32.mrb[0].mxu0
        %v4631 = vadd.f32 0.0, %v4630
        %v4632 = vpop.f32.mrb[0].mxu0
        %4633 = vmatprep.mubr.bf16.mxu0 0
        %4634 = vmatmul.mubr.bf16.gmra.mrb[0].mxu0 %v4524
        %v4635 = vpop.f32.mrb[0].mxu0
        %v4636 = vadd.f32 0.0, %v4635
        %v4637 = vpop.f32.mrb[0].mxu0
        %v4638 = vpop.f32.mrb[0].mxu0
        %v4639 = vadd.f32 0.0, %v4638
        %v4640 = vpop.f32.mrb[0].mxu0
        %4641 = vmatprep.mubr.bf16.mxu0 0
        %4642 = vmatmul.mubr.bf16.gmra.mrb[0].mxu0 %v4527
        %v4643 = vpop.f32.mrb[0].mxu0
        %v4644 = vadd.f32 0.0, %v4643
        %v4645 = vpop.f32.mrb[0].mxu0
        %v4646 = vpop.f32.mrb[0].mxu0
        %v4647 = vadd.f32 0.0, %v4646
        %v4648 = vpop.f32.mrb[0].mxu0
        %4649 = vmatprep.mubr.bf16.mxu0 0
        %4650 = vmatmul.mubr.bf16.gmra.mrb[0].mxu0 %v4530
        %v4651 = vpop.f32.mrb[0].mxu0
        %v4652 = vadd.f32 0.0, %v4651
        %v4653 = vpop.f32.mrb[0].mxu0
        %v4654 = vpop.f32.mrb[0].mxu0
        %v4655 = vadd.f32 0.0, %v4654
        %v4656 = vpop.f32.mrb[0].mxu0
        %4657 = vmatprep.mubr.bf16.mxu0 0
        %4658 = vmatmul.mubr.bf16.gmra.mrb[0].mxu0 %v4533
        %v4659 = vpop.f32.mrb[0].mxu0
        %v4660 = vadd.f32 0.0, %v4659
        %v4661 = vpop.f32.mrb[0].mxu0
        %v4662 = vpop.f32.mrb[0].mxu0
        %v4663 = vadd.f32 0.0, %v4662
        %v4664 = vpop.f32.mrb[0].mxu0
        %4665 = vmatprep.mubr.bf16.mxu0 0
        %4666 = vmatmul.mubr.bf16.gmra.mrb[0].mxu0 %v4536
        %v4667 = vpop.f32.mrb[0].mxu0
        %v4668 = vadd.f32 0.0, %v4667
        %v4669 = vpop.f32.mrb[0].mxu0
        %v4670 = vpop.f32.mrb[0].mxu0
        %v4671 = vadd.f32 0.0, %v4670
        %v4672 = vpop.f32.mrb[0].mxu0
        %4673 = vmatprep.mubr.bf16.mxu0 0
        %4674 = vmatmul.mubr.bf16.gmra.mrb[0].mxu0 %v4539
        %v4675 = vpop.f32.mrb[0].mxu0
        %v4676 = vadd.f32 0.0, %v4675
        %v4677 = vpop.f32.mrb[0].mxu0
        %v4678 = vpop.f32.mrb[0].mxu0
        %v4679 = vadd.f32 0.0, %v4678
        %v4680 = vpop.f32.mrb[0].mxu0
        %4681 = vmatprep.mubr.bf16.mxu0 0
        %4682 = vmatmul.mubr.bf16.gmra.mrb[0].mxu0 %v4542
        %v4683 = vpop.f32.mrb[0].mxu0
        %v4684 = vadd.f32 0.0, %v4683
        %v4685 = vpop.f32.mrb[0].mxu0
        %v4686 = vpop.f32.mrb[0].mxu0
        %v4687 = vadd.f32 0.0, %v4686
        %v4688 = vpop.f32.mrb[0].mxu0
        %4689 = vmatprep.mubr.bf16.mxu0 0
        %4690 = vmatmul.mubr.bf16.gmra.mrb[0].mxu0 %v4545
        %v4691 = vpop.f32.mrb[0].mxu0
        %v4692 = vadd.f32 0.0, %v4691
        %v4693 = vpop.f32.mrb[0].mxu0
        %v4694 = vpop.f32.mrb[0].mxu0
        %v4695 = vadd.f32 0.0, %v4694
        %v4696 = vpop.f32.mrb[0].mxu0
        %4697 = vmatprep.mubr.bf16.mxu0 0
        %4698 = vmatmul.mubr.bf16.gmra.mrb[0].mxu0 %v4548
        %v4699 = vpop.f32.mrb[0].mxu0
        %v4700 = vadd.f32 0.0, %v4699
        %v4701 = vpop.f32.mrb[0].mxu0
        %v4702 = vpop.f32.mrb[0].mxu0
        %v4703 = vadd.f32 0.0, %v4702
        %v4704 = vpop.f32.mrb[0].mxu0
        %4705 = vmatprep.mubr.bf16.mxu0 0
        %4706 = vmatmul.mubr.bf16.gmra.mrb[0].mxu0 %v4551
        %v4707 = vpop.f32.mrb[0].mxu0
        %v4708 = vadd.f32 0.0, %v4707
        %v4709 = vpop.f32.mrb[0].mxu0
        %v4710 = vpop.f32.mrb[0].mxu0
        %v4711 = vadd.f32 0.0, %v4710
        %v4712 = vpop.f32.mrb[0].mxu0
        %4713 = vdwg.mxu0
        %v4714 = vadd.f32 %v3976, %v4588
        %v4715 = vadd.f32 %v3977, %v4591
        %v4716 = vadd.f32 %v3978, %v4596
        %v4717 = vadd.f32 %v3979, %v4599
        %v4718 = vadd.f32 %v3980, %v4604
        %v4719 = vadd.f32 %v3981, %v4607
        %v4720 = vadd.f32 %v3982, %v4612
        %v4721 = vadd.f32 %v3983, %v4615
        %v4722 = vadd.f32 %v3984, %v4620
        %v4723 = vadd.f32 %v3985, %v4623
        %v4724 = vadd.f32 %v3986, %v4628
        %v4725 = vadd.f32 %v3987, %v4631
        %v4726 = vadd.f32 %v3988, %v4636
        %v4727 = vadd.f32 %v3989, %v4639
        %v4728 = vadd.f32 %v3990, %v4644
        %v4729 = vadd.f32 %v3991, %v4647
        %v4730 = vadd.f32 %v3992, %v4652
        %v4731 = vadd.f32 %v3993, %v4655
        %v4732 = vadd.f32 %v3994, %v4660
        %v4733 = vadd.f32 %v3995, %v4663
        %v4734 = vadd.f32 %v3996, %v4668
        %v4735 = vadd.f32 %v3997, %v4671
        %v4736 = vadd.f32 %v3998, %v4676
        %v4737 = vadd.f32 %v3999, %v4679
        %v4738 = vadd.f32 %v4000, %v4684
        %v4739 = vadd.f32 %v4001, %v4687
        %v4740 = vadd.f32 %v4002, %v4692
        %v4741 = vadd.f32 %v4003, %v4695
        %v4742 = vadd.f32 %v4004, %v4700
        %v4743 = vadd.f32 %v4005, %v4703
        %v4744 = vadd.f32 %v4006, %v4708
        %v4745 = vadd.f32 %v4007, %v4711
        %v4746 = vld [vmem:[%s3637] sm:$0xe]
        %v4747 = vld [vmem:[%s3637 + $0xc] sm:$0xe]
        %v4748 = vld [vmem:[%s3637 + $0x18] sm:$0xe]
        %v4749 = vld [vmem:[%s3637 + $0x24] sm:$0xe]
        %v4750 = vld [vmem:[%s3637 + $0x30] sm:$0xe]
        %v4751 = vld [vmem:[%s3637 + $0x3c] sm:$0xe]
        %v4752 = vld [vmem:[%s3637 + $0x48] sm:$0xe]
        %v4753 = vld [vmem:[%s3637 + $0x54] sm:$0xe]
        %v4754 = vld [vmem:[%s3637 + $0x60] sm:$0xe]
        %v4755 = vld [vmem:[%s3637 + $0x6c] sm:$0xe]
        %v4756 = vld [vmem:[%s3637 + $0x78] sm:$0xe]
        %v4757 = vld [vmem:[%s3637 + $0x84] sm:$0xe]
        %v4758 = vld [vmem:[%s3637 + $0x90] sm:$0xe]
        %v4759 = vld [vmem:[%s3637 + $0x9c] sm:$0xe]
        %v4760 = vld [vmem:[%s3637 + $0xa8] sm:$0xe]
        %v4761 = vld [vmem:[%s3637 + $0xb4] sm:$0xe]
        %v4810 = vrot.slane %v4746, 5
        %v4811 = vrot.slane %v4810, 4
        %v4812 = vrot.slane %v4009, 5
        %v4813 = vsel %vm1627, %v4811, %v4812
        %v4814 = vrot.slane %v4812, 4
        %v4815 = vrot.slane %v4010, 5
        %v4816 = vsel %vm1627, %v4814, %v4815
        %v4817 = vrot.slane %v4747, 5
        %v4818 = vrot.slane %v4817, 4
        %v4819 = vrot.slane %v4012, 5
        %v4820 = vsel %vm1627, %v4818, %v4819
        %v4821 = vrot.slane %v4819, 4
        %v4822 = vrot.slane %v4013, 5
        %v4823 = vsel %vm1627, %v4821, %v4822
        %v4824 = vrot.slane %v4748, 5
        %v4825 = vrot.slane %v4824, 4
        %v4826 = vrot.slane %v4015, 5
        %v4827 = vsel %vm1627, %v4825, %v4826
        %v4828 = vrot.slane %v4826, 4
        %v4829 = vrot.slane %v4016, 5
        %v4830 = vsel %vm1627, %v4828, %v4829
        %v4831 = vrot.slane %v4749, 5
        %v4832 = vrot.slane %v4831, 4
        %v4833 = vrot.slane %v4018, 5
        %v4834 = vsel %vm1627, %v4832, %v4833
        %v4835 = vrot.slane %v4833, 4
        %v4836 = vrot.slane %v4019, 5
        %v4837 = vsel %vm1627, %v4835, %v4836
        %v4838 = vrot.slane %v4750, 5
        %v4839 = vrot.slane %v4838, 4
        %v4840 = vrot.slane %v4021, 5
        %v4841 = vsel %vm1627, %v4839, %v4840
        %v4842 = vrot.slane %v4840, 4
        %v4843 = vrot.slane %v4022, 5
        %v4844 = vsel %vm1627, %v4842, %v4843
        %v4845 = vrot.slane %v4751, 5
        %v4846 = vrot.slane %v4845, 4
        %v4847 = vrot.slane %v4024, 5
        %v4848 = vsel %vm1627, %v4846, %v4847
        %v4849 = vrot.slane %v4847, 4
        %v4850 = vrot.slane %v4025, 5
        %v4851 = vsel %vm1627, %v4849, %v4850
        %v4852 = vrot.slane %v4752, 5
        %v4853 = vrot.slane %v4852, 4
        %v4854 = vrot.slane %v4027, 5
        %v4855 = vsel %vm1627, %v4853, %v4854
        %v4856 = vrot.slane %v4854, 4
        %v4857 = vrot.slane %v4028, 5
        %v4858 = vsel %vm1627, %v4856, %v4857
        %v4859 = vrot.slane %v4753, 5
        %v4860 = vrot.slane %v4859, 4
        %v4861 = vrot.slane %v4030, 5
        %v4862 = vsel %vm1627, %v4860, %v4861
        %v4863 = vrot.slane %v4861, 4
        %v4864 = vrot.slane %v4031, 5
        %v4865 = vsel %vm1627, %v4863, %v4864
        %v4866 = vrot.slane %v4754, 5
        %v4867 = vrot.slane %v4866, 4
        %v4868 = vrot.slane %v4033, 5
        %v4869 = vsel %vm1627, %v4867, %v4868
        %v4870 = vrot.slane %v4868, 4
        %v4871 = vrot.slane %v4034, 5
        %v4872 = vsel %vm1627, %v4870, %v4871
        %v4873 = vrot.slane %v4755, 5
        %v4874 = vrot.slane %v4873, 4
        %v4875 = vrot.slane %v4036, 5
        %v4876 = vsel %vm1627, %v4874, %v4875
        %v4877 = vrot.slane %v4875, 4
        %v4878 = vrot.slane %v4037, 5
        %v4879 = vsel %vm1627, %v4877, %v4878
        %v4880 = vrot.slane %v4756, 5
        %v4881 = vrot.slane %v4880, 4
        %v4882 = vrot.slane %v4039, 5
        %v4883 = vsel %vm1627, %v4881, %v4882
        %v4884 = vrot.slane %v4882, 4
        %v4885 = vrot.slane %v4040, 5
        %v4886 = vsel %vm1627, %v4884, %v4885
        %v4887 = vrot.slane %v4757, 5
        %v4888 = vrot.slane %v4887, 4
        %v4889 = vrot.slane %v4042, 5
        %v4890 = vsel %vm1627, %v4888, %v4889
        %v4891 = vrot.slane %v4889, 4
        %v4892 = vrot.slane %v4043, 5
        %v4893 = vsel %vm1627, %v4891, %v4892
        %v4894 = vrot.slane %v4758, 5
        %v4895 = vrot.slane %v4894, 4
        %v4896 = vrot.slane %v4045, 5
        %v4897 = vsel %vm1627, %v4895, %v4896
        %v4898 = vrot.slane %v4896, 4
        %v4899 = vrot.slane %v4046, 5
        %v4900 = vsel %vm1627, %v4898, %v4899
        %v4901 = vrot.slane %v4759, 5
        %v4902 = vrot.slane %v4901, 4
        %v4903 = vrot.slane %v4048, 5
        %v4904 = vsel %vm1627, %v4902, %v4903
        %v4905 = vrot.slane %v4903, 4
        %v4906 = vrot.slane %v4049, 5
        %v4907 = vsel %vm1627, %v4905, %v4906
        %v4908 = vrot.slane %v4760, 5
        %v4909 = vrot.slane %v4908, 4
        %v4910 = vrot.slane %v4051, 5
        %v4911 = vsel %vm1627, %v4909, %v4910
        %v4912 = vrot.slane %v4910, 4
        %v4913 = vrot.slane %v4052, 5
        %v4914 = vsel %vm1627, %v4912, %v4913
        %v4915 = vrot.slane %v4761, 5
        %v4916 = vrot.slane %v4915, 4
        %v4917 = vrot.slane %v4054, 5
        %v4918 = vsel %vm1627, %v4916, %v4917
        %v4919 = vrot.slane %v4917, 4
        %v4920 = vrot.slane %v4055, 5
        %v4921 = vsel %vm1627, %v4919, %v4920
        %s4922 = scalar_lea.vmem [#allocation9], 128
        %v4923 = vld [vmem:[%s4922] sm:$0xf]
        %v4924 = vld [vmem:[%s4922 + $0x4] sm:$0xf]
        %v4925 = vld [vmem:[%s4922 + $0x8] sm:$0xf]
        %v4926 = vld [vmem:[%s4922 + $0xc] sm:$0xf]
        %v4927 = vunpack.c.l.b16 %v4813
        %v4928 = vunpack.c.l.b16 %v4816
        %v4929 = vunpack.c.l.b16 %v4820
        %v4930 = vunpack.c.l.b16 %v4823
        %v4931 = vunpack.c.l.b16 %v4827
        %v4932 = vunpack.c.l.b16 %v4830
        %v4933 = vunpack.c.l.b16 %v4834
        %v4934 = vunpack.c.l.b16 %v4837
        %v4935 = vunpack.c.l.b16 %v4841
        %v4936 = vunpack.c.l.b16 %v4844
        %v4937 = vunpack.c.l.b16 %v4848
        %v4938 = vunpack.c.l.b16 %v4851
        %v4939 = vunpack.c.l.b16 %v4855
        %v4940 = vunpack.c.l.b16 %v4858
        %v4941 = vunpack.c.l.b16 %v4862
        %v4942 = vunpack.c.l.b16 %v4865
        %v4943 = vunpack.c.l.b16 %v4869
        %v4944 = vunpack.c.l.b16 %v4872
        %v4945 = vunpack.c.l.b16 %v4876
        %v4946 = vunpack.c.l.b16 %v4879
        %v4947 = vunpack.c.l.b16 %v4883
        %v4948 = vunpack.c.l.b16 %v4886
        %v4949 = vunpack.c.l.b16 %v4890
        %v4950 = vunpack.c.l.b16 %v4893
        %v4951 = vunpack.c.l.b16 %v4897
        %v4952 = vunpack.c.l.b16 %v4900
        %v4953 = vunpack.c.l.b16 %v4904
        %v4954 = vunpack.c.l.b16 %v4907
        %v4955 = vunpack.c.l.b16 %v4911
        %v4956 = vunpack.c.l.b16 %v4914
        %v4957 = vunpack.c.l.b16 %v4918
        %v4958 = vunpack.c.l.b16 %v4921
        %v4959 = vpack.c.b16 %v4928, %v4927
        %v4960 = vpack.c.b16 %v4930, %v4929
        %v4961 = vpack.c.b16 %v4932, %v4931
        %v4962 = vpack.c.b16 %v4934, %v4933
        %v4963 = vpack.c.b16 %v4936, %v4935
        %v4964 = vpack.c.b16 %v4938, %v4937
        %v4965 = vpack.c.b16 %v4940, %v4939
        %v4966 = vpack.c.b16 %v4942, %v4941
        %v4967 = vpack.c.b16 %v4944, %v4943
        %v4968 = vpack.c.b16 %v4946, %v4945
        %v4969 = vpack.c.b16 %v4948, %v4947
        %v4970 = vpack.c.b16 %v4950, %v4949
        %v4971 = vpack.c.b16 %v4952, %v4951
        %v4972 = vpack.c.b16 %v4954, %v4953
        %v4973 = vpack.c.b16 %v4956, %v4955
        %v4974 = vpack.c.b16 %v4958, %v4957
        %v4979 = vunpack.c.l.b16 %v4923
        %v4980 = vunpack.c.l.b16 %v4924
        %v4981 = vunpack.c.l.b16 %v4925
        %v4982 = vunpack.c.l.b16 %v4926
        %v4983 = vpack.c.b16 %v4980, %v4979
        %v4984 = vpack.c.b16 %v4982, %v4981
        %v4988 = vsel %vm1066, %v4959, 0
        %v4991 = vsel %vm1066, %v4960, 0
        %v4994 = vsel %vm1066, %v4961, 0
        %v4997 = vsel %vm1066, %v4962, 0
        %v5000 = vsel %vm1066, %v4963, 0
        %v5003 = vsel %vm1066, %v4964, 0
        %v5006 = vsel %vm1066, %v4965, 0
        %v5009 = vsel %vm1066, %v4966, 0
        %v5012 = vsel %vm1066, %v4967, 0
        %v5015 = vsel %vm1066, %v4968, 0
        %v5018 = vsel %vm1066, %v4969, 0
        %v5021 = vsel %vm1066, %v4970, 0
        %v5024 = vsel %vm1066, %v4971, 0
        %v5027 = vsel %vm1066, %v4972, 0
        %v5030 = vsel %vm1066, %v4973, 0
        %v5033 = vsel %vm1066, %v4974, 0
        %5035 = vmatprep.subr.bf16.mxu0 0
        %5036 = vmatpush1.bf16.msra.mxu0 %v4983
        %5037 = vmatprep.subr.bf16.mxu0 0
        %5038 = vmatpush1.bf16.msra.mxu0 %v4984
        %5039 = vmatprep.subr.bf16.mxu0 0
        %5040 = vmatpush1.bf16.msra.mxu0 0
        %5041 = vmatprep.subr.bf16.mxu0 0
        %5042 = vmatpush1.bf16.msra.mxu0 0
        %5043 = vmatprep.subr.bf16.mxu0 0
        %5044 = vmatpush1.bf16.msra.mxu0 0
        %5045 = vmatprep.subr.bf16.mxu0 0
        %5046 = vmatpush1.bf16.msra.mxu0 0
        %5047 = vmatprep.subr.bf16.mxu0 0
        %5048 = vmatpush1.bf16.msra.mxu0 0
        %5049 = vmatprep.subr.bf16.mxu0 0
        %5050 = vmatpush1.bf16.msra.mxu0 0
        %5051 = vmatprep.subr.bf16.mxu0 0
        %5052 = vmatpush1.bf16.msra.mxu0 0
        %5053 = vmatprep.subr.bf16.mxu0 0
        %5054 = vmatpush1.bf16.msra.mxu0 0
        %5055 = vmatprep.subr.bf16.mxu0 0
        %5056 = vmatpush1.bf16.msra.mxu0 0
        %5057 = vmatprep.subr.bf16.mxu0 0
        %5058 = vmatpush1.bf16.msra.mxu0 0
        %5059 = vmatprep.subr.bf16.mxu0 0
        %5060 = vmatpush1.bf16.msra.mxu0 0
        %5061 = vmatprep.subr.bf16.mxu0 0
        %5062 = vmatpush1.bf16.msra.mxu0 0
        %5063 = vmatprep.subr.bf16.mxu0 0
        %5064 = vmatpush1.bf16.msra.mxu0 0
        %5065 = vmatprep.subr.bf16.mxu0 0
        %5066 = vmatpush1.bf16.msra.mxu0 0
        %5067 = vmatprep.mubr.bf16.mxu0 0
        %5068 = vmatmul.mubr.bf16.gmra.mrb[0].mxu0 %v4988
        %v5069 = vpop.f32.mrb[0].mxu0
        %v5070 = vadd.f32 0.0, %v5069
        %v5071 = vpop.f32.mrb[0].mxu0
        %v5072 = vpop.f32.mrb[0].mxu0
        %v5073 = vadd.f32 0.0, %v5072
        %v5074 = vpop.f32.mrb[0].mxu0
        %5075 = vmatprep.mubr.bf16.mxu0 0
        %5076 = vmatmul.mubr.bf16.gmra.mrb[0].mxu0 %v4991
        %v5077 = vpop.f32.mrb[0].mxu0
        %v5078 = vadd.f32 0.0, %v5077
        %v5079 = vpop.f32.mrb[0].mxu0
        %v5080 = vpop.f32.mrb[0].mxu0
        %v5081 = vadd.f32 0.0, %v5080
        %v5082 = vpop.f32.mrb[0].mxu0
        %5083 = vmatprep.mubr.bf16.mxu0 0
        %5084 = vmatmul.mubr.bf16.gmra.mrb[0].mxu0 %v4994
        %v5085 = vpop.f32.mrb[0].mxu0
        %v5086 = vadd.f32 0.0, %v5085
        %v5087 = vpop.f32.mrb[0].mxu0
        %v5088 = vpop.f32.mrb[0].mxu0
        %v5089 = vadd.f32 0.0, %v5088
        %v5090 = vpop.f32.mrb[0].mxu0
        %5091 = vmatprep.mubr.bf16.mxu0 0
        %5092 = vmatmul.mubr.bf16.gmra.mrb[0].mxu0 %v4997
        %v5093 = vpop.f32.mrb[0].mxu0
        %v5094 = vadd.f32 0.0, %v5093
        %v5095 = vpop.f32.mrb[0].mxu0
        %v5096 = vpop.f32.mrb[0].mxu0
        %v5097 = vadd.f32 0.0, %v5096
        %v5098 = vpop.f32.mrb[0].mxu0
        %5099 = vmatprep.mubr.bf16.mxu0 0
        %5100 = vmatmul.mubr.bf16.gmra.mrb[0].mxu0 %v5000
        %v5101 = vpop.f32.mrb[0].mxu0
        %v5102 = vadd.f32 0.0, %v5101
        %v5103 = vpop.f32.mrb[0].mxu0
        %v5104 = vpop.f32.mrb[0].mxu0
        %v5105 = vadd.f32 0.0, %v5104
        %v5106 = vpop.f32.mrb[0].mxu0
        %5107 = vmatprep.mubr.bf16.mxu0 0
        %5108 = vmatmul.mubr.bf16.gmra.mrb[0].mxu0 %v5003
        %v5109 = vpop.f32.mrb[0].mxu0
        %v5110 = vadd.f32 0.0, %v5109
        %v5111 = vpop.f32.mrb[0].mxu0
        %v5112 = vpop.f32.mrb[0].mxu0
        %v5113 = vadd.f32 0.0, %v5112
        %v5114 = vpop.f32.mrb[0].mxu0
        %5115 = vmatprep.mubr.bf16.mxu0 0
        %5116 = vmatmul.mubr.bf16.gmra.mrb[0].mxu0 %v5006
        %v5117 = vpop.f32.mrb[0].mxu0
        %v5118 = vadd.f32 0.0, %v5117
        %v5119 = vpop.f32.mrb[0].mxu0
        %v5120 = vpop.f32.mrb[0].mxu0
        %v5121 = vadd.f32 0.0, %v5120
        %v5122 = vpop.f32.mrb[0].mxu0
        %5123 = vmatprep.mubr.bf16.mxu0 0
        %5124 = vmatmul.mubr.bf16.gmra.mrb[0].mxu0 %v5009
        %v5125 = vpop.f32.mrb[0].mxu0
        %v5126 = vadd.f32 0.0, %v5125
        %v5127 = vpop.f32.mrb[0].mxu0
        %v5128 = vpop.f32.mrb[0].mxu0
        %v5129 = vadd.f32 0.0, %v5128
        %v5130 = vpop.f32.mrb[0].mxu0
        %5131 = vmatprep.mubr.bf16.mxu0 0
        %5132 = vmatmul.mubr.bf16.gmra.mrb[0].mxu0 %v5012
        %v5133 = vpop.f32.mrb[0].mxu0
        %v5134 = vadd.f32 0.0, %v5133
        %v5135 = vpop.f32.mrb[0].mxu0
        %v5136 = vpop.f32.mrb[0].mxu0
        %v5137 = vadd.f32 0.0, %v5136
        %v5138 = vpop.f32.mrb[0].mxu0
        %5139 = vmatprep.mubr.bf16.mxu0 0
        %5140 = vmatmul.mubr.bf16.gmra.mrb[0].mxu0 %v5015
        %v5141 = vpop.f32.mrb[0].mxu0
        %v5142 = vadd.f32 0.0, %v5141
        %v5143 = vpop.f32.mrb[0].mxu0
        %v5144 = vpop.f32.mrb[0].mxu0
        %v5145 = vadd.f32 0.0, %v5144
        %v5146 = vpop.f32.mrb[0].mxu0
        %5147 = vmatprep.mubr.bf16.mxu0 0
        %5148 = vmatmul.mubr.bf16.gmra.mrb[0].mxu0 %v5018
        %v5149 = vpop.f32.mrb[0].mxu0
        %v5150 = vadd.f32 0.0, %v5149
        %v5151 = vpop.f32.mrb[0].mxu0
        %v5152 = vpop.f32.mrb[0].mxu0
        %v5153 = vadd.f32 0.0, %v5152
        %v5154 = vpop.f32.mrb[0].mxu0
        %5155 = vmatprep.mubr.bf16.mxu0 0
        %5156 = vmatmul.mubr.bf16.gmra.mrb[0].mxu0 %v5021
        %v5157 = vpop.f32.mrb[0].mxu0
        %v5158 = vadd.f32 0.0, %v5157
        %v5159 = vpop.f32.mrb[0].mxu0
        %v5160 = vpop.f32.mrb[0].mxu0
        %v5161 = vadd.f32 0.0, %v5160
        %v5162 = vpop.f32.mrb[0].mxu0
        %5163 = vmatprep.mubr.bf16.mxu0 0
        %5164 = vmatmul.mubr.bf16.gmra.mrb[0].mxu0 %v5024
        %v5165 = vpop.f32.mrb[0].mxu0
        %v5166 = vadd.f32 0.0, %v5165
        %v5167 = vpop.f32.mrb[0].mxu0
        %v5168 = vpop.f32.mrb[0].mxu0
        %v5169 = vadd.f32 0.0, %v5168
        %v5170 = vpop.f32.mrb[0].mxu0
        %5171 = vmatprep.mubr.bf16.mxu0 0
        %5172 = vmatmul.mubr.bf16.gmra.mrb[0].mxu0 %v5027
        %v5173 = vpop.f32.mrb[0].mxu0
        %v5174 = vadd.f32 0.0, %v5173
        %v5175 = vpop.f32.mrb[0].mxu0
        %v5176 = vpop.f32.mrb[0].mxu0
        %v5177 = vadd.f32 0.0, %v5176
        %v5178 = vpop.f32.mrb[0].mxu0
        %5179 = vmatprep.mubr.bf16.mxu0 0
        %5180 = vmatmul.mubr.bf16.gmra.mrb[0].mxu0 %v5030
        %v5181 = vpop.f32.mrb[0].mxu0
        %v5182 = vadd.f32 0.0, %v5181
        %v5183 = vpop.f32.mrb[0].mxu0
        %v5184 = vpop.f32.mrb[0].mxu0
        %v5185 = vadd.f32 0.0, %v5184
        %v5186 = vpop.f32.mrb[0].mxu0
        %5187 = vmatprep.mubr.bf16.mxu0 0
        %5188 = vmatmul.mubr.bf16.gmra.mrb[0].mxu0 %v5033
        %v5189 = vpop.f32.mrb[0].mxu0
        %v5190 = vadd.f32 0.0, %v5189
        %v5191 = vpop.f32.mrb[0].mxu0
        %v5192 = vpop.f32.mrb[0].mxu0
        %v5193 = vadd.f32 0.0, %v5192
        %v5194 = vpop.f32.mrb[0].mxu0
        %5195 = vdwg.mxu0
        %v5196 = vadd.f32 %v4714, %v5070
        %v5197 = vadd.f32 %v4715, %v5073
        %v5198 = vadd.f32 %v4716, %v5078
        %v5199 = vadd.f32 %v4717, %v5081
        %v5200 = vadd.f32 %v4718, %v5086
        %v5201 = vadd.f32 %v4719, %v5089
        %v5202 = vadd.f32 %v4720, %v5094
        %v5203 = vadd.f32 %v4721, %v5097
        %v5204 = vadd.f32 %v4722, %v5102
        %v5205 = vadd.f32 %v4723, %v5105
        %v5206 = vadd.f32 %v4724, %v5110
        %v5207 = vadd.f32 %v4725, %v5113
        %v5208 = vadd.f32 %v4726, %v5118
        %v5209 = vadd.f32 %v4727, %v5121
        %v5210 = vadd.f32 %v4728, %v5126
        %v5211 = vadd.f32 %v4729, %v5129
        %v5212 = vadd.f32 %v4730, %v5134
        %v5213 = vadd.f32 %v4731, %v5137
        %v5214 = vadd.f32 %v4732, %v5142
        %v5215 = vadd.f32 %v4733, %v5145
        %v5216 = vadd.f32 %v4734, %v5150
        %v5217 = vadd.f32 %v4735, %v5153
        %v5218 = vadd.f32 %v4736, %v5158
        %v5219 = vadd.f32 %v4737, %v5161
        %v5220 = vadd.f32 %v4738, %v5166
        %v5221 = vadd.f32 %v4739, %v5169
        %v5222 = vadd.f32 %v4740, %v5174
        %v5223 = vadd.f32 %v4741, %v5177
        %v5224 = vadd.f32 %v4742, %v5182
        %v5225 = vadd.f32 %v4743, %v5185
        %v5226 = vadd.f32 %v4744, %v5190
        %v5227 = vadd.f32 %v4745, %v5193
        %v5228 = vld [vmem:[#allocation11] sm:$0x1]
        %v5230 = vlaneseq
        %v5231 = vshrl.u32 %v5230, 7
        %v5232 = vsub.s32 0, %v5231
        %v5233 = vrot.slane %v5228, %v5232
        %v5235 = vadd.f32 %v5196, %v5233
        %v5236 = vadd.f32 %v5197, %v5233
        %v5237 = vadd.f32 %v5198, %v5233
        %v5238 = vadd.f32 %v5199, %v5233
        %v5239 = vadd.f32 %v5200, %v5233
        %v5240 = vadd.f32 %v5201, %v5233
        %v5241 = vadd.f32 %v5202, %v5233
        %v5242 = vadd.f32 %v5203, %v5233
        %v5243 = vadd.f32 %v5204, %v5233
        %v5244 = vadd.f32 %v5205, %v5233
        %v5245 = vadd.f32 %v5206, %v5233
        %v5246 = vadd.f32 %v5207, %v5233
        %v5247 = vadd.f32 %v5208, %v5233
        %v5248 = vadd.f32 %v5209, %v5233
        %v5249 = vadd.f32 %v5210, %v5233
        %v5250 = vadd.f32 %v5211, %v5233
        %v5251 = vadd.f32 %v5212, %v5233
        %v5252 = vadd.f32 %v5213, %v5233
        %v5253 = vadd.f32 %v5214, %v5233
        %v5254 = vadd.f32 %v5215, %v5233
        %v5255 = vadd.f32 %v5216, %v5233
        %v5256 = vadd.f32 %v5217, %v5233
        %v5257 = vadd.f32 %v5218, %v5233
        %v5258 = vadd.f32 %v5219, %v5233
        %v5259 = vadd.f32 %v5220, %v5233
        %v5260 = vadd.f32 %v5221, %v5233
        %v5261 = vadd.f32 %v5222, %v5233
        %v5262 = vadd.f32 %v5223, %v5233
        %v5263 = vadd.f32 %v5224, %v5233
        %v5264 = vadd.f32 %v5225, %v5233
        %v5265 = vadd.f32 %v5226, %v5233
        %v5266 = vadd.f32 %v5227, %v5233
        %v5267 = vpack.c.bf16 %v5236, %v5235
        %v5268 = vpack.c.bf16 %v5238, %v5237
        %v5269 = vpack.c.bf16 %v5240, %v5239
        %v5270 = vpack.c.bf16 %v5242, %v5241
        %v5271 = vpack.c.bf16 %v5244, %v5243
        %v5272 = vpack.c.bf16 %v5246, %v5245
        %v5273 = vpack.c.bf16 %v5248, %v5247
        %v5274 = vpack.c.bf16 %v5250, %v5249
        %v5275 = vpack.c.bf16 %v5252, %v5251
        %v5276 = vpack.c.bf16 %v5254, %v5253
        %v5277 = vpack.c.bf16 %v5256, %v5255
        %v5278 = vpack.c.bf16 %v5258, %v5257
        %v5279 = vpack.c.bf16 %v5260, %v5259
        %v5280 = vpack.c.bf16 %v5262, %v5261
        %v5281 = vpack.c.bf16 %v5264, %v5263
        %v5282 = vpack.c.bf16 %v5266, %v5265
        %v5299 = vunpack.c.l.b16 %v5267
        %v5300 = vunpack.c.h.b16 %v5267
        %v5301 = vunpack.c.l.b16 %v5268
        %v5302 = vunpack.c.h.b16 %v5268
        %v5303 = vunpack.c.l.b16 %v5269
        %v5304 = vunpack.c.h.b16 %v5269
        %v5305 = vunpack.c.l.b16 %v5270
        %v5306 = vunpack.c.h.b16 %v5270
        %v5307 = vunpack.c.l.b16 %v5271
        %v5308 = vunpack.c.h.b16 %v5271
        %v5309 = vunpack.c.l.b16 %v5272
        %v5310 = vunpack.c.h.b16 %v5272
        %v5311 = vunpack.c.l.b16 %v5273
        %v5312 = vunpack.c.h.b16 %v5273
        %v5313 = vunpack.c.l.b16 %v5274
        %v5314 = vunpack.c.h.b16 %v5274
        %v5315 = vunpack.c.l.b16 %v5275
        %v5316 = vunpack.c.h.b16 %v5275
        %v5317 = vunpack.c.l.b16 %v5276
        %v5318 = vunpack.c.h.b16 %v5276
        %v5319 = vunpack.c.l.b16 %v5277
        %v5320 = vunpack.c.h.b16 %v5277
        %v5321 = vunpack.c.l.b16 %v5278
        %v5322 = vunpack.c.h.b16 %v5278
        %v5323 = vunpack.c.l.b16 %v5279
        %v5324 = vunpack.c.h.b16 %v5279
        %v5325 = vunpack.c.l.b16 %v5280
        %v5326 = vunpack.c.h.b16 %v5280
        %v5327 = vunpack.c.l.b16 %v5281
        %v5328 = vunpack.c.h.b16 %v5281
        %v5329 = vunpack.c.l.b16 %v5282
        %v5330 = vunpack.c.h.b16 %v5282
        %v5331 = vpack.c.b16 %v5299, %v5299
        %v5332 = vpack.c.b16 %v5300, %v5300
        %v5333 = vpack.c.b16 %v5301, %v5301
        %v5334 = vpack.c.b16 %v5302, %v5302
        %v5335 = vpack.c.b16 %v5303, %v5303
        %v5336 = vpack.c.b16 %v5304, %v5304
        %v5337 = vpack.c.b16 %v5305, %v5305
        %v5338 = vpack.c.b16 %v5306, %v5306
        %v5339 = vpack.c.b16 %v5307, %v5307
        %v5340 = vpack.c.b16 %v5308, %v5308
        %v5341 = vpack.c.b16 %v5309, %v5309
        %v5342 = vpack.c.b16 %v5310, %v5310
        %v5343 = vpack.c.b16 %v5311, %v5311
        %v5344 = vpack.c.b16 %v5312, %v5312
        %v5345 = vpack.c.b16 %v5313, %v5313
        %v5346 = vpack.c.b16 %v5314, %v5314
        %v5347 = vpack.c.b16 %v5315, %v5315
        %v5348 = vpack.c.b16 %v5316, %v5316
        %v5349 = vpack.c.b16 %v5317, %v5317
        %v5350 = vpack.c.b16 %v5318, %v5318
        %v5351 = vpack.c.b16 %v5319, %v5319
        %v5352 = vpack.c.b16 %v5320, %v5320
        %v5353 = vpack.c.b16 %v5321, %v5321
        %v5354 = vpack.c.b16 %v5322, %v5322
        %v5355 = vpack.c.b16 %v5323, %v5323
        %v5356 = vpack.c.b16 %v5324, %v5324
        %v5357 = vpack.c.b16 %v5325, %v5325
        %v5358 = vpack.c.b16 %v5326, %v5326
        %v5359 = vpack.c.b16 %v5327, %v5327
        %v5360 = vpack.c.b16 %v5328, %v5328
        %v5361 = vpack.c.b16 %v5329, %v5329
        %v5362 = vpack.c.b16 %v5330, %v5330
        %5395 = vst.msk [vmem:[%s429] sm:$0xf] %vm498, %v5331
        %5396 = vst.msk [vmem:[%s429 + $0x4] sm:$0xf] %vm498, %v5332
        %5397 = vst.msk [vmem:[%s429 + $0x8] sm:$0xf] %vm498, %v5333
        %5398 = vst.msk [vmem:[%s429 + $0xc] sm:$0xf] %vm498, %v5334
        %5399 = vst.msk [vmem:[%s429 + $0x10] sm:$0xf] %vm498, %v5335
        %5400 = vst.msk [vmem:[%s429 + $0x14] sm:$0xf] %vm498, %v5336
        %5401 = vst.msk [vmem:[%s429 + $0x18] sm:$0xf] %vm498, %v5337
        %5402 = vst.msk [vmem:[%s429 + $0x1c] sm:$0xf] %vm498, %v5338
        %5403 = vst.msk [vmem:[%s429 + $0x20] sm:$0xf] %vm498, %v5339
        %5404 = vst.msk [vmem:[%s429 + $0x24] sm:$0xf] %vm498, %v5340
        %5405 = vst.msk [vmem:[%s429 + $0x28] sm:$0xf] %vm498, %v5341
        %5406 = vst.msk [vmem:[%s429 + $0x2c] sm:$0xf] %vm498, %v5342
        %5407 = vst.msk [vmem:[%s429 + $0x30] sm:$0xf] %vm498, %v5343
        %5408 = vst.msk [vmem:[%s429 + $0x34] sm:$0xf] %vm498, %v5344
        %5409 = vst.msk [vmem:[%s429 + $0x38] sm:$0xf] %vm498, %v5345
        %5410 = vst.msk [vmem:[%s429 + $0x3c] sm:$0xf] %vm498, %v5346
        %5411 = vst.msk [vmem:[%s429 + $0x40] sm:$0xf] %vm498, %v5347
        %5412 = vst.msk [vmem:[%s429 + $0x44] sm:$0xf] %vm498, %v5348
        %5413 = vst.msk [vmem:[%s429 + $0x48] sm:$0xf] %vm498, %v5349
        %5414 = vst.msk [vmem:[%s429 + $0x4c] sm:$0xf] %vm498, %v5350
        %5415 = vst.msk [vmem:[%s429 + $0x50] sm:$0xf] %vm498, %v5351
        %5416 = vst.msk [vmem:[%s429 + $0x54] sm:$0xf] %vm498, %v5352
        %5417 = vst.msk [vmem:[%s429 + $0x58] sm:$0xf] %vm498, %v5353
        %5418 = vst.msk [vmem:[%s429 + $0x5c] sm:$0xf] %vm498, %v5354
        %5419 = vst.msk [vmem:[%s429 + $0x60] sm:$0xf] %vm498, %v5355
        %5420 = vst.msk [vmem:[%s429 + $0x64] sm:$0xf] %vm498, %v5356
        %5421 = vst.msk [vmem:[%s429 + $0x68] sm:$0xf] %vm498, %v5357
        %5422 = vst.msk [vmem:[%s429 + $0x6c] sm:$0xf] %vm498, %v5358
        %5423 = vst.msk [vmem:[%s429 + $0x70] sm:$0xf] %vm498, %v5359
        %5424 = vst.msk [vmem:[%s429 + $0x74] sm:$0xf] %vm498, %v5360
        %5425 = vst.msk [vmem:[%s429 + $0x78] sm:$0xf] %vm498, %v5361
        %5426 = vst.msk [vmem:[%s429 + $0x7c] sm:$0xf] %vm498, %v5362
        %v5427 = vsel %vm1066, %v5235, 0.0
        %v5428 = vsel %vm1066, %v5236, 0.0
        %v5429 = vadd.f32 %v5427, %v5428
        %v5430 = vsel %vm1066, %v5237, 0.0
        %v5431 = vadd.f32 %v5429, %v5430
        %v5432 = vsel %vm1066, %v5238, 0.0
        %v5433 = vadd.f32 %v5431, %v5432
        %v5434 = vsel %vm1066, %v5239, 0.0
        %v5435 = vadd.f32 %v5433, %v5434
        %v5436 = vsel %vm1066, %v5240, 0.0
        %v5437 = vadd.f32 %v5435, %v5436
        %v5438 = vsel %vm1066, %v5241, 0.0
        %v5439 = vadd.f32 %v5437, %v5438
        %v5440 = vsel %vm1066, %v5242, 0.0
        %v5441 = vadd.f32 %v5439, %v5440
        %v5442 = vsel %vm1066, %v5243, 0.0
        %v5443 = vadd.f32 %v5441, %v5442
        %v5444 = vsel %vm1066, %v5244, 0.0
        %v5445 = vadd.f32 %v5443, %v5444
        %v5446 = vsel %vm1066, %v5245, 0.0
        %v5447 = vadd.f32 %v5445, %v5446
        %v5448 = vsel %vm1066, %v5246, 0.0
        %v5449 = vadd.f32 %v5447, %v5448
        %v5450 = vsel %vm1066, %v5247, 0.0
        %v5451 = vadd.f32 %v5449, %v5450
        %v5452 = vsel %vm1066, %v5248, 0.0
        %v5453 = vadd.f32 %v5451, %v5452
        %v5454 = vsel %vm1066, %v5249, 0.0
        %v5455 = vadd.f32 %v5453, %v5454
        %v5456 = vsel %vm1066, %v5250, 0.0
        %v5457 = vadd.f32 %v5455, %v5456
        %v5458 = vsel %vm1066, %v5251, 0.0
        %v5459 = vadd.f32 %v5457, %v5458
        %v5460 = vsel %vm1066, %v5252, 0.0
        %v5461 = vadd.f32 %v5459, %v5460
        %v5462 = vsel %vm1066, %v5253, 0.0
        %v5463 = vadd.f32 %v5461, %v5462
        %v5464 = vsel %vm1066, %v5254, 0.0
        %v5465 = vadd.f32 %v5463, %v5464
        %v5466 = vsel %vm1066, %v5255, 0.0
        %v5467 = vadd.f32 %v5465, %v5466
        %v5468 = vsel %vm1066, %v5256, 0.0
        %v5469 = vadd.f32 %v5467, %v5468
        %v5470 = vsel %vm1066, %v5257, 0.0
        %v5471 = vadd.f32 %v5469, %v5470
        %v5472 = vsel %vm1066, %v5258, 0.0
        %v5473 = vadd.f32 %v5471, %v5472
        %v5474 = vsel %vm1066, %v5259, 0.0
        %v5475 = vadd.f32 %v5473, %v5474
        %v5476 = vsel %vm1066, %v5260, 0.0
        %v5477 = vadd.f32 %v5475, %v5476
        %v5478 = vsel %vm1066, %v5261, 0.0
        %v5479 = vadd.f32 %v5477, %v5478
        %v5480 = vsel %vm1066, %v5262, 0.0
        %v5481 = vadd.f32 %v5479, %v5480
        %v5482 = vsel %vm1066, %v5263, 0.0
        %v5483 = vadd.f32 %v5481, %v5482
        %v5484 = vsel %vm1066, %v5264, 0.0
        %v5485 = vadd.f32 %v5483, %v5484
        %v5486 = vsel %vm1066, %v5265, 0.0
        %v5487 = vadd.f32 %v5485, %v5486
        %v5488 = vsel %vm1066, %v5266, 0.0
        %v5489 = vadd.f32 %v5487, %v5488
        %v5490 = vrot.slane %v5489, 4
        %v5491 = vadd.f32 %v5489, %v5490
        %v5492 = vrot.slane %v5491, 2
        %v5493 = vadd.f32 %v5491, %v5492
        %v5494 = vrot.slane %v5493, 1
        %v5495 = vadd.f32 %v5493, %v5494
        %5496 = vst.msk [vmem:[%s436] sm:$0x1] %vm501, %v5495
        %v5497 = vsel %vm1066, %v5235, -inf
        %v5498 = vsel %vm1066, %v5236, -inf
        %v5499 = vsel %vm1066, %v5237, -inf
        %v5500 = vsel %vm1066, %v5238, -inf
        %v5501 = vsel %vm1066, %v5239, -inf
        %v5502 = vmax.f32 %v5497, %v5501
        %v5503 = vsel %vm1066, %v5240, -inf
        %v5504 = vmax.f32 %v5498, %v5503
        %v5505 = vsel %vm1066, %v5241, -inf
        %v5506 = vmax.f32 %v5499, %v5505
        %v5507 = vsel %vm1066, %v5242, -inf
        %v5508 = vmax.f32 %v5500, %v5507
        %v5509 = vsel %vm1066, %v5243, -inf
        %v5510 = vmax.f32 %v5502, %v5509
        %v5511 = vsel %vm1066, %v5244, -inf
        %v5512 = vmax.f32 %v5504, %v5511
        %v5513 = vsel %vm1066, %v5245, -inf
        %v5514 = vmax.f32 %v5506, %v5513
        %v5515 = vsel %vm1066, %v5246, -inf
        %v5516 = vmax.f32 %v5508, %v5515
        %v5517 = vsel %vm1066, %v5247, -inf
        %v5518 = vmax.f32 %v5510, %v5517
        %v5519 = vsel %vm1066, %v5248, -inf
        %v5520 = vmax.f32 %v5512, %v5519
        %v5521 = vsel %vm1066, %v5249, -inf
        %v5522 = vmax.f32 %v5514, %v5521
        %v5523 = vsel %vm1066, %v5250, -inf
        %v5524 = vmax.f32 %v5516, %v5523
        %v5525 = vsel %vm1066, %v5251, -inf
        %v5526 = vmax.f32 %v5518, %v5525
        %v5527 = vsel %vm1066, %v5252, -inf
        %v5528 = vmax.f32 %v5520, %v5527
        %v5529 = vsel %vm1066, %v5253, -inf
        %v5530 = vmax.f32 %v5522, %v5529
        %v5531 = vsel %vm1066, %v5254, -inf
        %v5532 = vmax.f32 %v5524, %v5531
        %v5533 = vsel %vm1066, %v5255, -inf
        %v5534 = vmax.f32 %v5526, %v5533
        %v5535 = vsel %vm1066, %v5256, -inf
        %v5536 = vmax.f32 %v5528, %v5535
        %v5537 = vsel %vm1066, %v5257, -inf
        %v5538 = vmax.f32 %v5530, %v5537
        %v5539 = vsel %vm1066, %v5258, -inf
        %v5540 = vmax.f32 %v5532, %v5539
        %v5541 = vsel %vm1066, %v5259, -inf
        %v5542 = vmax.f32 %v5534, %v5541
        %v5543 = vsel %vm1066, %v5260, -inf
        %v5544 = vmax.f32 %v5536, %v5543
        %v5545 = vsel %vm1066, %v5261, -inf
        %v5546 = vmax.f32 %v5538, %v5545
        %v5547 = vsel %vm1066, %v5262, -inf
        %v5548 = vmax.f32 %v5540, %v5547
        %v5549 = vsel %vm1066, %v5263, -inf
        %v5550 = vmax.f32 %v5542, %v5549
        %v5551 = vsel %vm1066, %v5264, -inf
        %v5552 = vmax.f32 %v5544, %v5551
        %v5553 = vsel %vm1066, %v5265, -inf
        %v5554 = vmax.f32 %v5546, %v5553
        %v5555 = vsel %vm1066, %v5266, -inf
        %v5556 = vmax.f32 %v5548, %v5555
        %v5557 = vmax.f32 %v5550, %v5552
        %v5558 = vmax.f32 %v5554, %v5556
        %v5559 = vmax.f32 %v5557, %v5558
        %v5560 = vrot.slane %v5559, 4
        %v5561 = vmax.f32 %v5559, %v5560
        %v5562 = vrot.slane %v5561, 2
        %v5563 = vmax.f32 %v5561, %v5562
        %v5564 = vrot.slane %v5563, 1
        %v5565 = vmax.f32 %v5563, %v5564
        %5566 = vst.msk [vmem:[%s436 + $0x1] sm:$0x1] %vm501, %v5565
        %s5567 = sand.u32 %s189, 1
        %s5568 = scalar_lea.sflag [#allocation5], %s5567
        %s5569 = sand.u32 %s189, 1
        %s5570 = smul.addr %s5569, 128
        %s5571 = scalar_lea.vmem [#allocation12], %s5570
        %s5572 = sand.u32 %s217, 1
        %s5573 = scalar_lea.sflag [#allocation14], %s5572
        %s5574 = sand.u32 %s217, 1
        %s5575 = smul.addr %s5574, 2
        %s5576 = scalar_lea.vmem [#allocation13], %s5575
        // Predicated region
        $region61: #{residual_block_forward.4} parent=39 // pred_check
          %p5577 = pneg %p199
        $region62: #{residual_block_forward.4} parent=39 // pred_check_branch
          %5579 = sbr.rel (%p5577) target = $region64
        $region63: #{residual_block_forward.4} parent=39 // pred_region
          %s5580 = smul.u32 32, %s36
          %s5582 = ssub.s32 2048, 2048
          %5583 = vsyncadd %s5568, %s5582
          %s5584 = smul.addr %s35, 32
          %s5585 = sadd.s32 %s5580, %s5584
          %s5586 = smul.addr %s5585, 64
          %s5587 = scalar_lea.hbm %s5, %s5586
          %s5588 = sshll.u32 %s5571, 4
          %s5589 = int_to_ptr.vmem [resolvable:$true] %s5588
          %5594 = dma.vmem_to_hbm [thread:$0]  %s5589, 2048, %s5587, %s5568, 64, 64, 4
        $region64: #{residual_block_forward.4} parent=39 // pred_fallthru
          _
        // Predicated region
        $region65: #{residual_block_forward.4} parent=39 // pred_check
          %p5595 = pneg %p227
        $region66: #{residual_block_forward.4} parent=39 // pred_check_branch
          %5597 = sbr.rel (%p5595) target = $region68
        $region67: #{residual_block_forward.4} parent=39 // pred_region
          %s5599 = ssub.s32 32, 32
          %5600 = vsyncadd %s5573, %s5599
          %s5601 = sadd.s32 %s36, %s35
          %s5602 = smul.addr %s5601, 32
          %s5603 = scalar_lea.hbm %s6, %s5602
          %s5605 = sshll.u32 %s5576, 4
          %s5606 = int_to_ptr.vmem [resolvable:$true] %s5605
          %5608 = dma.vmem_to_hbm [thread:$0]  %s5606, 32, %s5603, %s5573
        $region68: #{residual_block_forward.4} parent=39 // pred_fallthru
          _
      $region40: #{residual_block_forward.4} parent=5 // pred_fallthru
        _
      %p5609 = scmp.le.s32.totalorder 2, %s26
      // Predicated region
      $region69: #{residual_block_forward.4} parent=5 // pred_check
        %p5610 = pneg %p5609
      $region70: #{residual_block_forward.4} parent=5 // pred_check_branch
        %5612 = sbr.rel (%p5610) target = $region72
      $region71: #{residual_block_forward.4} parent=5 // pred_region
        %s5613 = ssub.s32 %s26, 2
        // Predicated region
        $region73: #{residual_block_forward.4} parent=71 // pred_check
          %p5614 = pneg %p205
        $region74: #{residual_block_forward.4} parent=71 // pred_check_branch
          %5616 = sbr.rel (%p5614) target = $region76
        $region75: #{residual_block_forward.4} parent=71 // pred_region
          %s5617 = sand.u32 %s190, 1
          %s5618 = scalar_lea.sflag [#allocation5], %s5617
          %s5619 = sand.u32 %s190, 1
          %s5620 = smul.addr %s5619, 128
          %s5621 = scalar_lea.vmem [#allocation12], %s5620
          %5622 = dma.done %s5618, 2048
        $region76: #{residual_block_forward.4} parent=71 // pred_fallthru
          _
        // Predicated region
        $region77: #{residual_block_forward.4} parent=71 // pred_check
          %p5623 = pneg %p233
        $region78: #{residual_block_forward.4} parent=71 // pred_check_branch
          %5625 = sbr.rel (%p5623) target = $region80
        $region79: #{residual_block_forward.4} parent=71 // pred_region
          %s5626 = sand.u32 %s218, 1
          %s5627 = scalar_lea.sflag [#allocation14], %s5626
          %s5628 = sand.u32 %s218, 1
          %s5629 = smul.addr %s5628, 2
          %s5630 = scalar_lea.vmem [#allocation13], %s5629
          %5631 = dma.done %s5627, 32
        $region80: #{residual_block_forward.4} parent=71 // pred_fallthru
          _
      $region72: #{residual_block_forward.4} parent=5 // pred_fallthru
        _
    $region6: #{residual_block_forward.4} parent=1 // loop_footer
      %s30 = sadd.s32 1, %s26
    $region7: #{residual_block_forward.4} parent=1 // loop_footer_branch
      %25 = sbr.rel target = $region3
    $region8: #{residual_block_forward.4} parent=1 // loop_exit
      _
    %5632 = vsyncpa [#allocation4], 1
    %s5633 = scalar_lea.sflag [#allocation4], 1
    %5634 = vsyncpa %s5633, 1
    %5635 = vsyncpa [#allocation7], 1
    %s5636 = scalar_lea.sflag [#allocation7], 1
    %5637 = vsyncpa %s5636, 1
    %5638 = vsyncpa [#allocation10], 1
    %5639 = vsyncpa [#allocation5], 1
    %s5640 = scalar_lea.sflag [#allocation5], 1
    %5641 = vsyncpa %s5640, 1
    %5642 = vsyncpa [#allocation14], 1
    %s5643 = scalar_lea.sflag [#allocation14], 1
    %5644 = vsyncpa %s5643, 1

</llo_original>
